<compile_context>
chip_gen: v7x
topology: tpu7x:2x2x1
jax: 0.10.0
libtpu: 0.0.40
codegen_flags: <defaults>
</compile_context>

<pallas_src>
import functools

import jax
import jax.numpy as jnp
from jax.experimental import pallas as pl
from jax.experimental.pallas import tpu as pltpu

BM = 256                       # row tile: fills the 256-wide MXU on v6e/v7x, fine on v5e
VMEM_LIMIT = 48 * 1024 * 1024  # explicit scoped-VMEM budget, under v7x's 64 MiB physical


def _round_up(x, m):
    return (x + m - 1) // m * m


def _pick_divisor(dim, candidates):
    for c in candidates:
        if dim % c == 0:
            return c
    return 128  # dim is always a multiple of 128 by construction


# ----------------------------- Pallas kernels -----------------------------

def _gemm_acc_kernel(x_ref, w_ref, b_ref, o_ref, acc_ref, *, relu):
    """acc += x@w (bf16 MXU, f32 acc); at k==last: out = act(acc + shift)."""
    @pl.when(pl.program_id(2) == 0)
    def _():
        acc_ref[...] = jnp.zeros_like(acc_ref)

    acc_ref[...] += jnp.dot(x_ref[...], w_ref[...],
                            preferred_element_type=jnp.float32)

    @pl.when(pl.program_id(2) == pl.num_programs(2) - 1)
    def _():
        out = acc_ref[...] + b_ref[...]
        if relu:
            out = jnp.maximum(out, 0.0)
        o_ref[...] = out.astype(o_ref.dtype)


def _gemm_acc_res_kernel(x_ref, w_ref, b_ref, r_ref, o_ref, acc_ref, *, relu):
    """Same as above but with a fused residual add before the activation."""
    @pl.when(pl.program_id(2) == 0)
    def _():
        acc_ref[...] = jnp.zeros_like(acc_ref)

    acc_ref[...] += jnp.dot(x_ref[...], w_ref[...],
                            preferred_element_type=jnp.float32)

    @pl.when(pl.program_id(2) == pl.num_programs(2) - 1)
    def _():
        out = acc_ref[...] + b_ref[...] + r_ref[...].astype(jnp.float32)
        if relu:
            out = jnp.maximum(out, 0.0)
        o_ref[...] = out.astype(o_ref.dtype)


def _maxpool_kernel(x_ref, o_ref):
    acc = x_ref[0].astype(jnp.float32)
    for k in range(1, 9):
        acc = jnp.maximum(acc, x_ref[k].astype(jnp.float32))
    o_ref[...] = acc.astype(o_ref.dtype)


def _mlp_head_kernel(x_ref, w1_ref, b1_ref, w2_ref, b2_ref, w3_ref, b3_ref,
                     w4_ref, b4_ref, o_ref):
    # F.relu after flatten (inputs already >= 0 after the last block's ReLU).
    h = jnp.maximum(x_ref[...].astype(jnp.float32), 0.0).astype(jnp.bfloat16)
    h = jnp.dot(h, w1_ref[...], preferred_element_type=jnp.float32)
    h = jnp.maximum(h + b1_ref[...], 0.0).astype(jnp.bfloat16)
    h = jnp.dot(h, w2_ref[...], preferred_element_type=jnp.float32)
    h = jnp.maximum(h + b2_ref[...], 0.0).astype(jnp.bfloat16)
    h = jnp.dot(h, w3_ref[...], preferred_element_type=jnp.float32)
    h = jnp.maximum(h + b3_ref[...], 0.0).astype(jnp.bfloat16)
    h = jnp.dot(h, w4_ref[...], preferred_element_type=jnp.float32)
    o_ref[...] = h + b4_ref[...]


# ----------------------------- kernel wrappers -----------------------------

def gemm_bias_act(x, wp, shiftp, n_out, residual=None, relu=True,
                  out_dtype=jnp.bfloat16):
    """out = act( x @ wp + shift (+ residual) ); x:(M,K) -> (M, n_out).

    wp: (Kp, Np) bf16, BN-scale pre-folded, zero padded.  shiftp: (1, Np) f32.
    bf16 MXU matmul, f32 accumulation in a VMEM scratch, fused epilogue,
    M/N/K tiled grid (K innermost, "arbitrary").
    """
    M, K = x.shape
    Kp, Np = wp.shape

    bm = min(BM, _round_up(M, 8))
    Mp = _round_up(M, bm)
    bk = Kp if Kp <= 2048 else _pick_divisor(Kp, (2048, 1024, 512, 256))
    bn = Np if Np <= 512 else _pick_divisor(Np, (512, 256))

    xp = jnp.pad(x.astype(jnp.bfloat16), ((0, Mp - M), (0, Kp - K)))

    grid = (Mp // bm, Np // bn, Kp // bk)
    in_specs = [
        pl.BlockSpec((bm, bk), lambda i, j, k: (i, k)),
        pl.BlockSpec((bk, bn), lambda i, j, k: (k, j)),
        pl.BlockSpec((1, bn), lambda i, j, k: (0, j)),
    ]
    args = [xp, wp, shiftp]
    if residual is None:
        kernel = _gemm_acc_kernel
    else:
        rp = jnp.pad(residual.astype(jnp.bfloat16),
                     ((0, Mp - M), (0, Np - n_out)))
        in_specs.append(pl.BlockSpec((bm, bn), lambda i, j, k: (i, j)))
        args.append(rp)
        kernel = _gemm_acc_res_kernel

    out = pl.pallas_call(
        functools.partial(kernel, relu=relu),
        grid=grid,
        in_specs=in_specs,
        out_specs=pl.BlockSpec((bm, bn), lambda i, j, k: (i, j)),
        out_shape=jax.ShapeDtypeStruct((Mp, Np), out_dtype),
        scratch_shapes=[pltpu.VMEM((bm, bn), jnp.float32)],
        compiler_params=pltpu.CompilerParams(
            dimension_semantics=("parallel", "parallel", "arbitrary"),
            vmem_limit_bytes=VMEM_LIMIT),
    )(*args)
    return out[:M, :n_out]


def maxpool_3x3_s2_p1(x):
    """MaxPool2d(kernel=3, stride=2, padding=1) on NHWC, lane-dense layout."""
    n, h, w, c = x.shape
    oh = (h + 2 - 3) // 2 + 1
    ow = (w + 2 - 3) // 2 + 1
    xpad = jnp.pad(x, ((0, 0), (1, 1), (1, 1), (0, 0)),
                   constant_values=-jnp.inf)
    wins = []
    for kh in range(3):
        for kw in range(3):
            wins.append(xpad[:, kh:kh + 2 * (oh - 1) + 1:2,
                             kw:kw + 2 * (ow - 1) + 1:2, :])
    # Lane-dense: rows = n*oh, lanes = ow*c (128 for the test config).
    R, L = n * oh, ow * c
    stacked = jnp.stack(wins, axis=0).reshape(9, R, L)
    br = min(256, _round_up(R, 8))
    Rp = _round_up(R, br)
    if Rp != R:
        stacked = jnp.pad(stacked, ((0, 0), (0, Rp - R), (0, 0)))

    out = pl.pallas_call(
        _maxpool_kernel,
        grid=(Rp // br,),
        in_specs=[pl.BlockSpec((9, br, L), lambda i: (0, i, 0))],
        out_specs=pl.BlockSpec((br, L), lambda i: (i, 0)),
        out_shape=jax.ShapeDtypeStruct((Rp, L), x.dtype),
        compiler_params=pltpu.CompilerParams(
            dimension_semantics=("parallel",),
            vmem_limit_bytes=VMEM_LIMIT),
    )(stacked)
    return out[:R].reshape(n, oh, ow, c)


# ----------------------------- network glue -----------------------------

def _im2col(x, kh, kw, stride, pad):
    n, h, w, c = x.shape
    oh = (h + 2 * pad - kh) // stride + 1
    ow = (w + 2 * pad - kw) // stride + 1
    xp = jnp.pad(x, ((0, 0), (pad, pad), (pad, pad), (0, 0)))
    cols = []
    for i in range(kh):
        for j in range(kw):
            cols.append(xp[:, i:i + (oh - 1) * stride + 1:stride,
                           j:j + (ow - 1) * stride + 1:stride, :])
    # (n, oh, ow, c, kh*kw) -> (n*oh*ow, c*kh*kw), channel-major per patch,
    # matching the (ci, kh, kw) flattening of the prepared weight.
    patches = jnp.stack(cols, axis=-1).reshape(n * oh * ow, c * kh * kw)
    return patches, (n, oh, ow)


def conv_bn_act(x, cp, kh, kw, co, stride, pad, relu=True, residual=None):
    patches, (n, oh, ow) = _im2col(x, kh, kw, stride, pad)
    res = None if residual is None else residual.reshape(n * oh * ow, co)
    y = gemm_bias_act(patches, cp["wp"], cp["shift"], co,
                      residual=res, relu=relu)
    return y.reshape(n, oh, ow, co)


def block18(x, p, co, stride):
    out = conv_bn_act(x, p["conv1"], 3, 3, co, stride=stride, pad=1, relu=True)
    if "down_conv" in p:
        iden = conv_bn_act(x, p["down_conv"], 1, 1, co, stride=stride, pad=0,
                           relu=False)
    else:
        iden = x
    # conv2 + bn2 + residual add + relu fused in one Pallas GEMM epilogue
    out = conv_bn_act(out, p["conv2"], 3, 3, co, stride=1, pad=1, relu=True,
                      residual=iden)
    return out


def resnet_layer(x, p, co, stride):
    x = block18(x, p["block0"], co, stride)
    x = block18(x, p["block1"], co, 1)
    return x


def mlp_head(x, prep, out_dims):
    layers = [(prep["fc1"], out_dims[0]), (prep["fc2"], out_dims[1]),
              (prep["fc3"], out_dims[2]), (prep["output"], out_dims[3])]
    B, F = x.shape
    w_bytes = sum(l["wp"].shape[0] * l["wp"].shape[1] * 2 for l, _ in layers)

    if w_bytes <= 8 * 1024 * 1024 and B <= 256:
        # Whole 4-layer head fused in a single VMEM-resident pallas_call.
        Bp = _round_up(B, 8)
        K1p = layers[0][0]["wp"].shape[0]
        N4p = layers[3][0]["wp"].shape[1]
        xp = jnp.pad(x.astype(jnp.bfloat16), ((0, Bp - B), (0, K1p - F)))
        args = [xp]
        in_specs = [pl.BlockSpec((Bp, K1p), lambda i: (0, 0))]
        for l, _ in layers:
            args += [l["wp"], l["shift"]]
            in_specs += [pl.BlockSpec(l["wp"].shape, lambda i: (0, 0)),
                         pl.BlockSpec(l["shift"].shape, lambda i: (0, 0))]
        out = pl.pallas_call(
            _mlp_head_kernel,
            grid=(1,),
            in_specs=in_specs,
            out_specs=pl.BlockSpec((Bp, N4p), lambda i: (0, 0)),
            out_shape=jax.ShapeDtypeStruct((Bp, N4p), jnp.float32),
            compiler_params=pltpu.CompilerParams(vmem_limit_bytes=VMEM_LIMIT),
        )(*args)
        return out[:B, :out_dims[3]]

    # Fallback for large heads (e.g. the full-size 122880-wide fc1): tiled GEMMs.
    h = jnp.maximum(x, 0.0)
    h = gemm_bias_act(h, layers[0][0]["wp"], layers[0][0]["shift"], out_dims[0], relu=True)
    h = gemm_bias_act(h, layers[1][0]["wp"], layers[1][0]["shift"], out_dims[1], relu=True)
    h = gemm_bias_act(h, layers[2][0]["wp"], layers[2][0]["shift"], out_dims[2], relu=True)
    return gemm_bias_act(h, layers[3][0]["wp"], layers[3][0]["shift"], out_dims[3],
                         relu=False, out_dtype=jnp.float32)


def orangenet18_forward(prep, x_nchw, *, capacity, num_pts, bins, n_outputs):
    f = capacity
    c64, c128 = int(64 * f), int(128 * f)
    c256, c512 = int(256 * f), int(512 * f)

    x = jnp.transpose(x_nchw, (0, 2, 3, 1)).astype(jnp.bfloat16)   # NCHW -> NHWC
    x = conv_bn_act(x, prep["conv1"], 7, 7, c64, stride=2, pad=3, relu=True)
    x = maxpool_3x3_s2_p1(x)
    x = resnet_layer(x, prep["layer1"], c64, 1)
    x = resnet_layer(x, prep["layer2"], c128, 2)
    x = resnet_layer(x, prep["layer3"], c256, 2)
    x = resnet_layer(x, prep["layer4"], c512, 2)
    # torch.flatten(x, 1) uses NCHW ordering
    x = jnp.transpose(x, (0, 3, 1, 2)).reshape(x.shape[0], -1)
    out_dims = (int(4096 * f), int(2048 * f), int(1024 * f),
                n_outputs * num_pts * bins)
    return mlp_head(x, prep, out_dims)


# ------------------- one-time parameter folding / packing -------------------

def _prep_conv_bn(conv, bn, eps=1e-5):
    co, ci, kh, kw = conv["w"].shape
    inv = bn["gamma"] / jnp.sqrt(bn["var"] + eps)
    shift = bn["beta"] + (conv["b"] - bn["mean"]) * inv
    w2 = conv["w"].transpose(1, 2, 3, 0).reshape(ci * kh * kw, co) * inv[None, :]
    K, N = ci * kh * kw, co
    Kp, Np = _round_up(K, 128), _round_up(N, 128)
    return {
        "wp": jnp.pad(w2, ((0, Kp - K), (0, Np - N))).astype(jnp.bfloat16),
        "shift": jnp.pad(shift.reshape(1, N),
                         ((0, 0), (0, Np - N))).astype(jnp.float32),
    }


def _prep_linear(lin):
    out_f, in_f = lin["w"].shape
    Kp, Np = _round_up(in_f, 128), _round_up(out_f, 128)
    return {
        "wp": jnp.pad(lin["w"].T,
                      ((0, Kp - in_f), (0, Np - out_f))).astype(jnp.bfloat16),
        "shift": jnp.pad(lin["b"].reshape(1, out_f),
                         ((0, 0), (0, Np - out_f))).astype(jnp.float32),
    }


def _prep_block(bp):
    out = {"conv1": _prep_conv_bn(bp["conv1"], bp["bn1"]),
           "conv2": _prep_conv_bn(bp["conv2"], bp["bn2"])}
    if "down_conv" in bp:
        out["down_conv"] = _prep_conv_bn(bp["down_conv"], bp["down_bn"])
    return out


def prepare_params(params):
    prep = {"conv1": _prep_conv_bn(params["conv1"], params["bn1"])}
    for name in ("layer1", "layer2", "layer3", "layer4"):
        prep[name] = {"block0": _prep_block(params[name]["block0"]),
                      "block1": _prep_block(params[name]["block1"])}
    for name in ("fc1", "fc2", "fc3", "output"):
        prep[name] = _prep_linear(params[name])
    return prep


# ----------------------------- deterministic init -----------------------------

def _conv_init(key, co, ci, kh, kw):
    k1, k2 = jax.random.split(key)
    w = jax.random.normal(k1, (co, ci, kh, kw), jnp.float32) / jnp.sqrt(ci * kh * kw)
    b = 0.01 * jax.random.normal(k2, (co,), jnp.float32)
    return {"w": w, "b": b}


def _bn_init(key, c):
    k1, k2, k3, k4 = jax.random.split(key, 4)
    return {"gamma": 0.5 + jax.random.uniform(k1, (c,), jnp.float32),
            "beta": 0.01 * jax.random.normal(k2, (c,), jnp.float32),
            "mean": 0.01 * jax.random.normal(k3, (c,), jnp.float32),
            "var": 0.5 + jax.random.uniform(k4, (c,), jnp.float32)}


def _lin_init(key, out_f, in_f):
    k1, k2 = jax.random.split(key)
    w = jax.random.normal(k1, (out_f, in_f), jnp.float32) / jnp.sqrt(in_f)
    b = 0.01 * jax.random.normal(k2, (out_f,), jnp.float32)
    return {"w": w, "b": b}


def _block_init(key, in_f, out_f, downsample):
    keys = jax.random.split(key, 6)
    p = {"conv1": _conv_init(keys[0], out_f, in_f, 3, 3),
         "bn1": _bn_init(keys[1], out_f),
         "conv2": _conv_init(keys[2], out_f, out_f, 3, 3),
         "bn2": _bn_init(keys[3], out_f)}
    if downsample:
        p["down_conv"] = _conv_init(keys[4], out_f, in_f, 1, 1)
        p["down_bn"] = _bn_init(keys[5], out_f)
    return p


def _layer_init(key, in_f, out_f, stride):
    k0, k1 = jax.random.split(key)
    down = (in_f != out_f) or (stride != 1)
    return {"block0": _block_init(k0, in_f, out_f, down),
            "block1": _block_init(k1, out_f, out_f, False)}


def init_orangenet18(key, capacity, num_pts, bins, n_outputs, flat_dim):
    f = capacity
    c64, c128, c256, c512 = int(64 * f), int(128 * f), int(256 * f), int(512 * f)
    keys = jax.random.split(key, 10)
    return {
        "conv1": _conv_init(keys[0], c64, 3, 7, 7),
        "bn1": _bn_init(keys[1], c64),
        "layer1": _layer_init(keys[2], c64, c64, 1),
        "layer2": _layer_init(keys[3], c64, c128, 2),
        "layer3": _layer_init(keys[4], c128, c256, 2),
        "layer4": _layer_init(keys[5], c256, c512, 2),
        "fc1": _lin_init(keys[6], int(4096 * f), flat_dim),
        "fc2": _lin_init(keys[7], int(2048 * f), int(4096 * f)),
        "fc3": _lin_init(keys[8], int(1024 * f), int(2048 * f)),
        "output": _lin_init(keys[9], n_outputs * num_pts * bins, int(1024 * f)),
    }


# ----------------------------- main -----------------------------

if __name__ == "__main__":
    key = jax.random.PRNGKey(0)
    k_in, k_par = jax.random.split(key)

    capacity = 0.125          # small-channel variant: 8/16/32/64 channels
    num_pts, bins, n_outputs = 3, 30, 3
    N, H, W = 2, 64, 64       # small spatial size (divisible by overall /32)

    x = jax.random.normal(k_in, (N, 3, H, W), jnp.float32)   # NCHW like PyTorch

    c512 = int(512 * capacity)
    flat_dim = c512 * (H // 32) * (W // 32)
    params = init_orangenet18(k_par, capacity, num_pts, bins, n_outputs, flat_dim)

    # One-time BN folding / weight packing (done outside the per-forward path).
    prep = prepare_params(params)

    fwd = jax.jit(functools.partial(orangenet18_forward, capacity=capacity,
                                    num_pts=num_pts, bins=bins,
                                    n_outputs=n_outputs))
    out = fwd(prep, x)
    out = jax.block_until_ready(out)

    assert out.shape == (N, n_outputs * num_pts * bins), out.shape
    assert bool(jnp.all(jnp.isfinite(out)))
    print("KERNEL_OK")
</pallas_src>

<mosaic_0001>
module attributes {stable_mosaic.version = 11 : i64} {
  func.func @_gemm_acc_kernel(%arg0: i32, %arg1: i32, %arg2: i32, %arg3: memref<256x256xbf16, #tpu.memory_space<vmem>>, %arg4: memref<256x128xbf16, #tpu.memory_space<vmem>>, %arg5: memref<1x128xf32, #tpu.memory_space<vmem>>, %arg6: memref<256x128xbf16, #tpu.memory_space<vmem>>, %arg7: memref<256x128xf32, #tpu.memory_space<vmem>>) attributes {dimension_semantics = [#tpu.dimension_semantics<parallel>, #tpu.dimension_semantics<parallel>, #tpu.dimension_semantics<arbitrary>], iteration_bounds = array<i64: 8, 1, 1>, scalar_prefetch = 0 : i64, scratch_operands = 1 : i64, tpu.core_type = #tpu.core_type<tc>, window_params = [{transform_indices = @transform_0, window_bounds = array<i64: 256, 256>}, {transform_indices = @transform_1, window_bounds = array<i64: 256, 128>}, {transform_indices = @transform_2, window_bounds = array<i64: 1, 128>}, {transform_indices = @transform_3, window_bounds = array<i64: 256, 128>}]} {
    %c0_i32 = arith.constant 0 : i32
    %0 = arith.cmpi eq, %arg2, %c0_i32 : i32
    %1 = arith.extui %0 : i1 to i32
    %c0_i32_0 = arith.constant 0 : i32
    %2 = arith.cmpi ne, %1, %c0_i32_0 : i32
    scf.if %2 {
      %cst_10 = arith.constant 0.000000e+00 : f32
      %12 = vector.broadcast %cst_10 : f32 to vector<256x128xf32>
      %c0_11 = arith.constant 0 : index
      %c0_12 = arith.constant 0 : index
      %13 = vector.load %arg7[%c0_11, %c0_12] : memref<256x128xf32, #tpu.memory_space<vmem>>, vector<256x128xf32>
      tpu.vector_store %arg7[%c0_11, %c0_12], %12 {strides = array<i32>} : memref<256x128xf32, #tpu.memory_space<vmem>>, vector<256x128xf32>,
    } else {
    }
    %c0 = arith.constant 0 : index
    %c0_1 = arith.constant 0 : index
    %3 = vector.load %arg7[%c0, %c0_1] : memref<256x128xf32, #tpu.memory_space<vmem>>, vector<256x128xf32>
    %c0_2 = arith.constant 0 : index
    %c0_3 = arith.constant 0 : index
    %4 = vector.load %arg3[%c0_2, %c0_3] : memref<256x256xbf16, #tpu.memory_space<vmem>>, vector<256x256xbf16>
    %c0_4 = arith.constant 0 : index
    %c0_5 = arith.constant 0 : index
    %5 = vector.load %arg4[%c0_4, %c0_5] : memref<256x128xbf16, #tpu.memory_space<vmem>>, vector<256x128xbf16>
    %cst = arith.constant dense<0.000000e+00> : vector<256x128xf32>
    %6 = tpu.matmul %4, %5, %cst {dimension_numbers = #tpu.dot_dimension_numbers<[1], [0], [0], [1], [0, 0, 1, 1], [], []>} : vector<256x256xbf16>, vector<256x128xbf16>, vector<256x128xf32> -> vector<256x128xf32>
    %7 = arith.addf %3, %6 : vector<256x128xf32>
    %c0_6 = arith.constant 0 : index
    %c0_7 = arith.constant 0 : index
    %8 = vector.load %arg7[%c0_6, %c0_7] : memref<256x128xf32, #tpu.memory_space<vmem>>, vector<256x128xf32>
    tpu.vector_store %arg7[%c0_6, %c0_7], %7 {strides = array<i32>} : memref<256x128xf32, #tpu.memory_space<vmem>>, vector<256x128xf32>,
    %c0_i32_8 = arith.constant 0 : i32
    %9 = arith.cmpi eq, %arg2, %c0_i32_8 : i32
    %10 = arith.extui %9 : i1 to i32
    %c0_i32_9 = arith.constant 0 : i32
    %11 = arith.cmpi ne, %10, %c0_i32_9 : i32
    scf.if %11 {
      %c0_10 = arith.constant 0 : index
      %c0_11 = arith.constant 0 : index
      %12 = vector.load %arg7[%c0_10, %c0_11] : memref<256x128xf32, #tpu.memory_space<vmem>>, vector<256x128xf32>
      %c0_12 = arith.constant 0 : index
      %c0_13 = arith.constant 0 : index
      %13 = vector.load %arg5[%c0_12, %c0_13] : memref<1x128xf32, #tpu.memory_space<vmem>>, vector<1x128xf32>
      %14 = vector.broadcast %13 : vector<1x128xf32> to vector<256x128xf32>
      %15 = arith.addf %12, %14 : vector<256x128xf32>
      %cst_14 = arith.constant 0.000000e+00 : f32
      %16 = vector.broadcast %cst_14 : f32 to vector<256x128xf32>
      %17 = arith.maximumf %15, %16 : vector<256x128xf32>
      %18 = arith.truncf %17 : vector<256x128xf32> to vector<256x128xbf16>
      %c0_15 = arith.constant 0 : index
      %c0_16 = arith.constant 0 : index
      %19 = vector.load %arg6[%c0_15, %c0_16] : memref<256x128xbf16, #tpu.memory_space<vmem>>, vector<256x128xbf16>
      tpu.vector_store %arg6[%c0_15, %c0_16], %18 {strides = array<i32>} : memref<256x128xbf16, #tpu.memory_space<vmem>>, vector<256x128xbf16>,
    } else {
    }
    return
  }
  func.func @transform_0(%arg0: i32, %arg1: i32, %arg2: i32) -> (i32, i32) {
    %c0_i32 = arith.constant 0 : i32
    return %arg0, %arg2 : i32, i32
  }
  func.func @transform_1(%arg0: i32, %arg1: i32, %arg2: i32) -> (i32, i32) {
    %c0_i32 = arith.constant 0 : i32
    return %arg2, %arg1 : i32, i32
  }
  func.func @transform_2(%arg0: i32, %arg1: i32, %arg2: i32) -> (i32, i32) {
    %c0_i32 = arith.constant 0 : i32
    %c0_i32_0 = arith.constant 0 : i32
    return %c0_i32, %arg1 : i32, i32
  }
  func.func @transform_3(%arg0: i32, %arg1: i32, %arg2: i32) -> (i32, i32) {
    %c0_i32 = arith.constant 0 : i32
    return %arg0, %arg1 : i32, i32
  }
}

module attributes {stable_mosaic.version = 11 : i64} {
  func.func @_maxpool_kernel(%arg0: i32, %arg1: memref<9x32x128xbf16, #tpu.memory_space<vmem>>, %arg2: memref<32x128xbf16, #tpu.memory_space<vmem>>) attributes {dimension_semantics = [#tpu.dimension_semantics<parallel>], iteration_bounds = array<i64: 1>, scalar_prefetch = 0 : i64, scratch_operands = 0 : i64, tpu.core_type = #tpu.core_type<tc>, window_params = [{transform_indices = @transform_0, window_bounds = array<i64: 9, 32, 128>}, {transform_indices = @transform_1, window_bounds = array<i64: 32, 128>}]} {
    %c0 = arith.constant 0 : index
    %c0_0 = arith.constant 0 : index
    %c0_1 = arith.constant 0 : index
    %0 = vector.load %arg1[%c0, %c0_0, %c0_1] : memref<9x32x128xbf16, #tpu.memory_space<vmem>>, vector<1x32x128xbf16>
    %1 = vector.shape_cast %0 : vector<1x32x128xbf16> to vector<32x128xbf16>
    %2 = arith.extf %1 : vector<32x128xbf16> to vector<32x128xf32>
    %c1 = arith.constant 1 : index
    %c0_2 = arith.constant 0 : index
    %c0_3 = arith.constant 0 : index
    %3 = vector.load %arg1[%c1, %c0_2, %c0_3] : memref<9x32x128xbf16, #tpu.memory_space<vmem>>, vector<1x32x128xbf16>
    %4 = vector.shape_cast %3 : vector<1x32x128xbf16> to vector<32x128xbf16>
    %5 = arith.extf %4 : vector<32x128xbf16> to vector<32x128xf32>
    %6 = arith.maximumf %2, %5 : vector<32x128xf32>
    %c2 = arith.constant 2 : index
    %c0_4 = arith.constant 0 : index
    %c0_5 = arith.constant 0 : index
    %7 = vector.load %arg1[%c2, %c0_4, %c0_5] : memref<9x32x128xbf16, #tpu.memory_space<vmem>>, vector<1x32x128xbf16>
    %8 = vector.shape_cast %7 : vector<1x32x128xbf16> to vector<32x128xbf16>
    %9 = arith.extf %8 : vector<32x128xbf16> to vector<32x128xf32>
    %10 = arith.maximumf %6, %9 : vector<32x128xf32>
    %c3 = arith.constant 3 : index
    %c0_6 = arith.constant 0 : index
    %c0_7 = arith.constant 0 : index
    %11 = vector.load %arg1[%c3, %c0_6, %c0_7] : memref<9x32x128xbf16, #tpu.memory_space<vmem>>, vector<1x32x128xbf16>
    %12 = vector.shape_cast %11 : vector<1x32x128xbf16> to vector<32x128xbf16>
    %13 = arith.extf %12 : vector<32x128xbf16> to vector<32x128xf32>
    %14 = arith.maximumf %10, %13 : vector<32x128xf32>
    %c4 = arith.constant 4 : index
    %c0_8 = arith.constant 0 : index
    %c0_9 = arith.constant 0 : index
    %15 = vector.load %arg1[%c4, %c0_8, %c0_9] : memref<9x32x128xbf16, #tpu.memory_space<vmem>>, vector<1x32x128xbf16>
    %16 = vector.shape_cast %15 : vector<1x32x128xbf16> to vector<32x128xbf16>
    %17 = arith.extf %16 : vector<32x128xbf16> to vector<32x128xf32>
    %18 = arith.maximumf %14, %17 : vector<32x128xf32>
    %c5 = arith.constant 5 : index
    %c0_10 = arith.constant 0 : index
    %c0_11 = arith.constant 0 : index
    %19 = vector.load %arg1[%c5, %c0_10, %c0_11] : memref<9x32x128xbf16, #tpu.memory_space<vmem>>, vector<1x32x128xbf16>
    %20 = vector.shape_cast %19 : vector<1x32x128xbf16> to vector<32x128xbf16>
    %21 = arith.extf %20 : vector<32x128xbf16> to vector<32x128xf32>
    %22 = arith.maximumf %18, %21 : vector<32x128xf32>
    %c6 = arith.constant 6 : index
    %c0_12 = arith.constant 0 : index
    %c0_13 = arith.constant 0 : index
    %23 = vector.load %arg1[%c6, %c0_12, %c0_13] : memref<9x32x128xbf16, #tpu.memory_space<vmem>>, vector<1x32x128xbf16>
    %24 = vector.shape_cast %23 : vector<1x32x128xbf16> to vector<32x128xbf16>
    %25 = arith.extf %24 : vector<32x128xbf16> to vector<32x128xf32>
    %26 = arith.maximumf %22, %25 : vector<32x128xf32>
    %c7 = arith.constant 7 : index
    %c0_14 = arith.constant 0 : index
    %c0_15 = arith.constant 0 : index
    %27 = vector.load %arg1[%c7, %c0_14, %c0_15] : memref<9x32x128xbf16, #tpu.memory_space<vmem>>, vector<1x32x128xbf16>
    %28 = vector.shape_cast %27 : vector<1x32x128xbf16> to vector<32x128xbf16>
    %29 = arith.extf %28 : vector<32x128xbf16> to vector<32x128xf32>
    %30 = arith.maximumf %26, %29 : vector<32x128xf32>
    %c8 = arith.constant 8 : index
    %c0_16 = arith.constant 0 : index
    %c0_17 = arith.constant 0 : index
    %31 = vector.load %arg1[%c8, %c0_16, %c0_17] : memref<9x32x128xbf16, #tpu.memory_space<vmem>>, vector<1x32x128xbf16>
    %32 = vector.shape_cast %31 : vector<1x32x128xbf16> to vector<32x128xbf16>
    %33 = arith.extf %32 : vector<32x128xbf16> to vector<32x128xf32>
    %34 = arith.maximumf %30, %33 : vector<32x128xf32>
    %35 = arith.truncf %34 : vector<32x128xf32> to vector<32x128xbf16>
    %c0_18 = arith.constant 0 : index
    %c0_19 = arith.constant 0 : index
    %36 = vector.load %arg2[%c0_18, %c0_19] : memref<32x128xbf16, #tpu.memory_space<vmem>>, vector<32x128xbf16>
    tpu.vector_store %arg2[%c0_18, %c0_19], %35 {strides = array<i32>} : memref<32x128xbf16, #tpu.memory_space<vmem>>, vector<32x128xbf16>,
    return
  }
  func.func @transform_0(%arg0: i32) -> (i32, i32, i32) {
    %c0_i32 = arith.constant 0 : i32
    %c0_i32_0 = arith.constant 0 : i32
    %c0_i32_1 = arith.constant 0 : i32
    return %c0_i32, %arg0, %c0_i32_0 : i32, i32, i32
  }
  func.func @transform_1(%arg0: i32) -> (i32, i32) {
    %c0_i32 = arith.constant 0 : i32
    %c0_i32_0 = arith.constant 0 : i32
    return %arg0, %c0_i32 : i32, i32
  }
}

module attributes {stable_mosaic.version = 11 : i64} {
  func.func @_gemm_acc_kernel(%arg0: i32, %arg1: i32, %arg2: i32, %arg3: memref<256x128xbf16, #tpu.memory_space<vmem>>, %arg4: memref<128x128xbf16, #tpu.memory_space<vmem>>, %arg5: memref<1x128xf32, #tpu.memory_space<vmem>>, %arg6: memref<256x128xbf16, #tpu.memory_space<vmem>>, %arg7: memref<256x128xf32, #tpu.memory_space<vmem>>) attributes {dimension_semantics = [#tpu.dimension_semantics<parallel>, #tpu.dimension_semantics<parallel>, #tpu.dimension_semantics<arbitrary>], iteration_bounds = array<i64: 2, 1, 1>, scalar_prefetch = 0 : i64, scratch_operands = 1 : i64, tpu.core_type = #tpu.core_type<tc>, window_params = [{transform_indices = @transform_0, window_bounds = array<i64: 256, 128>}, {transform_indices = @transform_1, window_bounds = array<i64: 128, 128>}, {transform_indices = @transform_2, window_bounds = array<i64: 1, 128>}, {transform_indices = @transform_3, window_bounds = array<i64: 256, 128>}]} {
    %c0_i32 = arith.constant 0 : i32
    %0 = arith.cmpi eq, %arg2, %c0_i32 : i32
    %1 = arith.extui %0 : i1 to i32
    %c0_i32_0 = arith.constant 0 : i32
    %2 = arith.cmpi ne, %1, %c0_i32_0 : i32
    scf.if %2 {
      %cst_10 = arith.constant 0.000000e+00 : f32
      %12 = vector.broadcast %cst_10 : f32 to vector<256x128xf32>
      %c0_11 = arith.constant 0 : index
      %c0_12 = arith.constant 0 : index
      %13 = vector.load %arg7[%c0_11, %c0_12] : memref<256x128xf32, #tpu.memory_space<vmem>>, vector<256x128xf32>
      tpu.vector_store %arg7[%c0_11, %c0_12], %12 {strides = array<i32>} : memref<256x128xf32, #tpu.memory_space<vmem>>, vector<256x128xf32>,
    } else {
    }
    %c0 = arith.constant 0 : index
    %c0_1 = arith.constant 0 : index
    %3 = vector.load %arg7[%c0, %c0_1] : memref<256x128xf32, #tpu.memory_space<vmem>>, vector<256x128xf32>
    %c0_2 = arith.constant 0 : index
    %c0_3 = arith.constant 0 : index
    %4 = vector.load %arg3[%c0_2, %c0_3] : memref<256x128xbf16, #tpu.memory_space<vmem>>, vector<256x128xbf16>
    %c0_4 = arith.constant 0 : index
    %c0_5 = arith.constant 0 : index
    %5 = vector.load %arg4[%c0_4, %c0_5] : memref<128x128xbf16, #tpu.memory_space<vmem>>, vector<128x128xbf16>
    %cst = arith.constant dense<0.000000e+00> : vector<256x128xf32>
    %6 = tpu.matmul %4, %5, %cst {dimension_numbers = #tpu.dot_dimension_numbers<[1], [0], [0], [1], [0, 0, 1, 1], [], []>} : vector<256x128xbf16>, vector<128x128xbf16>, vector<256x128xf32> -> vector<256x128xf32>
    %7 = arith.addf %3, %6 : vector<256x128xf32>
    %c0_6 = arith.constant 0 : index
    %c0_7 = arith.constant 0 : index
    %8 = vector.load %arg7[%c0_6, %c0_7] : memref<256x128xf32, #tpu.memory_space<vmem>>, vector<256x128xf32>
    tpu.vector_store %arg7[%c0_6, %c0_7], %7 {strides = array<i32>} : memref<256x128xf32, #tpu.memory_space<vmem>>, vector<256x128xf32>,
    %c0_i32_8 = arith.constant 0 : i32
    %9 = arith.cmpi eq, %arg2, %c0_i32_8 : i32
    %10 = arith.extui %9 : i1 to i32
    %c0_i32_9 = arith.constant 0 : i32
    %11 = arith.cmpi ne, %10, %c0_i32_9 : i32
    scf.if %11 {
      %c0_10 = arith.constant 0 : index
      %c0_11 = arith.constant 0 : index
      %12 = vector.load %arg7[%c0_10, %c0_11] : memref<256x128xf32, #tpu.memory_space<vmem>>, vector<256x128xf32>
      %c0_12 = arith.constant 0 : index
      %c0_13 = arith.constant 0 : index
      %13 = vector.load %arg5[%c0_12, %c0_13] : memref<1x128xf32, #tpu.memory_space<vmem>>, vector<1x128xf32>
      %14 = vector.broadcast %13 : vector<1x128xf32> to vector<256x128xf32>
      %15 = arith.addf %12, %14 : vector<256x128xf32>
      %cst_14 = arith.constant 0.000000e+00 : f32
      %16 = vector.broadcast %cst_14 : f32 to vector<256x128xf32>
      %17 = arith.maximumf %15, %16 : vector<256x128xf32>
      %18 = arith.truncf %17 : vector<256x128xf32> to vector<256x128xbf16>
      %c0_15 = arith.constant 0 : index
      %c0_16 = arith.constant 0 : index
      %19 = vector.load %arg6[%c0_15, %c0_16] : memref<256x128xbf16, #tpu.memory_space<vmem>>, vector<256x128xbf16>
      tpu.vector_store %arg6[%c0_15, %c0_16], %18 {strides = array<i32>} : memref<256x128xbf16, #tpu.memory_space<vmem>>, vector<256x128xbf16>,
    } else {
    }
    return
  }
  func.func @transform_0(%arg0: i32, %arg1: i32, %arg2: i32) -> (i32, i32) {
    %c0_i32 = arith.constant 0 : i32
    return %arg0, %arg2 : i32, i32
  }
  func.func @transform_1(%arg0: i32, %arg1: i32, %arg2: i32) -> (i32, i32) {
    %c0_i32 = arith.constant 0 : i32
    return %arg2, %arg1 : i32, i32
  }
  func.func @transform_2(%arg0: i32, %arg1: i32, %arg2: i32) -> (i32, i32) {
    %c0_i32 = arith.constant 0 : i32
    %c0_i32_0 = arith.constant 0 : i32
    return %c0_i32, %arg1 : i32, i32
  }
  func.func @transform_3(%arg0: i32, %arg1: i32, %arg2: i32) -> (i32, i32) {
    %c0_i32 = arith.constant 0 : i32
    return %arg0, %arg1 : i32, i32
  }
}

module attributes {stable_mosaic.version = 11 : i64} {
  func.func @_gemm_acc_res_kernel(%arg0: i32, %arg1: i32, %arg2: i32, %arg3: memref<256x128xbf16, #tpu.memory_space<vmem>>, %arg4: memref<128x128xbf16, #tpu.memory_space<vmem>>, %arg5: memref<1x128xf32, #tpu.memory_space<vmem>>, %arg6: memref<256x128xbf16, #tpu.memory_space<vmem>>, %arg7: memref<256x128xbf16, #tpu.memory_space<vmem>>, %arg8: memref<256x128xf32, #tpu.memory_space<vmem>>) attributes {dimension_semantics = [#tpu.dimension_semantics<parallel>, #tpu.dimension_semantics<parallel>, #tpu.dimension_semantics<arbitrary>], iteration_bounds = array<i64: 2, 1, 1>, scalar_prefetch = 0 : i64, scratch_operands = 1 : i64, tpu.core_type = #tpu.core_type<tc>, window_params = [{transform_indices = @transform_0, window_bounds = array<i64: 256, 128>}, {transform_indices = @transform_1, window_bounds = array<i64: 128, 128>}, {transform_indices = @transform_2, window_bounds = array<i64: 1, 128>}, {transform_indices = @transform_3, window_bounds = array<i64: 256, 128>}, {transform_indices = @transform_4, window_bounds = array<i64: 256, 128>}]} {
    %c0_i32 = arith.constant 0 : i32
    %0 = arith.cmpi eq, %arg2, %c0_i32 : i32
    %1 = arith.extui %0 : i1 to i32
    %c0_i32_0 = arith.constant 0 : i32
    %2 = arith.cmpi ne, %1, %c0_i32_0 : i32
    scf.if %2 {
      %cst_10 = arith.constant 0.000000e+00 : f32
      %12 = vector.broadcast %cst_10 : f32 to vector<256x128xf32>
      %c0_11 = arith.constant 0 : index
      %c0_12 = arith.constant 0 : index
      %13 = vector.load %arg8[%c0_11, %c0_12] : memref<256x128xf32, #tpu.memory_space<vmem>>, vector<256x128xf32>
      tpu.vector_store %arg8[%c0_11, %c0_12], %12 {strides = array<i32>} : memref<256x128xf32, #tpu.memory_space<vmem>>, vector<256x128xf32>,
    } else {
    }
    %c0 = arith.constant 0 : index
    %c0_1 = arith.constant 0 : index
    %3 = vector.load %arg8[%c0, %c0_1] : memref<256x128xf32, #tpu.memory_space<vmem>>, vector<256x128xf32>
    %c0_2 = arith.constant 0 : index
    %c0_3 = arith.constant 0 : index
    %4 = vector.load %arg3[%c0_2, %c0_3] : memref<256x128xbf16, #tpu.memory_space<vmem>>, vector<256x128xbf16>
    %c0_4 = arith.constant 0 : index
    %c0_5 = arith.constant 0 : index
    %5 = vector.load %arg4[%c0_4, %c0_5] : memref<128x128xbf16, #tpu.memory_space<vmem>>, vector<128x128xbf16>
    %cst = arith.constant dense<0.000000e+00> : vector<256x128xf32>
    %6 = tpu.matmul %4, %5, %cst {dimension_numbers = #tpu.dot_dimension_numbers<[1], [0], [0], [1], [0, 0, 1, 1], [], []>} : vector<256x128xbf16>, vector<128x128xbf16>, vector<256x128xf32> -> vector<256x128xf32>
    %7 = arith.addf %3, %6 : vector<256x128xf32>
    %c0_6 = arith.constant 0 : index
    %c0_7 = arith.constant 0 : index
    %8 = vector.load %arg8[%c0_6, %c0_7] : memref<256x128xf32, #tpu.memory_space<vmem>>, vector<256x128xf32>
    tpu.vector_store %arg8[%c0_6, %c0_7], %7 {strides = array<i32>} : memref<256x128xf32, #tpu.memory_space<vmem>>, vector<256x128xf32>,
    %c0_i32_8 = arith.constant 0 : i32
    %9 = arith.cmpi eq, %arg2, %c0_i32_8 : i32
    %10 = arith.extui %9 : i1 to i32
    %c0_i32_9 = arith.constant 0 : i32
    %11 = arith.cmpi ne, %10, %c0_i32_9 : i32
    scf.if %11 {
      %c0_10 = arith.constant 0 : index
      %c0_11 = arith.constant 0 : index
      %12 = vector.load %arg8[%c0_10, %c0_11] : memref<256x128xf32, #tpu.memory_space<vmem>>, vector<256x128xf32>
      %c0_12 = arith.constant 0 : index
      %c0_13 = arith.constant 0 : index
      %13 = vector.load %arg5[%c0_12, %c0_13] : memref<1x128xf32, #tpu.memory_space<vmem>>, vector<1x128xf32>
      %14 = vector.broadcast %13 : vector<1x128xf32> to vector<256x128xf32>
      %15 = arith.addf %12, %14 : vector<256x128xf32>
      %c0_14 = arith.constant 0 : index
      %c0_15 = arith.constant 0 : index
      %16 = vector.load %arg6[%c0_14, %c0_15] : memref<256x128xbf16, #tpu.memory_space<vmem>>, vector<256x128xbf16>
      %17 = arith.extf %16 : vector<256x128xbf16> to vector<256x128xf32>
      %18 = arith.addf %15, %17 : vector<256x128xf32>
      %cst_16 = arith.constant 0.000000e+00 : f32
      %19 = vector.broadcast %cst_16 : f32 to vector<256x128xf32>
      %20 = arith.maximumf %18, %19 : vector<256x128xf32>
      %21 = arith.truncf %20 : vector<256x128xf32> to vector<256x128xbf16>
      %c0_17 = arith.constant 0 : index
      %c0_18 = arith.constant 0 : index
      %22 = vector.load %arg7[%c0_17, %c0_18] : memref<256x128xbf16, #tpu.memory_space<vmem>>, vector<256x128xbf16>
      tpu.vector_store %arg7[%c0_17, %c0_18], %21 {strides = array<i32>} : memref<256x128xbf16, #tpu.memory_space<vmem>>, vector<256x128xbf16>,
    } else {
    }
    return
  }
  func.func @transform_0(%arg0: i32, %arg1: i32, %arg2: i32) -> (i32, i32) {
    %c0_i32 = arith.constant 0 : i32
    return %arg0, %arg2 : i32, i32
  }
  func.func @transform_1(%arg0: i32, %arg1: i32, %arg2: i32) -> (i32, i32) {
    %c0_i32 = arith.constant 0 : i32
    return %arg2, %arg1 : i32, i32
  }
  func.func @transform_2(%arg0: i32, %arg1: i32, %arg2: i32) -> (i32, i32) {
    %c0_i32 = arith.constant 0 : i32
    %c0_i32_0 = arith.constant 0 : i32
    return %c0_i32, %arg1 : i32, i32
  }
  func.func @transform_3(%arg0: i32, %arg1: i32, %arg2: i32) -> (i32, i32) {
    %c0_i32 = arith.constant 0 : i32
    return %arg0, %arg1 : i32, i32
  }
  func.func @transform_4(%arg0: i32, %arg1: i32, %arg2: i32) -> (i32, i32) {
    %c0_i32 = arith.constant 0 : i32
    return %arg0, %arg1 : i32, i32
  }
}

module attributes {stable_mosaic.version = 11 : i64} {
  func.func @_gemm_acc_kernel(%arg0: i32, %arg1: i32, %arg2: i32, %arg3: memref<128x128xbf16, #tpu.memory_space<vmem>>, %arg4: memref<128x128xbf16, #tpu.memory_space<vmem>>, %arg5: memref<1x128xf32, #tpu.memory_space<vmem>>, %arg6: memref<128x128xbf16, #tpu.memory_space<vmem>>, %arg7: memref<128x128xf32, #tpu.memory_space<vmem>>) attributes {dimension_semantics = [#tpu.dimension_semantics<parallel>, #tpu.dimension_semantics<parallel>, #tpu.dimension_semantics<arbitrary>], iteration_bounds = array<i64: 1, 1, 1>, scalar_prefetch = 0 : i64, scratch_operands = 1 : i64, tpu.core_type = #tpu.core_type<tc>, window_params = [{transform_indices = @transform_0, window_bounds = array<i64: 128, 128>}, {transform_indices = @transform_1, window_bounds = array<i64: 128, 128>}, {transform_indices = @transform_2, window_bounds = array<i64: 1, 128>}, {transform_indices = @transform_3, window_bounds = array<i64: 128, 128>}]} {
    %c0_i32 = arith.constant 0 : i32
    %0 = arith.cmpi eq, %arg2, %c0_i32 : i32
    %1 = arith.extui %0 : i1 to i32
    %c0_i32_0 = arith.constant 0 : i32
    %2 = arith.cmpi ne, %1, %c0_i32_0 : i32
    scf.if %2 {
      %cst_10 = arith.constant 0.000000e+00 : f32
      %12 = vector.broadcast %cst_10 : f32 to vector<128x128xf32>
      %c0_11 = arith.constant 0 : index
      %c0_12 = arith.constant 0 : index
      %13 = vector.load %arg7[%c0_11, %c0_12] : memref<128x128xf32, #tpu.memory_space<vmem>>, vector<128x128xf32>
      tpu.vector_store %arg7[%c0_11, %c0_12], %12 {strides = array<i32>} : memref<128x128xf32, #tpu.memory_space<vmem>>, vector<128x128xf32>,
    } else {
    }
    %c0 = arith.constant 0 : index
    %c0_1 = arith.constant 0 : index
    %3 = vector.load %arg7[%c0, %c0_1] : memref<128x128xf32, #tpu.memory_space<vmem>>, vector<128x128xf32>
    %c0_2 = arith.constant 0 : index
    %c0_3 = arith.constant 0 : index
    %4 = vector.load %arg3[%c0_2, %c0_3] : memref<128x128xbf16, #tpu.memory_space<vmem>>, vector<128x128xbf16>
    %c0_4 = arith.constant 0 : index
    %c0_5 = arith.constant 0 : index
    %5 = vector.load %arg4[%c0_4, %c0_5] : memref<128x128xbf16, #tpu.memory_space<vmem>>, vector<128x128xbf16>
    %cst = arith.constant dense<0.000000e+00> : vector<128x128xf32>
    %6 = tpu.matmul %4, %5, %cst {dimension_numbers = #tpu.dot_dimension_numbers<[1], [0], [0], [1], [0, 0, 1, 1], [], []>} : vector<128x128xbf16>, vector<128x128xbf16>, vector<128x128xf32> -> vector<128x128xf32>
    %7 = arith.addf %3, %6 : vector<128x128xf32>
    %c0_6 = arith.constant 0 : index
    %c0_7 = arith.constant 0 : index
    %8 = vector.load %arg7[%c0_6, %c0_7] : memref<128x128xf32, #tpu.memory_space<vmem>>, vector<128x128xf32>
    tpu.vector_store %arg7[%c0_6, %c0_7], %7 {strides = array<i32>} : memref<128x128xf32, #tpu.memory_space<vmem>>, vector<128x128xf32>,
    %c0_i32_8 = arith.constant 0 : i32
    %9 = arith.cmpi eq, %arg2, %c0_i32_8 : i32
    %10 = arith.extui %9 : i1 to i32
    %c0_i32_9 = arith.constant 0 : i32
    %11 = arith.cmpi ne, %10, %c0_i32_9 : i32
    scf.if %11 {
      %c0_10 = arith.constant 0 : index
      %c0_11 = arith.constant 0 : index
      %12 = vector.load %arg7[%c0_10, %c0_11] : memref<128x128xf32, #tpu.memory_space<vmem>>, vector<128x128xf32>
      %c0_12 = arith.constant 0 : index
      %c0_13 = arith.constant 0 : index
      %13 = vector.load %arg5[%c0_12, %c0_13] : memref<1x128xf32, #tpu.memory_space<vmem>>, vector<1x128xf32>
      %14 = vector.broadcast %13 : vector<1x128xf32> to vector<128x128xf32>
      %15 = arith.addf %12, %14 : vector<128x128xf32>
      %cst_14 = arith.constant 0.000000e+00 : f32
      %16 = vector.broadcast %cst_14 : f32 to vector<128x128xf32>
      %17 = arith.maximumf %15, %16 : vector<128x128xf32>
      %18 = arith.truncf %17 : vector<128x128xf32> to vector<128x128xbf16>
      %c0_15 = arith.constant 0 : index
      %c0_16 = arith.constant 0 : index
      %19 = vector.load %arg6[%c0_15, %c0_16] : memref<128x128xbf16, #tpu.memory_space<vmem>>, vector<128x128xbf16>
      tpu.vector_store %arg6[%c0_15, %c0_16], %18 {strides = array<i32>} : memref<128x128xbf16, #tpu.memory_space<vmem>>, vector<128x128xbf16>,
    } else {
    }
    return
  }
  func.func @transform_0(%arg0: i32, %arg1: i32, %arg2: i32) -> (i32, i32) {
    %c0_i32 = arith.constant 0 : i32
    return %arg0, %arg2 : i32, i32
  }
  func.func @transform_1(%arg0: i32, %arg1: i32, %arg2: i32) -> (i32, i32) {
    %c0_i32 = arith.constant 0 : i32
    return %arg2, %arg1 : i32, i32
  }
  func.func @transform_2(%arg0: i32, %arg1: i32, %arg2: i32) -> (i32, i32) {
    %c0_i32 = arith.constant 0 : i32
    %c0_i32_0 = arith.constant 0 : i32
    return %c0_i32, %arg1 : i32, i32
  }
  func.func @transform_3(%arg0: i32, %arg1: i32, %arg2: i32) -> (i32, i32) {
    %c0_i32 = arith.constant 0 : i32
    return %arg0, %arg1 : i32, i32
  }
}

module attributes {stable_mosaic.version = 11 : i64} {
  func.func @_gemm_acc_res_kernel(%arg0: i32, %arg1: i32, %arg2: i32, %arg3: memref<128x256xbf16, #tpu.memory_space<vmem>>, %arg4: memref<256x128xbf16, #tpu.memory_space<vmem>>, %arg5: memref<1x128xf32, #tpu.memory_space<vmem>>, %arg6: memref<128x128xbf16, #tpu.memory_space<vmem>>, %arg7: memref<128x128xbf16, #tpu.memory_space<vmem>>, %arg8: memref<128x128xf32, #tpu.memory_space<vmem>>) attributes {dimension_semantics = [#tpu.dimension_semantics<parallel>, #tpu.dimension_semantics<parallel>, #tpu.dimension_semantics<arbitrary>], iteration_bounds = array<i64: 1, 1, 1>, scalar_prefetch = 0 : i64, scratch_operands = 1 : i64, tpu.core_type = #tpu.core_type<tc>, window_params = [{transform_indices = @transform_0, window_bounds = array<i64: 128, 256>}, {transform_indices = @transform_1, window_bounds = array<i64: 256, 128>}, {transform_indices = @transform_2, window_bounds = array<i64: 1, 128>}, {transform_indices = @transform_3, window_bounds = array<i64: 128, 128>}, {transform_indices = @transform_4, window_bounds = array<i64: 128, 128>}]} {
    %c0_i32 = arith.constant 0 : i32
    %0 = arith.cmpi eq, %arg2, %c0_i32 : i32
    %1 = arith.extui %0 : i1 to i32
    %c0_i32_0 = arith.constant 0 : i32
    %2 = arith.cmpi ne, %1, %c0_i32_0 : i32
    scf.if %2 {
      %cst_10 = arith.constant 0.000000e+00 : f32
      %12 = vector.broadcast %cst_10 : f32 to vector<128x128xf32>
      %c0_11 = arith.constant 0 : index
      %c0_12 = arith.constant 0 : index
      %13 = vector.load %arg8[%c0_11, %c0_12] : memref<128x128xf32, #tpu.memory_space<vmem>>, vector<128x128xf32>
      tpu.vector_store %arg8[%c0_11, %c0_12], %12 {strides = array<i32>} : memref<128x128xf32, #tpu.memory_space<vmem>>, vector<128x128xf32>,
    } else {
    }
    %c0 = arith.constant 0 : index
    %c0_1 = arith.constant 0 : index
    %3 = vector.load %arg8[%c0, %c0_1] : memref<128x128xf32, #tpu.memory_space<vmem>>, vector<128x128xf32>
    %c0_2 = arith.constant 0 : index
    %c0_3 = arith.constant 0 : index
    %4 = vector.load %arg3[%c0_2, %c0_3] : memref<128x256xbf16, #tpu.memory_space<vmem>>, vector<128x256xbf16>
    %c0_4 = arith.constant 0 : index
    %c0_5 = arith.constant 0 : index
    %5 = vector.load %arg4[%c0_4, %c0_5] : memref<256x128xbf16, #tpu.memory_space<vmem>>, vector<256x128xbf16>
    %cst = arith.constant dense<0.000000e+00> : vector<128x128xf32>
    %6 = tpu.matmul %4, %5, %cst {dimension_numbers = #tpu.dot_dimension_numbers<[1], [0], [0], [1], [0, 0, 1, 1], [], []>} : vector<128x256xbf16>, vector<256x128xbf16>, vector<128x128xf32> -> vector<128x128xf32>
    %7 = arith.addf %3, %6 : vector<128x128xf32>
    %c0_6 = arith.constant 0 : index
    %c0_7 = arith.constant 0 : index
    %8 = vector.load %arg8[%c0_6, %c0_7] : memref<128x128xf32, #tpu.memory_space<vmem>>, vector<128x128xf32>
    tpu.vector_store %arg8[%c0_6, %c0_7], %7 {strides = array<i32>} : memref<128x128xf32, #tpu.memory_space<vmem>>, vector<128x128xf32>,
    %c0_i32_8 = arith.constant 0 : i32
    %9 = arith.cmpi eq, %arg2, %c0_i32_8 : i32
    %10 = arith.extui %9 : i1 to i32
    %c0_i32_9 = arith.constant 0 : i32
    %11 = arith.cmpi ne, %10, %c0_i32_9 : i32
    scf.if %11 {
      %c0_10 = arith.constant 0 : index
      %c0_11 = arith.constant 0 : index
      %12 = vector.load %arg8[%c0_10, %c0_11] : memref<128x128xf32, #tpu.memory_space<vmem>>, vector<128x128xf32>
      %c0_12 = arith.constant 0 : index
      %c0_13 = arith.constant 0 : index
      %13 = vector.load %arg5[%c0_12, %c0_13] : memref<1x128xf32, #tpu.memory_space<vmem>>, vector<1x128xf32>
      %14 = vector.broadcast %13 : vector<1x128xf32> to vector<128x128xf32>
      %15 = arith.addf %12, %14 : vector<128x128xf32>
      %c0_14 = arith.constant 0 : index
      %c0_15 = arith.constant 0 : index
      %16 = vector.load %arg6[%c0_14, %c0_15] : memref<128x128xbf16, #tpu.memory_space<vmem>>, vector<128x128xbf16>
      %17 = arith.extf %16 : vector<128x128xbf16> to vector<128x128xf32>
      %18 = arith.addf %15, %17 : vector<128x128xf32>
      %cst_16 = arith.constant 0.000000e+00 : f32
      %19 = vector.broadcast %cst_16 : f32 to vector<128x128xf32>
      %20 = arith.maximumf %18, %19 : vector<128x128xf32>
      %21 = arith.truncf %20 : vector<128x128xf32> to vector<128x128xbf16>
      %c0_17 = arith.constant 0 : index
      %c0_18 = arith.constant 0 : index
      %22 = vector.load %arg7[%c0_17, %c0_18] : memref<128x128xbf16, #tpu.memory_space<vmem>>, vector<128x128xbf16>
      tpu.vector_store %arg7[%c0_17, %c0_18], %21 {strides = array<i32>} : memref<128x128xbf16, #tpu.memory_space<vmem>>, vector<128x128xbf16>,
    } else {
    }
    return
  }
  func.func @transform_0(%arg0: i32, %arg1: i32, %arg2: i32) -> (i32, i32) {
    %c0_i32 = arith.constant 0 : i32
    return %arg0, %arg2 : i32, i32
  }
  func.func @transform_1(%arg0: i32, %arg1: i32, %arg2: i32) -> (i32, i32) {
    %c0_i32 = arith.constant 0 : i32
    return %arg2, %arg1 : i32, i32
  }
  func.func @transform_2(%arg0: i32, %arg1: i32, %arg2: i32) -> (i32, i32) {
    %c0_i32 = arith.constant 0 : i32
    %c0_i32_0 = arith.constant 0 : i32
    return %c0_i32, %arg1 : i32, i32
  }
  func.func @transform_3(%arg0: i32, %arg1: i32, %arg2: i32) -> (i32, i32) {
    %c0_i32 = arith.constant 0 : i32
    return %arg0, %arg1 : i32, i32
  }
  func.func @transform_4(%arg0: i32, %arg1: i32, %arg2: i32) -> (i32, i32) {
    %c0_i32 = arith.constant 0 : i32
    return %arg0, %arg1 : i32, i32
  }
}

module attributes {stable_mosaic.version = 11 : i64} {
  func.func @_gemm_acc_kernel(%arg0: i32, %arg1: i32, %arg2: i32, %arg3: memref<128x128xbf16, #tpu.memory_space<vmem>>, %arg4: memref<128x128xbf16, #tpu.memory_space<vmem>>, %arg5: memref<1x128xf32, #tpu.memory_space<vmem>>, %arg6: memref<128x128xbf16, #tpu.memory_space<vmem>>, %arg7: memref<128x128xf32, #tpu.memory_space<vmem>>) attributes {dimension_semantics = [#tpu.dimension_semantics<parallel>, #tpu.dimension_semantics<parallel>, #tpu.dimension_semantics<arbitrary>], iteration_bounds = array<i64: 1, 1, 1>, scalar_prefetch = 0 : i64, scratch_operands = 1 : i64, tpu.core_type = #tpu.core_type<tc>, window_params = [{transform_indices = @transform_0, window_bounds = array<i64: 128, 128>}, {transform_indices = @transform_1, window_bounds = array<i64: 128, 128>}, {transform_indices = @transform_2, window_bounds = array<i64: 1, 128>}, {transform_indices = @transform_3, window_bounds = array<i64: 128, 128>}]} {
    %c0_i32 = arith.constant 0 : i32
    %0 = arith.cmpi eq, %arg2, %c0_i32 : i32
    %1 = arith.extui %0 : i1 to i32
    %c0_i32_0 = arith.constant 0 : i32
    %2 = arith.cmpi ne, %1, %c0_i32_0 : i32
    scf.if %2 {
      %cst_10 = arith.constant 0.000000e+00 : f32
      %12 = vector.broadcast %cst_10 : f32 to vector<128x128xf32>
      %c0_11 = arith.constant 0 : index
      %c0_12 = arith.constant 0 : index
      %13 = vector.load %arg7[%c0_11, %c0_12] : memref<128x128xf32, #tpu.memory_space<vmem>>, vector<128x128xf32>
      tpu.vector_store %arg7[%c0_11, %c0_12], %12 {strides = array<i32>} : memref<128x128xf32, #tpu.memory_space<vmem>>, vector<128x128xf32>,
    } else {
    }
    %c0 = arith.constant 0 : index
    %c0_1 = arith.constant 0 : index
    %3 = vector.load %arg7[%c0, %c0_1] : memref<128x128xf32, #tpu.memory_space<vmem>>, vector<128x128xf32>
    %c0_2 = arith.constant 0 : index
    %c0_3 = arith.constant 0 : index
    %4 = vector.load %arg3[%c0_2, %c0_3] : memref<128x128xbf16, #tpu.memory_space<vmem>>, vector<128x128xbf16>
    %c0_4 = arith.constant 0 : index
    %c0_5 = arith.constant 0 : index
    %5 = vector.load %arg4[%c0_4, %c0_5] : memref<128x128xbf16, #tpu.memory_space<vmem>>, vector<128x128xbf16>
    %cst = arith.constant dense<0.000000e+00> : vector<128x128xf32>
    %6 = tpu.matmul %4, %5, %cst {dimension_numbers = #tpu.dot_dimension_numbers<[1], [0], [0], [1], [0, 0, 1, 1], [], []>} : vector<128x128xbf16>, vector<128x128xbf16>, vector<128x128xf32> -> vector<128x128xf32>
    %7 = arith.addf %3, %6 : vector<128x128xf32>
    %c0_6 = arith.constant 0 : index
    %c0_7 = arith.constant 0 : index
    %8 = vector.load %arg7[%c0_6, %c0_7] : memref<128x128xf32, #tpu.memory_space<vmem>>, vector<128x128xf32>
    tpu.vector_store %arg7[%c0_6, %c0_7], %7 {strides = array<i32>} : memref<128x128xf32, #tpu.memory_space<vmem>>, vector<128x128xf32>,
    %c0_i32_8 = arith.constant 0 : i32
    %9 = arith.cmpi eq, %arg2, %c0_i32_8 : i32
    %10 = arith.extui %9 : i1 to i32
    %c0_i32_9 = arith.constant 0 : i32
    %11 = arith.cmpi ne, %10, %c0_i32_9 : i32
    scf.if %11 {
      %c0_10 = arith.constant 0 : index
      %c0_11 = arith.constant 0 : index
      %12 = vector.load %arg7[%c0_10, %c0_11] : memref<128x128xf32, #tpu.memory_space<vmem>>, vector<128x128xf32>
      %c0_12 = arith.constant 0 : index
      %c0_13 = arith.constant 0 : index
      %13 = vector.load %arg5[%c0_12, %c0_13] : memref<1x128xf32, #tpu.memory_space<vmem>>, vector<1x128xf32>
      %14 = vector.broadcast %13 : vector<1x128xf32> to vector<128x128xf32>
      %15 = arith.addf %12, %14 : vector<128x128xf32>
      %16 = arith.truncf %15 : vector<128x128xf32> to vector<128x128xbf16>
      %c0_14 = arith.constant 0 : index
      %c0_15 = arith.constant 0 : index
      %17 = vector.load %arg6[%c0_14, %c0_15] : memref<128x128xbf16, #tpu.memory_space<vmem>>, vector<128x128xbf16>
      tpu.vector_store %arg6[%c0_14, %c0_15], %16 {strides = array<i32>} : memref<128x128xbf16, #tpu.memory_space<vmem>>, vector<128x128xbf16>,
    } else {
    }
    return
  }
  func.func @transform_0(%arg0: i32, %arg1: i32, %arg2: i32) -> (i32, i32) {
    %c0_i32 = arith.constant 0 : i32
    return %arg0, %arg2 : i32, i32
  }
  func.func @transform_1(%arg0: i32, %arg1: i32, %arg2: i32) -> (i32, i32) {
    %c0_i32 = arith.constant 0 : i32
    return %arg2, %arg1 : i32, i32
  }
  func.func @transform_2(%arg0: i32, %arg1: i32, %arg2: i32) -> (i32, i32) {
    %c0_i32 = arith.constant 0 : i32
    %c0_i32_0 = arith.constant 0 : i32
    return %c0_i32, %arg1 : i32, i32
  }
  func.func @transform_3(%arg0: i32, %arg1: i32, %arg2: i32) -> (i32, i32) {
    %c0_i32 = arith.constant 0 : i32
    return %arg0, %arg1 : i32, i32
  }
}

module attributes {stable_mosaic.version = 11 : i64} {
  func.func @_gemm_acc_kernel(%arg0: i32, %arg1: i32, %arg2: i32, %arg3: memref<128x256xbf16, #tpu.memory_space<vmem>>, %arg4: memref<256x128xbf16, #tpu.memory_space<vmem>>, %arg5: memref<1x128xf32, #tpu.memory_space<vmem>>, %arg6: memref<128x128xbf16, #tpu.memory_space<vmem>>, %arg7: memref<128x128xf32, #tpu.memory_space<vmem>>) attributes {dimension_semantics = [#tpu.dimension_semantics<parallel>, #tpu.dimension_semantics<parallel>, #tpu.dimension_semantics<arbitrary>], iteration_bounds = array<i64: 1, 1, 1>, scalar_prefetch = 0 : i64, scratch_operands = 1 : i64, tpu.core_type = #tpu.core_type<tc>, window_params = [{transform_indices = @transform_0, window_bounds = array<i64: 128, 256>}, {transform_indices = @transform_1, window_bounds = array<i64: 256, 128>}, {transform_indices = @transform_2, window_bounds = array<i64: 1, 128>}, {transform_indices = @transform_3, window_bounds = array<i64: 128, 128>}]} {
    %c0_i32 = arith.constant 0 : i32
    %0 = arith.cmpi eq, %arg2, %c0_i32 : i32
    %1 = arith.extui %0 : i1 to i32
    %c0_i32_0 = arith.constant 0 : i32
    %2 = arith.cmpi ne, %1, %c0_i32_0 : i32
    scf.if %2 {
      %cst_10 = arith.constant 0.000000e+00 : f32
      %12 = vector.broadcast %cst_10 : f32 to vector<128x128xf32>
      %c0_11 = arith.constant 0 : index
      %c0_12 = arith.constant 0 : index
      %13 = vector.load %arg7[%c0_11, %c0_12] : memref<128x128xf32, #tpu.memory_space<vmem>>, vector<128x128xf32>
      tpu.vector_store %arg7[%c0_11, %c0_12], %12 {strides = array<i32>} : memref<128x128xf32, #tpu.memory_space<vmem>>, vector<128x128xf32>,
    } else {
    }
    %c0 = arith.constant 0 : index
    %c0_1 = arith.constant 0 : index
    %3 = vector.load %arg7[%c0, %c0_1] : memref<128x128xf32, #tpu.memory_space<vmem>>, vector<128x128xf32>
    %c0_2 = arith.constant 0 : index
    %c0_3 = arith.constant 0 : index
    %4 = vector.load %arg3[%c0_2, %c0_3] : memref<128x256xbf16, #tpu.memory_space<vmem>>, vector<128x256xbf16>
    %c0_4 = arith.constant 0 : index
    %c0_5 = arith.constant 0 : index
    %5 = vector.load %arg4[%c0_4, %c0_5] : memref<256x128xbf16, #tpu.memory_space<vmem>>, vector<256x128xbf16>
    %cst = arith.constant dense<0.000000e+00> : vector<128x128xf32>
    %6 = tpu.matmul %4, %5, %cst {dimension_numbers = #tpu.dot_dimension_numbers<[1], [0], [0], [1], [0, 0, 1, 1], [], []>} : vector<128x256xbf16>, vector<256x128xbf16>, vector<128x128xf32> -> vector<128x128xf32>
    %7 = arith.addf %3, %6 : vector<128x128xf32>
    %c0_6 = arith.constant 0 : index
    %c0_7 = arith.constant 0 : index
    %8 = vector.load %arg7[%c0_6, %c0_7] : memref<128x128xf32, #tpu.memory_space<vmem>>, vector<128x128xf32>
    tpu.vector_store %arg7[%c0_6, %c0_7], %7 {strides = array<i32>} : memref<128x128xf32, #tpu.memory_space<vmem>>, vector<128x128xf32>,
    %c0_i32_8 = arith.constant 0 : i32
    %9 = arith.cmpi eq, %arg2, %c0_i32_8 : i32
    %10 = arith.extui %9 : i1 to i32
    %c0_i32_9 = arith.constant 0 : i32
    %11 = arith.cmpi ne, %10, %c0_i32_9 : i32
    scf.if %11 {
      %c0_10 = arith.constant 0 : index
      %c0_11 = arith.constant 0 : index
      %12 = vector.load %arg7[%c0_10, %c0_11] : memref<128x128xf32, #tpu.memory_space<vmem>>, vector<128x128xf32>
      %c0_12 = arith.constant 0 : index
      %c0_13 = arith.constant 0 : index
      %13 = vector.load %arg5[%c0_12, %c0_13] : memref<1x128xf32, #tpu.memory_space<vmem>>, vector<1x128xf32>
      %14 = vector.broadcast %13 : vector<1x128xf32> to vector<128x128xf32>
      %15 = arith.addf %12, %14 : vector<128x128xf32>
      %cst_14 = arith.constant 0.000000e+00 : f32
      %16 = vector.broadcast %cst_14 : f32 to vector<128x128xf32>
      %17 = arith.maximumf %15, %16 : vector<128x128xf32>
      %18 = arith.truncf %17 : vector<128x128xf32> to vector<128x128xbf16>
      %c0_15 = arith.constant 0 : index
      %c0_16 = arith.constant 0 : index
      %19 = vector.load %arg6[%c0_15, %c0_16] : memref<128x128xbf16, #tpu.memory_space<vmem>>, vector<128x128xbf16>
      tpu.vector_store %arg6[%c0_15, %c0_16], %18 {strides = array<i32>} : memref<128x128xbf16, #tpu.memory_space<vmem>>, vector<128x128xbf16>,
    } else {
    }
    return
  }
  func.func @transform_0(%arg0: i32, %arg1: i32, %arg2: i32) -> (i32, i32) {
    %c0_i32 = arith.constant 0 : i32
    return %arg0, %arg2 : i32, i32
  }
  func.func @transform_1(%arg0: i32, %arg1: i32, %arg2: i32) -> (i32, i32) {
    %c0_i32 = arith.constant 0 : i32
    return %arg2, %arg1 : i32, i32
  }
  func.func @transform_2(%arg0: i32, %arg1: i32, %arg2: i32) -> (i32, i32) {
    %c0_i32 = arith.constant 0 : i32
    %c0_i32_0 = arith.constant 0 : i32
    return %c0_i32, %arg1 : i32, i32
  }
  func.func @transform_3(%arg0: i32, %arg1: i32, %arg2: i32) -> (i32, i32) {
    %c0_i32 = arith.constant 0 : i32
    return %arg0, %arg1 : i32, i32
  }
}

module attributes {stable_mosaic.version = 11 : i64} {
  func.func @_gemm_acc_kernel(%arg0: i32, %arg1: i32, %arg2: i32, %arg3: memref<32x256xbf16, #tpu.memory_space<vmem>>, %arg4: memref<256x128xbf16, #tpu.memory_space<vmem>>, %arg5: memref<1x128xf32, #tpu.memory_space<vmem>>, %arg6: memref<32x128xbf16, #tpu.memory_space<vmem>>, %arg7: memref<32x128xf32, #tpu.memory_space<vmem>>) attributes {dimension_semantics = [#tpu.dimension_semantics<parallel>, #tpu.dimension_semantics<parallel>, #tpu.dimension_semantics<arbitrary>], iteration_bounds = array<i64: 1, 1, 1>, scalar_prefetch = 0 : i64, scratch_operands = 1 : i64, tpu.core_type = #tpu.core_type<tc>, window_params = [{transform_indices = @transform_0, window_bounds = array<i64: 32, 256>}, {transform_indices = @transform_1, window_bounds = array<i64: 256, 128>}, {transform_indices = @transform_2, window_bounds = array<i64: 1, 128>}, {transform_indices = @transform_3, window_bounds = array<i64: 32, 128>}]} {
    %c0_i32 = arith.constant 0 : i32
    %0 = arith.cmpi eq, %arg2, %c0_i32 : i32
    %1 = arith.extui %0 : i1 to i32
    %c0_i32_0 = arith.constant 0 : i32
    %2 = arith.cmpi ne, %1, %c0_i32_0 : i32
    scf.if %2 {
      %cst_10 = arith.constant 0.000000e+00 : f32
      %12 = vector.broadcast %cst_10 : f32 to vector<32x128xf32>
      %c0_11 = arith.constant 0 : index
      %c0_12 = arith.constant 0 : index
      %13 = vector.load %arg7[%c0_11, %c0_12] : memref<32x128xf32, #tpu.memory_space<vmem>>, vector<32x128xf32>
      tpu.vector_store %arg7[%c0_11, %c0_12], %12 {strides = array<i32>} : memref<32x128xf32, #tpu.memory_space<vmem>>, vector<32x128xf32>,
    } else {
    }
    %c0 = arith.constant 0 : index
    %c0_1 = arith.constant 0 : index
    %3 = vector.load %arg7[%c0, %c0_1] : memref<32x128xf32, #tpu.memory_space<vmem>>, vector<32x128xf32>
    %c0_2 = arith.constant 0 : index
    %c0_3 = arith.constant 0 : index
    %4 = vector.load %arg3[%c0_2, %c0_3] : memref<32x256xbf16, #tpu.memory_space<vmem>>, vector<32x256xbf16>
    %c0_4 = arith.constant 0 : index
    %c0_5 = arith.constant 0 : index
    %5 = vector.load %arg4[%c0_4, %c0_5] : memref<256x128xbf16, #tpu.memory_space<vmem>>, vector<256x128xbf16>
    %cst = arith.constant dense<0.000000e+00> : vector<32x128xf32>
    %6 = tpu.matmul %4, %5, %cst {dimension_numbers = #tpu.dot_dimension_numbers<[1], [0], [0], [1], [0, 0, 1, 1], [], []>} : vector<32x256xbf16>, vector<256x128xbf16>, vector<32x128xf32> -> vector<32x128xf32>
    %7 = arith.addf %3, %6 : vector<32x128xf32>
    %c0_6 = arith.constant 0 : index
    %c0_7 = arith.constant 0 : index
    %8 = vector.load %arg7[%c0_6, %c0_7] : memref<32x128xf32, #tpu.memory_space<vmem>>, vector<32x128xf32>
    tpu.vector_store %arg7[%c0_6, %c0_7], %7 {strides = array<i32>} : memref<32x128xf32, #tpu.memory_space<vmem>>, vector<32x128xf32>,
    %c0_i32_8 = arith.constant 0 : i32
    %9 = arith.cmpi eq, %arg2, %c0_i32_8 : i32
    %10 = arith.extui %9 : i1 to i32
    %c0_i32_9 = arith.constant 0 : i32
    %11 = arith.cmpi ne, %10, %c0_i32_9 : i32
    scf.if %11 {
      %c0_10 = arith.constant 0 : index
      %c0_11 = arith.constant 0 : index
      %12 = vector.load %arg7[%c0_10, %c0_11] : memref<32x128xf32, #tpu.memory_space<vmem>>, vector<32x128xf32>
      %c0_12 = arith.constant 0 : index
      %c0_13 = arith.constant 0 : index
      %13 = vector.load %arg5[%c0_12, %c0_13] : memref<1x128xf32, #tpu.memory_space<vmem>>, vector<1x128xf32>
      %14 = vector.broadcast %13 : vector<1x128xf32> to vector<32x128xf32>
      %15 = arith.addf %12, %14 : vector<32x128xf32>
      %cst_14 = arith.constant 0.000000e+00 : f32
      %16 = vector.broadcast %cst_14 : f32 to vector<32x128xf32>
      %17 = arith.maximumf %15, %16 : vector<32x128xf32>
      %18 = arith.truncf %17 : vector<32x128xf32> to vector<32x128xbf16>
      %c0_15 = arith.constant 0 : index
      %c0_16 = arith.constant 0 : index
      %19 = vector.load %arg6[%c0_15, %c0_16] : memref<32x128xbf16, #tpu.memory_space<vmem>>, vector<32x128xbf16>
      tpu.vector_store %arg6[%c0_15, %c0_16], %18 {strides = array<i32>} : memref<32x128xbf16, #tpu.memory_space<vmem>>, vector<32x128xbf16>,
    } else {
    }
    return
  }
  func.func @transform_0(%arg0: i32, %arg1: i32, %arg2: i32) -> (i32, i32) {
    %c0_i32 = arith.constant 0 : i32
    return %arg0, %arg2 : i32, i32
  }
  func.func @transform_1(%arg0: i32, %arg1: i32, %arg2: i32) -> (i32, i32) {
    %c0_i32 = arith.constant 0 : i32
    return %arg2, %arg1 : i32, i32
  }
  func.func @transform_2(%arg0: i32, %arg1: i32, %arg2: i32) -> (i32, i32) {
    %c0_i32 = arith.constant 0 : i32
    %c0_i32_0 = arith.constant 0 : i32
    return %c0_i32, %arg1 : i32, i32
  }
  func.func @transform_3(%arg0: i32, %arg1: i32, %arg2: i32) -> (i32, i32) {
    %c0_i32 = arith.constant 0 : i32
    return %arg0, %arg1 : i32, i32
  }
}

module attributes {stable_mosaic.version = 11 : i64} {
  func.func @_gemm_acc_kernel(%arg0: i32, %arg1: i32, %arg2: i32, %arg3: memref<32x128xbf16, #tpu.memory_space<vmem>>, %arg4: memref<128x128xbf16, #tpu.memory_space<vmem>>, %arg5: memref<1x128xf32, #tpu.memory_space<vmem>>, %arg6: memref<32x128xbf16, #tpu.memory_space<vmem>>, %arg7: memref<32x128xf32, #tpu.memory_space<vmem>>) attributes {dimension_semantics = [#tpu.dimension_semantics<parallel>, #tpu.dimension_semantics<parallel>, #tpu.dimension_semantics<arbitrary>], iteration_bounds = array<i64: 1, 1, 1>, scalar_prefetch = 0 : i64, scratch_operands = 1 : i64, tpu.core_type = #tpu.core_type<tc>, window_params = [{transform_indices = @transform_0, window_bounds = array<i64: 32, 128>}, {transform_indices = @transform_1, window_bounds = array<i64: 128, 128>}, {transform_indices = @transform_2, window_bounds = array<i64: 1, 128>}, {transform_indices = @transform_3, window_bounds = array<i64: 32, 128>}]} {
    %c0_i32 = arith.constant 0 : i32
    %0 = arith.cmpi eq, %arg2, %c0_i32 : i32
    %1 = arith.extui %0 : i1 to i32
    %c0_i32_0 = arith.constant 0 : i32
    %2 = arith.cmpi ne, %1, %c0_i32_0 : i32
    scf.if %2 {
      %cst_10 = arith.constant 0.000000e+00 : f32
      %12 = vector.broadcast %cst_10 : f32 to vector<32x128xf32>
      %c0_11 = arith.constant 0 : index
      %c0_12 = arith.constant 0 : index
      %13 = vector.load %arg7[%c0_11, %c0_12] : memref<32x128xf32, #tpu.memory_space<vmem>>, vector<32x128xf32>
      tpu.vector_store %arg7[%c0_11, %c0_12], %12 {strides = array<i32>} : memref<32x128xf32, #tpu.memory_space<vmem>>, vector<32x128xf32>,
    } else {
    }
    %c0 = arith.constant 0 : index
    %c0_1 = arith.constant 0 : index
    %3 = vector.load %arg7[%c0, %c0_1] : memref<32x128xf32, #tpu.memory_space<vmem>>, vector<32x128xf32>
    %c0_2 = arith.constant 0 : index
    %c0_3 = arith.constant 0 : index
    %4 = vector.load %arg3[%c0_2, %c0_3] : memref<32x128xbf16, #tpu.memory_space<vmem>>, vector<32x128xbf16>
    %c0_4 = arith.constant 0 : index
    %c0_5 = arith.constant 0 : index
    %5 = vector.load %arg4[%c0_4, %c0_5] : memref<128x128xbf16, #tpu.memory_space<vmem>>, vector<128x128xbf16>
    %cst = arith.constant dense<0.000000e+00> : vector<32x128xf32>
    %6 = tpu.matmul %4, %5, %cst {dimension_numbers = #tpu.dot_dimension_numbers<[1], [0], [0], [1], [0, 0, 1, 1], [], []>} : vector<32x128xbf16>, vector<128x128xbf16>, vector<32x128xf32> -> vector<32x128xf32>
    %7 = arith.addf %3, %6 : vector<32x128xf32>
    %c0_6 = arith.constant 0 : index
    %c0_7 = arith.constant 0 : index
    %8 = vector.load %arg7[%c0_6, %c0_7] : memref<32x128xf32, #tpu.memory_space<vmem>>, vector<32x128xf32>
    tpu.vector_store %arg7[%c0_6, %c0_7], %7 {strides = array<i32>} : memref<32x128xf32, #tpu.memory_space<vmem>>, vector<32x128xf32>,
    %c0_i32_8 = arith.constant 0 : i32
    %9 = arith.cmpi eq, %arg2, %c0_i32_8 : i32
    %10 = arith.extui %9 : i1 to i32
    %c0_i32_9 = arith.constant 0 : i32
    %11 = arith.cmpi ne, %10, %c0_i32_9 : i32
    scf.if %11 {
      %c0_10 = arith.constant 0 : index
      %c0_11 = arith.constant 0 : index
      %12 = vector.load %arg7[%c0_10, %c0_11] : memref<32x128xf32, #tpu.memory_space<vmem>>, vector<32x128xf32>
      %c0_12 = arith.constant 0 : index
      %c0_13 = arith.constant 0 : index
      %13 = vector.load %arg5[%c0_12, %c0_13] : memref<1x128xf32, #tpu.memory_space<vmem>>, vector<1x128xf32>
      %14 = vector.broadcast %13 : vector<1x128xf32> to vector<32x128xf32>
      %15 = arith.addf %12, %14 : vector<32x128xf32>
      %16 = arith.truncf %15 : vector<32x128xf32> to vector<32x128xbf16>
      %c0_14 = arith.constant 0 : index
      %c0_15 = arith.constant 0 : index
      %17 = vector.load %arg6[%c0_14, %c0_15] : memref<32x128xbf16, #tpu.memory_space<vmem>>, vector<32x128xbf16>
      tpu.vector_store %arg6[%c0_14, %c0_15], %16 {strides = array<i32>} : memref<32x128xbf16, #tpu.memory_space<vmem>>, vector<32x128xbf16>,
    } else {
    }
    return
  }
  func.func @transform_0(%arg0: i32, %arg1: i32, %arg2: i32) -> (i32, i32) {
    %c0_i32 = arith.constant 0 : i32
    return %arg0, %arg2 : i32, i32
  }
  func.func @transform_1(%arg0: i32, %arg1: i32, %arg2: i32) -> (i32, i32) {
    %c0_i32 = arith.constant 0 : i32
    return %arg2, %arg1 : i32, i32
  }
  func.func @transform_2(%arg0: i32, %arg1: i32, %arg2: i32) -> (i32, i32) {
    %c0_i32 = arith.constant 0 : i32
    %c0_i32_0 = arith.constant 0 : i32
    return %c0_i32, %arg1 : i32, i32
  }
  func.func @transform_3(%arg0: i32, %arg1: i32, %arg2: i32) -> (i32, i32) {
    %c0_i32 = arith.constant 0 : i32
    return %arg0, %arg1 : i32, i32
  }
}

module attributes {stable_mosaic.version = 11 : i64} {
  func.func @_gemm_acc_res_kernel(%arg0: i32, %arg1: i32, %arg2: i32, %arg3: memref<32x384xbf16, #tpu.memory_space<vmem>>, %arg4: memref<384x128xbf16, #tpu.memory_space<vmem>>, %arg5: memref<1x128xf32, #tpu.memory_space<vmem>>, %arg6: memref<32x128xbf16, #tpu.memory_space<vmem>>, %arg7: memref<32x128xbf16, #tpu.memory_space<vmem>>, %arg8: memref<32x128xf32, #tpu.memory_space<vmem>>) attributes {dimension_semantics = [#tpu.dimension_semantics<parallel>, #tpu.dimension_semantics<parallel>, #tpu.dimension_semantics<arbitrary>], iteration_bounds = array<i64: 1, 1, 1>, scalar_prefetch = 0 : i64, scratch_operands = 1 : i64, tpu.core_type = #tpu.core_type<tc>, window_params = [{transform_indices = @transform_0, window_bounds = array<i64: 32, 384>}, {transform_indices = @transform_1, window_bounds = array<i64: 384, 128>}, {transform_indices = @transform_2, window_bounds = array<i64: 1, 128>}, {transform_indices = @transform_3, window_bounds = array<i64: 32, 128>}, {transform_indices = @transform_4, window_bounds = array<i64: 32, 128>}]} {
    %c0_i32 = arith.constant 0 : i32
    %0 = arith.cmpi eq, %arg2, %c0_i32 : i32
    %1 = arith.extui %0 : i1 to i32
    %c0_i32_0 = arith.constant 0 : i32
    %2 = arith.cmpi ne, %1, %c0_i32_0 : i32
    scf.if %2 {
      %cst_10 = arith.constant 0.000000e+00 : f32
      %12 = vector.broadcast %cst_10 : f32 to vector<32x128xf32>
      %c0_11 = arith.constant 0 : index
      %c0_12 = arith.constant 0 : index
      %13 = vector.load %arg8[%c0_11, %c0_12] : memref<32x128xf32, #tpu.memory_space<vmem>>, vector<32x128xf32>
      tpu.vector_store %arg8[%c0_11, %c0_12], %12 {strides = array<i32>} : memref<32x128xf32, #tpu.memory_space<vmem>>, vector<32x128xf32>,
    } else {
    }
    %c0 = arith.constant 0 : index
    %c0_1 = arith.constant 0 : index
    %3 = vector.load %arg8[%c0, %c0_1] : memref<32x128xf32, #tpu.memory_space<vmem>>, vector<32x128xf32>
    %c0_2 = arith.constant 0 : index
    %c0_3 = arith.constant 0 : index
    %4 = vector.load %arg3[%c0_2, %c0_3] : memref<32x384xbf16, #tpu.memory_space<vmem>>, vector<32x384xbf16>
    %c0_4 = arith.constant 0 : index
    %c0_5 = arith.constant 0 : index
    %5 = vector.load %arg4[%c0_4, %c0_5] : memref<384x128xbf16, #tpu.memory_space<vmem>>, vector<384x128xbf16>
    %cst = arith.constant dense<0.000000e+00> : vector<32x128xf32>
    %6 = tpu.matmul %4, %5, %cst {dimension_numbers = #tpu.dot_dimension_numbers<[1], [0], [0], [1], [0, 0, 1, 1], [], []>} : vector<32x384xbf16>, vector<384x128xbf16>, vector<32x128xf32> -> vector<32x128xf32>
    %7 = arith.addf %3, %6 : vector<32x128xf32>
    %c0_6 = arith.constant 0 : index
    %c0_7 = arith.constant 0 : index
    %8 = vector.load %arg8[%c0_6, %c0_7] : memref<32x128xf32, #tpu.memory_space<vmem>>, vector<32x128xf32>
    tpu.vector_store %arg8[%c0_6, %c0_7], %7 {strides = array<i32>} : memref<32x128xf32, #tpu.memory_space<vmem>>, vector<32x128xf32>,
    %c0_i32_8 = arith.constant 0 : i32
    %9 = arith.cmpi eq, %arg2, %c0_i32_8 : i32
    %10 = arith.extui %9 : i1 to i32
    %c0_i32_9 = arith.constant 0 : i32
    %11 = arith.cmpi ne, %10, %c0_i32_9 : i32
    scf.if %11 {
      %c0_10 = arith.constant 0 : index
      %c0_11 = arith.constant 0 : index
      %12 = vector.load %arg8[%c0_10, %c0_11] : memref<32x128xf32, #tpu.memory_space<vmem>>, vector<32x128xf32>
      %c0_12 = arith.constant 0 : index
      %c0_13 = arith.constant 0 : index
      %13 = vector.load %arg5[%c0_12, %c0_13] : memref<1x128xf32, #tpu.memory_space<vmem>>, vector<1x128xf32>
      %14 = vector.broadcast %13 : vector<1x128xf32> to vector<32x128xf32>
      %15 = arith.addf %12, %14 : vector<32x128xf32>
      %c0_14 = arith.constant 0 : index
      %c0_15 = arith.constant 0 : index
      %16 = vector.load %arg6[%c0_14, %c0_15] : memref<32x128xbf16, #tpu.memory_space<vmem>>, vector<32x128xbf16>
      %17 = arith.extf %16 : vector<32x128xbf16> to vector<32x128xf32>
      %18 = arith.addf %15, %17 : vector<32x128xf32>
      %cst_16 = arith.constant 0.000000e+00 : f32
      %19 = vector.broadcast %cst_16 : f32 to vector<32x128xf32>
      %20 = arith.maximumf %18, %19 : vector<32x128xf32>
      %21 = arith.truncf %20 : vector<32x128xf32> to vector<32x128xbf16>
      %c0_17 = arith.constant 0 : index
      %c0_18 = arith.constant 0 : index
      %22 = vector.load %arg7[%c0_17, %c0_18] : memref<32x128xbf16, #tpu.memory_space<vmem>>, vector<32x128xbf16>
      tpu.vector_store %arg7[%c0_17, %c0_18], %21 {strides = array<i32>} : memref<32x128xbf16, #tpu.memory_space<vmem>>, vector<32x128xbf16>,
    } else {
    }
    return
  }
  func.func @transform_0(%arg0: i32, %arg1: i32, %arg2: i32) -> (i32, i32) {
    %c0_i32 = arith.constant 0 : i32
    return %arg0, %arg2 : i32, i32
  }
  func.func @transform_1(%arg0: i32, %arg1: i32, %arg2: i32) -> (i32, i32) {
    %c0_i32 = arith.constant 0 : i32
    return %arg2, %arg1 : i32, i32
  }
  func.func @transform_2(%arg0: i32, %arg1: i32, %arg2: i32) -> (i32, i32) {
    %c0_i32 = arith.constant 0 : i32
    %c0_i32_0 = arith.constant 0 : i32
    return %c0_i32, %arg1 : i32, i32
  }
  func.func @transform_3(%arg0: i32, %arg1: i32, %arg2: i32) -> (i32, i32) {
    %c0_i32 = arith.constant 0 : i32
    return %arg0, %arg1 : i32, i32
  }
  func.func @transform_4(%arg0: i32, %arg1: i32, %arg2: i32) -> (i32, i32) {
    %c0_i32 = arith.constant 0 : i32
    return %arg0, %arg1 : i32, i32
  }
}

module attributes {stable_mosaic.version = 11 : i64} {
  func.func @_gemm_acc_kernel(%arg0: i32, %arg1: i32, %arg2: i32, %arg3: memref<32x384xbf16, #tpu.memory_space<vmem>>, %arg4: memref<384x128xbf16, #tpu.memory_space<vmem>>, %arg5: memref<1x128xf32, #tpu.memory_space<vmem>>, %arg6: memref<32x128xbf16, #tpu.memory_space<vmem>>, %arg7: memref<32x128xf32, #tpu.memory_space<vmem>>) attributes {dimension_semantics = [#tpu.dimension_semantics<parallel>, #tpu.dimension_semantics<parallel>, #tpu.dimension_semantics<arbitrary>], iteration_bounds = array<i64: 1, 1, 1>, scalar_prefetch = 0 : i64, scratch_operands = 1 : i64, tpu.core_type = #tpu.core_type<tc>, window_params = [{transform_indices = @transform_0, window_bounds = array<i64: 32, 384>}, {transform_indices = @transform_1, window_bounds = array<i64: 384, 128>}, {transform_indices = @transform_2, window_bounds = array<i64: 1, 128>}, {transform_indices = @transform_3, window_bounds = array<i64: 32, 128>}]} {
    %c0_i32 = arith.constant 0 : i32
    %0 = arith.cmpi eq, %arg2, %c0_i32 : i32
    %1 = arith.extui %0 : i1 to i32
    %c0_i32_0 = arith.constant 0 : i32
    %2 = arith.cmpi ne, %1, %c0_i32_0 : i32
    scf.if %2 {
      %cst_10 = arith.constant 0.000000e+00 : f32
      %12 = vector.broadcast %cst_10 : f32 to vector<32x128xf32>
      %c0_11 = arith.constant 0 : index
      %c0_12 = arith.constant 0 : index
      %13 = vector.load %arg7[%c0_11, %c0_12] : memref<32x128xf32, #tpu.memory_space<vmem>>, vector<32x128xf32>
      tpu.vector_store %arg7[%c0_11, %c0_12], %12 {strides = array<i32>} : memref<32x128xf32, #tpu.memory_space<vmem>>, vector<32x128xf32>,
    } else {
    }
    %c0 = arith.constant 0 : index
    %c0_1 = arith.constant 0 : index
    %3 = vector.load %arg7[%c0, %c0_1] : memref<32x128xf32, #tpu.memory_space<vmem>>, vector<32x128xf32>
    %c0_2 = arith.constant 0 : index
    %c0_3 = arith.constant 0 : index
    %4 = vector.load %arg3[%c0_2, %c0_3] : memref<32x384xbf16, #tpu.memory_space<vmem>>, vector<32x384xbf16>
    %c0_4 = arith.constant 0 : index
    %c0_5 = arith.constant 0 : index
    %5 = vector.load %arg4[%c0_4, %c0_5] : memref<384x128xbf16, #tpu.memory_space<vmem>>, vector<384x128xbf16>
    %cst = arith.constant dense<0.000000e+00> : vector<32x128xf32>
    %6 = tpu.matmul %4, %5, %cst {dimension_numbers = #tpu.dot_dimension_numbers<[1], [0], [0], [1], [0, 0, 1, 1], [], []>} : vector<32x384xbf16>, vector<384x128xbf16>, vector<32x128xf32> -> vector<32x128xf32>
    %7 = arith.addf %3, %6 : vector<32x128xf32>
    %c0_6 = arith.constant 0 : index
    %c0_7 = arith.constant 0 : index
    %8 = vector.load %arg7[%c0_6, %c0_7] : memref<32x128xf32, #tpu.memory_space<vmem>>, vector<32x128xf32>
    tpu.vector_store %arg7[%c0_6, %c0_7], %7 {strides = array<i32>} : memref<32x128xf32, #tpu.memory_space<vmem>>, vector<32x128xf32>,
    %c0_i32_8 = arith.constant 0 : i32
    %9 = arith.cmpi eq, %arg2, %c0_i32_8 : i32
    %10 = arith.extui %9 : i1 to i32
    %c0_i32_9 = arith.constant 0 : i32
    %11 = arith.cmpi ne, %10, %c0_i32_9 : i32
    scf.if %11 {
      %c0_10 = arith.constant 0 : index
      %c0_11 = arith.constant 0 : index
      %12 = vector.load %arg7[%c0_10, %c0_11] : memref<32x128xf32, #tpu.memory_space<vmem>>, vector<32x128xf32>
      %c0_12 = arith.constant 0 : index
      %c0_13 = arith.constant 0 : index
      %13 = vector.load %arg5[%c0_12, %c0_13] : memref<1x128xf32, #tpu.memory_space<vmem>>, vector<1x128xf32>
      %14 = vector.broadcast %13 : vector<1x128xf32> to vector<32x128xf32>
      %15 = arith.addf %12, %14 : vector<32x128xf32>
      %cst_14 = arith.constant 0.000000e+00 : f32
      %16 = vector.broadcast %cst_14 : f32 to vector<32x128xf32>
      %17 = arith.maximumf %15, %16 : vector<32x128xf32>
      %18 = arith.truncf %17 : vector<32x128xf32> to vector<32x128xbf16>
      %c0_15 = arith.constant 0 : index
      %c0_16 = arith.constant 0 : index
      %19 = vector.load %arg6[%c0_15, %c0_16] : memref<32x128xbf16, #tpu.memory_space<vmem>>, vector<32x128xbf16>
      tpu.vector_store %arg6[%c0_15, %c0_16], %18 {strides = array<i32>} : memref<32x128xbf16, #tpu.memory_space<vmem>>, vector<32x128xbf16>,
    } else {
    }
    return
  }
  func.func @transform_0(%arg0: i32, %arg1: i32, %arg2: i32) -> (i32, i32) {
    %c0_i32 = arith.constant 0 : i32
    return %arg0, %arg2 : i32, i32
  }
  func.func @transform_1(%arg0: i32, %arg1: i32, %arg2: i32) -> (i32, i32) {
    %c0_i32 = arith.constant 0 : i32
    return %arg2, %arg1 : i32, i32
  }
  func.func @transform_2(%arg0: i32, %arg1: i32, %arg2: i32) -> (i32, i32) {
    %c0_i32 = arith.constant 0 : i32
    %c0_i32_0 = arith.constant 0 : i32
    return %c0_i32, %arg1 : i32, i32
  }
  func.func @transform_3(%arg0: i32, %arg1: i32, %arg2: i32) -> (i32, i32) {
    %c0_i32 = arith.constant 0 : i32
    return %arg0, %arg1 : i32, i32
  }
}

module attributes {stable_mosaic.version = 11 : i64} {
  func.func @_gemm_acc_kernel(%arg0: i32, %arg1: i32, %arg2: i32, %arg3: memref<8x384xbf16, #tpu.memory_space<vmem>>, %arg4: memref<384x128xbf16, #tpu.memory_space<vmem>>, %arg5: memref<1x128xf32, #tpu.memory_space<vmem>>, %arg6: memref<8x128xbf16, #tpu.memory_space<vmem>>, %arg7: memref<8x128xf32, #tpu.memory_space<vmem>>) attributes {dimension_semantics = [#tpu.dimension_semantics<parallel>, #tpu.dimension_semantics<parallel>, #tpu.dimension_semantics<arbitrary>], iteration_bounds = array<i64: 1, 1, 1>, scalar_prefetch = 0 : i64, scratch_operands = 1 : i64, tpu.core_type = #tpu.core_type<tc>, window_params = [{transform_indices = @transform_0, window_bounds = array<i64: 8, 384>}, {transform_indices = @transform_1, window_bounds = array<i64: 384, 128>}, {transform_indices = @transform_2, window_bounds = array<i64: 1, 128>}, {transform_indices = @transform_3, window_bounds = array<i64: 8, 128>}]} {
    %c0_i32 = arith.constant 0 : i32
    %0 = arith.cmpi eq, %arg2, %c0_i32 : i32
    %1 = arith.extui %0 : i1 to i32
    %c0_i32_0 = arith.constant 0 : i32
    %2 = arith.cmpi ne, %1, %c0_i32_0 : i32
    scf.if %2 {
      %cst_10 = arith.constant 0.000000e+00 : f32
      %12 = vector.broadcast %cst_10 : f32 to vector<8x128xf32>
      %c0_11 = arith.constant 0 : index
      %c0_12 = arith.constant 0 : index
      %13 = vector.load %arg7[%c0_11, %c0_12] : memref<8x128xf32, #tpu.memory_space<vmem>>, vector<8x128xf32>
      tpu.vector_store %arg7[%c0_11, %c0_12], %12 {strides = array<i32>} : memref<8x128xf32, #tpu.memory_space<vmem>>, vector<8x128xf32>,
    } else {
    }
    %c0 = arith.constant 0 : index
    %c0_1 = arith.constant 0 : index
    %3 = vector.load %arg7[%c0, %c0_1] : memref<8x128xf32, #tpu.memory_space<vmem>>, vector<8x128xf32>
    %c0_2 = arith.constant 0 : index
    %c0_3 = arith.constant 0 : index
    %4 = vector.load %arg3[%c0_2, %c0_3] : memref<8x384xbf16, #tpu.memory_space<vmem>>, vector<8x384xbf16>
    %c0_4 = arith.constant 0 : index
    %c0_5 = arith.constant 0 : index
    %5 = vector.load %arg4[%c0_4, %c0_5] : memref<384x128xbf16, #tpu.memory_space<vmem>>, vector<384x128xbf16>
    %cst = arith.constant dense<0.000000e+00> : vector<8x128xf32>
    %6 = tpu.matmul %4, %5, %cst {dimension_numbers = #tpu.dot_dimension_numbers<[1], [0], [0], [1], [0, 0, 1, 1], [], []>} : vector<8x384xbf16>, vector<384x128xbf16>, vector<8x128xf32> -> vector<8x128xf32>
    %7 = arith.addf %3, %6 : vector<8x128xf32>
    %c0_6 = arith.constant 0 : index
    %c0_7 = arith.constant 0 : index
    %8 = vector.load %arg7[%c0_6, %c0_7] : memref<8x128xf32, #tpu.memory_space<vmem>>, vector<8x128xf32>
    tpu.vector_store %arg7[%c0_6, %c0_7], %7 {strides = array<i32>} : memref<8x128xf32, #tpu.memory_space<vmem>>, vector<8x128xf32>,
    %c0_i32_8 = arith.constant 0 : i32
    %9 = arith.cmpi eq, %arg2, %c0_i32_8 : i32
    %10 = arith.extui %9 : i1 to i32
    %c0_i32_9 = arith.constant 0 : i32
    %11 = arith.cmpi ne, %10, %c0_i32_9 : i32
    scf.if %11 {
      %c0_10 = arith.constant 0 : index
      %c0_11 = arith.constant 0 : index
      %12 = vector.load %arg7[%c0_10, %c0_11] : memref<8x128xf32, #tpu.memory_space<vmem>>, vector<8x128xf32>
      %c0_12 = arith.constant 0 : index
      %c0_13 = arith.constant 0 : index
      %13 = vector.load %arg5[%c0_12, %c0_13] : memref<1x128xf32, #tpu.memory_space<vmem>>, vector<1x128xf32>
      %14 = vector.broadcast %13 : vector<1x128xf32> to vector<8x128xf32>
      %15 = arith.addf %12, %14 : vector<8x128xf32>
      %cst_14 = arith.constant 0.000000e+00 : f32
      %16 = vector.broadcast %cst_14 : f32 to vector<8x128xf32>
      %17 = arith.maximumf %15, %16 : vector<8x128xf32>
      %18 = arith.truncf %17 : vector<8x128xf32> to vector<8x128xbf16>
      %c0_15 = arith.constant 0 : index
      %c0_16 = arith.constant 0 : index
      %19 = vector.load %arg6[%c0_15, %c0_16] : memref<8x128xbf16, #tpu.memory_space<vmem>>, vector<8x128xbf16>
      tpu.vector_store %arg6[%c0_15, %c0_16], %18 {strides = array<i32>} : memref<8x128xbf16, #tpu.memory_space<vmem>>, vector<8x128xbf16>,
    } else {
    }
    return
  }
  func.func @transform_0(%arg0: i32, %arg1: i32, %arg2: i32) -> (i32, i32) {
    %c0_i32 = arith.constant 0 : i32
    return %arg0, %arg2 : i32, i32
  }
  func.func @transform_1(%arg0: i32, %arg1: i32, %arg2: i32) -> (i32, i32) {
    %c0_i32 = arith.constant 0 : i32
    return %arg2, %arg1 : i32, i32
  }
  func.func @transform_2(%arg0: i32, %arg1: i32, %arg2: i32) -> (i32, i32) {
    %c0_i32 = arith.constant 0 : i32
    %c0_i32_0 = arith.constant 0 : i32
    return %c0_i32, %arg1 : i32, i32
  }
  func.func @transform_3(%arg0: i32, %arg1: i32, %arg2: i32) -> (i32, i32) {
    %c0_i32 = arith.constant 0 : i32
    return %arg0, %arg1 : i32, i32
  }
}

module attributes {stable_mosaic.version = 11 : i64} {
  func.func @_gemm_acc_kernel(%arg0: i32, %arg1: i32, %arg2: i32, %arg3: memref<8x128xbf16, #tpu.memory_space<vmem>>, %arg4: memref<128x128xbf16, #tpu.memory_space<vmem>>, %arg5: memref<1x128xf32, #tpu.memory_space<vmem>>, %arg6: memref<8x128xbf16, #tpu.memory_space<vmem>>, %arg7: memref<8x128xf32, #tpu.memory_space<vmem>>) attributes {dimension_semantics = [#tpu.dimension_semantics<parallel>, #tpu.dimension_semantics<parallel>, #tpu.dimension_semantics<arbitrary>], iteration_bounds = array<i64: 1, 1, 1>, scalar_prefetch = 0 : i64, scratch_operands = 1 : i64, tpu.core_type = #tpu.core_type<tc>, window_params = [{transform_indices = @transform_0, window_bounds = array<i64: 8, 128>}, {transform_indices = @transform_1, window_bounds = array<i64: 128, 128>}, {transform_indices = @transform_2, window_bounds = array<i64: 1, 128>}, {transform_indices = @transform_3, window_bounds = array<i64: 8, 128>}]} {
    %c0_i32 = arith.constant 0 : i32
    %0 = arith.cmpi eq, %arg2, %c0_i32 : i32
    %1 = arith.extui %0 : i1 to i32
    %c0_i32_0 = arith.constant 0 : i32
    %2 = arith.cmpi ne, %1, %c0_i32_0 : i32
    scf.if %2 {
      %cst_10 = arith.constant 0.000000e+00 : f32
      %12 = vector.broadcast %cst_10 : f32 to vector<8x128xf32>
      %c0_11 = arith.constant 0 : index
      %c0_12 = arith.constant 0 : index
      %13 = vector.load %arg7[%c0_11, %c0_12] : memref<8x128xf32, #tpu.memory_space<vmem>>, vector<8x128xf32>
      tpu.vector_store %arg7[%c0_11, %c0_12], %12 {strides = array<i32>} : memref<8x128xf32, #tpu.memory_space<vmem>>, vector<8x128xf32>,
    } else {
    }
    %c0 = arith.constant 0 : index
    %c0_1 = arith.constant 0 : index
    %3 = vector.load %arg7[%c0, %c0_1] : memref<8x128xf32, #tpu.memory_space<vmem>>, vector<8x128xf32>
    %c0_2 = arith.constant 0 : index
    %c0_3 = arith.constant 0 : index
    %4 = vector.load %arg3[%c0_2, %c0_3] : memref<8x128xbf16, #tpu.memory_space<vmem>>, vector<8x128xbf16>
    %c0_4 = arith.constant 0 : index
    %c0_5 = arith.constant 0 : index
    %5 = vector.load %arg4[%c0_4, %c0_5] : memref<128x128xbf16, #tpu.memory_space<vmem>>, vector<128x128xbf16>
    %cst = arith.constant dense<0.000000e+00> : vector<8x128xf32>
    %6 = tpu.matmul %4, %5, %cst {dimension_numbers = #tpu.dot_dimension_numbers<[1], [0], [0], [1], [0, 0, 1, 1], [], []>} : vector<8x128xbf16>, vector<128x128xbf16>, vector<8x128xf32> -> vector<8x128xf32>
    %7 = arith.addf %3, %6 : vector<8x128xf32>
    %c0_6 = arith.constant 0 : index
    %c0_7 = arith.constant 0 : index
    %8 = vector.load %arg7[%c0_6, %c0_7] : memref<8x128xf32, #tpu.memory_space<vmem>>, vector<8x128xf32>
    tpu.vector_store %arg7[%c0_6, %c0_7], %7 {strides = array<i32>} : memref<8x128xf32, #tpu.memory_space<vmem>>, vector<8x128xf32>,
    %c0_i32_8 = arith.constant 0 : i32
    %9 = arith.cmpi eq, %arg2, %c0_i32_8 : i32
    %10 = arith.extui %9 : i1 to i32
    %c0_i32_9 = arith.constant 0 : i32
    %11 = arith.cmpi ne, %10, %c0_i32_9 : i32
    scf.if %11 {
      %c0_10 = arith.constant 0 : index
      %c0_11 = arith.constant 0 : index
      %12 = vector.load %arg7[%c0_10, %c0_11] : memref<8x128xf32, #tpu.memory_space<vmem>>, vector<8x128xf32>
      %c0_12 = arith.constant 0 : index
      %c0_13 = arith.constant 0 : index
      %13 = vector.load %arg5[%c0_12, %c0_13] : memref<1x128xf32, #tpu.memory_space<vmem>>, vector<1x128xf32>
      %14 = vector.broadcast %13 : vector<1x128xf32> to vector<8x128xf32>
      %15 = arith.addf %12, %14 : vector<8x128xf32>
      %16 = arith.truncf %15 : vector<8x128xf32> to vector<8x128xbf16>
      %c0_14 = arith.constant 0 : index
      %c0_15 = arith.constant 0 : index
      %17 = vector.load %arg6[%c0_14, %c0_15] : memref<8x128xbf16, #tpu.memory_space<vmem>>, vector<8x128xbf16>
      tpu.vector_store %arg6[%c0_14, %c0_15], %16 {strides = array<i32>} : memref<8x128xbf16, #tpu.memory_space<vmem>>, vector<8x128xbf16>,
    } else {
    }
    return
  }
  func.func @transform_0(%arg0: i32, %arg1: i32, %arg2: i32) -> (i32, i32) {
    %c0_i32 = arith.constant 0 : i32
    return %arg0, %arg2 : i32, i32
  }
  func.func @transform_1(%arg0: i32, %arg1: i32, %arg2: i32) -> (i32, i32) {
    %c0_i32 = arith.constant 0 : i32
    return %arg2, %arg1 : i32, i32
  }
  func.func @transform_2(%arg0: i32, %arg1: i32, %arg2: i32) -> (i32, i32) {
    %c0_i32 = arith.constant 0 : i32
    %c0_i32_0 = arith.constant 0 : i32
    return %c0_i32, %arg1 : i32, i32
  }
  func.func @transform_3(%arg0: i32, %arg1: i32, %arg2: i32) -> (i32, i32) {
    %c0_i32 = arith.constant 0 : i32
    return %arg0, %arg1 : i32, i32
  }
}

module attributes {stable_mosaic.version = 11 : i64} {
  func.func @_gemm_acc_res_kernel(%arg0: i32, %arg1: i32, %arg2: i32, %arg3: memref<8x640xbf16, #tpu.memory_space<vmem>>, %arg4: memref<640x128xbf16, #tpu.memory_space<vmem>>, %arg5: memref<1x128xf32, #tpu.memory_space<vmem>>, %arg6: memref<8x128xbf16, #tpu.memory_space<vmem>>, %arg7: memref<8x128xbf16, #tpu.memory_space<vmem>>, %arg8: memref<8x128xf32, #tpu.memory_space<vmem>>) attributes {dimension_semantics = [#tpu.dimension_semantics<parallel>, #tpu.dimension_semantics<parallel>, #tpu.dimension_semantics<arbitrary>], iteration_bounds = array<i64: 1, 1, 1>, scalar_prefetch = 0 : i64, scratch_operands = 1 : i64, tpu.core_type = #tpu.core_type<tc>, window_params = [{transform_indices = @transform_0, window_bounds = array<i64: 8, 640>}, {transform_indices = @transform_1, window_bounds = array<i64: 640, 128>}, {transform_indices = @transform_2, window_bounds = array<i64: 1, 128>}, {transform_indices = @transform_3, window_bounds = array<i64: 8, 128>}, {transform_indices = @transform_4, window_bounds = array<i64: 8, 128>}]} {
    %c0_i32 = arith.constant 0 : i32
    %0 = arith.cmpi eq, %arg2, %c0_i32 : i32
    %1 = arith.extui %0 : i1 to i32
    %c0_i32_0 = arith.constant 0 : i32
    %2 = arith.cmpi ne, %1, %c0_i32_0 : i32
    scf.if %2 {
      %cst_10 = arith.constant 0.000000e+00 : f32
      %12 = vector.broadcast %cst_10 : f32 to vector<8x128xf32>
      %c0_11 = arith.constant 0 : index
      %c0_12 = arith.constant 0 : index
      %13 = vector.load %arg8[%c0_11, %c0_12] : memref<8x128xf32, #tpu.memory_space<vmem>>, vector<8x128xf32>
      tpu.vector_store %arg8[%c0_11, %c0_12], %12 {strides = array<i32>} : memref<8x128xf32, #tpu.memory_space<vmem>>, vector<8x128xf32>,
    } else {
    }
    %c0 = arith.constant 0 : index
    %c0_1 = arith.constant 0 : index
    %3 = vector.load %arg8[%c0, %c0_1] : memref<8x128xf32, #tpu.memory_space<vmem>>, vector<8x128xf32>
    %c0_2 = arith.constant 0 : index
    %c0_3 = arith.constant 0 : index
    %4 = vector.load %arg3[%c0_2, %c0_3] : memref<8x640xbf16, #tpu.memory_space<vmem>>, vector<8x640xbf16>
    %c0_4 = arith.constant 0 : index
    %c0_5 = arith.constant 0 : index
    %5 = vector.load %arg4[%c0_4, %c0_5] : memref<640x128xbf16, #tpu.memory_space<vmem>>, vector<640x128xbf16>
    %cst = arith.constant dense<0.000000e+00> : vector<8x128xf32>
    %6 = tpu.matmul %4, %5, %cst {dimension_numbers = #tpu.dot_dimension_numbers<[1], [0], [0], [1], [0, 0, 1, 1], [], []>} : vector<8x640xbf16>, vector<640x128xbf16>, vector<8x128xf32> -> vector<8x128xf32>
    %7 = arith.addf %3, %6 : vector<8x128xf32>
    %c0_6 = arith.constant 0 : index
    %c0_7 = arith.constant 0 : index
    %8 = vector.load %arg8[%c0_6, %c0_7] : memref<8x128xf32, #tpu.memory_space<vmem>>, vector<8x128xf32>
    tpu.vector_store %arg8[%c0_6, %c0_7], %7 {strides = array<i32>} : memref<8x128xf32, #tpu.memory_space<vmem>>, vector<8x128xf32>,
    %c0_i32_8 = arith.constant 0 : i32
    %9 = arith.cmpi eq, %arg2, %c0_i32_8 : i32
    %10 = arith.extui %9 : i1 to i32
    %c0_i32_9 = arith.constant 0 : i32
    %11 = arith.cmpi ne, %10, %c0_i32_9 : i32
    scf.if %11 {
      %c0_10 = arith.constant 0 : index
      %c0_11 = arith.constant 0 : index
      %12 = vector.load %arg8[%c0_10, %c0_11] : memref<8x128xf32, #tpu.memory_space<vmem>>, vector<8x128xf32>
      %c0_12 = arith.constant 0 : index
      %c0_13 = arith.constant 0 : index
      %13 = vector.load %arg5[%c0_12, %c0_13] : memref<1x128xf32, #tpu.memory_space<vmem>>, vector<1x128xf32>
      %14 = vector.broadcast %13 : vector<1x128xf32> to vector<8x128xf32>
      %15 = arith.addf %12, %14 : vector<8x128xf32>
      %c0_14 = arith.constant 0 : index
      %c0_15 = arith.constant 0 : index
      %16 = vector.load %arg6[%c0_14, %c0_15] : memref<8x128xbf16, #tpu.memory_space<vmem>>, vector<8x128xbf16>
      %17 = arith.extf %16 : vector<8x128xbf16> to vector<8x128xf32>
      %18 = arith.addf %15, %17 : vector<8x128xf32>
      %cst_16 = arith.constant 0.000000e+00 : f32
      %19 = vector.broadcast %cst_16 : f32 to vector<8x128xf32>
      %20 = arith.maximumf %18, %19 : vector<8x128xf32>
      %21 = arith.truncf %20 : vector<8x128xf32> to vector<8x128xbf16>
      %c0_17 = arith.constant 0 : index
      %c0_18 = arith.constant 0 : index
      %22 = vector.load %arg7[%c0_17, %c0_18] : memref<8x128xbf16, #tpu.memory_space<vmem>>, vector<8x128xbf16>
      tpu.vector_store %arg7[%c0_17, %c0_18], %21 {strides = array<i32>} : memref<8x128xbf16, #tpu.memory_space<vmem>>, vector<8x128xbf16>,
    } else {
    }
    return
  }
  func.func @transform_0(%arg0: i32, %arg1: i32, %arg2: i32) -> (i32, i32) {
    %c0_i32 = arith.constant 0 : i32
    return %arg0, %arg2 : i32, i32
  }
  func.func @transform_1(%arg0: i32, %arg1: i32, %arg2: i32) -> (i32, i32) {
    %c0_i32 = arith.constant 0 : i32
    return %arg2, %arg1 : i32, i32
  }
  func.func @transform_2(%arg0: i32, %arg1: i32, %arg2: i32) -> (i32, i32) {
    %c0_i32 = arith.constant 0 : i32
    %c0_i32_0 = arith.constant 0 : i32
    return %c0_i32, %arg1 : i32, i32
  }
  func.func @transform_3(%arg0: i32, %arg1: i32, %arg2: i32) -> (i32, i32) {
    %c0_i32 = arith.constant 0 : i32
    return %arg0, %arg1 : i32, i32
  }
  func.func @transform_4(%arg0: i32, %arg1: i32, %arg2: i32) -> (i32, i32) {
    %c0_i32 = arith.constant 0 : i32
    return %arg0, %arg1 : i32, i32
  }
}

module attributes {stable_mosaic.version = 11 : i64} {
  func.func @_gemm_acc_kernel(%arg0: i32, %arg1: i32, %arg2: i32, %arg3: memref<8x640xbf16, #tpu.memory_space<vmem>>, %arg4: memref<640x128xbf16, #tpu.memory_space<vmem>>, %arg5: memref<1x128xf32, #tpu.memory_space<vmem>>, %arg6: memref<8x128xbf16, #tpu.memory_space<vmem>>, %arg7: memref<8x128xf32, #tpu.memory_space<vmem>>) attributes {dimension_semantics = [#tpu.dimension_semantics<parallel>, #tpu.dimension_semantics<parallel>, #tpu.dimension_semantics<arbitrary>], iteration_bounds = array<i64: 1, 1, 1>, scalar_prefetch = 0 : i64, scratch_operands = 1 : i64, tpu.core_type = #tpu.core_type<tc>, window_params = [{transform_indices = @transform_0, window_bounds = array<i64: 8, 640>}, {transform_indices = @transform_1, window_bounds = array<i64: 640, 128>}, {transform_indices = @transform_2, window_bounds = array<i64: 1, 128>}, {transform_indices = @transform_3, window_bounds = array<i64: 8, 128>}]} {
    %c0_i32 = arith.constant 0 : i32
    %0 = arith.cmpi eq, %arg2, %c0_i32 : i32
    %1 = arith.extui %0 : i1 to i32
    %c0_i32_0 = arith.constant 0 : i32
    %2 = arith.cmpi ne, %1, %c0_i32_0 : i32
    scf.if %2 {
      %cst_10 = arith.constant 0.000000e+00 : f32
      %12 = vector.broadcast %cst_10 : f32 to vector<8x128xf32>
      %c0_11 = arith.constant 0 : index
      %c0_12 = arith.constant 0 : index
      %13 = vector.load %arg7[%c0_11, %c0_12] : memref<8x128xf32, #tpu.memory_space<vmem>>, vector<8x128xf32>
      tpu.vector_store %arg7[%c0_11, %c0_12], %12 {strides = array<i32>} : memref<8x128xf32, #tpu.memory_space<vmem>>, vector<8x128xf32>,
    } else {
    }
    %c0 = arith.constant 0 : index
    %c0_1 = arith.constant 0 : index
    %3 = vector.load %arg7[%c0, %c0_1] : memref<8x128xf32, #tpu.memory_space<vmem>>, vector<8x128xf32>
    %c0_2 = arith.constant 0 : index
    %c0_3 = arith.constant 0 : index
    %4 = vector.load %arg3[%c0_2, %c0_3] : memref<8x640xbf16, #tpu.memory_space<vmem>>, vector<8x640xbf16>
    %c0_4 = arith.constant 0 : index
    %c0_5 = arith.constant 0 : index
    %5 = vector.load %arg4[%c0_4, %c0_5] : memref<640x128xbf16, #tpu.memory_space<vmem>>, vector<640x128xbf16>
    %cst = arith.constant dense<0.000000e+00> : vector<8x128xf32>
    %6 = tpu.matmul %4, %5, %cst {dimension_numbers = #tpu.dot_dimension_numbers<[1], [0], [0], [1], [0, 0, 1, 1], [], []>} : vector<8x640xbf16>, vector<640x128xbf16>, vector<8x128xf32> -> vector<8x128xf32>
    %7 = arith.addf %3, %6 : vector<8x128xf32>
    %c0_6 = arith.constant 0 : index
    %c0_7 = arith.constant 0 : index
    %8 = vector.load %arg7[%c0_6, %c0_7] : memref<8x128xf32, #tpu.memory_space<vmem>>, vector<8x128xf32>
    tpu.vector_store %arg7[%c0_6, %c0_7], %7 {strides = array<i32>} : memref<8x128xf32, #tpu.memory_space<vmem>>, vector<8x128xf32>,
    %c0_i32_8 = arith.constant 0 : i32
    %9 = arith.cmpi eq, %arg2, %c0_i32_8 : i32
    %10 = arith.extui %9 : i1 to i32
    %c0_i32_9 = arith.constant 0 : i32
    %11 = arith.cmpi ne, %10, %c0_i32_9 : i32
    scf.if %11 {
      %c0_10 = arith.constant 0 : index
      %c0_11 = arith.constant 0 : index
      %12 = vector.load %arg7[%c0_10, %c0_11] : memref<8x128xf32, #tpu.memory_space<vmem>>, vector<8x128xf32>
      %c0_12 = arith.constant 0 : index
      %c0_13 = arith.constant 0 : index
      %13 = vector.load %arg5[%c0_12, %c0_13] : memref<1x128xf32, #tpu.memory_space<vmem>>, vector<1x128xf32>
      %14 = vector.broadcast %13 : vector<1x128xf32> to vector<8x128xf32>
      %15 = arith.addf %12, %14 : vector<8x128xf32>
      %cst_14 = arith.constant 0.000000e+00 : f32
      %16 = vector.broadcast %cst_14 : f32 to vector<8x128xf32>
      %17 = arith.maximumf %15, %16 : vector<8x128xf32>
      %18 = arith.truncf %17 : vector<8x128xf32> to vector<8x128xbf16>
      %c0_15 = arith.constant 0 : index
      %c0_16 = arith.constant 0 : index
      %19 = vector.load %arg6[%c0_15, %c0_16] : memref<8x128xbf16, #tpu.memory_space<vmem>>, vector<8x128xbf16>
      tpu.vector_store %arg6[%c0_15, %c0_16], %18 {strides = array<i32>} : memref<8x128xbf16, #tpu.memory_space<vmem>>, vector<8x128xbf16>,
    } else {
    }
    return
  }
  func.func @transform_0(%arg0: i32, %arg1: i32, %arg2: i32) -> (i32, i32) {
    %c0_i32 = arith.constant 0 : i32
    return %arg0, %arg2 : i32, i32
  }
  func.func @transform_1(%arg0: i32, %arg1: i32, %arg2: i32) -> (i32, i32) {
    %c0_i32 = arith.constant 0 : i32
    return %arg2, %arg1 : i32, i32
  }
  func.func @transform_2(%arg0: i32, %arg1: i32, %arg2: i32) -> (i32, i32) {
    %c0_i32 = arith.constant 0 : i32
    %c0_i32_0 = arith.constant 0 : i32
    return %c0_i32, %arg1 : i32, i32
  }
  func.func @transform_3(%arg0: i32, %arg1: i32, %arg2: i32) -> (i32, i32) {
    %c0_i32 = arith.constant 0 : i32
    return %arg0, %arg1 : i32, i32
  }
}

module attributes {stable_mosaic.version = 11 : i64} {
  func.func @_mlp_head_kernel(%arg0: i32, %arg1: memref<8x256xbf16, #tpu.memory_space<vmem>>, %arg2: memref<256x512xbf16, #tpu.memory_space<vmem>>, %arg3: memref<1x512xf32, #tpu.memory_space<vmem>>, %arg4: memref<512x256xbf16, #tpu.memory_space<vmem>>, %arg5: memref<1x256xf32, #tpu.memory_space<vmem>>, %arg6: memref<256x128xbf16, #tpu.memory_space<vmem>>, %arg7: memref<1x128xf32, #tpu.memory_space<vmem>>, %arg8: memref<128x384xbf16, #tpu.memory_space<vmem>>, %arg9: memref<1x384xf32, #tpu.memory_space<vmem>>, %arg10: memref<8x384xf32, #tpu.memory_space<vmem>>) attributes {dimension_semantics = [#tpu.dimension_semantics<arbitrary>], iteration_bounds = array<i64: 1>, scalar_prefetch = 0 : i64, scratch_operands = 0 : i64, tpu.core_type = #tpu.core_type<tc>, window_params = [{pipeline_mode = #tpu.pipeline_mode<synchronous>, transform_indices = @transform_0, window_bounds = array<i64: 8, 256>}, {pipeline_mode = #tpu.pipeline_mode<synchronous>, transform_indices = @transform_1, window_bounds = array<i64: 256, 512>}, {pipeline_mode = #tpu.pipeline_mode<synchronous>, transform_indices = @transform_2, window_bounds = array<i64: 1, 512>}, {pipeline_mode = #tpu.pipeline_mode<synchronous>, transform_indices = @transform_3, window_bounds = array<i64: 512, 256>}, {pipeline_mode = #tpu.pipeline_mode<synchronous>, transform_indices = @transform_4, window_bounds = array<i64: 1, 256>}, {pipeline_mode = #tpu.pipeline_mode<synchronous>, transform_indices = @transform_5, window_bounds = array<i64: 256, 128>}, {pipeline_mode = #tpu.pipeline_mode<synchronous>, transform_indices = @transform_6, window_bounds = array<i64: 1, 128>}, {pipeline_mode = #tpu.pipeline_mode<synchronous>, transform_indices = @transform_7, window_bounds = array<i64: 128, 384>}, {pipeline_mode = #tpu.pipeline_mode<synchronous>, transform_indices = @transform_8, window_bounds = array<i64: 1, 384>}, {pipeline_mode = #tpu.pipeline_mode<synchronous>, transform_indices = @transform_9, window_bounds = array<i64: 8, 384>}]} {
    %c0 = arith.constant 0 : index
    %c0_0 = arith.constant 0 : index
    %0 = vector.load %arg1[%c0, %c0_0] : memref<8x256xbf16, #tpu.memory_space<vmem>>, vector<8x256xbf16>
    %1 = arith.extf %0 : vector<8x256xbf16> to vector<8x256xf32>
    %cst = arith.constant 0.000000e+00 : f32
    %2 = vector.broadcast %cst : f32 to vector<8x256xf32>
    %3 = arith.maximumf %1, %2 : vector<8x256xf32>
    %4 = arith.truncf %3 : vector<8x256xf32> to vector<8x256xbf16>
    %c0_1 = arith.constant 0 : index
    %c0_2 = arith.constant 0 : index
    %5 = vector.load %arg2[%c0_1, %c0_2] : memref<256x512xbf16, #tpu.memory_space<vmem>>, vector<256x512xbf16>
    %cst_3 = arith.constant dense<0.000000e+00> : vector<8x512xf32>
    %6 = tpu.matmul %4, %5, %cst_3 {dimension_numbers = #tpu.dot_dimension_numbers<[1], [0], [0], [1], [0, 0, 1, 1], [], []>} : vector<8x256xbf16>, vector<256x512xbf16>, vector<8x512xf32> -> vector<8x512xf32>
    %c0_4 = arith.constant 0 : index
    %c0_5 = arith.constant 0 : index
    %7 = vector.load %arg3[%c0_4, %c0_5] : memref<1x512xf32, #tpu.memory_space<vmem>>, vector<1x512xf32>
    %8 = vector.broadcast %7 : vector<1x512xf32> to vector<8x512xf32>
    %9 = arith.addf %6, %8 : vector<8x512xf32>
    %cst_6 = arith.constant 0.000000e+00 : f32
    %10 = vector.broadcast %cst_6 : f32 to vector<8x512xf32>
    %11 = arith.maximumf %9, %10 : vector<8x512xf32>
    %12 = arith.truncf %11 : vector<8x512xf32> to vector<8x512xbf16>
    %c0_7 = arith.constant 0 : index
    %c0_8 = arith.constant 0 : index
    %13 = vector.load %arg4[%c0_7, %c0_8] : memref<512x256xbf16, #tpu.memory_space<vmem>>, vector<512x256xbf16>
    %cst_9 = arith.constant dense<0.000000e+00> : vector<8x256xf32>
    %14 = tpu.matmul %12, %13, %cst_9 {dimension_numbers = #tpu.dot_dimension_numbers<[1], [0], [0], [1], [0, 0, 1, 1], [], []>} : vector<8x512xbf16>, vector<512x256xbf16>, vector<8x256xf32> -> vector<8x256xf32>
    %c0_10 = arith.constant 0 : index
    %c0_11 = arith.constant 0 : index
    %15 = vector.load %arg5[%c0_10, %c0_11] : memref<1x256xf32, #tpu.memory_space<vmem>>, vector<1x256xf32>
    %16 = vector.broadcast %15 : vector<1x256xf32> to vector<8x256xf32>
    %17 = arith.addf %14, %16 : vector<8x256xf32>
    %cst_12 = arith.constant 0.000000e+00 : f32
    %18 = vector.broadcast %cst_12 : f32 to vector<8x256xf32>
    %19 = arith.maximumf %17, %18 : vector<8x256xf32>
    %20 = arith.truncf %19 : vector<8x256xf32> to vector<8x256xbf16>
    %c0_13 = arith.constant 0 : index
    %c0_14 = arith.constant 0 : index
    %21 = vector.load %arg6[%c0_13, %c0_14] : memref<256x128xbf16, #tpu.memory_space<vmem>>, vector<256x128xbf16>
    %cst_15 = arith.constant dense<0.000000e+00> : vector<8x128xf32>
    %22 = tpu.matmul %20, %21, %cst_15 {dimension_numbers = #tpu.dot_dimension_numbers<[1], [0], [0], [1], [0, 0, 1, 1], [], []>} : vector<8x256xbf16>, vector<256x128xbf16>, vector<8x128xf32> -> vector<8x128xf32>
    %c0_16 = arith.constant 0 : index
    %c0_17 = arith.constant 0 : index
    %23 = vector.load %arg7[%c0_16, %c0_17] : memref<1x128xf32, #tpu.memory_space<vmem>>, vector<1x128xf32>
    %24 = vector.broadcast %23 : vector<1x128xf32> to vector<8x128xf32>
    %25 = arith.addf %22, %24 : vector<8x128xf32>
    %cst_18 = arith.constant 0.000000e+00 : f32
    %26 = vector.broadcast %cst_18 : f32 to vector<8x128xf32>
    %27 = arith.maximumf %25, %26 : vector<8x128xf32>
    %28 = arith.truncf %27 : vector<8x128xf32> to vector<8x128xbf16>
    %c0_19 = arith.constant 0 : index
    %c0_20 = arith.constant 0 : index
    %29 = vector.load %arg8[%c0_19, %c0_20] : memref<128x384xbf16, #tpu.memory_space<vmem>>, vector<128x384xbf16>
    %cst_21 = arith.constant dense<0.000000e+00> : vector<8x384xf32>
    %30 = tpu.matmul %28, %29, %cst_21 {dimension_numbers = #tpu.dot_dimension_numbers<[1], [0], [0], [1], [0, 0, 1, 1], [], []>} : vector<8x128xbf16>, vector<128x384xbf16>, vector<8x384xf32> -> vector<8x384xf32>
    %c0_22 = arith.constant 0 : index
    %c0_23 = arith.constant 0 : index
    %31 = vector.load %arg9[%c0_22, %c0_23] : memref<1x384xf32, #tpu.memory_space<vmem>>, vector<1x384xf32>
    %32 = vector.broadcast %31 : vector<1x384xf32> to vector<8x384xf32>
    %33 = arith.addf %30, %32 : vector<8x384xf32>
    %c0_24 = arith.constant 0 : index
    %c0_25 = arith.constant 0 : index
    %34 = vector.load %arg10[%c0_24, %c0_25] : memref<8x384xf32, #tpu.memory_space<vmem>>, vector<8x384xf32>
    tpu.vector_store %arg10[%c0_24, %c0_25], %33 {strides = array<i32>} : memref<8x384xf32, #tpu.memory_space<vmem>>, vector<8x384xf32>,
    return
  }
  func.func @transform_0(%arg0: i32) -> (i32, i32) {
    %c0_i32 = arith.constant 0 : i32
    %c0_i32_0 = arith.constant 0 : i32
    %c0_i32_1 = arith.constant 0 : i32
    return %c0_i32, %c0_i32_0 : i32, i32
  }
  func.func @transform_1(%arg0: i32) -> (i32, i32) {
    %c0_i32 = arith.constant 0 : i32
    %c0_i32_0 = arith.constant 0 : i32
    %c0_i32_1 = arith.constant 0 : i32
    return %c0_i32, %c0_i32_0 : i32, i32
  }
  func.func @transform_2(%arg0: i32) -> (i32, i32) {
    %c0_i32 = arith.constant 0 : i32
    %c0_i32_0 = arith.constant 0 : i32
    %c0_i32_1 = arith.constant 0 : i32
    return %c0_i32, %c0_i32_0 : i32, i32
  }
  func.func @transform_3(%arg0: i32) -> (i32, i32) {
    %c0_i32 = arith.constant 0 : i32
    %c0_i32_0 = arith.constant 0 : i32
    %c0_i32_1 = arith.constant 0 : i32
    return %c0_i32, %c0_i32_0 : i32, i32
  }
  func.func @transform_4(%arg0: i32) -> (i32, i32) {
    %c0_i32 = arith.constant 0 : i32
    %c0_i32_0 = arith.constant 0 : i32
    %c0_i32_1 = arith.constant 0 : i32
    return %c0_i32, %c0_i32_0 : i32, i32
  }
  func.func @transform_5(%arg0: i32) -> (i32, i32) {
    %c0_i32 = arith.constant 0 : i32
    %c0_i32_0 = arith.constant 0 : i32
    %c0_i32_1 = arith.constant 0 : i32
    return %c0_i32, %c0_i32_0 : i32, i32
  }
  func.func @transform_6(%arg0: i32) -> (i32, i32) {
    %c0_i32 = arith.constant 0 : i32
    %c0_i32_0 = arith.constant 0 : i32
    %c0_i32_1 = arith.constant 0 : i32
    return %c0_i32, %c0_i32_0 : i32, i32
  }
  func.func @transform_7(%arg0: i32) -> (i32, i32) {
    %c0_i32 = arith.constant 0 : i32
    %c0_i32_0 = arith.constant 0 : i32
    %c0_i32_1 = arith.constant 0 : i32
    return %c0_i32, %c0_i32_0 : i32, i32
  }
  func.func @transform_8(%arg0: i32) -> (i32, i32) {
    %c0_i32 = arith.constant 0 : i32
    %c0_i32_0 = arith.constant 0 : i32
    %c0_i32_1 = arith.constant 0 : i32
    return %c0_i32, %c0_i32_0 : i32, i32
  }
  func.func @transform_9(%arg0: i32) -> (i32, i32) {
    %c0_i32 = arith.constant 0 : i32
    %c0_i32_0 = arith.constant 0 : i32
    %c0_i32_1 = arith.constant 0 : i32
    return %c0_i32, %c0_i32_0 : i32, i32
  }
}

</mosaic_0001>

<llo_original>
// kernel: orangenet18_forward.22
$region0: #{orangenet18_forward.22}
  #allocation0 [shape = 'u32[]', space=smem, size = 0x4, offset = 0x4, fixed_abs, tag = 'smem constant byte address 0x4 - core index']
  #allocation1 [shape = 'u32[144,128]{1,0:T(1,128)}', space=vmem, size = 0x12000, scoped, tag = 'internal scratch']
  #allocation2 [shape = 'f32[256,128]{1,0:T(8,128)}', space=vmem, size = 0x20000, scoped, tag = 'scratch operand']
  %s0 = inlined_call_operand.vmem [shape: bf16[2048,256], index: 0, kind: input, shape index: {}]
  %s1 = inlined_call_operand.vmem [shape: bf16[256,128], index: 1, kind: input, shape index: {}]
  %s2 = inlined_call_operand.vmem [shape: f32[1,128], index: 2, kind: input, shape index: {}]
  %s3 = inlined_call_operand.vmem [shape: bf16[2048,128], index: 3, kind: output, shape index: {}]
  %s4 = sld [smem:[#allocation0]]
  $region53: #{orangenet18_forward.22} parent=0
    _
  %s6 = ssub.s32 1, %s4
  %s7 = scalar_select 0, %s6, %s4
  loop: start=0, step=1, limit=10
  $region2: #{orangenet18_forward.22} parent=0 // loop_pre_header
    _
  $region3: #{orangenet18_forward.22} parent=0 // loop_header
    %s9 = sphi 0, %s13
    %p10 = scmp.ge.s32.totalorder %s9, 10
    %s16 = sphi 0, %s35
    %s17 = sphi 0, %s31
    %s18 = sphi 0, %s27
    %s19 = sphi 0, %s16
    %s20 = sphi 0, %s17
    %s21 = sphi 0, %s18
    %s22 = sphi 0, %s19
    %s23 = sphi 0, %s20
    %s24 = sphi 0, %s21
    %s40 = sphi 0, %s42
    %s43 = sphi 0, %s40
    %s44 = sphi 0, %s43
    %s60 = sphi 0, %s44
    %s68 = sphi 0, %s70
    %s71 = sphi 0, %s68
    %s72 = sphi 0, %s71
    %s88 = sphi 0, %s72
    %s94 = sphi 0, %s96
    %s97 = sphi 0, %s94
    %s98 = sphi 0, %s97
    %s114 = sphi 0, %s98
    %s122 = sphi 0, %s124
    %s125 = sphi 0, %s122
    %s126 = sphi 0, %s125
    %s142 = sphi 0, %s126
  $region4: #{orangenet18_forward.22} parent=0 // loop_header_branch
    %12 = sbr.rel (%p10) target = $region8
  $region5: #{orangenet18_forward.22} parent=0 // loop_body
    %s14 = ssub.s32 %s9, 1
    %s15 = ssub.s32 %s9, 2
    %s25 = sadd.s32 1, %s18
    %p26 = scmp.ge.s32.totalorder %s25, 1
    %s27 = scalar_select %p26, 0, %s25
    %s28 = sadd.s32 1, %s17
    %s29 = scalar_select %p26, %s28, %s17
    %p30 = scmp.ge.s32.totalorder %s29, 1
    %s31 = scalar_select %p30, 0, %s29
    %s32 = sadd.s32 1, %s16
    %s33 = scalar_select %p30, %s32, %s16
    %p34 = scmp.ge.s32.totalorder %s33, 8
    %s35 = scalar_select %p34, 0, %s33
    %s36 = ssub.s32 %s16, %s35
    %s37 = ssub.s32 %s18, %s27
    %s38 = sor.u32 %s36, %s37
    %p39 = scmp.eq.s32.totalorder %s38, 0
    %s41 = sadd.s32 %s40, 1
    %s42 = scalar_select %p39, %s40, %s41
    %p45 = pneg %p39
    %p46 = scmp.eq.s32.totalorder %s9, 7
    %p47 = por %p45, %p46
    %p48 = scmp.ne.s32.totalorder %s40, %s43
    %p49 = scmp.eq.s32.totalorder %s9, 0
    %p50 = por %p48, %p49
    %p51 = scmp.ne.s32.totalorder %s40, %s43
    %p52 = scmp.eq.s32.totalorder %s14, 7
    %p53 = por %p51, %p52
    %p54 = scmp.ne.s32.totalorder %s43, %s44
    %p55 = scmp.eq.s32.totalorder %s14, 0
    %p56 = por %p54, %p55
    %p57 = scmp.ne.s32.totalorder %s43, %s44
    %p58 = scmp.eq.s32.totalorder %s15, 7
    %p59 = por %p57, %p58
    %p61 = scmp.ne.s32.totalorder %s44, %s60
    %p62 = scmp.eq.s32.totalorder %s15, 0
    %p63 = por %p61, %p62
    %s64 = ssub.s32 %s18, %s27
    %s65 = ssub.s32 %s17, %s31
    %s66 = sor.u32 %s64, %s65
    %p67 = scmp.eq.s32.totalorder %s66, 0
    %s69 = sadd.s32 %s68, 1
    %s70 = scalar_select %p67, %s68, %s69
    %p73 = pneg %p67
    %p74 = scmp.eq.s32.totalorder %s9, 7
    %p75 = por %p73, %p74
    %p76 = scmp.ne.s32.totalorder %s68, %s71
    %p77 = scmp.eq.s32.totalorder %s9, 0
    %p78 = por %p76, %p77
    %p79 = scmp.ne.s32.totalorder %s68, %s71
    %p80 = scmp.eq.s32.totalorder %s14, 7
    %p81 = por %p79, %p80
    %p82 = scmp.ne.s32.totalorder %s71, %s72
    %p83 = scmp.eq.s32.totalorder %s14, 0
    %p84 = por %p82, %p83
    %p85 = scmp.ne.s32.totalorder %s71, %s72
    %p86 = scmp.eq.s32.totalorder %s15, 7
    %p87 = por %p85, %p86
    %p89 = scmp.ne.s32.totalorder %s72, %s88
    %p90 = scmp.eq.s32.totalorder %s15, 0
    %p91 = por %p89, %p90
    %s92 = ssub.s32 %s17, %s31
    %p93 = scmp.eq.s32.totalorder %s92, 0
    %s95 = sadd.s32 %s94, 1
    %s96 = scalar_select %p93, %s94, %s95
    %p99 = pneg %p93
    %p100 = scmp.eq.s32.totalorder %s9, 7
    %p101 = por %p99, %p100
    %p102 = scmp.ne.s32.totalorder %s94, %s97
    %p103 = scmp.eq.s32.totalorder %s9, 0
    %p104 = por %p102, %p103
    %p105 = scmp.ne.s32.totalorder %s94, %s97
    %p106 = scmp.eq.s32.totalorder %s14, 7
    %p107 = por %p105, %p106
    %p108 = scmp.ne.s32.totalorder %s97, %s98
    %p109 = scmp.eq.s32.totalorder %s14, 0
    %p110 = por %p108, %p109
    %p111 = scmp.ne.s32.totalorder %s97, %s98
    %p112 = scmp.eq.s32.totalorder %s15, 7
    %p113 = por %p111, %p112
    %p115 = scmp.ne.s32.totalorder %s98, %s114
    %p116 = scmp.eq.s32.totalorder %s15, 0
    %p117 = por %p115, %p116
    %s118 = ssub.s32 %s16, %s35
    %s119 = ssub.s32 %s17, %s31
    %s120 = sor.u32 %s118, %s119
    %p121 = scmp.eq.s32.totalorder %s120, 0
    %s123 = sadd.s32 %s122, 1
    %s124 = scalar_select %p121, %s122, %s123
    %p127 = pneg %p121
    %p128 = scmp.eq.s32.totalorder %s9, 7
    %p129 = por %p127, %p128
    %p130 = scmp.ne.s32.totalorder %s122, %s125
    %p131 = scmp.eq.s32.totalorder %s9, 0
    %p132 = por %p130, %p131
    %p133 = scmp.ne.s32.totalorder %s122, %s125
    %p134 = scmp.eq.s32.totalorder %s14, 7
    %p135 = por %p133, %p134
    %p136 = scmp.ne.s32.totalorder %s125, %s126
    %p137 = scmp.eq.s32.totalorder %s14, 0
    %p138 = por %p136, %p137
    %p139 = scmp.ne.s32.totalorder %s125, %s126
    %p140 = scmp.eq.s32.totalorder %s15, 7
    %p141 = por %p139, %p140
    %p143 = scmp.ne.s32.totalorder %s126, %s142
    %p144 = scmp.eq.s32.totalorder %s15, 0
    %p145 = por %p143, %p144
    %p146 = scmp.le.s32.totalorder 1, %s9
    %p147 = scmp.lt.s32.totalorder %s9, 9
    %p148 = pnand %p146, %p147
    %p149 = pneg %p148
    // Predicated region
    $region9: #{orangenet18_forward.22} parent=5 // pred_check
      _
    $region10: #{orangenet18_forward.22} parent=5 // pred_check_branch
      %151 = sbr.rel (%p148) target = $region12
    $region11: #{orangenet18_forward.22} parent=5 // pred_region
      %s152 = ssub.s32 %s9, 1
      // Predicated region
      $region13: #{orangenet18_forward.22} parent=11 // pred_check
        %p153 = pneg %p84
      $region14: #{orangenet18_forward.22} parent=11 // pred_check_branch
        %155 = sbr.rel (%p153) target = $region16
      $region15: #{orangenet18_forward.22} parent=11 // pred_region
        %s156 = smul.u32 32, %s21
        %p157 = scmp.lt.s32.totalorder %s156, 31
        %s158 = scalar_select %p157, %s156, 31
        %p159 = scmp.lt.s32.totalorder %s20, 0
        %s160 = scalar_select %p159, %s20, 0
        %s161 = sadd.s32 %s160, %s158
        %s162 = smul.addr %s161, 4
        %s163 = scalar_lea.vmem %s1, %s162
        %s164 = smul.u32 32, %s21
      $region16: #{orangenet18_forward.22} parent=11 // pred_fallthru
        _
      // Predicated region
      $region17: #{orangenet18_forward.22} parent=11 // pred_check
        %p165 = pneg %p110
      $region18: #{orangenet18_forward.22} parent=11 // pred_check_branch
        %167 = sbr.rel (%p165) target = $region20
      $region19: #{orangenet18_forward.22} parent=11 // pred_region
        %p168 = scmp.lt.s32.totalorder %s20, 0
        %s169 = scalar_select %p168, %s20, 0
        %s170 = scalar_lea.vmem %s2, %s169
      $region20: #{orangenet18_forward.22} parent=11 // pred_fallthru
        _
    $region12: #{orangenet18_forward.22} parent=5 // pred_fallthru
      _
    %p171 = scmp.lt.s32.totalorder %s9, 8
    // Predicated region
    $region21: #{orangenet18_forward.22} parent=5 // pred_check
      %p172 = pneg %p171
    $region22: #{orangenet18_forward.22} parent=5 // pred_check_branch
      %174 = sbr.rel (%p172) target = $region24
    $region23: #{orangenet18_forward.22} parent=5 // pred_region
      // Predicated region
      $region25: #{orangenet18_forward.22} parent=23 // pred_check
        %p175 = pneg %p50
      $region26: #{orangenet18_forward.22} parent=23 // pred_check_branch
        %177 = sbr.rel (%p175) target = $region28
      $region27: #{orangenet18_forward.22} parent=23 // pred_region
        %s178 = smul.u32 32, %s16
        %s179 = smul.u32 2, %s18
        %p180 = scmp.lt.s32.totalorder %s178, 255
        %s181 = scalar_select %p180, %s178, 255
        %p182 = scmp.lt.s32.totalorder %s179, 1
        %s183 = scalar_select %p182, %s179, 1
        %s184 = smul.addr %s181, 2
        %s185 = sadd.s32 %s183, %s184
        %s186 = smul.addr %s185, 4
        %s187 = scalar_lea.vmem %s0, %s186
        %s188 = smul.u32 32, %s16
        %s189 = smul.u32 2, %s18
      $region28: #{orangenet18_forward.22} parent=23 // pred_fallthru
        _
    $region24: #{orangenet18_forward.22} parent=5 // pred_fallthru
      _
    %p190 = scmp.le.s32.totalorder 1, %s9
    %p191 = scmp.lt.s32.totalorder %s9, 9
    %p192 = pnand %p190, %p191
    %p193 = pneg %p192
    // Predicated region
    $region29: #{orangenet18_forward.22} parent=5 // pred_check
      _
    $region30: #{orangenet18_forward.22} parent=5 // pred_check_branch
      %195 = sbr.rel (%p192) target = $region32
    $region31: #{orangenet18_forward.22} parent=5 // pred_region
      %s196 = ssub.s32 %s9, 1
      %s197 = smul.u32 32, %s19
      %s198 = smul.u32 2, %s21
      %p199 = scmp.lt.s32.totalorder %s197, 255
      %s200 = scalar_select %p199, %s197, 255
      %p201 = scmp.lt.s32.totalorder %s198, 1
      %s202 = scalar_select %p201, %s198, 1
      %s203 = smul.addr %s200, 2
      %s204 = sadd.s32 %s202, %s203
      %s205 = smul.addr %s204, 4
      %s206 = scalar_lea.vmem %s0, %s205
      %p207 = pneg %p56
      %p208 = pneg %p53
      %s209 = smul.u32 32, %s21
      %p210 = scmp.lt.s32.totalorder %s209, 31
      %s211 = scalar_select %p210, %s209, 31
      %p212 = scmp.lt.s32.totalorder %s20, 0
      %s213 = scalar_select %p212, %s20, 0
      %s214 = sadd.s32 %s213, %s211
      %s215 = smul.addr %s214, 4
      %s216 = scalar_lea.vmem %s1, %s215
      %p217 = pneg %p84
      %p218 = pneg %p81
      %p219 = scmp.lt.s32.totalorder %s20, 0
      %s220 = scalar_select %p219, %s20, 0
      %s221 = scalar_lea.vmem %s2, %s220
      %p222 = pneg %p110
      %p223 = pneg %p107
      %p224 = pneg %p138
      %p225 = pneg %p135
      %s226 = smul.u32 32, %s19
      %p227 = scmp.lt.s32.totalorder %s226, 255
      %s228 = scalar_select %p227, %s226, 255
      %p229 = scmp.lt.s32.totalorder %s20, 0
      %s230 = scalar_select %p229, %s20, 0
      %s231 = sadd.s32 %s230, %s228
      %s232 = smul.addr %s231, 4
      %s233 = scalar_lea.vmem %s3, %s232
      %s234 = smul.u32 32, %s19
      %s235 = smul.u32 2, %s21
      %p236 = scmp.lt.s32.totalorder %s234, 255
      %s237 = scalar_select %p236, %s234, 255
      %p238 = scmp.lt.s32.totalorder %s235, 1
      %s239 = scalar_select %p238, %s235, 1
      %s240 = smul.addr %s237, 2
      %s241 = sadd.s32 %s239, %s240
      %s242 = smul.addr %s241, 4
      %s243 = scalar_lea.vmem %s0, %s242
      %s244 = smul.u32 32, %s19
      %s245 = smul.u32 2, %s21
      %s246 = smul.u32 32, %s21
      %p247 = scmp.lt.s32.totalorder %s246, 31
      %s248 = scalar_select %p247, %s246, 31
      %p249 = scmp.lt.s32.totalorder %s20, 0
      %s250 = scalar_select %p249, %s20, 0
      %s251 = sadd.s32 %s250, %s248
      %s252 = smul.addr %s251, 4
      %s253 = scalar_lea.vmem %s1, %s252
      %s254 = smul.u32 32, %s21
      %p255 = scmp.lt.s32.totalorder %s20, 0
      %s256 = scalar_select %p255, %s20, 0
      %s257 = scalar_lea.vmem %s2, %s256
      %s258 = smul.u32 32, %s19
      %p259 = scmp.lt.s32.totalorder %s258, 255
      %s260 = scalar_select %p259, %s258, 255
      %p261 = scmp.lt.s32.totalorder %s20, 0
      %s262 = scalar_select %p261, %s20, 0
      %s263 = sadd.s32 %s262, %s260
      %s264 = smul.addr %s263, 4
      %s265 = scalar_lea.vmem %s3, %s264
      %s266 = smul.u32 32, %s19
      %p268 = scmp.eq.s32.totalorder %s21, 0
      // Predicated region
      $region33: #{orangenet18_forward.22} parent=31 // pred_check
        %p269 = pneg %p268
      $region34: #{orangenet18_forward.22} parent=31 // pred_check_branch
        %271 = sbr.rel (%p269) target = $region36
      $region35: #{orangenet18_forward.22} parent=31 // pred_region
        %272 = vst [vmem:[#allocation2] sm:$0xff] 0.0
        %273 = vst [vmem:[#allocation2 + $0x8] sm:$0xff] 0.0
        %274 = vst [vmem:[#allocation2 + $0x10] sm:$0xff] 0.0
        %275 = vst [vmem:[#allocation2 + $0x18] sm:$0xff] 0.0
        %276 = vst [vmem:[#allocation2 + $0x20] sm:$0xff] 0.0
        %277 = vst [vmem:[#allocation2 + $0x28] sm:$0xff] 0.0
        %278 = vst [vmem:[#allocation2 + $0x30] sm:$0xff] 0.0
        %279 = vst [vmem:[#allocation2 + $0x38] sm:$0xff] 0.0
        %280 = vst [vmem:[#allocation2 + $0x40] sm:$0xff] 0.0
        %281 = vst [vmem:[#allocation2 + $0x48] sm:$0xff] 0.0
        %282 = vst [vmem:[#allocation2 + $0x50] sm:$0xff] 0.0
        %283 = vst [vmem:[#allocation2 + $0x58] sm:$0xff] 0.0
        %284 = vst [vmem:[#allocation2 + $0x60] sm:$0xff] 0.0
        %285 = vst [vmem:[#allocation2 + $0x68] sm:$0xff] 0.0
        %286 = vst [vmem:[#allocation2 + $0x70] sm:$0xff] 0.0
        %287 = vst [vmem:[#allocation2 + $0x78] sm:$0xff] 0.0
        %288 = vst [vmem:[#allocation2 + $0x80] sm:$0xff] 0.0
        %289 = vst [vmem:[#allocation2 + $0x88] sm:$0xff] 0.0
        %290 = vst [vmem:[#allocation2 + $0x90] sm:$0xff] 0.0
        %291 = vst [vmem:[#allocation2 + $0x98] sm:$0xff] 0.0
        %292 = vst [vmem:[#allocation2 + $0xa0] sm:$0xff] 0.0
        %293 = vst [vmem:[#allocation2 + $0xa8] sm:$0xff] 0.0
        %294 = vst [vmem:[#allocation2 + $0xb0] sm:$0xff] 0.0
        %295 = vst [vmem:[#allocation2 + $0xb8] sm:$0xff] 0.0
        %296 = vst [vmem:[#allocation2 + $0xc0] sm:$0xff] 0.0
        %297 = vst [vmem:[#allocation2 + $0xc8] sm:$0xff] 0.0
        %298 = vst [vmem:[#allocation2 + $0xd0] sm:$0xff] 0.0
        %299 = vst [vmem:[#allocation2 + $0xd8] sm:$0xff] 0.0
        %300 = vst [vmem:[#allocation2 + $0xe0] sm:$0xff] 0.0
        %301 = vst [vmem:[#allocation2 + $0xe8] sm:$0xff] 0.0
        %302 = vst [vmem:[#allocation2 + $0xf0] sm:$0xff] 0.0
        %303 = vst [vmem:[#allocation2 + $0xf8] sm:$0xff] 0.0
      $region36: #{orangenet18_forward.22} parent=31 // pred_fallthru
        _
      %v304 = vld [vmem:[#allocation2] sm:$0xff]
      %v305 = vld [vmem:[#allocation2 + $0x8] sm:$0xff]
      %v306 = vld [vmem:[#allocation2 + $0x10] sm:$0xff]
      %v307 = vld [vmem:[#allocation2 + $0x18] sm:$0xff]
      %v308 = vld [vmem:[#allocation2 + $0x20] sm:$0xff]
      %v309 = vld [vmem:[#allocation2 + $0x28] sm:$0xff]
      %v310 = vld [vmem:[#allocation2 + $0x30] sm:$0xff]
      %v311 = vld [vmem:[#allocation2 + $0x38] sm:$0xff]
      %v312 = vld [vmem:[#allocation2 + $0x40] sm:$0xff]
      %v313 = vld [vmem:[#allocation2 + $0x48] sm:$0xff]
      %v314 = vld [vmem:[#allocation2 + $0x50] sm:$0xff]
      %v315 = vld [vmem:[#allocation2 + $0x58] sm:$0xff]
      %v316 = vld [vmem:[#allocation2 + $0x60] sm:$0xff]
      %v317 = vld [vmem:[#allocation2 + $0x68] sm:$0xff]
      %v318 = vld [vmem:[#allocation2 + $0x70] sm:$0xff]
      %v319 = vld [vmem:[#allocation2 + $0x78] sm:$0xff]
      %v320 = vld [vmem:[#allocation2 + $0x80] sm:$0xff]
      %v321 = vld [vmem:[#allocation2 + $0x88] sm:$0xff]
      %v322 = vld [vmem:[#allocation2 + $0x90] sm:$0xff]
      %v323 = vld [vmem:[#allocation2 + $0x98] sm:$0xff]
      %v324 = vld [vmem:[#allocation2 + $0xa0] sm:$0xff]
      %v325 = vld [vmem:[#allocation2 + $0xa8] sm:$0xff]
      %v326 = vld [vmem:[#allocation2 + $0xb0] sm:$0xff]
      %v327 = vld [vmem:[#allocation2 + $0xb8] sm:$0xff]
      %v328 = vld [vmem:[#allocation2 + $0xc0] sm:$0xff]
      %v329 = vld [vmem:[#allocation2 + $0xc8] sm:$0xff]
      %v330 = vld [vmem:[#allocation2 + $0xd0] sm:$0xff]
      %v331 = vld [vmem:[#allocation2 + $0xd8] sm:$0xff]
      %v332 = vld [vmem:[#allocation2 + $0xe0] sm:$0xff]
      %v333 = vld [vmem:[#allocation2 + $0xe8] sm:$0xff]
      %v334 = vld [vmem:[#allocation2 + $0xf0] sm:$0xff]
      %v335 = vld [vmem:[#allocation2 + $0xf8] sm:$0xff]
      %v336 = vld [vmem:[%s243] sm:$0xff]
      %v337 = vld [vmem:[%s243 + $0x8] sm:$0xff]
      %v338 = vld [vmem:[%s243 + $0x10] sm:$0xff]
      %v339 = vld [vmem:[%s243 + $0x18] sm:$0xff]
      %v340 = vld [vmem:[%s243 + $0x20] sm:$0xff]
      %v341 = vld [vmem:[%s243 + $0x28] sm:$0xff]
      %v342 = vld [vmem:[%s243 + $0x30] sm:$0xff]
      %v343 = vld [vmem:[%s243 + $0x38] sm:$0xff]
      %v344 = vld [vmem:[%s243 + $0x40] sm:$0xff]
      %v345 = vld [vmem:[%s243 + $0x48] sm:$0xff]
      %v346 = vld [vmem:[%s243 + $0x50] sm:$0xff]
      %v347 = vld [vmem:[%s243 + $0x58] sm:$0xff]
      %v348 = vld [vmem:[%s243 + $0x60] sm:$0xff]
      %v349 = vld [vmem:[%s243 + $0x68] sm:$0xff]
      %v350 = vld [vmem:[%s243 + $0x70] sm:$0xff]
      %v351 = vld [vmem:[%s243 + $0x78] sm:$0xff]
      %v352 = vld [vmem:[%s243 + $0x80] sm:$0xff]
      %v353 = vld [vmem:[%s243 + $0x88] sm:$0xff]
      %v354 = vld [vmem:[%s243 + $0x90] sm:$0xff]
      %v355 = vld [vmem:[%s243 + $0x98] sm:$0xff]
      %v356 = vld [vmem:[%s243 + $0xa0] sm:$0xff]
      %v357 = vld [vmem:[%s243 + $0xa8] sm:$0xff]
      %v358 = vld [vmem:[%s243 + $0xb0] sm:$0xff]
      %v359 = vld [vmem:[%s243 + $0xb8] sm:$0xff]
      %v360 = vld [vmem:[%s243 + $0xc0] sm:$0xff]
      %v361 = vld [vmem:[%s243 + $0xc8] sm:$0xff]
      %v362 = vld [vmem:[%s243 + $0xd0] sm:$0xff]
      %v363 = vld [vmem:[%s243 + $0xd8] sm:$0xff]
      %v364 = vld [vmem:[%s243 + $0xe0] sm:$0xff]
      %v365 = vld [vmem:[%s243 + $0xe8] sm:$0xff]
      %v366 = vld [vmem:[%s243 + $0xf0] sm:$0xff]
      %v367 = vld [vmem:[%s243 + $0xf8] sm:$0xff]
      %v368 = vld [vmem:[%s253] sm:$0xf]
      %v369 = vld [vmem:[%s253 + $0x4] sm:$0xf]
      %v370 = vld [vmem:[%s253 + $0x8] sm:$0xf]
      %v371 = vld [vmem:[%s253 + $0xc] sm:$0xf]
      %v372 = vld [vmem:[%s253 + $0x10] sm:$0xf]
      %v373 = vld [vmem:[%s253 + $0x14] sm:$0xf]
      %v374 = vld [vmem:[%s253 + $0x18] sm:$0xf]
      %v375 = vld [vmem:[%s253 + $0x1c] sm:$0xf]
      %v376 = vld [vmem:[%s253 + $0x20] sm:$0xf]
      %v377 = vld [vmem:[%s253 + $0x24] sm:$0xf]
      %v378 = vld [vmem:[%s253 + $0x28] sm:$0xf]
      %v379 = vld [vmem:[%s253 + $0x2c] sm:$0xf]
      %v380 = vld [vmem:[%s253 + $0x30] sm:$0xf]
      %v381 = vld [vmem:[%s253 + $0x34] sm:$0xf]
      %v382 = vld [vmem:[%s253 + $0x38] sm:$0xf]
      %v383 = vld [vmem:[%s253 + $0x3c] sm:$0xf]
      %v384 = vld [vmem:[%s253 + $0x40] sm:$0xf]
      %v385 = vld [vmem:[%s253 + $0x44] sm:$0xf]
      %v386 = vld [vmem:[%s253 + $0x48] sm:$0xf]
      %v387 = vld [vmem:[%s253 + $0x4c] sm:$0xf]
      %v388 = vld [vmem:[%s253 + $0x50] sm:$0xf]
      %v389 = vld [vmem:[%s253 + $0x54] sm:$0xf]
      %v390 = vld [vmem:[%s253 + $0x58] sm:$0xf]
      %v391 = vld [vmem:[%s253 + $0x5c] sm:$0xf]
      %v392 = vld [vmem:[%s253 + $0x60] sm:$0xf]
      %v393 = vld [vmem:[%s253 + $0x64] sm:$0xf]
      %v394 = vld [vmem:[%s253 + $0x68] sm:$0xf]
      %v395 = vld [vmem:[%s253 + $0x6c] sm:$0xf]
      %v396 = vld [vmem:[%s253 + $0x70] sm:$0xf]
      %v397 = vld [vmem:[%s253 + $0x74] sm:$0xf]
      %v398 = vld [vmem:[%s253 + $0x78] sm:$0xf]
      %v399 = vld [vmem:[%s253 + $0x7c] sm:$0xf]
      %v432 = vunpack.c.l.b16 %v336
      %v433 = vunpack.c.h.b16 %v336
      %v434 = vunpack.c.l.b16 %v337
      %v435 = vunpack.c.h.b16 %v337
      %v436 = vunpack.c.l.b16 %v338
      %v437 = vunpack.c.h.b16 %v338
      %v438 = vunpack.c.l.b16 %v339
      %v439 = vunpack.c.h.b16 %v339
      %v440 = vunpack.c.l.b16 %v340
      %v441 = vunpack.c.h.b16 %v340
      %v442 = vunpack.c.l.b16 %v341
      %v443 = vunpack.c.h.b16 %v341
      %v444 = vunpack.c.l.b16 %v342
      %v445 = vunpack.c.h.b16 %v342
      %v446 = vunpack.c.l.b16 %v343
      %v447 = vunpack.c.h.b16 %v343
      %v448 = vunpack.c.l.b16 %v344
      %v449 = vunpack.c.h.b16 %v344
      %v450 = vunpack.c.l.b16 %v345
      %v451 = vunpack.c.h.b16 %v345
      %v452 = vunpack.c.l.b16 %v346
      %v453 = vunpack.c.h.b16 %v346
      %v454 = vunpack.c.l.b16 %v347
      %v455 = vunpack.c.h.b16 %v347
      %v456 = vunpack.c.l.b16 %v348
      %v457 = vunpack.c.h.b16 %v348
      %v458 = vunpack.c.l.b16 %v349
      %v459 = vunpack.c.h.b16 %v349
      %v460 = vunpack.c.l.b16 %v350
      %v461 = vunpack.c.h.b16 %v350
      %v462 = vunpack.c.l.b16 %v351
      %v463 = vunpack.c.h.b16 %v351
      %v464 = vunpack.c.l.b16 %v352
      %v465 = vunpack.c.h.b16 %v352
      %v466 = vunpack.c.l.b16 %v353
      %v467 = vunpack.c.h.b16 %v353
      %v468 = vunpack.c.l.b16 %v354
      %v469 = vunpack.c.h.b16 %v354
      %v470 = vunpack.c.l.b16 %v355
      %v471 = vunpack.c.h.b16 %v355
      %v472 = vunpack.c.l.b16 %v356
      %v473 = vunpack.c.h.b16 %v356
      %v474 = vunpack.c.l.b16 %v357
      %v475 = vunpack.c.h.b16 %v357
      %v476 = vunpack.c.l.b16 %v358
      %v477 = vunpack.c.h.b16 %v358
      %v478 = vunpack.c.l.b16 %v359
      %v479 = vunpack.c.h.b16 %v359
      %v480 = vunpack.c.l.b16 %v360
      %v481 = vunpack.c.h.b16 %v360
      %v482 = vunpack.c.l.b16 %v361
      %v483 = vunpack.c.h.b16 %v361
      %v484 = vunpack.c.l.b16 %v362
      %v485 = vunpack.c.h.b16 %v362
      %v486 = vunpack.c.l.b16 %v363
      %v487 = vunpack.c.h.b16 %v363
      %v488 = vunpack.c.l.b16 %v364
      %v489 = vunpack.c.h.b16 %v364
      %v490 = vunpack.c.l.b16 %v365
      %v491 = vunpack.c.h.b16 %v365
      %v492 = vunpack.c.l.b16 %v366
      %v493 = vunpack.c.h.b16 %v366
      %v494 = vunpack.c.l.b16 %v367
      %v495 = vunpack.c.h.b16 %v367
      %v496 = vpack.c.b16 %v434, %v432
      %v497 = vpack.c.b16 %v435, %v433
      %v498 = vpack.c.b16 %v438, %v436
      %v499 = vpack.c.b16 %v439, %v437
      %v500 = vpack.c.b16 %v442, %v440
      %v501 = vpack.c.b16 %v443, %v441
      %v502 = vpack.c.b16 %v446, %v444
      %v503 = vpack.c.b16 %v447, %v445
      %v504 = vpack.c.b16 %v450, %v448
      %v505 = vpack.c.b16 %v451, %v449
      %v506 = vpack.c.b16 %v454, %v452
      %v507 = vpack.c.b16 %v455, %v453
      %v508 = vpack.c.b16 %v458, %v456
      %v509 = vpack.c.b16 %v459, %v457
      %v510 = vpack.c.b16 %v462, %v460
      %v511 = vpack.c.b16 %v463, %v461
      %v512 = vpack.c.b16 %v466, %v464
      %v513 = vpack.c.b16 %v467, %v465
      %v514 = vpack.c.b16 %v470, %v468
      %v515 = vpack.c.b16 %v471, %v469
      %v516 = vpack.c.b16 %v474, %v472
      %v517 = vpack.c.b16 %v475, %v473
      %v518 = vpack.c.b16 %v478, %v476
      %v519 = vpack.c.b16 %v479, %v477
      %v520 = vpack.c.b16 %v482, %v480
      %v521 = vpack.c.b16 %v483, %v481
      %v522 = vpack.c.b16 %v486, %v484
      %v523 = vpack.c.b16 %v487, %v485
      %v524 = vpack.c.b16 %v490, %v488
      %v525 = vpack.c.b16 %v491, %v489
      %v526 = vpack.c.b16 %v494, %v492
      %v527 = vpack.c.b16 %v495, %v493
      %v592 = vunpack.c.l.b16 %v368
      %v593 = vunpack.c.l.b16 %v369
      %v594 = vunpack.c.l.b16 %v370
      %v595 = vunpack.c.l.b16 %v371
      %v596 = vunpack.c.l.b16 %v372
      %v597 = vunpack.c.l.b16 %v373
      %v598 = vunpack.c.l.b16 %v374
      %v599 = vunpack.c.l.b16 %v375
      %v600 = vunpack.c.l.b16 %v376
      %v601 = vunpack.c.l.b16 %v377
      %v602 = vunpack.c.l.b16 %v378
      %v603 = vunpack.c.l.b16 %v379
      %v604 = vunpack.c.l.b16 %v380
      %v605 = vunpack.c.l.b16 %v381
      %v606 = vunpack.c.l.b16 %v382
      %v607 = vunpack.c.l.b16 %v383
      %v608 = vunpack.c.l.b16 %v384
      %v609 = vunpack.c.l.b16 %v385
      %v610 = vunpack.c.l.b16 %v386
      %v611 = vunpack.c.l.b16 %v387
      %v612 = vunpack.c.l.b16 %v388
      %v613 = vunpack.c.l.b16 %v389
      %v614 = vunpack.c.l.b16 %v390
      %v615 = vunpack.c.l.b16 %v391
      %v616 = vunpack.c.l.b16 %v392
      %v617 = vunpack.c.l.b16 %v393
      %v618 = vunpack.c.l.b16 %v394
      %v619 = vunpack.c.l.b16 %v395
      %v620 = vunpack.c.l.b16 %v396
      %v621 = vunpack.c.l.b16 %v397
      %v622 = vunpack.c.l.b16 %v398
      %v623 = vunpack.c.l.b16 %v399
      %v624 = vpack.c.b16 %v593, %v592
      %v625 = vpack.c.b16 %v595, %v594
      %v626 = vpack.c.b16 %v597, %v596
      %v627 = vpack.c.b16 %v599, %v598
      %v628 = vpack.c.b16 %v601, %v600
      %v629 = vpack.c.b16 %v603, %v602
      %v630 = vpack.c.b16 %v605, %v604
      %v631 = vpack.c.b16 %v607, %v606
      %v632 = vpack.c.b16 %v609, %v608
      %v633 = vpack.c.b16 %v611, %v610
      %v634 = vpack.c.b16 %v613, %v612
      %v635 = vpack.c.b16 %v615, %v614
      %v636 = vpack.c.b16 %v617, %v616
      %v637 = vpack.c.b16 %v619, %v618
      %v638 = vpack.c.b16 %v621, %v620
      %v639 = vpack.c.b16 %v623, %v622
      %656 = vmatprep.subr.bf16.mxu0 0
      %657 = vmatpush1.bf16.msra.mxu0 %v624
      %658 = vmatprep.subr.bf16.mxu0 0
      %659 = vmatpush1.bf16.msra.mxu0 %v625
      %660 = vmatprep.subr.bf16.mxu0 0
      %661 = vmatpush1.bf16.msra.mxu0 %v626
      %662 = vmatprep.subr.bf16.mxu0 0
      %663 = vmatpush1.bf16.msra.mxu0 %v627
      %664 = vmatprep.subr.bf16.mxu0 0
      %665 = vmatpush1.bf16.msra.mxu0 %v628
      %666 = vmatprep.subr.bf16.mxu0 0
      %667 = vmatpush1.bf16.msra.mxu0 %v629
      %668 = vmatprep.subr.bf16.mxu0 0
      %669 = vmatpush1.bf16.msra.mxu0 %v630
      %670 = vmatprep.subr.bf16.mxu0 0
      %671 = vmatpush1.bf16.msra.mxu0 %v631
      %672 = vmatprep.subr.bf16.mxu0 0
      %673 = vmatpush1.bf16.msra.mxu0 %v632
      %674 = vmatprep.subr.bf16.mxu0 0
      %675 = vmatpush1.bf16.msra.mxu0 %v633
      %676 = vmatprep.subr.bf16.mxu0 0
      %677 = vmatpush1.bf16.msra.mxu0 %v634
      %678 = vmatprep.subr.bf16.mxu0 0
      %679 = vmatpush1.bf16.msra.mxu0 %v635
      %680 = vmatprep.subr.bf16.mxu0 0
      %681 = vmatpush1.bf16.msra.mxu0 %v636
      %682 = vmatprep.subr.bf16.mxu0 0
      %683 = vmatpush1.bf16.msra.mxu0 %v637
      %684 = vmatprep.subr.bf16.mxu0 0
      %685 = vmatpush1.bf16.msra.mxu0 %v638
      %686 = vmatprep.subr.bf16.mxu0 0
      %687 = vmatpush1.bf16.msra.mxu0 %v639
      %688 = vmatprep.mubr.bf16.mxu0 %v497
      %689 = vmatmul.mubr.bf16.gmra.mrb[0].mxu0 %v496
      %v690 = vpop.f32.mrb[0].mxu0
      %v691 = vadd.f32 0.0, %v690
      %v692 = vpop.f32.mrb[0].mxu0
      %v693 = vpop.f32.mrb[0].mxu0
      %v694 = vadd.f32 0.0, %v693
      %v695 = vpop.f32.mrb[0].mxu0
      %696 = vmatprep.mubr.bf16.mxu0 %v499
      %697 = vmatmul.mubr.bf16.gmra.mrb[0].mxu0 %v498
      %v698 = vpop.f32.mrb[0].mxu0
      %v699 = vadd.f32 0.0, %v698
      %v700 = vpop.f32.mrb[0].mxu0
      %v701 = vpop.f32.mrb[0].mxu0
      %v702 = vadd.f32 0.0, %v701
      %v703 = vpop.f32.mrb[0].mxu0
      %704 = vmatprep.mubr.bf16.mxu0 %v501
      %705 = vmatmul.mubr.bf16.gmra.mrb[0].mxu0 %v500
      %v706 = vpop.f32.mrb[0].mxu0
      %v707 = vadd.f32 0.0, %v706
      %v708 = vpop.f32.mrb[0].mxu0
      %v709 = vpop.f32.mrb[0].mxu0
      %v710 = vadd.f32 0.0, %v709
      %v711 = vpop.f32.mrb[0].mxu0
      %712 = vmatprep.mubr.bf16.mxu0 %v503
      %713 = vmatmul.mubr.bf16.gmra.mrb[0].mxu0 %v502
      %v714 = vpop.f32.mrb[0].mxu0
      %v715 = vadd.f32 0.0, %v714
      %v716 = vpop.f32.mrb[0].mxu0
      %v717 = vpop.f32.mrb[0].mxu0
      %v718 = vadd.f32 0.0, %v717
      %v719 = vpop.f32.mrb[0].mxu0
      %720 = vmatprep.mubr.bf16.mxu0 %v505
      %721 = vmatmul.mubr.bf16.gmra.mrb[0].mxu0 %v504
      %v722 = vpop.f32.mrb[0].mxu0
      %v723 = vadd.f32 0.0, %v722
      %v724 = vpop.f32.mrb[0].mxu0
      %v725 = vpop.f32.mrb[0].mxu0
      %v726 = vadd.f32 0.0, %v725
      %v727 = vpop.f32.mrb[0].mxu0
      %728 = vmatprep.mubr.bf16.mxu0 %v507
      %729 = vmatmul.mubr.bf16.gmra.mrb[0].mxu0 %v506
      %v730 = vpop.f32.mrb[0].mxu0
      %v731 = vadd.f32 0.0, %v730
      %v732 = vpop.f32.mrb[0].mxu0
      %v733 = vpop.f32.mrb[0].mxu0
      %v734 = vadd.f32 0.0, %v733
      %v735 = vpop.f32.mrb[0].mxu0
      %736 = vmatprep.mubr.bf16.mxu0 %v509
      %737 = vmatmul.mubr.bf16.gmra.mrb[0].mxu0 %v508
      %v738 = vpop.f32.mrb[0].mxu0
      %v739 = vadd.f32 0.0, %v738
      %v740 = vpop.f32.mrb[0].mxu0
      %v741 = vpop.f32.mrb[0].mxu0
      %v742 = vadd.f32 0.0, %v741
      %v743 = vpop.f32.mrb[0].mxu0
      %744 = vmatprep.mubr.bf16.mxu0 %v511
      %745 = vmatmul.mubr.bf16.gmra.mrb[0].mxu0 %v510
      %v746 = vpop.f32.mrb[0].mxu0
      %v747 = vadd.f32 0.0, %v746
      %v748 = vpop.f32.mrb[0].mxu0
      %v749 = vpop.f32.mrb[0].mxu0
      %v750 = vadd.f32 0.0, %v749
      %v751 = vpop.f32.mrb[0].mxu0
      %752 = vmatprep.mubr.bf16.mxu0 %v513
      %753 = vmatmul.mubr.bf16.gmra.mrb[0].mxu0 %v512
      %v754 = vpop.f32.mrb[0].mxu0
      %v755 = vadd.f32 0.0, %v754
      %v756 = vpop.f32.mrb[0].mxu0
      %v757 = vpop.f32.mrb[0].mxu0
      %v758 = vadd.f32 0.0, %v757
      %v759 = vpop.f32.mrb[0].mxu0
      %760 = vmatprep.mubr.bf16.mxu0 %v515
      %761 = vmatmul.mubr.bf16.gmra.mrb[0].mxu0 %v514
      %v762 = vpop.f32.mrb[0].mxu0
      %v763 = vadd.f32 0.0, %v762
      %v764 = vpop.f32.mrb[0].mxu0
      %v765 = vpop.f32.mrb[0].mxu0
      %v766 = vadd.f32 0.0, %v765
      %v767 = vpop.f32.mrb[0].mxu0
      %768 = vmatprep.mubr.bf16.mxu0 %v517
      %769 = vmatmul.mubr.bf16.gmra.mrb[0].mxu0 %v516
      %v770 = vpop.f32.mrb[0].mxu0
      %v771 = vadd.f32 0.0, %v770
      %v772 = vpop.f32.mrb[0].mxu0
      %v773 = vpop.f32.mrb[0].mxu0
      %v774 = vadd.f32 0.0, %v773
      %v775 = vpop.f32.mrb[0].mxu0
      %776 = vmatprep.mubr.bf16.mxu0 %v519
      %777 = vmatmul.mubr.bf16.gmra.mrb[0].mxu0 %v518
      %v778 = vpop.f32.mrb[0].mxu0
      %v779 = vadd.f32 0.0, %v778
      %v780 = vpop.f32.mrb[0].mxu0
      %v781 = vpop.f32.mrb[0].mxu0
      %v782 = vadd.f32 0.0, %v781
      %v783 = vpop.f32.mrb[0].mxu0
      %784 = vmatprep.mubr.bf16.mxu0 %v521
      %785 = vmatmul.mubr.bf16.gmra.mrb[0].mxu0 %v520
      %v786 = vpop.f32.mrb[0].mxu0
      %v787 = vadd.f32 0.0, %v786
      %v788 = vpop.f32.mrb[0].mxu0
      %v789 = vpop.f32.mrb[0].mxu0
      %v790 = vadd.f32 0.0, %v789
      %v791 = vpop.f32.mrb[0].mxu0
      %792 = vmatprep.mubr.bf16.mxu0 %v523
      %793 = vmatmul.mubr.bf16.gmra.mrb[0].mxu0 %v522
      %v794 = vpop.f32.mrb[0].mxu0
      %v795 = vadd.f32 0.0, %v794
      %v796 = vpop.f32.mrb[0].mxu0
      %v797 = vpop.f32.mrb[0].mxu0
      %v798 = vadd.f32 0.0, %v797
      %v799 = vpop.f32.mrb[0].mxu0
      %800 = vmatprep.mubr.bf16.mxu0 %v525
      %801 = vmatmul.mubr.bf16.gmra.mrb[0].mxu0 %v524
      %v802 = vpop.f32.mrb[0].mxu0
      %v803 = vadd.f32 0.0, %v802
      %v804 = vpop.f32.mrb[0].mxu0
      %v805 = vpop.f32.mrb[0].mxu0
      %v806 = vadd.f32 0.0, %v805
      %v807 = vpop.f32.mrb[0].mxu0
      %808 = vmatprep.mubr.bf16.mxu0 %v527
      %809 = vmatmul.mubr.bf16.gmra.mrb[0].mxu0 %v526
      %v810 = vpop.f32.mrb[0].mxu0
      %v811 = vadd.f32 0.0, %v810
      %v812 = vpop.f32.mrb[0].mxu0
      %v813 = vpop.f32.mrb[0].mxu0
      %v814 = vadd.f32 0.0, %v813
      %v815 = vpop.f32.mrb[0].mxu0
      %816 = vdwg.mxu0
      %v817 = vadd.f32 %v304, %v691
      %v818 = vadd.f32 %v305, %v694
      %v819 = vadd.f32 %v306, %v699
      %v820 = vadd.f32 %v307, %v702
      %v821 = vadd.f32 %v308, %v707
      %v822 = vadd.f32 %v309, %v710
      %v823 = vadd.f32 %v310, %v715
      %v824 = vadd.f32 %v311, %v718
      %v825 = vadd.f32 %v312, %v723
      %v826 = vadd.f32 %v313, %v726
      %v827 = vadd.f32 %v314, %v731
      %v828 = vadd.f32 %v315, %v734
      %v829 = vadd.f32 %v316, %v739
      %v830 = vadd.f32 %v317, %v742
      %v831 = vadd.f32 %v318, %v747
      %v832 = vadd.f32 %v319, %v750
      %v833 = vadd.f32 %v320, %v755
      %v834 = vadd.f32 %v321, %v758
      %v835 = vadd.f32 %v322, %v763
      %v836 = vadd.f32 %v323, %v766
      %v837 = vadd.f32 %v324, %v771
      %v838 = vadd.f32 %v325, %v774
      %v839 = vadd.f32 %v326, %v779
      %v840 = vadd.f32 %v327, %v782
      %v841 = vadd.f32 %v328, %v787
      %v842 = vadd.f32 %v329, %v790
      %v843 = vadd.f32 %v330, %v795
      %v844 = vadd.f32 %v331, %v798
      %v845 = vadd.f32 %v332, %v803
      %v846 = vadd.f32 %v333, %v806
      %v847 = vadd.f32 %v334, %v811
      %v848 = vadd.f32 %v335, %v814
      %849 = vst [vmem:[#allocation2] sm:$0xff] %v817
      %850 = vst [vmem:[#allocation2 + $0x8] sm:$0xff] %v818
      %851 = vst [vmem:[#allocation2 + $0x10] sm:$0xff] %v819
      %852 = vst [vmem:[#allocation2 + $0x18] sm:$0xff] %v820
      %853 = vst [vmem:[#allocation2 + $0x20] sm:$0xff] %v821
      %854 = vst [vmem:[#allocation2 + $0x28] sm:$0xff] %v822
      %855 = vst [vmem:[#allocation2 + $0x30] sm:$0xff] %v823
      %856 = vst [vmem:[#allocation2 + $0x38] sm:$0xff] %v824
      %857 = vst [vmem:[#allocation2 + $0x40] sm:$0xff] %v825
      %858 = vst [vmem:[#allocation2 + $0x48] sm:$0xff] %v826
      %859 = vst [vmem:[#allocation2 + $0x50] sm:$0xff] %v827
      %860 = vst [vmem:[#allocation2 + $0x58] sm:$0xff] %v828
      %861 = vst [vmem:[#allocation2 + $0x60] sm:$0xff] %v829
      %862 = vst [vmem:[#allocation2 + $0x68] sm:$0xff] %v830
      %863 = vst [vmem:[#allocation2 + $0x70] sm:$0xff] %v831
      %864 = vst [vmem:[#allocation2 + $0x78] sm:$0xff] %v832
      %865 = vst [vmem:[#allocation2 + $0x80] sm:$0xff] %v833
      %866 = vst [vmem:[#allocation2 + $0x88] sm:$0xff] %v834
      %867 = vst [vmem:[#allocation2 + $0x90] sm:$0xff] %v835
      %868 = vst [vmem:[#allocation2 + $0x98] sm:$0xff] %v836
      %869 = vst [vmem:[#allocation2 + $0xa0] sm:$0xff] %v837
      %870 = vst [vmem:[#allocation2 + $0xa8] sm:$0xff] %v838
      %871 = vst [vmem:[#allocation2 + $0xb0] sm:$0xff] %v839
      %872 = vst [vmem:[#allocation2 + $0xb8] sm:$0xff] %v840
      %873 = vst [vmem:[#allocation2 + $0xc0] sm:$0xff] %v841
      %874 = vst [vmem:[#allocation2 + $0xc8] sm:$0xff] %v842
      %875 = vst [vmem:[#allocation2 + $0xd0] sm:$0xff] %v843
      %876 = vst [vmem:[#allocation2 + $0xd8] sm:$0xff] %v844
      %877 = vst [vmem:[#allocation2 + $0xe0] sm:$0xff] %v845
      %878 = vst [vmem:[#allocation2 + $0xe8] sm:$0xff] %v846
      %879 = vst [vmem:[#allocation2 + $0xf0] sm:$0xff] %v847
      %880 = vst [vmem:[#allocation2 + $0xf8] sm:$0xff] %v848
      // Predicated region
      $region37: #{orangenet18_forward.22} parent=31 // pred_check
        %p881 = pneg %p268
      $region38: #{orangenet18_forward.22} parent=31 // pred_check_branch
        %883 = sbr.rel (%p881) target = $region40
      $region39: #{orangenet18_forward.22} parent=31 // pred_region
        %v884 = vld [vmem:[#allocation2] sm:$0xff]
        %v885 = vld [vmem:[#allocation2 + $0x8] sm:$0xff]
        %v886 = vld [vmem:[#allocation2 + $0x10] sm:$0xff]
        %v887 = vld [vmem:[#allocation2 + $0x18] sm:$0xff]
        %v888 = vld [vmem:[#allocation2 + $0x20] sm:$0xff]
        %v889 = vld [vmem:[#allocation2 + $0x28] sm:$0xff]
        %v890 = vld [vmem:[#allocation2 + $0x30] sm:$0xff]
        %v891 = vld [vmem:[#allocation2 + $0x38] sm:$0xff]
        %v892 = vld [vmem:[#allocation2 + $0x40] sm:$0xff]
        %v893 = vld [vmem:[#allocation2 + $0x48] sm:$0xff]
        %v894 = vld [vmem:[#allocation2 + $0x50] sm:$0xff]
        %v895 = vld [vmem:[#allocation2 + $0x58] sm:$0xff]
        %v896 = vld [vmem:[#allocation2 + $0x60] sm:$0xff]
        %v897 = vld [vmem:[#allocation2 + $0x68] sm:$0xff]
        %v898 = vld [vmem:[#allocation2 + $0x70] sm:$0xff]
        %v899 = vld [vmem:[#allocation2 + $0x78] sm:$0xff]
        %v900 = vld [vmem:[#allocation2 + $0x80] sm:$0xff]
        %v901 = vld [vmem:[#allocation2 + $0x88] sm:$0xff]
        %v902 = vld [vmem:[#allocation2 + $0x90] sm:$0xff]
        %v903 = vld [vmem:[#allocation2 + $0x98] sm:$0xff]
        %v904 = vld [vmem:[#allocation2 + $0xa0] sm:$0xff]
        %v905 = vld [vmem:[#allocation2 + $0xa8] sm:$0xff]
        %v906 = vld [vmem:[#allocation2 + $0xb0] sm:$0xff]
        %v907 = vld [vmem:[#allocation2 + $0xb8] sm:$0xff]
        %v908 = vld [vmem:[#allocation2 + $0xc0] sm:$0xff]
        %v909 = vld [vmem:[#allocation2 + $0xc8] sm:$0xff]
        %v910 = vld [vmem:[#allocation2 + $0xd0] sm:$0xff]
        %v911 = vld [vmem:[#allocation2 + $0xd8] sm:$0xff]
        %v912 = vld [vmem:[#allocation2 + $0xe0] sm:$0xff]
        %v913 = vld [vmem:[#allocation2 + $0xe8] sm:$0xff]
        %v914 = vld [vmem:[#allocation2 + $0xf0] sm:$0xff]
        %v915 = vld [vmem:[#allocation2 + $0xf8] sm:$0xff]
        %v916 = vld [vmem:[%s257] sm:$0x1]
        %v918 = vlaneseq
        %v919 = vshrl.u32 %v918, 7
        %v920 = vsub.s32 0, %v919
        %v921 = vrot.slane %v916, %v920
        %v923 = vadd.f32 %v884, %v921
        %v924 = vadd.f32 %v885, %v921
        %v925 = vadd.f32 %v886, %v921
        %v926 = vadd.f32 %v887, %v921
        %v927 = vadd.f32 %v888, %v921
        %v928 = vadd.f32 %v889, %v921
        %v929 = vadd.f32 %v890, %v921
        %v930 = vadd.f32 %v891, %v921
        %v931 = vadd.f32 %v892, %v921
        %v932 = vadd.f32 %v893, %v921
        %v933 = vadd.f32 %v894, %v921
        %v934 = vadd.f32 %v895, %v921
        %v935 = vadd.f32 %v896, %v921
        %v936 = vadd.f32 %v897, %v921
        %v937 = vadd.f32 %v898, %v921
        %v938 = vadd.f32 %v899, %v921
        %v939 = vadd.f32 %v900, %v921
        %v940 = vadd.f32 %v901, %v921
        %v941 = vadd.f32 %v902, %v921
        %v942 = vadd.f32 %v903, %v921
        %v943 = vadd.f32 %v904, %v921
        %v944 = vadd.f32 %v905, %v921
        %v945 = vadd.f32 %v906, %v921
        %v946 = vadd.f32 %v907, %v921
        %v947 = vadd.f32 %v908, %v921
        %v948 = vadd.f32 %v909, %v921
        %v949 = vadd.f32 %v910, %v921
        %v950 = vadd.f32 %v911, %v921
        %v951 = vadd.f32 %v912, %v921
        %v952 = vadd.f32 %v913, %v921
        %v953 = vadd.f32 %v914, %v921
        %v954 = vadd.f32 %v915, %v921
        %v955 = vmax.f32 %v923, 0.0
        %v956 = vmax.f32 %v924, 0.0
        %v957 = vmax.f32 %v925, 0.0
        %v958 = vmax.f32 %v926, 0.0
        %v959 = vmax.f32 %v927, 0.0
        %v960 = vmax.f32 %v928, 0.0
        %v961 = vmax.f32 %v929, 0.0
        %v962 = vmax.f32 %v930, 0.0
        %v963 = vmax.f32 %v931, 0.0
        %v964 = vmax.f32 %v932, 0.0
        %v965 = vmax.f32 %v933, 0.0
        %v966 = vmax.f32 %v934, 0.0
        %v967 = vmax.f32 %v935, 0.0
        %v968 = vmax.f32 %v936, 0.0
        %v969 = vmax.f32 %v937, 0.0
        %v970 = vmax.f32 %v938, 0.0
        %v971 = vmax.f32 %v939, 0.0
        %v972 = vmax.f32 %v940, 0.0
        %v973 = vmax.f32 %v941, 0.0
        %v974 = vmax.f32 %v942, 0.0
        %v975 = vmax.f32 %v943, 0.0
        %v976 = vmax.f32 %v944, 0.0
        %v977 = vmax.f32 %v945, 0.0
        %v978 = vmax.f32 %v946, 0.0
        %v979 = vmax.f32 %v947, 0.0
        %v980 = vmax.f32 %v948, 0.0
        %v981 = vmax.f32 %v949, 0.0
        %v982 = vmax.f32 %v950, 0.0
        %v983 = vmax.f32 %v951, 0.0
        %v984 = vmax.f32 %v952, 0.0
        %v985 = vmax.f32 %v953, 0.0
        %v986 = vmax.f32 %v954, 0.0
        %v987 = vpack.c.bf16 %v956, %v955
        %v988 = vpack.c.bf16 %v958, %v957
        %v989 = vpack.c.bf16 %v960, %v959
        %v990 = vpack.c.bf16 %v962, %v961
        %v991 = vpack.c.bf16 %v964, %v963
        %v992 = vpack.c.bf16 %v966, %v965
        %v993 = vpack.c.bf16 %v968, %v967
        %v994 = vpack.c.bf16 %v970, %v969
        %v995 = vpack.c.bf16 %v972, %v971
        %v996 = vpack.c.bf16 %v974, %v973
        %v997 = vpack.c.bf16 %v976, %v975
        %v998 = vpack.c.bf16 %v978, %v977
        %v999 = vpack.c.bf16 %v980, %v979
        %v1000 = vpack.c.bf16 %v982, %v981
        %v1001 = vpack.c.bf16 %v984, %v983
        %v1002 = vpack.c.bf16 %v986, %v985
        %v1019 = vunpack.c.l.b16 %v987
        %v1020 = vunpack.c.h.b16 %v987
        %v1021 = vunpack.c.l.b16 %v988
        %v1022 = vunpack.c.h.b16 %v988
        %v1023 = vunpack.c.l.b16 %v989
        %v1024 = vunpack.c.h.b16 %v989
        %v1025 = vunpack.c.l.b16 %v990
        %v1026 = vunpack.c.h.b16 %v990
        %v1027 = vunpack.c.l.b16 %v991
        %v1028 = vunpack.c.h.b16 %v991
        %v1029 = vunpack.c.l.b16 %v992
        %v1030 = vunpack.c.h.b16 %v992
        %v1031 = vunpack.c.l.b16 %v993
        %v1032 = vunpack.c.h.b16 %v993
        %v1033 = vunpack.c.l.b16 %v994
        %v1034 = vunpack.c.h.b16 %v994
        %v1035 = vunpack.c.l.b16 %v995
        %v1036 = vunpack.c.h.b16 %v995
        %v1037 = vunpack.c.l.b16 %v996
        %v1038 = vunpack.c.h.b16 %v996
        %v1039 = vunpack.c.l.b16 %v997
        %v1040 = vunpack.c.h.b16 %v997
        %v1041 = vunpack.c.l.b16 %v998
        %v1042 = vunpack.c.h.b16 %v998
        %v1043 = vunpack.c.l.b16 %v999
        %v1044 = vunpack.c.h.b16 %v999
        %v1045 = vunpack.c.l.b16 %v1000
        %v1046 = vunpack.c.h.b16 %v1000
        %v1047 = vunpack.c.l.b16 %v1001
        %v1048 = vunpack.c.h.b16 %v1001
        %v1049 = vunpack.c.l.b16 %v1002
        %v1050 = vunpack.c.h.b16 %v1002
        %v1051 = vpack.c.b16 %v1019, %v1019
        %v1052 = vpack.c.b16 %v1020, %v1020
        %v1053 = vpack.c.b16 %v1021, %v1021
        %v1054 = vpack.c.b16 %v1022, %v1022
        %v1055 = vpack.c.b16 %v1023, %v1023
        %v1056 = vpack.c.b16 %v1024, %v1024
        %v1057 = vpack.c.b16 %v1025, %v1025
        %v1058 = vpack.c.b16 %v1026, %v1026
        %v1059 = vpack.c.b16 %v1027, %v1027
        %v1060 = vpack.c.b16 %v1028, %v1028
        %v1061 = vpack.c.b16 %v1029, %v1029
        %v1062 = vpack.c.b16 %v1030, %v1030
        %v1063 = vpack.c.b16 %v1031, %v1031
        %v1064 = vpack.c.b16 %v1032, %v1032
        %v1065 = vpack.c.b16 %v1033, %v1033
        %v1066 = vpack.c.b16 %v1034, %v1034
        %v1067 = vpack.c.b16 %v1035, %v1035
        %v1068 = vpack.c.b16 %v1036, %v1036
        %v1069 = vpack.c.b16 %v1037, %v1037
        %v1070 = vpack.c.b16 %v1038, %v1038
        %v1071 = vpack.c.b16 %v1039, %v1039
        %v1072 = vpack.c.b16 %v1040, %v1040
        %v1073 = vpack.c.b16 %v1041, %v1041
        %v1074 = vpack.c.b16 %v1042, %v1042
        %v1075 = vpack.c.b16 %v1043, %v1043
        %v1076 = vpack.c.b16 %v1044, %v1044
        %v1077 = vpack.c.b16 %v1045, %v1045
        %v1078 = vpack.c.b16 %v1046, %v1046
        %v1079 = vpack.c.b16 %v1047, %v1047
        %v1080 = vpack.c.b16 %v1048, %v1048
        %v1081 = vpack.c.b16 %v1049, %v1049
        %v1082 = vpack.c.b16 %v1050, %v1050
        %1115 = vst [vmem:[%s265] sm:$0xf] %v1051
        %1116 = vst [vmem:[%s265 + $0x4] sm:$0xf] %v1052
        %1117 = vst [vmem:[%s265 + $0x8] sm:$0xf] %v1053
        %1118 = vst [vmem:[%s265 + $0xc] sm:$0xf] %v1054
        %1119 = vst [vmem:[%s265 + $0x10] sm:$0xf] %v1055
        %1120 = vst [vmem:[%s265 + $0x14] sm:$0xf] %v1056
        %1121 = vst [vmem:[%s265 + $0x18] sm:$0xf] %v1057
        %1122 = vst [vmem:[%s265 + $0x1c] sm:$0xf] %v1058
        %1123 = vst [vmem:[%s265 + $0x20] sm:$0xf] %v1059
        %1124 = vst [vmem:[%s265 + $0x24] sm:$0xf] %v1060
        %1125 = vst [vmem:[%s265 + $0x28] sm:$0xf] %v1061
        %1126 = vst [vmem:[%s265 + $0x2c] sm:$0xf] %v1062
        %1127 = vst [vmem:[%s265 + $0x30] sm:$0xf] %v1063
        %1128 = vst [vmem:[%s265 + $0x34] sm:$0xf] %v1064
        %1129 = vst [vmem:[%s265 + $0x38] sm:$0xf] %v1065
        %1130 = vst [vmem:[%s265 + $0x3c] sm:$0xf] %v1066
        %1131 = vst [vmem:[%s265 + $0x40] sm:$0xf] %v1067
        %1132 = vst [vmem:[%s265 + $0x44] sm:$0xf] %v1068
        %1133 = vst [vmem:[%s265 + $0x48] sm:$0xf] %v1069
        %1134 = vst [vmem:[%s265 + $0x4c] sm:$0xf] %v1070
        %1135 = vst [vmem:[%s265 + $0x50] sm:$0xf] %v1071
        %1136 = vst [vmem:[%s265 + $0x54] sm:$0xf] %v1072
        %1137 = vst [vmem:[%s265 + $0x58] sm:$0xf] %v1073
        %1138 = vst [vmem:[%s265 + $0x5c] sm:$0xf] %v1074
        %1139 = vst [vmem:[%s265 + $0x60] sm:$0xf] %v1075
        %1140 = vst [vmem:[%s265 + $0x64] sm:$0xf] %v1076
        %1141 = vst [vmem:[%s265 + $0x68] sm:$0xf] %v1077
        %1142 = vst [vmem:[%s265 + $0x6c] sm:$0xf] %v1078
        %1143 = vst [vmem:[%s265 + $0x70] sm:$0xf] %v1079
        %1144 = vst [vmem:[%s265 + $0x74] sm:$0xf] %v1080
        %1145 = vst [vmem:[%s265 + $0x78] sm:$0xf] %v1081
        %1146 = vst [vmem:[%s265 + $0x7c] sm:$0xf] %v1082
      $region40: #{orangenet18_forward.22} parent=31 // pred_fallthru
        _
      %s1147 = smul.u32 32, %s19
      %p1148 = scmp.lt.s32.totalorder %s1147, 255
      %s1149 = scalar_select %p1148, %s1147, 255
      %p1150 = scmp.lt.s32.totalorder %s20, 0
      %s1151 = scalar_select %p1150, %s20, 0
      %s1152 = sadd.s32 %s1151, %s1149
      %s1153 = smul.addr %s1152, 4
      %s1154 = scalar_lea.vmem %s3, %s1153
      // Predicated region
      $region41: #{orangenet18_forward.22} parent=31 // pred_check
        %p1155 = pneg %p135
      $region42: #{orangenet18_forward.22} parent=31 // pred_check_branch
        %1157 = sbr.rel (%p1155) target = $region44
      $region43: #{orangenet18_forward.22} parent=31 // pred_region
        %s1158 = smul.u32 32, %s19
      $region44: #{orangenet18_forward.22} parent=31 // pred_fallthru
        _
    $region32: #{orangenet18_forward.22} parent=5 // pred_fallthru
      _
    %p1159 = scmp.le.s32.totalorder 2, %s9
    // Predicated region
    $region45: #{orangenet18_forward.22} parent=5 // pred_check
      %p1160 = pneg %p1159
    $region46: #{orangenet18_forward.22} parent=5 // pred_check_branch
      %1162 = sbr.rel (%p1160) target = $region48
    $region47: #{orangenet18_forward.22} parent=5 // pred_region
      %s1163 = ssub.s32 %s9, 2
      // Predicated region
      $region49: #{orangenet18_forward.22} parent=47 // pred_check
        %p1164 = pneg %p141
      $region50: #{orangenet18_forward.22} parent=47 // pred_check_branch
        %1166 = sbr.rel (%p1164) target = $region52
      $region51: #{orangenet18_forward.22} parent=47 // pred_region
        %s1167 = smul.u32 32, %s22
        %p1168 = scmp.lt.s32.totalorder %s1167, 255
        %s1169 = scalar_select %p1168, %s1167, 255
        %p1170 = scmp.lt.s32.totalorder %s23, 0
        %s1171 = scalar_select %p1170, %s23, 0
        %s1172 = sadd.s32 %s1171, %s1169
        %s1173 = smul.addr %s1172, 4
        %s1174 = scalar_lea.vmem %s3, %s1173
      $region52: #{orangenet18_forward.22} parent=47 // pred_fallthru
        _
    $region48: #{orangenet18_forward.22} parent=5 // pred_fallthru
      _
  $region6: #{orangenet18_forward.22} parent=0 // loop_footer
    %s13 = sadd.s32 1, %s9
  $region7: #{orangenet18_forward.22} parent=0 // loop_footer_branch
    %8 = sbr.rel target = $region3
  $region8: #{orangenet18_forward.22} parent=0 // loop_exit
    _

// kernel: orangenet18_forward.23
$region0: #{orangenet18_forward.23}
  #allocation0 [shape = 'u32[]', space=smem, size = 0x4, offset = 0x4, fixed_abs, tag = 'smem constant byte address 0x4 - core index']
  #allocation1 [shape = 'u32[144,128]{1,0:T(1,128)}', space=vmem, size = 0x12000, scoped, tag = 'internal scratch']
  %s0 = inlined_call_operand.vmem [shape: bf16[9,32,128], index: 0, kind: input, shape index: {}]
  %s1 = inlined_call_operand.vmem [shape: bf16[32,128], index: 1, kind: output, shape index: {}]
  %s2 = sld [smem:[#allocation0]]
  $region14: #{orangenet18_forward.23} parent=0
    _
  %s4 = ssub.s32 1, %s2
  %s5 = scalar_select 0, %s4, %s2
  // Predicated region
  $region2: #{orangenet18_forward.23} parent=0 // pred_check
    _
  $region3: #{orangenet18_forward.23} parent=0 // pred_check_branch
    %7 = sbr.rel (0) target = $region5
  $region4: #{orangenet18_forward.23} parent=0 // pred_region
    _
  $region5: #{orangenet18_forward.23} parent=0 // pred_fallthru
    _
  %v8 = vld [vmem:[%s0] sm:$0xf]
  %v9 = vld [vmem:[%s0 + $0x4] sm:$0xf]
  %v10 = vld [vmem:[%s0 + $0x8] sm:$0xf]
  %v11 = vld [vmem:[%s0 + $0xc] sm:$0xf]
  %v12 = vunpack.c.l.bf16 %v8
  %v13 = vunpack.c.l.bf16 %v9
  %v14 = vunpack.c.l.bf16 %v10
  %v15 = vunpack.c.l.bf16 %v11
  %s16 = scalar_lea.vmem %s0, 16
  %v17 = vld [vmem:[%s16] sm:$0xf]
  %v18 = vld [vmem:[%s16 + $0x4] sm:$0xf]
  %v19 = vld [vmem:[%s16 + $0x8] sm:$0xf]
  %v20 = vld [vmem:[%s16 + $0xc] sm:$0xf]
  %v21 = vunpack.c.l.bf16 %v17
  %v22 = vunpack.c.l.bf16 %v18
  %v23 = vunpack.c.l.bf16 %v19
  %v24 = vunpack.c.l.bf16 %v20
  %v25 = vmax.f32 %v12, %v21
  %v26 = vmax.f32 %v13, %v22
  %v27 = vmax.f32 %v14, %v23
  %v28 = vmax.f32 %v15, %v24
  %s29 = scalar_lea.vmem %s0, 32
  %v30 = vld [vmem:[%s29] sm:$0xf]
  %v31 = vld [vmem:[%s29 + $0x4] sm:$0xf]
  %v32 = vld [vmem:[%s29 + $0x8] sm:$0xf]
  %v33 = vld [vmem:[%s29 + $0xc] sm:$0xf]
  %v34 = vunpack.c.l.bf16 %v30
  %v35 = vunpack.c.l.bf16 %v31
  %v36 = vunpack.c.l.bf16 %v32
  %v37 = vunpack.c.l.bf16 %v33
  %v38 = vmax.f32 %v25, %v34
  %v39 = vmax.f32 %v26, %v35
  %v40 = vmax.f32 %v27, %v36
  %v41 = vmax.f32 %v28, %v37
  %s42 = scalar_lea.vmem %s0, 48
  %v43 = vld [vmem:[%s42] sm:$0xf]
  %v44 = vld [vmem:[%s42 + $0x4] sm:$0xf]
  %v45 = vld [vmem:[%s42 + $0x8] sm:$0xf]
  %v46 = vld [vmem:[%s42 + $0xc] sm:$0xf]
  %v47 = vunpack.c.l.bf16 %v43
  %v48 = vunpack.c.l.bf16 %v44
  %v49 = vunpack.c.l.bf16 %v45
  %v50 = vunpack.c.l.bf16 %v46
  %v51 = vmax.f32 %v38, %v47
  %v52 = vmax.f32 %v39, %v48
  %v53 = vmax.f32 %v40, %v49
  %v54 = vmax.f32 %v41, %v50
  %s55 = scalar_lea.vmem %s0, 64
  %v56 = vld [vmem:[%s55] sm:$0xf]
  %v57 = vld [vmem:[%s55 + $0x4] sm:$0xf]
  %v58 = vld [vmem:[%s55 + $0x8] sm:$0xf]
  %v59 = vld [vmem:[%s55 + $0xc] sm:$0xf]
  %v60 = vunpack.c.l.bf16 %v56
  %v61 = vunpack.c.l.bf16 %v57
  %v62 = vunpack.c.l.bf16 %v58
  %v63 = vunpack.c.l.bf16 %v59
  %v64 = vmax.f32 %v51, %v60
  %v65 = vmax.f32 %v52, %v61
  %v66 = vmax.f32 %v53, %v62
  %v67 = vmax.f32 %v54, %v63
  %s68 = scalar_lea.vmem %s0, 80
  %v69 = vld [vmem:[%s68] sm:$0xf]
  %v70 = vld [vmem:[%s68 + $0x4] sm:$0xf]
  %v71 = vld [vmem:[%s68 + $0x8] sm:$0xf]
  %v72 = vld [vmem:[%s68 + $0xc] sm:$0xf]
  %v73 = vunpack.c.l.bf16 %v69
  %v74 = vunpack.c.l.bf16 %v70
  %v75 = vunpack.c.l.bf16 %v71
  %v76 = vunpack.c.l.bf16 %v72
  %v77 = vmax.f32 %v64, %v73
  %v78 = vmax.f32 %v65, %v74
  %v79 = vmax.f32 %v66, %v75
  %v80 = vmax.f32 %v67, %v76
  %s81 = scalar_lea.vmem %s0, 96
  %v82 = vld [vmem:[%s81] sm:$0xf]
  %v83 = vld [vmem:[%s81 + $0x4] sm:$0xf]
  %v84 = vld [vmem:[%s81 + $0x8] sm:$0xf]
  %v85 = vld [vmem:[%s81 + $0xc] sm:$0xf]
  %v86 = vunpack.c.l.bf16 %v82
  %v87 = vunpack.c.l.bf16 %v83
  %v88 = vunpack.c.l.bf16 %v84
  %v89 = vunpack.c.l.bf16 %v85
  %v90 = vmax.f32 %v77, %v86
  %v91 = vmax.f32 %v78, %v87
  %v92 = vmax.f32 %v79, %v88
  %v93 = vmax.f32 %v80, %v89
  %s94 = scalar_lea.vmem %s0, 112
  %v95 = vld [vmem:[%s94] sm:$0xf]
  %v96 = vld [vmem:[%s94 + $0x4] sm:$0xf]
  %v97 = vld [vmem:[%s94 + $0x8] sm:$0xf]
  %v98 = vld [vmem:[%s94 + $0xc] sm:$0xf]
  %v99 = vunpack.c.l.bf16 %v95
  %v100 = vunpack.c.l.bf16 %v96
  %v101 = vunpack.c.l.bf16 %v97
  %v102 = vunpack.c.l.bf16 %v98
  %v103 = vmax.f32 %v90, %v99
  %v104 = vmax.f32 %v91, %v100
  %v105 = vmax.f32 %v92, %v101
  %v106 = vmax.f32 %v93, %v102
  %s107 = scalar_lea.vmem %s0, 128
  %v108 = vld [vmem:[%s107] sm:$0xf]
  %v109 = vld [vmem:[%s107 + $0x4] sm:$0xf]
  %v110 = vld [vmem:[%s107 + $0x8] sm:$0xf]
  %v111 = vld [vmem:[%s107 + $0xc] sm:$0xf]
  %v112 = vunpack.c.l.bf16 %v108
  %v113 = vunpack.c.l.bf16 %v109
  %v114 = vunpack.c.l.bf16 %v110
  %v115 = vunpack.c.l.bf16 %v111
  %v116 = vmax.f32 %v103, %v112
  %v117 = vmax.f32 %v104, %v113
  %v118 = vmax.f32 %v105, %v114
  %v119 = vmax.f32 %v106, %v115
  %v120 = vpack.c.bf16 %v117, %v116
  %v121 = vpack.c.bf16 %v119, %v118
  %v124 = vunpack.c.l.b16 %v120
  %v125 = vunpack.c.h.b16 %v120
  %v126 = vunpack.c.l.b16 %v121
  %v127 = vunpack.c.h.b16 %v121
  %v128 = vpack.c.b16 %v124, %v124
  %v129 = vpack.c.b16 %v125, %v125
  %v130 = vpack.c.b16 %v126, %v126
  %v131 = vpack.c.b16 %v127, %v127
  %136 = vst [vmem:[%s1] sm:$0xf] %v128
  %137 = vst [vmem:[%s1 + $0x4] sm:$0xf] %v129
  %138 = vst [vmem:[%s1 + $0x8] sm:$0xf] %v130
  %139 = vst [vmem:[%s1 + $0xc] sm:$0xf] %v131
  // Predicated region
  $region6: #{orangenet18_forward.23} parent=0 // pred_check
    _
  $region7: #{orangenet18_forward.23} parent=0 // pred_check_branch
    %141 = sbr.rel (0) target = $region9
  $region8: #{orangenet18_forward.23} parent=0 // pred_region
    _
  $region9: #{orangenet18_forward.23} parent=0 // pred_fallthru
    _
  // Predicated region
  $region10: #{orangenet18_forward.23} parent=0 // pred_check
    _
  $region11: #{orangenet18_forward.23} parent=0 // pred_check_branch
    %143 = sbr.rel (0) target = $region13
  $region12: #{orangenet18_forward.23} parent=0 // pred_region
    _
  $region13: #{orangenet18_forward.23} parent=0 // pred_fallthru
    _

// kernel: orangenet18_forward.24
$region0: #{orangenet18_forward.24}
  #allocation0 [shape = 'u32[]', space=smem, size = 0x4, offset = 0x4, fixed_abs, tag = 'smem constant byte address 0x4 - core index']
  #allocation1 [shape = 'u32[144,128]{1,0:T(1,128)}', space=vmem, size = 0x12000, scoped, tag = 'internal scratch']
  #allocation2 [shape = 'f32[256,128]{1,0:T(8,128)}', space=vmem, size = 0x20000, scoped, tag = 'scratch operand']
  %s0 = inlined_call_operand.vmem [shape: bf16[512,128], index: 0, kind: input, shape index: {}]
  %s1 = inlined_call_operand.vmem [shape: bf16[128,128], index: 1, kind: input, shape index: {}]
  %s2 = inlined_call_operand.vmem [shape: f32[1,128], index: 2, kind: input, shape index: {}]
  %s3 = inlined_call_operand.vmem [shape: bf16[512,128], index: 3, kind: output, shape index: {}]
  %s4 = sld [smem:[#allocation0]]
  $region53: #{orangenet18_forward.24} parent=0
    _
  %s6 = ssub.s32 1, %s4
  %s7 = scalar_select 0, %s6, %s4
  loop: start=0, step=1, limit=4
  $region2: #{orangenet18_forward.24} parent=0 // loop_pre_header
    _
  $region3: #{orangenet18_forward.24} parent=0 // loop_header
    %s9 = sphi 0, %s13
    %p10 = scmp.ge.s32.totalorder %s9, 4
    %s16 = sphi 0, %s35
    %s17 = sphi 0, %s31
    %s18 = sphi 0, %s27
    %s19 = sphi 0, %s16
    %s20 = sphi 0, %s17
    %s21 = sphi 0, %s18
    %s22 = sphi 0, %s19
    %s23 = sphi 0, %s20
    %s24 = sphi 0, %s21
    %s40 = sphi 0, %s42
    %s43 = sphi 0, %s40
    %s44 = sphi 0, %s43
    %s60 = sphi 0, %s44
    %s68 = sphi 0, %s70
    %s71 = sphi 0, %s68
    %s72 = sphi 0, %s71
    %s88 = sphi 0, %s72
    %s94 = sphi 0, %s96
    %s97 = sphi 0, %s94
    %s98 = sphi 0, %s97
    %s114 = sphi 0, %s98
    %s122 = sphi 0, %s124
    %s125 = sphi 0, %s122
    %s126 = sphi 0, %s125
    %s142 = sphi 0, %s126
  $region4: #{orangenet18_forward.24} parent=0 // loop_header_branch
    %12 = sbr.rel (%p10) target = $region8
  $region5: #{orangenet18_forward.24} parent=0 // loop_body
    %s14 = ssub.s32 %s9, 1
    %s15 = ssub.s32 %s9, 2
    %s25 = sadd.s32 1, %s18
    %p26 = scmp.ge.s32.totalorder %s25, 1
    %s27 = scalar_select %p26, 0, %s25
    %s28 = sadd.s32 1, %s17
    %s29 = scalar_select %p26, %s28, %s17
    %p30 = scmp.ge.s32.totalorder %s29, 1
    %s31 = scalar_select %p30, 0, %s29
    %s32 = sadd.s32 1, %s16
    %s33 = scalar_select %p30, %s32, %s16
    %p34 = scmp.ge.s32.totalorder %s33, 2
    %s35 = scalar_select %p34, 0, %s33
    %s36 = ssub.s32 %s16, %s35
    %s37 = ssub.s32 %s18, %s27
    %s38 = sor.u32 %s36, %s37
    %p39 = scmp.eq.s32.totalorder %s38, 0
    %s41 = sadd.s32 %s40, 1
    %s42 = scalar_select %p39, %s40, %s41
    %p45 = pneg %p39
    %p46 = scmp.eq.s32.totalorder %s9, 1
    %p47 = por %p45, %p46
    %p48 = scmp.ne.s32.totalorder %s40, %s43
    %p49 = scmp.eq.s32.totalorder %s9, 0
    %p50 = por %p48, %p49
    %p51 = scmp.ne.s32.totalorder %s40, %s43
    %p52 = scmp.eq.s32.totalorder %s14, 1
    %p53 = por %p51, %p52
    %p54 = scmp.ne.s32.totalorder %s43, %s44
    %p55 = scmp.eq.s32.totalorder %s14, 0
    %p56 = por %p54, %p55
    %p57 = scmp.ne.s32.totalorder %s43, %s44
    %p58 = scmp.eq.s32.totalorder %s15, 1
    %p59 = por %p57, %p58
    %p61 = scmp.ne.s32.totalorder %s44, %s60
    %p62 = scmp.eq.s32.totalorder %s15, 0
    %p63 = por %p61, %p62
    %s64 = ssub.s32 %s18, %s27
    %s65 = ssub.s32 %s17, %s31
    %s66 = sor.u32 %s64, %s65
    %p67 = scmp.eq.s32.totalorder %s66, 0
    %s69 = sadd.s32 %s68, 1
    %s70 = scalar_select %p67, %s68, %s69
    %p73 = pneg %p67
    %p74 = scmp.eq.s32.totalorder %s9, 1
    %p75 = por %p73, %p74
    %p76 = scmp.ne.s32.totalorder %s68, %s71
    %p77 = scmp.eq.s32.totalorder %s9, 0
    %p78 = por %p76, %p77
    %p79 = scmp.ne.s32.totalorder %s68, %s71
    %p80 = scmp.eq.s32.totalorder %s14, 1
    %p81 = por %p79, %p80
    %p82 = scmp.ne.s32.totalorder %s71, %s72
    %p83 = scmp.eq.s32.totalorder %s14, 0
    %p84 = por %p82, %p83
    %p85 = scmp.ne.s32.totalorder %s71, %s72
    %p86 = scmp.eq.s32.totalorder %s15, 1
    %p87 = por %p85, %p86
    %p89 = scmp.ne.s32.totalorder %s72, %s88
    %p90 = scmp.eq.s32.totalorder %s15, 0
    %p91 = por %p89, %p90
    %s92 = ssub.s32 %s17, %s31
    %p93 = scmp.eq.s32.totalorder %s92, 0
    %s95 = sadd.s32 %s94, 1
    %s96 = scalar_select %p93, %s94, %s95
    %p99 = pneg %p93
    %p100 = scmp.eq.s32.totalorder %s9, 1
    %p101 = por %p99, %p100
    %p102 = scmp.ne.s32.totalorder %s94, %s97
    %p103 = scmp.eq.s32.totalorder %s9, 0
    %p104 = por %p102, %p103
    %p105 = scmp.ne.s32.totalorder %s94, %s97
    %p106 = scmp.eq.s32.totalorder %s14, 1
    %p107 = por %p105, %p106
    %p108 = scmp.ne.s32.totalorder %s97, %s98
    %p109 = scmp.eq.s32.totalorder %s14, 0
    %p110 = por %p108, %p109
    %p111 = scmp.ne.s32.totalorder %s97, %s98
    %p112 = scmp.eq.s32.totalorder %s15, 1
    %p113 = por %p111, %p112
    %p115 = scmp.ne.s32.totalorder %s98, %s114
    %p116 = scmp.eq.s32.totalorder %s15, 0
    %p117 = por %p115, %p116
    %s118 = ssub.s32 %s16, %s35
    %s119 = ssub.s32 %s17, %s31
    %s120 = sor.u32 %s118, %s119
    %p121 = scmp.eq.s32.totalorder %s120, 0
    %s123 = sadd.s32 %s122, 1
    %s124 = scalar_select %p121, %s122, %s123
    %p127 = pneg %p121
    %p128 = scmp.eq.s32.totalorder %s9, 1
    %p129 = por %p127, %p128
    %p130 = scmp.ne.s32.totalorder %s122, %s125
    %p131 = scmp.eq.s32.totalorder %s9, 0
    %p132 = por %p130, %p131
    %p133 = scmp.ne.s32.totalorder %s122, %s125
    %p134 = scmp.eq.s32.totalorder %s14, 1
    %p135 = por %p133, %p134
    %p136 = scmp.ne.s32.totalorder %s125, %s126
    %p137 = scmp.eq.s32.totalorder %s14, 0
    %p138 = por %p136, %p137
    %p139 = scmp.ne.s32.totalorder %s125, %s126
    %p140 = scmp.eq.s32.totalorder %s15, 1
    %p141 = por %p139, %p140
    %p143 = scmp.ne.s32.totalorder %s126, %s142
    %p144 = scmp.eq.s32.totalorder %s15, 0
    %p145 = por %p143, %p144
    %p146 = scmp.le.s32.totalorder 1, %s9
    %p147 = scmp.lt.s32.totalorder %s9, 3
    %p148 = pnand %p146, %p147
    %p149 = pneg %p148
    // Predicated region
    $region9: #{orangenet18_forward.24} parent=5 // pred_check
      _
    $region10: #{orangenet18_forward.24} parent=5 // pred_check_branch
      %151 = sbr.rel (%p148) target = $region12
    $region11: #{orangenet18_forward.24} parent=5 // pred_region
      %s152 = ssub.s32 %s9, 1
      // Predicated region
      $region13: #{orangenet18_forward.24} parent=11 // pred_check
        %p153 = pneg %p84
      $region14: #{orangenet18_forward.24} parent=11 // pred_check_branch
        %155 = sbr.rel (%p153) target = $region16
      $region15: #{orangenet18_forward.24} parent=11 // pred_region
        %s156 = smul.u32 16, %s21
        %p157 = scmp.lt.s32.totalorder %s156, 15
        %s158 = scalar_select %p157, %s156, 15
        %p159 = scmp.lt.s32.totalorder %s20, 0
        %s160 = scalar_select %p159, %s20, 0
        %s161 = sadd.s32 %s160, %s158
        %s162 = smul.addr %s161, 4
        %s163 = scalar_lea.vmem %s1, %s162
        %s164 = smul.u32 16, %s21
      $region16: #{orangenet18_forward.24} parent=11 // pred_fallthru
        _
      // Predicated region
      $region17: #{orangenet18_forward.24} parent=11 // pred_check
        %p165 = pneg %p110
      $region18: #{orangenet18_forward.24} parent=11 // pred_check_branch
        %167 = sbr.rel (%p165) target = $region20
      $region19: #{orangenet18_forward.24} parent=11 // pred_region
        %p168 = scmp.lt.s32.totalorder %s20, 0
        %s169 = scalar_select %p168, %s20, 0
        %s170 = scalar_lea.vmem %s2, %s169
      $region20: #{orangenet18_forward.24} parent=11 // pred_fallthru
        _
    $region12: #{orangenet18_forward.24} parent=5 // pred_fallthru
      _
    %p171 = scmp.lt.s32.totalorder %s9, 2
    // Predicated region
    $region21: #{orangenet18_forward.24} parent=5 // pred_check
      %p172 = pneg %p171
    $region22: #{orangenet18_forward.24} parent=5 // pred_check_branch
      %174 = sbr.rel (%p172) target = $region24
    $region23: #{orangenet18_forward.24} parent=5 // pred_region
      // Predicated region
      $region25: #{orangenet18_forward.24} parent=23 // pred_check
        %p175 = pneg %p50
      $region26: #{orangenet18_forward.24} parent=23 // pred_check_branch
        %177 = sbr.rel (%p175) target = $region28
      $region27: #{orangenet18_forward.24} parent=23 // pred_region
        %s178 = smul.u32 32, %s16
        %p179 = scmp.lt.s32.totalorder %s178, 63
        %s180 = scalar_select %p179, %s178, 63
        %p181 = scmp.lt.s32.totalorder %s18, 0
        %s182 = scalar_select %p181, %s18, 0
        %s183 = sadd.s32 %s182, %s180
        %s184 = smul.addr %s183, 4
        %s185 = scalar_lea.vmem %s0, %s184
        %s186 = smul.u32 32, %s16
      $region28: #{orangenet18_forward.24} parent=23 // pred_fallthru
        _
    $region24: #{orangenet18_forward.24} parent=5 // pred_fallthru
      _
    %p187 = scmp.le.s32.totalorder 1, %s9
    %p188 = scmp.lt.s32.totalorder %s9, 3
    %p189 = pnand %p187, %p188
    %p190 = pneg %p189
    // Predicated region
    $region29: #{orangenet18_forward.24} parent=5 // pred_check
      _
    $region30: #{orangenet18_forward.24} parent=5 // pred_check_branch
      %192 = sbr.rel (%p189) target = $region32
    $region31: #{orangenet18_forward.24} parent=5 // pred_region
      %s193 = ssub.s32 %s9, 1
      %s194 = smul.u32 32, %s19
      %p195 = scmp.lt.s32.totalorder %s194, 63
      %s196 = scalar_select %p195, %s194, 63
      %p197 = scmp.lt.s32.totalorder %s21, 0
      %s198 = scalar_select %p197, %s21, 0
      %s199 = sadd.s32 %s198, %s196
      %s200 = smul.addr %s199, 4
      %s201 = scalar_lea.vmem %s0, %s200
      %p202 = pneg %p56
      %p203 = pneg %p53
      %s204 = smul.u32 16, %s21
      %p205 = scmp.lt.s32.totalorder %s204, 15
      %s206 = scalar_select %p205, %s204, 15
      %p207 = scmp.lt.s32.totalorder %s20, 0
      %s208 = scalar_select %p207, %s20, 0
      %s209 = sadd.s32 %s208, %s206
      %s210 = smul.addr %s209, 4
      %s211 = scalar_lea.vmem %s1, %s210
      %p212 = pneg %p84
      %p213 = pneg %p81
      %p214 = scmp.lt.s32.totalorder %s20, 0
      %s215 = scalar_select %p214, %s20, 0
      %s216 = scalar_lea.vmem %s2, %s215
      %p217 = pneg %p110
      %p218 = pneg %p107
      %p219 = pneg %p138
      %p220 = pneg %p135
      %s221 = smul.u32 32, %s19
      %p222 = scmp.lt.s32.totalorder %s221, 63
      %s223 = scalar_select %p222, %s221, 63
      %p224 = scmp.lt.s32.totalorder %s20, 0
      %s225 = scalar_select %p224, %s20, 0
      %s226 = sadd.s32 %s225, %s223
      %s227 = smul.addr %s226, 4
      %s228 = scalar_lea.vmem %s3, %s227
      %s229 = smul.u32 32, %s19
      %p230 = scmp.lt.s32.totalorder %s229, 63
      %s231 = scalar_select %p230, %s229, 63
      %p232 = scmp.lt.s32.totalorder %s21, 0
      %s233 = scalar_select %p232, %s21, 0
      %s234 = sadd.s32 %s233, %s231
      %s235 = smul.addr %s234, 4
      %s236 = scalar_lea.vmem %s0, %s235
      %s237 = smul.u32 32, %s19
      %s238 = smul.u32 16, %s21
      %p239 = scmp.lt.s32.totalorder %s238, 15
      %s240 = scalar_select %p239, %s238, 15
      %p241 = scmp.lt.s32.totalorder %s20, 0
      %s242 = scalar_select %p241, %s20, 0
      %s243 = sadd.s32 %s242, %s240
      %s244 = smul.addr %s243, 4
      %s245 = scalar_lea.vmem %s1, %s244
      %s246 = smul.u32 16, %s21
      %p247 = scmp.lt.s32.totalorder %s20, 0
      %s248 = scalar_select %p247, %s20, 0
      %s249 = scalar_lea.vmem %s2, %s248
      %s250 = smul.u32 32, %s19
      %p251 = scmp.lt.s32.totalorder %s250, 63
      %s252 = scalar_select %p251, %s250, 63
      %p253 = scmp.lt.s32.totalorder %s20, 0
      %s254 = scalar_select %p253, %s20, 0
      %s255 = sadd.s32 %s254, %s252
      %s256 = smul.addr %s255, 4
      %s257 = scalar_lea.vmem %s3, %s256
      %s258 = smul.u32 32, %s19
      %p260 = scmp.eq.s32.totalorder %s21, 0
      // Predicated region
      $region33: #{orangenet18_forward.24} parent=31 // pred_check
        %p261 = pneg %p260
      $region34: #{orangenet18_forward.24} parent=31 // pred_check_branch
        %263 = sbr.rel (%p261) target = $region36
      $region35: #{orangenet18_forward.24} parent=31 // pred_region
        %264 = vst [vmem:[#allocation2] sm:$0xff] 0.0
        %265 = vst [vmem:[#allocation2 + $0x8] sm:$0xff] 0.0
        %266 = vst [vmem:[#allocation2 + $0x10] sm:$0xff] 0.0
        %267 = vst [vmem:[#allocation2 + $0x18] sm:$0xff] 0.0
        %268 = vst [vmem:[#allocation2 + $0x20] sm:$0xff] 0.0
        %269 = vst [vmem:[#allocation2 + $0x28] sm:$0xff] 0.0
        %270 = vst [vmem:[#allocation2 + $0x30] sm:$0xff] 0.0
        %271 = vst [vmem:[#allocation2 + $0x38] sm:$0xff] 0.0
        %272 = vst [vmem:[#allocation2 + $0x40] sm:$0xff] 0.0
        %273 = vst [vmem:[#allocation2 + $0x48] sm:$0xff] 0.0
        %274 = vst [vmem:[#allocation2 + $0x50] sm:$0xff] 0.0
        %275 = vst [vmem:[#allocation2 + $0x58] sm:$0xff] 0.0
        %276 = vst [vmem:[#allocation2 + $0x60] sm:$0xff] 0.0
        %277 = vst [vmem:[#allocation2 + $0x68] sm:$0xff] 0.0
        %278 = vst [vmem:[#allocation2 + $0x70] sm:$0xff] 0.0
        %279 = vst [vmem:[#allocation2 + $0x78] sm:$0xff] 0.0
        %280 = vst [vmem:[#allocation2 + $0x80] sm:$0xff] 0.0
        %281 = vst [vmem:[#allocation2 + $0x88] sm:$0xff] 0.0
        %282 = vst [vmem:[#allocation2 + $0x90] sm:$0xff] 0.0
        %283 = vst [vmem:[#allocation2 + $0x98] sm:$0xff] 0.0
        %284 = vst [vmem:[#allocation2 + $0xa0] sm:$0xff] 0.0
        %285 = vst [vmem:[#allocation2 + $0xa8] sm:$0xff] 0.0
        %286 = vst [vmem:[#allocation2 + $0xb0] sm:$0xff] 0.0
        %287 = vst [vmem:[#allocation2 + $0xb8] sm:$0xff] 0.0
        %288 = vst [vmem:[#allocation2 + $0xc0] sm:$0xff] 0.0
        %289 = vst [vmem:[#allocation2 + $0xc8] sm:$0xff] 0.0
        %290 = vst [vmem:[#allocation2 + $0xd0] sm:$0xff] 0.0
        %291 = vst [vmem:[#allocation2 + $0xd8] sm:$0xff] 0.0
        %292 = vst [vmem:[#allocation2 + $0xe0] sm:$0xff] 0.0
        %293 = vst [vmem:[#allocation2 + $0xe8] sm:$0xff] 0.0
        %294 = vst [vmem:[#allocation2 + $0xf0] sm:$0xff] 0.0
        %295 = vst [vmem:[#allocation2 + $0xf8] sm:$0xff] 0.0
      $region36: #{orangenet18_forward.24} parent=31 // pred_fallthru
        _
      %v296 = vld [vmem:[#allocation2] sm:$0xff]
      %v297 = vld [vmem:[#allocation2 + $0x8] sm:$0xff]
      %v298 = vld [vmem:[#allocation2 + $0x10] sm:$0xff]
      %v299 = vld [vmem:[#allocation2 + $0x18] sm:$0xff]
      %v300 = vld [vmem:[#allocation2 + $0x20] sm:$0xff]
      %v301 = vld [vmem:[#allocation2 + $0x28] sm:$0xff]
      %v302 = vld [vmem:[#allocation2 + $0x30] sm:$0xff]
      %v303 = vld [vmem:[#allocation2 + $0x38] sm:$0xff]
      %v304 = vld [vmem:[#allocation2 + $0x40] sm:$0xff]
      %v305 = vld [vmem:[#allocation2 + $0x48] sm:$0xff]
      %v306 = vld [vmem:[#allocation2 + $0x50] sm:$0xff]
      %v307 = vld [vmem:[#allocation2 + $0x58] sm:$0xff]
      %v308 = vld [vmem:[#allocation2 + $0x60] sm:$0xff]
      %v309 = vld [vmem:[#allocation2 + $0x68] sm:$0xff]
      %v310 = vld [vmem:[#allocation2 + $0x70] sm:$0xff]
      %v311 = vld [vmem:[#allocation2 + $0x78] sm:$0xff]
      %v312 = vld [vmem:[#allocation2 + $0x80] sm:$0xff]
      %v313 = vld [vmem:[#allocation2 + $0x88] sm:$0xff]
      %v314 = vld [vmem:[#allocation2 + $0x90] sm:$0xff]
      %v315 = vld [vmem:[#allocation2 + $0x98] sm:$0xff]
      %v316 = vld [vmem:[#allocation2 + $0xa0] sm:$0xff]
      %v317 = vld [vmem:[#allocation2 + $0xa8] sm:$0xff]
      %v318 = vld [vmem:[#allocation2 + $0xb0] sm:$0xff]
      %v319 = vld [vmem:[#allocation2 + $0xb8] sm:$0xff]
      %v320 = vld [vmem:[#allocation2 + $0xc0] sm:$0xff]
      %v321 = vld [vmem:[#allocation2 + $0xc8] sm:$0xff]
      %v322 = vld [vmem:[#allocation2 + $0xd0] sm:$0xff]
      %v323 = vld [vmem:[#allocation2 + $0xd8] sm:$0xff]
      %v324 = vld [vmem:[#allocation2 + $0xe0] sm:$0xff]
      %v325 = vld [vmem:[#allocation2 + $0xe8] sm:$0xff]
      %v326 = vld [vmem:[#allocation2 + $0xf0] sm:$0xff]
      %v327 = vld [vmem:[#allocation2 + $0xf8] sm:$0xff]
      %v328 = vld [vmem:[%s236] sm:$0xf]
      %v329 = vld [vmem:[%s236 + $0x4] sm:$0xf]
      %v330 = vld [vmem:[%s236 + $0x8] sm:$0xf]
      %v331 = vld [vmem:[%s236 + $0xc] sm:$0xf]
      %v332 = vld [vmem:[%s236 + $0x10] sm:$0xf]
      %v333 = vld [vmem:[%s236 + $0x14] sm:$0xf]
      %v334 = vld [vmem:[%s236 + $0x18] sm:$0xf]
      %v335 = vld [vmem:[%s236 + $0x1c] sm:$0xf]
      %v336 = vld [vmem:[%s236 + $0x20] sm:$0xf]
      %v337 = vld [vmem:[%s236 + $0x24] sm:$0xf]
      %v338 = vld [vmem:[%s236 + $0x28] sm:$0xf]
      %v339 = vld [vmem:[%s236 + $0x2c] sm:$0xf]
      %v340 = vld [vmem:[%s236 + $0x30] sm:$0xf]
      %v341 = vld [vmem:[%s236 + $0x34] sm:$0xf]
      %v342 = vld [vmem:[%s236 + $0x38] sm:$0xf]
      %v343 = vld [vmem:[%s236 + $0x3c] sm:$0xf]
      %v344 = vld [vmem:[%s236 + $0x40] sm:$0xf]
      %v345 = vld [vmem:[%s236 + $0x44] sm:$0xf]
      %v346 = vld [vmem:[%s236 + $0x48] sm:$0xf]
      %v347 = vld [vmem:[%s236 + $0x4c] sm:$0xf]
      %v348 = vld [vmem:[%s236 + $0x50] sm:$0xf]
      %v349 = vld [vmem:[%s236 + $0x54] sm:$0xf]
      %v350 = vld [vmem:[%s236 + $0x58] sm:$0xf]
      %v351 = vld [vmem:[%s236 + $0x5c] sm:$0xf]
      %v352 = vld [vmem:[%s236 + $0x60] sm:$0xf]
      %v353 = vld [vmem:[%s236 + $0x64] sm:$0xf]
      %v354 = vld [vmem:[%s236 + $0x68] sm:$0xf]
      %v355 = vld [vmem:[%s236 + $0x6c] sm:$0xf]
      %v356 = vld [vmem:[%s236 + $0x70] sm:$0xf]
      %v357 = vld [vmem:[%s236 + $0x74] sm:$0xf]
      %v358 = vld [vmem:[%s236 + $0x78] sm:$0xf]
      %v359 = vld [vmem:[%s236 + $0x7c] sm:$0xf]
      %v360 = vld [vmem:[%s245] sm:$0xf]
      %v361 = vld [vmem:[%s245 + $0x4] sm:$0xf]
      %v362 = vld [vmem:[%s245 + $0x8] sm:$0xf]
      %v363 = vld [vmem:[%s245 + $0xc] sm:$0xf]
      %v364 = vld [vmem:[%s245 + $0x10] sm:$0xf]
      %v365 = vld [vmem:[%s245 + $0x14] sm:$0xf]
      %v366 = vld [vmem:[%s245 + $0x18] sm:$0xf]
      %v367 = vld [vmem:[%s245 + $0x1c] sm:$0xf]
      %v368 = vld [vmem:[%s245 + $0x20] sm:$0xf]
      %v369 = vld [vmem:[%s245 + $0x24] sm:$0xf]
      %v370 = vld [vmem:[%s245 + $0x28] sm:$0xf]
      %v371 = vld [vmem:[%s245 + $0x2c] sm:$0xf]
      %v372 = vld [vmem:[%s245 + $0x30] sm:$0xf]
      %v373 = vld [vmem:[%s245 + $0x34] sm:$0xf]
      %v374 = vld [vmem:[%s245 + $0x38] sm:$0xf]
      %v375 = vld [vmem:[%s245 + $0x3c] sm:$0xf]
      %v408 = vunpack.c.l.b16 %v328
      %v409 = vunpack.c.l.b16 %v329
      %v410 = vunpack.c.l.b16 %v330
      %v411 = vunpack.c.l.b16 %v331
      %v412 = vunpack.c.l.b16 %v332
      %v413 = vunpack.c.l.b16 %v333
      %v414 = vunpack.c.l.b16 %v334
      %v415 = vunpack.c.l.b16 %v335
      %v416 = vunpack.c.l.b16 %v336
      %v417 = vunpack.c.l.b16 %v337
      %v418 = vunpack.c.l.b16 %v338
      %v419 = vunpack.c.l.b16 %v339
      %v420 = vunpack.c.l.b16 %v340
      %v421 = vunpack.c.l.b16 %v341
      %v422 = vunpack.c.l.b16 %v342
      %v423 = vunpack.c.l.b16 %v343
      %v424 = vunpack.c.l.b16 %v344
      %v425 = vunpack.c.l.b16 %v345
      %v426 = vunpack.c.l.b16 %v346
      %v427 = vunpack.c.l.b16 %v347
      %v428 = vunpack.c.l.b16 %v348
      %v429 = vunpack.c.l.b16 %v349
      %v430 = vunpack.c.l.b16 %v350
      %v431 = vunpack.c.l.b16 %v351
      %v432 = vunpack.c.l.b16 %v352
      %v433 = vunpack.c.l.b16 %v353
      %v434 = vunpack.c.l.b16 %v354
      %v435 = vunpack.c.l.b16 %v355
      %v436 = vunpack.c.l.b16 %v356
      %v437 = vunpack.c.l.b16 %v357
      %v438 = vunpack.c.l.b16 %v358
      %v439 = vunpack.c.l.b16 %v359
      %v440 = vpack.c.b16 %v409, %v408
      %v441 = vpack.c.b16 %v411, %v410
      %v442 = vpack.c.b16 %v413, %v412
      %v443 = vpack.c.b16 %v415, %v414
      %v444 = vpack.c.b16 %v417, %v416
      %v445 = vpack.c.b16 %v419, %v418
      %v446 = vpack.c.b16 %v421, %v420
      %v447 = vpack.c.b16 %v423, %v422
      %v448 = vpack.c.b16 %v425, %v424
      %v449 = vpack.c.b16 %v427, %v426
      %v450 = vpack.c.b16 %v429, %v428
      %v451 = vpack.c.b16 %v431, %v430
      %v452 = vpack.c.b16 %v433, %v432
      %v453 = vpack.c.b16 %v435, %v434
      %v454 = vpack.c.b16 %v437, %v436
      %v455 = vpack.c.b16 %v439, %v438
      %v488 = vunpack.c.l.b16 %v360
      %v489 = vunpack.c.l.b16 %v361
      %v490 = vunpack.c.l.b16 %v362
      %v491 = vunpack.c.l.b16 %v363
      %v492 = vunpack.c.l.b16 %v364
      %v493 = vunpack.c.l.b16 %v365
      %v494 = vunpack.c.l.b16 %v366
      %v495 = vunpack.c.l.b16 %v367
      %v496 = vunpack.c.l.b16 %v368
      %v497 = vunpack.c.l.b16 %v369
      %v498 = vunpack.c.l.b16 %v370
      %v499 = vunpack.c.l.b16 %v371
      %v500 = vunpack.c.l.b16 %v372
      %v501 = vunpack.c.l.b16 %v373
      %v502 = vunpack.c.l.b16 %v374
      %v503 = vunpack.c.l.b16 %v375
      %v504 = vpack.c.b16 %v489, %v488
      %v505 = vpack.c.b16 %v491, %v490
      %v506 = vpack.c.b16 %v493, %v492
      %v507 = vpack.c.b16 %v495, %v494
      %v508 = vpack.c.b16 %v497, %v496
      %v509 = vpack.c.b16 %v499, %v498
      %v510 = vpack.c.b16 %v501, %v500
      %v511 = vpack.c.b16 %v503, %v502
      %520 = vmatprep.subr.bf16.mxu0 0
      %521 = vmatpush1.bf16.msra.mxu0 %v504
      %522 = vmatprep.subr.bf16.mxu0 0
      %523 = vmatpush1.bf16.msra.mxu0 %v505
      %524 = vmatprep.subr.bf16.mxu0 0
      %525 = vmatpush1.bf16.msra.mxu0 %v506
      %526 = vmatprep.subr.bf16.mxu0 0
      %527 = vmatpush1.bf16.msra.mxu0 %v507
      %528 = vmatprep.subr.bf16.mxu0 0
      %529 = vmatpush1.bf16.msra.mxu0 %v508
      %530 = vmatprep.subr.bf16.mxu0 0
      %531 = vmatpush1.bf16.msra.mxu0 %v509
      %532 = vmatprep.subr.bf16.mxu0 0
      %533 = vmatpush1.bf16.msra.mxu0 %v510
      %534 = vmatprep.subr.bf16.mxu0 0
      %535 = vmatpush1.bf16.msra.mxu0 %v511
      %536 = vmatprep.subr.bf16.mxu0 0
      %537 = vmatpush1.bf16.msra.mxu0 0
      %538 = vmatprep.subr.bf16.mxu0 0
      %539 = vmatpush1.bf16.msra.mxu0 0
      %540 = vmatprep.subr.bf16.mxu0 0
      %541 = vmatpush1.bf16.msra.mxu0 0
      %542 = vmatprep.subr.bf16.mxu0 0
      %543 = vmatpush1.bf16.msra.mxu0 0
      %544 = vmatprep.subr.bf16.mxu0 0
      %545 = vmatpush1.bf16.msra.mxu0 0
      %546 = vmatprep.subr.bf16.mxu0 0
      %547 = vmatpush1.bf16.msra.mxu0 0
      %548 = vmatprep.subr.bf16.mxu0 0
      %549 = vmatpush1.bf16.msra.mxu0 0
      %550 = vmatprep.subr.bf16.mxu0 0
      %551 = vmatpush1.bf16.msra.mxu0 0
      %552 = vmatprep.mubr.bf16.mxu0 0
      %553 = vmatmul.mubr.bf16.gmra.mrb[0].mxu0 %v440
      %v554 = vpop.f32.mrb[0].mxu0
      %v555 = vadd.f32 0.0, %v554
      %v556 = vpop.f32.mrb[0].mxu0
      %v557 = vpop.f32.mrb[0].mxu0
      %v558 = vadd.f32 0.0, %v557
      %v559 = vpop.f32.mrb[0].mxu0
      %560 = vmatprep.mubr.bf16.mxu0 0
      %561 = vmatmul.mubr.bf16.gmra.mrb[0].mxu0 %v441
      %v562 = vpop.f32.mrb[0].mxu0
      %v563 = vadd.f32 0.0, %v562
      %v564 = vpop.f32.mrb[0].mxu0
      %v565 = vpop.f32.mrb[0].mxu0
      %v566 = vadd.f32 0.0, %v565
      %v567 = vpop.f32.mrb[0].mxu0
      %568 = vmatprep.mubr.bf16.mxu0 0
      %569 = vmatmul.mubr.bf16.gmra.mrb[0].mxu0 %v442
      %v570 = vpop.f32.mrb[0].mxu0
      %v571 = vadd.f32 0.0, %v570
      %v572 = vpop.f32.mrb[0].mxu0
      %v573 = vpop.f32.mrb[0].mxu0
      %v574 = vadd.f32 0.0, %v573
      %v575 = vpop.f32.mrb[0].mxu0
      %576 = vmatprep.mubr.bf16.mxu0 0
      %577 = vmatmul.mubr.bf16.gmra.mrb[0].mxu0 %v443
      %v578 = vpop.f32.mrb[0].mxu0
      %v579 = vadd.f32 0.0, %v578
      %v580 = vpop.f32.mrb[0].mxu0
      %v581 = vpop.f32.mrb[0].mxu0
      %v582 = vadd.f32 0.0, %v581
      %v583 = vpop.f32.mrb[0].mxu0
      %584 = vmatprep.mubr.bf16.mxu0 0
      %585 = vmatmul.mubr.bf16.gmra.mrb[0].mxu0 %v444
      %v586 = vpop.f32.mrb[0].mxu0
      %v587 = vadd.f32 0.0, %v586
      %v588 = vpop.f32.mrb[0].mxu0
      %v589 = vpop.f32.mrb[0].mxu0
      %v590 = vadd.f32 0.0, %v589
      %v591 = vpop.f32.mrb[0].mxu0
      %592 = vmatprep.mubr.bf16.mxu0 0
      %593 = vmatmul.mubr.bf16.gmra.mrb[0].mxu0 %v445
      %v594 = vpop.f32.mrb[0].mxu0
      %v595 = vadd.f32 0.0, %v594
      %v596 = vpop.f32.mrb[0].mxu0
      %v597 = vpop.f32.mrb[0].mxu0
      %v598 = vadd.f32 0.0, %v597
      %v599 = vpop.f32.mrb[0].mxu0
      %600 = vmatprep.mubr.bf16.mxu0 0
      %601 = vmatmul.mubr.bf16.gmra.mrb[0].mxu0 %v446
      %v602 = vpop.f32.mrb[0].mxu0
      %v603 = vadd.f32 0.0, %v602
      %v604 = vpop.f32.mrb[0].mxu0
      %v605 = vpop.f32.mrb[0].mxu0
      %v606 = vadd.f32 0.0, %v605
      %v607 = vpop.f32.mrb[0].mxu0
      %608 = vmatprep.mubr.bf16.mxu0 0
      %609 = vmatmul.mubr.bf16.gmra.mrb[0].mxu0 %v447
      %v610 = vpop.f32.mrb[0].mxu0
      %v611 = vadd.f32 0.0, %v610
      %v612 = vpop.f32.mrb[0].mxu0
      %v613 = vpop.f32.mrb[0].mxu0
      %v614 = vadd.f32 0.0, %v613
      %v615 = vpop.f32.mrb[0].mxu0
      %616 = vmatprep.mubr.bf16.mxu0 0
      %617 = vmatmul.mubr.bf16.gmra.mrb[0].mxu0 %v448
      %v618 = vpop.f32.mrb[0].mxu0
      %v619 = vadd.f32 0.0, %v618
      %v620 = vpop.f32.mrb[0].mxu0
      %v621 = vpop.f32.mrb[0].mxu0
      %v622 = vadd.f32 0.0, %v621
      %v623 = vpop.f32.mrb[0].mxu0
      %624 = vmatprep.mubr.bf16.mxu0 0
      %625 = vmatmul.mubr.bf16.gmra.mrb[0].mxu0 %v449
      %v626 = vpop.f32.mrb[0].mxu0
      %v627 = vadd.f32 0.0, %v626
      %v628 = vpop.f32.mrb[0].mxu0
      %v629 = vpop.f32.mrb[0].mxu0
      %v630 = vadd.f32 0.0, %v629
      %v631 = vpop.f32.mrb[0].mxu0
      %632 = vmatprep.mubr.bf16.mxu0 0
      %633 = vmatmul.mubr.bf16.gmra.mrb[0].mxu0 %v450
      %v634 = vpop.f32.mrb[0].mxu0
      %v635 = vadd.f32 0.0, %v634
      %v636 = vpop.f32.mrb[0].mxu0
      %v637 = vpop.f32.mrb[0].mxu0
      %v638 = vadd.f32 0.0, %v637
      %v639 = vpop.f32.mrb[0].mxu0
      %640 = vmatprep.mubr.bf16.mxu0 0
      %641 = vmatmul.mubr.bf16.gmra.mrb[0].mxu0 %v451
      %v642 = vpop.f32.mrb[0].mxu0
      %v643 = vadd.f32 0.0, %v642
      %v644 = vpop.f32.mrb[0].mxu0
      %v645 = vpop.f32.mrb[0].mxu0
      %v646 = vadd.f32 0.0, %v645
      %v647 = vpop.f32.mrb[0].mxu0
      %648 = vmatprep.mubr.bf16.mxu0 0
      %649 = vmatmul.mubr.bf16.gmra.mrb[0].mxu0 %v452
      %v650 = vpop.f32.mrb[0].mxu0
      %v651 = vadd.f32 0.0, %v650
      %v652 = vpop.f32.mrb[0].mxu0
      %v653 = vpop.f32.mrb[0].mxu0
      %v654 = vadd.f32 0.0, %v653
      %v655 = vpop.f32.mrb[0].mxu0
      %656 = vmatprep.mubr.bf16.mxu0 0
      %657 = vmatmul.mubr.bf16.gmra.mrb[0].mxu0 %v453
      %v658 = vpop.f32.mrb[0].mxu0
      %v659 = vadd.f32 0.0, %v658
      %v660 = vpop.f32.mrb[0].mxu0
      %v661 = vpop.f32.mrb[0].mxu0
      %v662 = vadd.f32 0.0, %v661
      %v663 = vpop.f32.mrb[0].mxu0
      %664 = vmatprep.mubr.bf16.mxu0 0
      %665 = vmatmul.mubr.bf16.gmra.mrb[0].mxu0 %v454
      %v666 = vpop.f32.mrb[0].mxu0
      %v667 = vadd.f32 0.0, %v666
      %v668 = vpop.f32.mrb[0].mxu0
      %v669 = vpop.f32.mrb[0].mxu0
      %v670 = vadd.f32 0.0, %v669
      %v671 = vpop.f32.mrb[0].mxu0
      %672 = vmatprep.mubr.bf16.mxu0 0
      %673 = vmatmul.mubr.bf16.gmra.mrb[0].mxu0 %v455
      %v674 = vpop.f32.mrb[0].mxu0
      %v675 = vadd.f32 0.0, %v674
      %v676 = vpop.f32.mrb[0].mxu0
      %v677 = vpop.f32.mrb[0].mxu0
      %v678 = vadd.f32 0.0, %v677
      %v679 = vpop.f32.mrb[0].mxu0
      %680 = vdwg.mxu0
      %v681 = vadd.f32 %v296, %v555
      %v682 = vadd.f32 %v297, %v558
      %v683 = vadd.f32 %v298, %v563
      %v684 = vadd.f32 %v299, %v566
      %v685 = vadd.f32 %v300, %v571
      %v686 = vadd.f32 %v301, %v574
      %v687 = vadd.f32 %v302, %v579
      %v688 = vadd.f32 %v303, %v582
      %v689 = vadd.f32 %v304, %v587
      %v690 = vadd.f32 %v305, %v590
      %v691 = vadd.f32 %v306, %v595
      %v692 = vadd.f32 %v307, %v598
      %v693 = vadd.f32 %v308, %v603
      %v694 = vadd.f32 %v309, %v606
      %v695 = vadd.f32 %v310, %v611
      %v696 = vadd.f32 %v311, %v614
      %v697 = vadd.f32 %v312, %v619
      %v698 = vadd.f32 %v313, %v622
      %v699 = vadd.f32 %v314, %v627
      %v700 = vadd.f32 %v315, %v630
      %v701 = vadd.f32 %v316, %v635
      %v702 = vadd.f32 %v317, %v638
      %v703 = vadd.f32 %v318, %v643
      %v704 = vadd.f32 %v319, %v646
      %v705 = vadd.f32 %v320, %v651
      %v706 = vadd.f32 %v321, %v654
      %v707 = vadd.f32 %v322, %v659
      %v708 = vadd.f32 %v323, %v662
      %v709 = vadd.f32 %v324, %v667
      %v710 = vadd.f32 %v325, %v670
      %v711 = vadd.f32 %v326, %v675
      %v712 = vadd.f32 %v327, %v678
      %713 = vst [vmem:[#allocation2] sm:$0xff] %v681
      %714 = vst [vmem:[#allocation2 + $0x8] sm:$0xff] %v682
      %715 = vst [vmem:[#allocation2 + $0x10] sm:$0xff] %v683
      %716 = vst [vmem:[#allocation2 + $0x18] sm:$0xff] %v684
      %717 = vst [vmem:[#allocation2 + $0x20] sm:$0xff] %v685
      %718 = vst [vmem:[#allocation2 + $0x28] sm:$0xff] %v686
      %719 = vst [vmem:[#allocation2 + $0x30] sm:$0xff] %v687
      %720 = vst [vmem:[#allocation2 + $0x38] sm:$0xff] %v688
      %721 = vst [vmem:[#allocation2 + $0x40] sm:$0xff] %v689
      %722 = vst [vmem:[#allocation2 + $0x48] sm:$0xff] %v690
      %723 = vst [vmem:[#allocation2 + $0x50] sm:$0xff] %v691
      %724 = vst [vmem:[#allocation2 + $0x58] sm:$0xff] %v692
      %725 = vst [vmem:[#allocation2 + $0x60] sm:$0xff] %v693
      %726 = vst [vmem:[#allocation2 + $0x68] sm:$0xff] %v694
      %727 = vst [vmem:[#allocation2 + $0x70] sm:$0xff] %v695
      %728 = vst [vmem:[#allocation2 + $0x78] sm:$0xff] %v696
      %729 = vst [vmem:[#allocation2 + $0x80] sm:$0xff] %v697
      %730 = vst [vmem:[#allocation2 + $0x88] sm:$0xff] %v698
      %731 = vst [vmem:[#allocation2 + $0x90] sm:$0xff] %v699
      %732 = vst [vmem:[#allocation2 + $0x98] sm:$0xff] %v700
      %733 = vst [vmem:[#allocation2 + $0xa0] sm:$0xff] %v701
      %734 = vst [vmem:[#allocation2 + $0xa8] sm:$0xff] %v702
      %735 = vst [vmem:[#allocation2 + $0xb0] sm:$0xff] %v703
      %736 = vst [vmem:[#allocation2 + $0xb8] sm:$0xff] %v704
      %737 = vst [vmem:[#allocation2 + $0xc0] sm:$0xff] %v705
      %738 = vst [vmem:[#allocation2 + $0xc8] sm:$0xff] %v706
      %739 = vst [vmem:[#allocation2 + $0xd0] sm:$0xff] %v707
      %740 = vst [vmem:[#allocation2 + $0xd8] sm:$0xff] %v708
      %741 = vst [vmem:[#allocation2 + $0xe0] sm:$0xff] %v709
      %742 = vst [vmem:[#allocation2 + $0xe8] sm:$0xff] %v710
      %743 = vst [vmem:[#allocation2 + $0xf0] sm:$0xff] %v711
      %744 = vst [vmem:[#allocation2 + $0xf8] sm:$0xff] %v712
      // Predicated region
      $region37: #{orangenet18_forward.24} parent=31 // pred_check
        %p745 = pneg %p260
      $region38: #{orangenet18_forward.24} parent=31 // pred_check_branch
        %747 = sbr.rel (%p745) target = $region40
      $region39: #{orangenet18_forward.24} parent=31 // pred_region
        %v748 = vld [vmem:[#allocation2] sm:$0xff]
        %v749 = vld [vmem:[#allocation2 + $0x8] sm:$0xff]
        %v750 = vld [vmem:[#allocation2 + $0x10] sm:$0xff]
        %v751 = vld [vmem:[#allocation2 + $0x18] sm:$0xff]
        %v752 = vld [vmem:[#allocation2 + $0x20] sm:$0xff]
        %v753 = vld [vmem:[#allocation2 + $0x28] sm:$0xff]
        %v754 = vld [vmem:[#allocation2 + $0x30] sm:$0xff]
        %v755 = vld [vmem:[#allocation2 + $0x38] sm:$0xff]
        %v756 = vld [vmem:[#allocation2 + $0x40] sm:$0xff]
        %v757 = vld [vmem:[#allocation2 + $0x48] sm:$0xff]
        %v758 = vld [vmem:[#allocation2 + $0x50] sm:$0xff]
        %v759 = vld [vmem:[#allocation2 + $0x58] sm:$0xff]
        %v760 = vld [vmem:[#allocation2 + $0x60] sm:$0xff]
        %v761 = vld [vmem:[#allocation2 + $0x68] sm:$0xff]
        %v762 = vld [vmem:[#allocation2 + $0x70] sm:$0xff]
        %v763 = vld [vmem:[#allocation2 + $0x78] sm:$0xff]
        %v764 = vld [vmem:[#allocation2 + $0x80] sm:$0xff]
        %v765 = vld [vmem:[#allocation2 + $0x88] sm:$0xff]
        %v766 = vld [vmem:[#allocation2 + $0x90] sm:$0xff]
        %v767 = vld [vmem:[#allocation2 + $0x98] sm:$0xff]
        %v768 = vld [vmem:[#allocation2 + $0xa0] sm:$0xff]
        %v769 = vld [vmem:[#allocation2 + $0xa8] sm:$0xff]
        %v770 = vld [vmem:[#allocation2 + $0xb0] sm:$0xff]
        %v771 = vld [vmem:[#allocation2 + $0xb8] sm:$0xff]
        %v772 = vld [vmem:[#allocation2 + $0xc0] sm:$0xff]
        %v773 = vld [vmem:[#allocation2 + $0xc8] sm:$0xff]
        %v774 = vld [vmem:[#allocation2 + $0xd0] sm:$0xff]
        %v775 = vld [vmem:[#allocation2 + $0xd8] sm:$0xff]
        %v776 = vld [vmem:[#allocation2 + $0xe0] sm:$0xff]
        %v777 = vld [vmem:[#allocation2 + $0xe8] sm:$0xff]
        %v778 = vld [vmem:[#allocation2 + $0xf0] sm:$0xff]
        %v779 = vld [vmem:[#allocation2 + $0xf8] sm:$0xff]
        %v780 = vld [vmem:[%s249] sm:$0x1]
        %v782 = vlaneseq
        %v783 = vshrl.u32 %v782, 7
        %v784 = vsub.s32 0, %v783
        %v785 = vrot.slane %v780, %v784
        %v787 = vadd.f32 %v748, %v785
        %v788 = vadd.f32 %v749, %v785
        %v789 = vadd.f32 %v750, %v785
        %v790 = vadd.f32 %v751, %v785
        %v791 = vadd.f32 %v752, %v785
        %v792 = vadd.f32 %v753, %v785
        %v793 = vadd.f32 %v754, %v785
        %v794 = vadd.f32 %v755, %v785
        %v795 = vadd.f32 %v756, %v785
        %v796 = vadd.f32 %v757, %v785
        %v797 = vadd.f32 %v758, %v785
        %v798 = vadd.f32 %v759, %v785
        %v799 = vadd.f32 %v760, %v785
        %v800 = vadd.f32 %v761, %v785
        %v801 = vadd.f32 %v762, %v785
        %v802 = vadd.f32 %v763, %v785
        %v803 = vadd.f32 %v764, %v785
        %v804 = vadd.f32 %v765, %v785
        %v805 = vadd.f32 %v766, %v785
        %v806 = vadd.f32 %v767, %v785
        %v807 = vadd.f32 %v768, %v785
        %v808 = vadd.f32 %v769, %v785
        %v809 = vadd.f32 %v770, %v785
        %v810 = vadd.f32 %v771, %v785
        %v811 = vadd.f32 %v772, %v785
        %v812 = vadd.f32 %v773, %v785
        %v813 = vadd.f32 %v774, %v785
        %v814 = vadd.f32 %v775, %v785
        %v815 = vadd.f32 %v776, %v785
        %v816 = vadd.f32 %v777, %v785
        %v817 = vadd.f32 %v778, %v785
        %v818 = vadd.f32 %v779, %v785
        %v819 = vmax.f32 %v787, 0.0
        %v820 = vmax.f32 %v788, 0.0
        %v821 = vmax.f32 %v789, 0.0
        %v822 = vmax.f32 %v790, 0.0
        %v823 = vmax.f32 %v791, 0.0
        %v824 = vmax.f32 %v792, 0.0
        %v825 = vmax.f32 %v793, 0.0
        %v826 = vmax.f32 %v794, 0.0
        %v827 = vmax.f32 %v795, 0.0
        %v828 = vmax.f32 %v796, 0.0
        %v829 = vmax.f32 %v797, 0.0
        %v830 = vmax.f32 %v798, 0.0
        %v831 = vmax.f32 %v799, 0.0
        %v832 = vmax.f32 %v800, 0.0
        %v833 = vmax.f32 %v801, 0.0
        %v834 = vmax.f32 %v802, 0.0
        %v835 = vmax.f32 %v803, 0.0
        %v836 = vmax.f32 %v804, 0.0
        %v837 = vmax.f32 %v805, 0.0
        %v838 = vmax.f32 %v806, 0.0
        %v839 = vmax.f32 %v807, 0.0
        %v840 = vmax.f32 %v808, 0.0
        %v841 = vmax.f32 %v809, 0.0
        %v842 = vmax.f32 %v810, 0.0
        %v843 = vmax.f32 %v811, 0.0
        %v844 = vmax.f32 %v812, 0.0
        %v845 = vmax.f32 %v813, 0.0
        %v846 = vmax.f32 %v814, 0.0
        %v847 = vmax.f32 %v815, 0.0
        %v848 = vmax.f32 %v816, 0.0
        %v849 = vmax.f32 %v817, 0.0
        %v850 = vmax.f32 %v818, 0.0
        %v851 = vpack.c.bf16 %v820, %v819
        %v852 = vpack.c.bf16 %v822, %v821
        %v853 = vpack.c.bf16 %v824, %v823
        %v854 = vpack.c.bf16 %v826, %v825
        %v855 = vpack.c.bf16 %v828, %v827
        %v856 = vpack.c.bf16 %v830, %v829
        %v857 = vpack.c.bf16 %v832, %v831
        %v858 = vpack.c.bf16 %v834, %v833
        %v859 = vpack.c.bf16 %v836, %v835
        %v860 = vpack.c.bf16 %v838, %v837
        %v861 = vpack.c.bf16 %v840, %v839
        %v862 = vpack.c.bf16 %v842, %v841
        %v863 = vpack.c.bf16 %v844, %v843
        %v864 = vpack.c.bf16 %v846, %v845
        %v865 = vpack.c.bf16 %v848, %v847
        %v866 = vpack.c.bf16 %v850, %v849
        %v883 = vunpack.c.l.b16 %v851
        %v884 = vunpack.c.h.b16 %v851
        %v885 = vunpack.c.l.b16 %v852
        %v886 = vunpack.c.h.b16 %v852
        %v887 = vunpack.c.l.b16 %v853
        %v888 = vunpack.c.h.b16 %v853
        %v889 = vunpack.c.l.b16 %v854
        %v890 = vunpack.c.h.b16 %v854
        %v891 = vunpack.c.l.b16 %v855
        %v892 = vunpack.c.h.b16 %v855
        %v893 = vunpack.c.l.b16 %v856
        %v894 = vunpack.c.h.b16 %v856
        %v895 = vunpack.c.l.b16 %v857
        %v896 = vunpack.c.h.b16 %v857
        %v897 = vunpack.c.l.b16 %v858
        %v898 = vunpack.c.h.b16 %v858
        %v899 = vunpack.c.l.b16 %v859
        %v900 = vunpack.c.h.b16 %v859
        %v901 = vunpack.c.l.b16 %v860
        %v902 = vunpack.c.h.b16 %v860
        %v903 = vunpack.c.l.b16 %v861
        %v904 = vunpack.c.h.b16 %v861
        %v905 = vunpack.c.l.b16 %v862
        %v906 = vunpack.c.h.b16 %v862
        %v907 = vunpack.c.l.b16 %v863
        %v908 = vunpack.c.h.b16 %v863
        %v909 = vunpack.c.l.b16 %v864
        %v910 = vunpack.c.h.b16 %v864
        %v911 = vunpack.c.l.b16 %v865
        %v912 = vunpack.c.h.b16 %v865
        %v913 = vunpack.c.l.b16 %v866
        %v914 = vunpack.c.h.b16 %v866
        %v915 = vpack.c.b16 %v883, %v883
        %v916 = vpack.c.b16 %v884, %v884
        %v917 = vpack.c.b16 %v885, %v885
        %v918 = vpack.c.b16 %v886, %v886
        %v919 = vpack.c.b16 %v887, %v887
        %v920 = vpack.c.b16 %v888, %v888
        %v921 = vpack.c.b16 %v889, %v889
        %v922 = vpack.c.b16 %v890, %v890
        %v923 = vpack.c.b16 %v891, %v891
        %v924 = vpack.c.b16 %v892, %v892
        %v925 = vpack.c.b16 %v893, %v893
        %v926 = vpack.c.b16 %v894, %v894
        %v927 = vpack.c.b16 %v895, %v895
        %v928 = vpack.c.b16 %v896, %v896
        %v929 = vpack.c.b16 %v897, %v897
        %v930 = vpack.c.b16 %v898, %v898
        %v931 = vpack.c.b16 %v899, %v899
        %v932 = vpack.c.b16 %v900, %v900
        %v933 = vpack.c.b16 %v901, %v901
        %v934 = vpack.c.b16 %v902, %v902
        %v935 = vpack.c.b16 %v903, %v903
        %v936 = vpack.c.b16 %v904, %v904
        %v937 = vpack.c.b16 %v905, %v905
        %v938 = vpack.c.b16 %v906, %v906
        %v939 = vpack.c.b16 %v907, %v907
        %v940 = vpack.c.b16 %v908, %v908
        %v941 = vpack.c.b16 %v909, %v909
        %v942 = vpack.c.b16 %v910, %v910
        %v943 = vpack.c.b16 %v911, %v911
        %v944 = vpack.c.b16 %v912, %v912
        %v945 = vpack.c.b16 %v913, %v913
        %v946 = vpack.c.b16 %v914, %v914
        %979 = vst [vmem:[%s257] sm:$0xf] %v915
        %980 = vst [vmem:[%s257 + $0x4] sm:$0xf] %v916
        %981 = vst [vmem:[%s257 + $0x8] sm:$0xf] %v917
        %982 = vst [vmem:[%s257 + $0xc] sm:$0xf] %v918
        %983 = vst [vmem:[%s257 + $0x10] sm:$0xf] %v919
        %984 = vst [vmem:[%s257 + $0x14] sm:$0xf] %v920
        %985 = vst [vmem:[%s257 + $0x18] sm:$0xf] %v921
        %986 = vst [vmem:[%s257 + $0x1c] sm:$0xf] %v922
        %987 = vst [vmem:[%s257 + $0x20] sm:$0xf] %v923
        %988 = vst [vmem:[%s257 + $0x24] sm:$0xf] %v924
        %989 = vst [vmem:[%s257 + $0x28] sm:$0xf] %v925
        %990 = vst [vmem:[%s257 + $0x2c] sm:$0xf] %v926
        %991 = vst [vmem:[%s257 + $0x30] sm:$0xf] %v927
        %992 = vst [vmem:[%s257 + $0x34] sm:$0xf] %v928
        %993 = vst [vmem:[%s257 + $0x38] sm:$0xf] %v929
        %994 = vst [vmem:[%s257 + $0x3c] sm:$0xf] %v930
        %995 = vst [vmem:[%s257 + $0x40] sm:$0xf] %v931
        %996 = vst [vmem:[%s257 + $0x44] sm:$0xf] %v932
        %997 = vst [vmem:[%s257 + $0x48] sm:$0xf] %v933
        %998 = vst [vmem:[%s257 + $0x4c] sm:$0xf] %v934
        %999 = vst [vmem:[%s257 + $0x50] sm:$0xf] %v935
        %1000 = vst [vmem:[%s257 + $0x54] sm:$0xf] %v936
        %1001 = vst [vmem:[%s257 + $0x58] sm:$0xf] %v937
        %1002 = vst [vmem:[%s257 + $0x5c] sm:$0xf] %v938
        %1003 = vst [vmem:[%s257 + $0x60] sm:$0xf] %v939
        %1004 = vst [vmem:[%s257 + $0x64] sm:$0xf] %v940
        %1005 = vst [vmem:[%s257 + $0x68] sm:$0xf] %v941
        %1006 = vst [vmem:[%s257 + $0x6c] sm:$0xf] %v942
        %1007 = vst [vmem:[%s257 + $0x70] sm:$0xf] %v943
        %1008 = vst [vmem:[%s257 + $0x74] sm:$0xf] %v944
        %1009 = vst [vmem:[%s257 + $0x78] sm:$0xf] %v945
        %1010 = vst [vmem:[%s257 + $0x7c] sm:$0xf] %v946
      $region40: #{orangenet18_forward.24} parent=31 // pred_fallthru
        _
      %s1011 = smul.u32 32, %s19
      %p1012 = scmp.lt.s32.totalorder %s1011, 63
      %s1013 = scalar_select %p1012, %s1011, 63
      %p1014 = scmp.lt.s32.totalorder %s20, 0
      %s1015 = scalar_select %p1014, %s20, 0
      %s1016 = sadd.s32 %s1015, %s1013
      %s1017 = smul.addr %s1016, 4
      %s1018 = scalar_lea.vmem %s3, %s1017
      // Predicated region
      $region41: #{orangenet18_forward.24} parent=31 // pred_check
        %p1019 = pneg %p135
      $region42: #{orangenet18_forward.24} parent=31 // pred_check_branch
        %1021 = sbr.rel (%p1019) target = $region44
      $region43: #{orangenet18_forward.24} parent=31 // pred_region
        %s1022 = smul.u32 32, %s19
      $region44: #{orangenet18_forward.24} parent=31 // pred_fallthru
        _
    $region32: #{orangenet18_forward.24} parent=5 // pred_fallthru
      _
    %p1023 = scmp.le.s32.totalorder 2, %s9
    // Predicated region
    $region45: #{orangenet18_forward.24} parent=5 // pred_check
      %p1024 = pneg %p1023
    $region46: #{orangenet18_forward.24} parent=5 // pred_check_branch
      %1026 = sbr.rel (%p1024) target = $region48
    $region47: #{orangenet18_forward.24} parent=5 // pred_region
      %s1027 = ssub.s32 %s9, 2
      // Predicated region
      $region49: #{orangenet18_forward.24} parent=47 // pred_check
        %p1028 = pneg %p141
      $region50: #{orangenet18_forward.24} parent=47 // pred_check_branch
        %1030 = sbr.rel (%p1028) target = $region52
      $region51: #{orangenet18_forward.24} parent=47 // pred_region
        %s1031 = smul.u32 32, %s22
        %p1032 = scmp.lt.s32.totalorder %s1031, 63
        %s1033 = scalar_select %p1032, %s1031, 63
        %p1034 = scmp.lt.s32.totalorder %s23, 0
        %s1035 = scalar_select %p1034, %s23, 0
        %s1036 = sadd.s32 %s1035, %s1033
        %s1037 = smul.addr %s1036, 4
        %s1038 = scalar_lea.vmem %s3, %s1037
      $region52: #{orangenet18_forward.24} parent=47 // pred_fallthru
        _
    $region48: #{orangenet18_forward.24} parent=5 // pred_fallthru
      _
  $region6: #{orangenet18_forward.24} parent=0 // loop_footer
    %s13 = sadd.s32 1, %s9
  $region7: #{orangenet18_forward.24} parent=0 // loop_footer_branch
    %8 = sbr.rel target = $region3
  $region8: #{orangenet18_forward.24} parent=0 // loop_exit
    _

// kernel: orangenet18_forward.25
$region0: #{orangenet18_forward.25}
  #allocation0 [shape = 'u32[]', space=smem, size = 0x4, offset = 0x4, fixed_abs, tag = 'smem constant byte address 0x4 - core index']
  #allocation1 [shape = 'u32[144,128]{1,0:T(1,128)}', space=vmem, size = 0x12000, scoped, tag = 'internal scratch']
  #allocation2 [shape = 'f32[256,128]{1,0:T(8,128)}', space=vmem, size = 0x20000, scoped, tag = 'scratch operand']
  %s0 = inlined_call_operand.vmem [shape: bf16[512,128], index: 0, kind: input, shape index: {}]
  %s1 = inlined_call_operand.vmem [shape: bf16[128,128], index: 1, kind: input, shape index: {}]
  %s2 = inlined_call_operand.vmem [shape: f32[1,128], index: 2, kind: input, shape index: {}]
  %s3 = inlined_call_operand.vmem [shape: bf16[512,128], index: 3, kind: input, shape index: {}]
  %s4 = inlined_call_operand.vmem [shape: bf16[512,128], index: 4, kind: output, shape index: {}]
  %s5 = sld [smem:[#allocation0]]
  $region57: #{orangenet18_forward.25} parent=0
    _
  %s7 = ssub.s32 1, %s5
  %s8 = scalar_select 0, %s7, %s5
  loop: start=0, step=1, limit=4
  $region2: #{orangenet18_forward.25} parent=0 // loop_pre_header
    _
  $region3: #{orangenet18_forward.25} parent=0 // loop_header
    %s10 = sphi 0, %s14
    %p11 = scmp.ge.s32.totalorder %s10, 4
    %s17 = sphi 0, %s36
    %s18 = sphi 0, %s32
    %s19 = sphi 0, %s28
    %s20 = sphi 0, %s17
    %s21 = sphi 0, %s18
    %s22 = sphi 0, %s19
    %s23 = sphi 0, %s20
    %s24 = sphi 0, %s21
    %s25 = sphi 0, %s22
    %s41 = sphi 0, %s43
    %s44 = sphi 0, %s41
    %s45 = sphi 0, %s44
    %s61 = sphi 0, %s45
    %s69 = sphi 0, %s71
    %s72 = sphi 0, %s69
    %s73 = sphi 0, %s72
    %s89 = sphi 0, %s73
    %s95 = sphi 0, %s97
    %s98 = sphi 0, %s95
    %s99 = sphi 0, %s98
    %s115 = sphi 0, %s99
    %s123 = sphi 0, %s125
    %s126 = sphi 0, %s123
    %s127 = sphi 0, %s126
    %s143 = sphi 0, %s127
    %s151 = sphi 0, %s153
    %s154 = sphi 0, %s151
    %s155 = sphi 0, %s154
    %s171 = sphi 0, %s155
  $region4: #{orangenet18_forward.25} parent=0 // loop_header_branch
    %13 = sbr.rel (%p11) target = $region8
  $region5: #{orangenet18_forward.25} parent=0 // loop_body
    %s15 = ssub.s32 %s10, 1
    %s16 = ssub.s32 %s10, 2
    %s26 = sadd.s32 1, %s19
    %p27 = scmp.ge.s32.totalorder %s26, 1
    %s28 = scalar_select %p27, 0, %s26
    %s29 = sadd.s32 1, %s18
    %s30 = scalar_select %p27, %s29, %s18
    %p31 = scmp.ge.s32.totalorder %s30, 1
    %s32 = scalar_select %p31, 0, %s30
    %s33 = sadd.s32 1, %s17
    %s34 = scalar_select %p31, %s33, %s17
    %p35 = scmp.ge.s32.totalorder %s34, 2
    %s36 = scalar_select %p35, 0, %s34
    %s37 = ssub.s32 %s17, %s36
    %s38 = ssub.s32 %s19, %s28
    %s39 = sor.u32 %s37, %s38
    %p40 = scmp.eq.s32.totalorder %s39, 0
    %s42 = sadd.s32 %s41, 1
    %s43 = scalar_select %p40, %s41, %s42
    %p46 = pneg %p40
    %p47 = scmp.eq.s32.totalorder %s10, 1
    %p48 = por %p46, %p47
    %p49 = scmp.ne.s32.totalorder %s41, %s44
    %p50 = scmp.eq.s32.totalorder %s10, 0
    %p51 = por %p49, %p50
    %p52 = scmp.ne.s32.totalorder %s41, %s44
    %p53 = scmp.eq.s32.totalorder %s15, 1
    %p54 = por %p52, %p53
    %p55 = scmp.ne.s32.totalorder %s44, %s45
    %p56 = scmp.eq.s32.totalorder %s15, 0
    %p57 = por %p55, %p56
    %p58 = scmp.ne.s32.totalorder %s44, %s45
    %p59 = scmp.eq.s32.totalorder %s16, 1
    %p60 = por %p58, %p59
    %p62 = scmp.ne.s32.totalorder %s45, %s61
    %p63 = scmp.eq.s32.totalorder %s16, 0
    %p64 = por %p62, %p63
    %s65 = ssub.s32 %s19, %s28
    %s66 = ssub.s32 %s18, %s32
    %s67 = sor.u32 %s65, %s66
    %p68 = scmp.eq.s32.totalorder %s67, 0
    %s70 = sadd.s32 %s69, 1
    %s71 = scalar_select %p68, %s69, %s70
    %p74 = pneg %p68
    %p75 = scmp.eq.s32.totalorder %s10, 1
    %p76 = por %p74, %p75
    %p77 = scmp.ne.s32.totalorder %s69, %s72
    %p78 = scmp.eq.s32.totalorder %s10, 0
    %p79 = por %p77, %p78
    %p80 = scmp.ne.s32.totalorder %s69, %s72
    %p81 = scmp.eq.s32.totalorder %s15, 1
    %p82 = por %p80, %p81
    %p83 = scmp.ne.s32.totalorder %s72, %s73
    %p84 = scmp.eq.s32.totalorder %s15, 0
    %p85 = por %p83, %p84
    %p86 = scmp.ne.s32.totalorder %s72, %s73
    %p87 = scmp.eq.s32.totalorder %s16, 1
    %p88 = por %p86, %p87
    %p90 = scmp.ne.s32.totalorder %s73, %s89
    %p91 = scmp.eq.s32.totalorder %s16, 0
    %p92 = por %p90, %p91
    %s93 = ssub.s32 %s18, %s32
    %p94 = scmp.eq.s32.totalorder %s93, 0
    %s96 = sadd.s32 %s95, 1
    %s97 = scalar_select %p94, %s95, %s96
    %p100 = pneg %p94
    %p101 = scmp.eq.s32.totalorder %s10, 1
    %p102 = por %p100, %p101
    %p103 = scmp.ne.s32.totalorder %s95, %s98
    %p104 = scmp.eq.s32.totalorder %s10, 0
    %p105 = por %p103, %p104
    %p106 = scmp.ne.s32.totalorder %s95, %s98
    %p107 = scmp.eq.s32.totalorder %s15, 1
    %p108 = por %p106, %p107
    %p109 = scmp.ne.s32.totalorder %s98, %s99
    %p110 = scmp.eq.s32.totalorder %s15, 0
    %p111 = por %p109, %p110
    %p112 = scmp.ne.s32.totalorder %s98, %s99
    %p113 = scmp.eq.s32.totalorder %s16, 1
    %p114 = por %p112, %p113
    %p116 = scmp.ne.s32.totalorder %s99, %s115
    %p117 = scmp.eq.s32.totalorder %s16, 0
    %p118 = por %p116, %p117
    %s119 = ssub.s32 %s17, %s36
    %s120 = ssub.s32 %s18, %s32
    %s121 = sor.u32 %s119, %s120
    %p122 = scmp.eq.s32.totalorder %s121, 0
    %s124 = sadd.s32 %s123, 1
    %s125 = scalar_select %p122, %s123, %s124
    %p128 = pneg %p122
    %p129 = scmp.eq.s32.totalorder %s10, 1
    %p130 = por %p128, %p129
    %p131 = scmp.ne.s32.totalorder %s123, %s126
    %p132 = scmp.eq.s32.totalorder %s10, 0
    %p133 = por %p131, %p132
    %p134 = scmp.ne.s32.totalorder %s123, %s126
    %p135 = scmp.eq.s32.totalorder %s15, 1
    %p136 = por %p134, %p135
    %p137 = scmp.ne.s32.totalorder %s126, %s127
    %p138 = scmp.eq.s32.totalorder %s15, 0
    %p139 = por %p137, %p138
    %p140 = scmp.ne.s32.totalorder %s126, %s127
    %p141 = scmp.eq.s32.totalorder %s16, 1
    %p142 = por %p140, %p141
    %p144 = scmp.ne.s32.totalorder %s127, %s143
    %p145 = scmp.eq.s32.totalorder %s16, 0
    %p146 = por %p144, %p145
    %s147 = ssub.s32 %s17, %s36
    %s148 = ssub.s32 %s18, %s32
    %s149 = sor.u32 %s147, %s148
    %p150 = scmp.eq.s32.totalorder %s149, 0
    %s152 = sadd.s32 %s151, 1
    %s153 = scalar_select %p150, %s151, %s152
    %p156 = pneg %p150
    %p157 = scmp.eq.s32.totalorder %s10, 1
    %p158 = por %p156, %p157
    %p159 = scmp.ne.s32.totalorder %s151, %s154
    %p160 = scmp.eq.s32.totalorder %s10, 0
    %p161 = por %p159, %p160
    %p162 = scmp.ne.s32.totalorder %s151, %s154
    %p163 = scmp.eq.s32.totalorder %s15, 1
    %p164 = por %p162, %p163
    %p165 = scmp.ne.s32.totalorder %s154, %s155
    %p166 = scmp.eq.s32.totalorder %s15, 0
    %p167 = por %p165, %p166
    %p168 = scmp.ne.s32.totalorder %s154, %s155
    %p169 = scmp.eq.s32.totalorder %s16, 1
    %p170 = por %p168, %p169
    %p172 = scmp.ne.s32.totalorder %s155, %s171
    %p173 = scmp.eq.s32.totalorder %s16, 0
    %p174 = por %p172, %p173
    %p175 = scmp.le.s32.totalorder 1, %s10
    %p176 = scmp.lt.s32.totalorder %s10, 3
    %p177 = pnand %p175, %p176
    %p178 = pneg %p177
    // Predicated region
    $region9: #{orangenet18_forward.25} parent=5 // pred_check
      _
    $region10: #{orangenet18_forward.25} parent=5 // pred_check_branch
      %180 = sbr.rel (%p177) target = $region12
    $region11: #{orangenet18_forward.25} parent=5 // pred_region
      %s181 = ssub.s32 %s10, 1
      // Predicated region
      $region13: #{orangenet18_forward.25} parent=11 // pred_check
        %p182 = pneg %p85
      $region14: #{orangenet18_forward.25} parent=11 // pred_check_branch
        %184 = sbr.rel (%p182) target = $region16
      $region15: #{orangenet18_forward.25} parent=11 // pred_region
        %s185 = smul.u32 16, %s22
        %p186 = scmp.lt.s32.totalorder %s185, 15
        %s187 = scalar_select %p186, %s185, 15
        %p188 = scmp.lt.s32.totalorder %s21, 0
        %s189 = scalar_select %p188, %s21, 0
        %s190 = sadd.s32 %s189, %s187
        %s191 = smul.addr %s190, 4
        %s192 = scalar_lea.vmem %s1, %s191
        %s193 = smul.u32 16, %s22
      $region16: #{orangenet18_forward.25} parent=11 // pred_fallthru
        _
      // Predicated region
      $region17: #{orangenet18_forward.25} parent=11 // pred_check
        %p194 = pneg %p111
      $region18: #{orangenet18_forward.25} parent=11 // pred_check_branch
        %196 = sbr.rel (%p194) target = $region20
      $region19: #{orangenet18_forward.25} parent=11 // pred_region
        %p197 = scmp.lt.s32.totalorder %s21, 0
        %s198 = scalar_select %p197, %s21, 0
        %s199 = scalar_lea.vmem %s2, %s198
      $region20: #{orangenet18_forward.25} parent=11 // pred_fallthru
        _
    $region12: #{orangenet18_forward.25} parent=5 // pred_fallthru
      _
    %p200 = scmp.lt.s32.totalorder %s10, 2
    // Predicated region
    $region21: #{orangenet18_forward.25} parent=5 // pred_check
      %p201 = pneg %p200
    $region22: #{orangenet18_forward.25} parent=5 // pred_check_branch
      %203 = sbr.rel (%p201) target = $region24
    $region23: #{orangenet18_forward.25} parent=5 // pred_region
      // Predicated region
      $region25: #{orangenet18_forward.25} parent=23 // pred_check
        %p204 = pneg %p51
      $region26: #{orangenet18_forward.25} parent=23 // pred_check_branch
        %206 = sbr.rel (%p204) target = $region28
      $region27: #{orangenet18_forward.25} parent=23 // pred_region
        %s207 = smul.u32 32, %s17
        %p208 = scmp.lt.s32.totalorder %s207, 63
        %s209 = scalar_select %p208, %s207, 63
        %p210 = scmp.lt.s32.totalorder %s19, 0
        %s211 = scalar_select %p210, %s19, 0
        %s212 = sadd.s32 %s211, %s209
        %s213 = smul.addr %s212, 4
        %s214 = scalar_lea.vmem %s0, %s213
        %s215 = smul.u32 32, %s17
      $region28: #{orangenet18_forward.25} parent=23 // pred_fallthru
        _
      // Predicated region
      $region29: #{orangenet18_forward.25} parent=23 // pred_check
        %p216 = pneg %p133
      $region30: #{orangenet18_forward.25} parent=23 // pred_check_branch
        %218 = sbr.rel (%p216) target = $region32
      $region31: #{orangenet18_forward.25} parent=23 // pred_region
        %s219 = smul.u32 32, %s17
        %p220 = scmp.lt.s32.totalorder %s219, 63
        %s221 = scalar_select %p220, %s219, 63
        %p222 = scmp.lt.s32.totalorder %s18, 0
        %s223 = scalar_select %p222, %s18, 0
        %s224 = sadd.s32 %s223, %s221
        %s225 = smul.addr %s224, 4
        %s226 = scalar_lea.vmem %s3, %s225
        %s227 = smul.u32 32, %s17
      $region32: #{orangenet18_forward.25} parent=23 // pred_fallthru
        _
    $region24: #{orangenet18_forward.25} parent=5 // pred_fallthru
      _
    %p228 = scmp.le.s32.totalorder 1, %s10
    %p229 = scmp.lt.s32.totalorder %s10, 3
    %p230 = pnand %p228, %p229
    %p231 = pneg %p230
    // Predicated region
    $region33: #{orangenet18_forward.25} parent=5 // pred_check
      _
    $region34: #{orangenet18_forward.25} parent=5 // pred_check_branch
      %233 = sbr.rel (%p230) target = $region36
    $region35: #{orangenet18_forward.25} parent=5 // pred_region
      %s234 = ssub.s32 %s10, 1
      %s235 = smul.u32 32, %s20
      %p236 = scmp.lt.s32.totalorder %s235, 63
      %s237 = scalar_select %p236, %s235, 63
      %p238 = scmp.lt.s32.totalorder %s22, 0
      %s239 = scalar_select %p238, %s22, 0
      %s240 = sadd.s32 %s239, %s237
      %s241 = smul.addr %s240, 4
      %s242 = scalar_lea.vmem %s0, %s241
      %p243 = pneg %p57
      %p244 = pneg %p54
      %s245 = smul.u32 16, %s22
      %p246 = scmp.lt.s32.totalorder %s245, 15
      %s247 = scalar_select %p246, %s245, 15
      %p248 = scmp.lt.s32.totalorder %s21, 0
      %s249 = scalar_select %p248, %s21, 0
      %s250 = sadd.s32 %s249, %s247
      %s251 = smul.addr %s250, 4
      %s252 = scalar_lea.vmem %s1, %s251
      %p253 = pneg %p85
      %p254 = pneg %p82
      %p255 = scmp.lt.s32.totalorder %s21, 0
      %s256 = scalar_select %p255, %s21, 0
      %s257 = scalar_lea.vmem %s2, %s256
      %p258 = pneg %p111
      %p259 = pneg %p108
      %s260 = smul.u32 32, %s20
      %p261 = scmp.lt.s32.totalorder %s260, 63
      %s262 = scalar_select %p261, %s260, 63
      %p263 = scmp.lt.s32.totalorder %s21, 0
      %s264 = scalar_select %p263, %s21, 0
      %s265 = sadd.s32 %s264, %s262
      %s266 = smul.addr %s265, 4
      %s267 = scalar_lea.vmem %s3, %s266
      %p268 = pneg %p139
      %p269 = pneg %p136
      %p270 = pneg %p167
      %p271 = pneg %p164
      %s272 = smul.u32 32, %s20
      %p273 = scmp.lt.s32.totalorder %s272, 63
      %s274 = scalar_select %p273, %s272, 63
      %p275 = scmp.lt.s32.totalorder %s21, 0
      %s276 = scalar_select %p275, %s21, 0
      %s277 = sadd.s32 %s276, %s274
      %s278 = smul.addr %s277, 4
      %s279 = scalar_lea.vmem %s4, %s278
      %s280 = smul.u32 32, %s20
      %p281 = scmp.lt.s32.totalorder %s280, 63
      %s282 = scalar_select %p281, %s280, 63
      %p283 = scmp.lt.s32.totalorder %s22, 0
      %s284 = scalar_select %p283, %s22, 0
      %s285 = sadd.s32 %s284, %s282
      %s286 = smul.addr %s285, 4
      %s287 = scalar_lea.vmem %s0, %s286
      %s288 = smul.u32 32, %s20
      %s289 = smul.u32 16, %s22
      %p290 = scmp.lt.s32.totalorder %s289, 15
      %s291 = scalar_select %p290, %s289, 15
      %p292 = scmp.lt.s32.totalorder %s21, 0
      %s293 = scalar_select %p292, %s21, 0
      %s294 = sadd.s32 %s293, %s291
      %s295 = smul.addr %s294, 4
      %s296 = scalar_lea.vmem %s1, %s295
      %s297 = smul.u32 16, %s22
      %p298 = scmp.lt.s32.totalorder %s21, 0
      %s299 = scalar_select %p298, %s21, 0
      %s300 = scalar_lea.vmem %s2, %s299
      %s301 = smul.u32 32, %s20
      %p302 = scmp.lt.s32.totalorder %s301, 63
      %s303 = scalar_select %p302, %s301, 63
      %p304 = scmp.lt.s32.totalorder %s21, 0
      %s305 = scalar_select %p304, %s21, 0
      %s306 = sadd.s32 %s305, %s303
      %s307 = smul.addr %s306, 4
      %s308 = scalar_lea.vmem %s3, %s307
      %s309 = smul.u32 32, %s20
      %s310 = smul.u32 32, %s20
      %p311 = scmp.lt.s32.totalorder %s310, 63
      %s312 = scalar_select %p311, %s310, 63
      %p313 = scmp.lt.s32.totalorder %s21, 0
      %s314 = scalar_select %p313, %s21, 0
      %s315 = sadd.s32 %s314, %s312
      %s316 = smul.addr %s315, 4
      %s317 = scalar_lea.vmem %s4, %s316
      %s318 = smul.u32 32, %s20
      %p320 = scmp.eq.s32.totalorder %s22, 0
      // Predicated region
      $region37: #{orangenet18_forward.25} parent=35 // pred_check
        %p321 = pneg %p320
      $region38: #{orangenet18_forward.25} parent=35 // pred_check_branch
        %323 = sbr.rel (%p321) target = $region40
      $region39: #{orangenet18_forward.25} parent=35 // pred_region
        %324 = vst [vmem:[#allocation2] sm:$0xff] 0.0
        %325 = vst [vmem:[#allocation2 + $0x8] sm:$0xff] 0.0
        %326 = vst [vmem:[#allocation2 + $0x10] sm:$0xff] 0.0
        %327 = vst [vmem:[#allocation2 + $0x18] sm:$0xff] 0.0
        %328 = vst [vmem:[#allocation2 + $0x20] sm:$0xff] 0.0
        %329 = vst [vmem:[#allocation2 + $0x28] sm:$0xff] 0.0
        %330 = vst [vmem:[#allocation2 + $0x30] sm:$0xff] 0.0
        %331 = vst [vmem:[#allocation2 + $0x38] sm:$0xff] 0.0
        %332 = vst [vmem:[#allocation2 + $0x40] sm:$0xff] 0.0
        %333 = vst [vmem:[#allocation2 + $0x48] sm:$0xff] 0.0
        %334 = vst [vmem:[#allocation2 + $0x50] sm:$0xff] 0.0
        %335 = vst [vmem:[#allocation2 + $0x58] sm:$0xff] 0.0
        %336 = vst [vmem:[#allocation2 + $0x60] sm:$0xff] 0.0
        %337 = vst [vmem:[#allocation2 + $0x68] sm:$0xff] 0.0
        %338 = vst [vmem:[#allocation2 + $0x70] sm:$0xff] 0.0
        %339 = vst [vmem:[#allocation2 + $0x78] sm:$0xff] 0.0
        %340 = vst [vmem:[#allocation2 + $0x80] sm:$0xff] 0.0
        %341 = vst [vmem:[#allocation2 + $0x88] sm:$0xff] 0.0
        %342 = vst [vmem:[#allocation2 + $0x90] sm:$0xff] 0.0
        %343 = vst [vmem:[#allocation2 + $0x98] sm:$0xff] 0.0
        %344 = vst [vmem:[#allocation2 + $0xa0] sm:$0xff] 0.0
        %345 = vst [vmem:[#allocation2 + $0xa8] sm:$0xff] 0.0
        %346 = vst [vmem:[#allocation2 + $0xb0] sm:$0xff] 0.0
        %347 = vst [vmem:[#allocation2 + $0xb8] sm:$0xff] 0.0
        %348 = vst [vmem:[#allocation2 + $0xc0] sm:$0xff] 0.0
        %349 = vst [vmem:[#allocation2 + $0xc8] sm:$0xff] 0.0
        %350 = vst [vmem:[#allocation2 + $0xd0] sm:$0xff] 0.0
        %351 = vst [vmem:[#allocation2 + $0xd8] sm:$0xff] 0.0
        %352 = vst [vmem:[#allocation2 + $0xe0] sm:$0xff] 0.0
        %353 = vst [vmem:[#allocation2 + $0xe8] sm:$0xff] 0.0
        %354 = vst [vmem:[#allocation2 + $0xf0] sm:$0xff] 0.0
        %355 = vst [vmem:[#allocation2 + $0xf8] sm:$0xff] 0.0
      $region40: #{orangenet18_forward.25} parent=35 // pred_fallthru
        _
      %v356 = vld [vmem:[#allocation2] sm:$0xff]
      %v357 = vld [vmem:[#allocation2 + $0x8] sm:$0xff]
      %v358 = vld [vmem:[#allocation2 + $0x10] sm:$0xff]
      %v359 = vld [vmem:[#allocation2 + $0x18] sm:$0xff]
      %v360 = vld [vmem:[#allocation2 + $0x20] sm:$0xff]
      %v361 = vld [vmem:[#allocation2 + $0x28] sm:$0xff]
      %v362 = vld [vmem:[#allocation2 + $0x30] sm:$0xff]
      %v363 = vld [vmem:[#allocation2 + $0x38] sm:$0xff]
      %v364 = vld [vmem:[#allocation2 + $0x40] sm:$0xff]
      %v365 = vld [vmem:[#allocation2 + $0x48] sm:$0xff]
      %v366 = vld [vmem:[#allocation2 + $0x50] sm:$0xff]
      %v367 = vld [vmem:[#allocation2 + $0x58] sm:$0xff]
      %v368 = vld [vmem:[#allocation2 + $0x60] sm:$0xff]
      %v369 = vld [vmem:[#allocation2 + $0x68] sm:$0xff]
      %v370 = vld [vmem:[#allocation2 + $0x70] sm:$0xff]
      %v371 = vld [vmem:[#allocation2 + $0x78] sm:$0xff]
      %v372 = vld [vmem:[#allocation2 + $0x80] sm:$0xff]
      %v373 = vld [vmem:[#allocation2 + $0x88] sm:$0xff]
      %v374 = vld [vmem:[#allocation2 + $0x90] sm:$0xff]
      %v375 = vld [vmem:[#allocation2 + $0x98] sm:$0xff]
      %v376 = vld [vmem:[#allocation2 + $0xa0] sm:$0xff]
      %v377 = vld [vmem:[#allocation2 + $0xa8] sm:$0xff]
      %v378 = vld [vmem:[#allocation2 + $0xb0] sm:$0xff]
      %v379 = vld [vmem:[#allocation2 + $0xb8] sm:$0xff]
      %v380 = vld [vmem:[#allocation2 + $0xc0] sm:$0xff]
      %v381 = vld [vmem:[#allocation2 + $0xc8] sm:$0xff]
      %v382 = vld [vmem:[#allocation2 + $0xd0] sm:$0xff]
      %v383 = vld [vmem:[#allocation2 + $0xd8] sm:$0xff]
      %v384 = vld [vmem:[#allocation2 + $0xe0] sm:$0xff]
      %v385 = vld [vmem:[#allocation2 + $0xe8] sm:$0xff]
      %v386 = vld [vmem:[#allocation2 + $0xf0] sm:$0xff]
      %v387 = vld [vmem:[#allocation2 + $0xf8] sm:$0xff]
      %v388 = vld [vmem:[%s287] sm:$0xf]
      %v389 = vld [vmem:[%s287 + $0x4] sm:$0xf]
      %v390 = vld [vmem:[%s287 + $0x8] sm:$0xf]
      %v391 = vld [vmem:[%s287 + $0xc] sm:$0xf]
      %v392 = vld [vmem:[%s287 + $0x10] sm:$0xf]
      %v393 = vld [vmem:[%s287 + $0x14] sm:$0xf]
      %v394 = vld [vmem:[%s287 + $0x18] sm:$0xf]
      %v395 = vld [vmem:[%s287 + $0x1c] sm:$0xf]
      %v396 = vld [vmem:[%s287 + $0x20] sm:$0xf]
      %v397 = vld [vmem:[%s287 + $0x24] sm:$0xf]
      %v398 = vld [vmem:[%s287 + $0x28] sm:$0xf]
      %v399 = vld [vmem:[%s287 + $0x2c] sm:$0xf]
      %v400 = vld [vmem:[%s287 + $0x30] sm:$0xf]
      %v401 = vld [vmem:[%s287 + $0x34] sm:$0xf]
      %v402 = vld [vmem:[%s287 + $0x38] sm:$0xf]
      %v403 = vld [vmem:[%s287 + $0x3c] sm:$0xf]
      %v404 = vld [vmem:[%s287 + $0x40] sm:$0xf]
      %v405 = vld [vmem:[%s287 + $0x44] sm:$0xf]
      %v406 = vld [vmem:[%s287 + $0x48] sm:$0xf]
      %v407 = vld [vmem:[%s287 + $0x4c] sm:$0xf]
      %v408 = vld [vmem:[%s287 + $0x50] sm:$0xf]
      %v409 = vld [vmem:[%s287 + $0x54] sm:$0xf]
      %v410 = vld [vmem:[%s287 + $0x58] sm:$0xf]
      %v411 = vld [vmem:[%s287 + $0x5c] sm:$0xf]
      %v412 = vld [vmem:[%s287 + $0x60] sm:$0xf]
      %v413 = vld [vmem:[%s287 + $0x64] sm:$0xf]
      %v414 = vld [vmem:[%s287 + $0x68] sm:$0xf]
      %v415 = vld [vmem:[%s287 + $0x6c] sm:$0xf]
      %v416 = vld [vmem:[%s287 + $0x70] sm:$0xf]
      %v417 = vld [vmem:[%s287 + $0x74] sm:$0xf]
      %v418 = vld [vmem:[%s287 + $0x78] sm:$0xf]
      %v419 = vld [vmem:[%s287 + $0x7c] sm:$0xf]
      %v420 = vld [vmem:[%s296] sm:$0xf]
      %v421 = vld [vmem:[%s296 + $0x4] sm:$0xf]
      %v422 = vld [vmem:[%s296 + $0x8] sm:$0xf]
      %v423 = vld [vmem:[%s296 + $0xc] sm:$0xf]
      %v424 = vld [vmem:[%s296 + $0x10] sm:$0xf]
      %v425 = vld [vmem:[%s296 + $0x14] sm:$0xf]
      %v426 = vld [vmem:[%s296 + $0x18] sm:$0xf]
      %v427 = vld [vmem:[%s296 + $0x1c] sm:$0xf]
      %v428 = vld [vmem:[%s296 + $0x20] sm:$0xf]
      %v429 = vld [vmem:[%s296 + $0x24] sm:$0xf]
      %v430 = vld [vmem:[%s296 + $0x28] sm:$0xf]
      %v431 = vld [vmem:[%s296 + $0x2c] sm:$0xf]
      %v432 = vld [vmem:[%s296 + $0x30] sm:$0xf]
      %v433 = vld [vmem:[%s296 + $0x34] sm:$0xf]
      %v434 = vld [vmem:[%s296 + $0x38] sm:$0xf]
      %v435 = vld [vmem:[%s296 + $0x3c] sm:$0xf]
      %v468 = vunpack.c.l.b16 %v388
      %v469 = vunpack.c.l.b16 %v389
      %v470 = vunpack.c.l.b16 %v390
      %v471 = vunpack.c.l.b16 %v391
      %v472 = vunpack.c.l.b16 %v392
      %v473 = vunpack.c.l.b16 %v393
      %v474 = vunpack.c.l.b16 %v394
      %v475 = vunpack.c.l.b16 %v395
      %v476 = vunpack.c.l.b16 %v396
      %v477 = vunpack.c.l.b16 %v397
      %v478 = vunpack.c.l.b16 %v398
      %v479 = vunpack.c.l.b16 %v399
      %v480 = vunpack.c.l.b16 %v400
      %v481 = vunpack.c.l.b16 %v401
      %v482 = vunpack.c.l.b16 %v402
      %v483 = vunpack.c.l.b16 %v403
      %v484 = vunpack.c.l.b16 %v404
      %v485 = vunpack.c.l.b16 %v405
      %v486 = vunpack.c.l.b16 %v406
      %v487 = vunpack.c.l.b16 %v407
      %v488 = vunpack.c.l.b16 %v408
      %v489 = vunpack.c.l.b16 %v409
      %v490 = vunpack.c.l.b16 %v410
      %v491 = vunpack.c.l.b16 %v411
      %v492 = vunpack.c.l.b16 %v412
      %v493 = vunpack.c.l.b16 %v413
      %v494 = vunpack.c.l.b16 %v414
      %v495 = vunpack.c.l.b16 %v415
      %v496 = vunpack.c.l.b16 %v416
      %v497 = vunpack.c.l.b16 %v417
      %v498 = vunpack.c.l.b16 %v418
      %v499 = vunpack.c.l.b16 %v419
      %v500 = vpack.c.b16 %v469, %v468
      %v501 = vpack.c.b16 %v471, %v470
      %v502 = vpack.c.b16 %v473, %v472
      %v503 = vpack.c.b16 %v475, %v474
      %v504 = vpack.c.b16 %v477, %v476
      %v505 = vpack.c.b16 %v479, %v478
      %v506 = vpack.c.b16 %v481, %v480
      %v507 = vpack.c.b16 %v483, %v482
      %v508 = vpack.c.b16 %v485, %v484
      %v509 = vpack.c.b16 %v487, %v486
      %v510 = vpack.c.b16 %v489, %v488
      %v511 = vpack.c.b16 %v491, %v490
      %v512 = vpack.c.b16 %v493, %v492
      %v513 = vpack.c.b16 %v495, %v494
      %v514 = vpack.c.b16 %v497, %v496
      %v515 = vpack.c.b16 %v499, %v498
      %v548 = vunpack.c.l.b16 %v420
      %v549 = vunpack.c.l.b16 %v421
      %v550 = vunpack.c.l.b16 %v422
      %v551 = vunpack.c.l.b16 %v423
      %v552 = vunpack.c.l.b16 %v424
      %v553 = vunpack.c.l.b16 %v425
      %v554 = vunpack.c.l.b16 %v426
      %v555 = vunpack.c.l.b16 %v427
      %v556 = vunpack.c.l.b16 %v428
      %v557 = vunpack.c.l.b16 %v429
      %v558 = vunpack.c.l.b16 %v430
      %v559 = vunpack.c.l.b16 %v431
      %v560 = vunpack.c.l.b16 %v432
      %v561 = vunpack.c.l.b16 %v433
      %v562 = vunpack.c.l.b16 %v434
      %v563 = vunpack.c.l.b16 %v435
      %v564 = vpack.c.b16 %v549, %v548
      %v565 = vpack.c.b16 %v551, %v550
      %v566 = vpack.c.b16 %v553, %v552
      %v567 = vpack.c.b16 %v555, %v554
      %v568 = vpack.c.b16 %v557, %v556
      %v569 = vpack.c.b16 %v559, %v558
      %v570 = vpack.c.b16 %v561, %v560
      %v571 = vpack.c.b16 %v563, %v562
      %580 = vmatprep.subr.bf16.mxu0 0
      %581 = vmatpush1.bf16.msra.mxu0 %v564
      %582 = vmatprep.subr.bf16.mxu0 0
      %583 = vmatpush1.bf16.msra.mxu0 %v565
      %584 = vmatprep.subr.bf16.mxu0 0
      %585 = vmatpush1.bf16.msra.mxu0 %v566
      %586 = vmatprep.subr.bf16.mxu0 0
      %587 = vmatpush1.bf16.msra.mxu0 %v567
      %588 = vmatprep.subr.bf16.mxu0 0
      %589 = vmatpush1.bf16.msra.mxu0 %v568
      %590 = vmatprep.subr.bf16.mxu0 0
      %591 = vmatpush1.bf16.msra.mxu0 %v569
      %592 = vmatprep.subr.bf16.mxu0 0
      %593 = vmatpush1.bf16.msra.mxu0 %v570
      %594 = vmatprep.subr.bf16.mxu0 0
      %595 = vmatpush1.bf16.msra.mxu0 %v571
      %596 = vmatprep.subr.bf16.mxu0 0
      %597 = vmatpush1.bf16.msra.mxu0 0
      %598 = vmatprep.subr.bf16.mxu0 0
      %599 = vmatpush1.bf16.msra.mxu0 0
      %600 = vmatprep.subr.bf16.mxu0 0
      %601 = vmatpush1.bf16.msra.mxu0 0
      %602 = vmatprep.subr.bf16.mxu0 0
      %603 = vmatpush1.bf16.msra.mxu0 0
      %604 = vmatprep.subr.bf16.mxu0 0
      %605 = vmatpush1.bf16.msra.mxu0 0
      %606 = vmatprep.subr.bf16.mxu0 0
      %607 = vmatpush1.bf16.msra.mxu0 0
      %608 = vmatprep.subr.bf16.mxu0 0
      %609 = vmatpush1.bf16.msra.mxu0 0
      %610 = vmatprep.subr.bf16.mxu0 0
      %611 = vmatpush1.bf16.msra.mxu0 0
      %612 = vmatprep.mubr.bf16.mxu0 0
      %613 = vmatmul.mubr.bf16.gmra.mrb[0].mxu0 %v500
      %v614 = vpop.f32.mrb[0].mxu0
      %v615 = vadd.f32 0.0, %v614
      %v616 = vpop.f32.mrb[0].mxu0
      %v617 = vpop.f32.mrb[0].mxu0
      %v618 = vadd.f32 0.0, %v617
      %v619 = vpop.f32.mrb[0].mxu0
      %620 = vmatprep.mubr.bf16.mxu0 0
      %621 = vmatmul.mubr.bf16.gmra.mrb[0].mxu0 %v501
      %v622 = vpop.f32.mrb[0].mxu0
      %v623 = vadd.f32 0.0, %v622
      %v624 = vpop.f32.mrb[0].mxu0
      %v625 = vpop.f32.mrb[0].mxu0
      %v626 = vadd.f32 0.0, %v625
      %v627 = vpop.f32.mrb[0].mxu0
      %628 = vmatprep.mubr.bf16.mxu0 0
      %629 = vmatmul.mubr.bf16.gmra.mrb[0].mxu0 %v502
      %v630 = vpop.f32.mrb[0].mxu0
      %v631 = vadd.f32 0.0, %v630
      %v632 = vpop.f32.mrb[0].mxu0
      %v633 = vpop.f32.mrb[0].mxu0
      %v634 = vadd.f32 0.0, %v633
      %v635 = vpop.f32.mrb[0].mxu0
      %636 = vmatprep.mubr.bf16.mxu0 0
      %637 = vmatmul.mubr.bf16.gmra.mrb[0].mxu0 %v503
      %v638 = vpop.f32.mrb[0].mxu0
      %v639 = vadd.f32 0.0, %v638
      %v640 = vpop.f32.mrb[0].mxu0
      %v641 = vpop.f32.mrb[0].mxu0
      %v642 = vadd.f32 0.0, %v641
      %v643 = vpop.f32.mrb[0].mxu0
      %644 = vmatprep.mubr.bf16.mxu0 0
      %645 = vmatmul.mubr.bf16.gmra.mrb[0].mxu0 %v504
      %v646 = vpop.f32.mrb[0].mxu0
      %v647 = vadd.f32 0.0, %v646
      %v648 = vpop.f32.mrb[0].mxu0
      %v649 = vpop.f32.mrb[0].mxu0
      %v650 = vadd.f32 0.0, %v649
      %v651 = vpop.f32.mrb[0].mxu0
      %652 = vmatprep.mubr.bf16.mxu0 0
      %653 = vmatmul.mubr.bf16.gmra.mrb[0].mxu0 %v505
      %v654 = vpop.f32.mrb[0].mxu0
      %v655 = vadd.f32 0.0, %v654
      %v656 = vpop.f32.mrb[0].mxu0
      %v657 = vpop.f32.mrb[0].mxu0
      %v658 = vadd.f32 0.0, %v657
      %v659 = vpop.f32.mrb[0].mxu0
      %660 = vmatprep.mubr.bf16.mxu0 0
      %661 = vmatmul.mubr.bf16.gmra.mrb[0].mxu0 %v506
      %v662 = vpop.f32.mrb[0].mxu0
      %v663 = vadd.f32 0.0, %v662
      %v664 = vpop.f32.mrb[0].mxu0
      %v665 = vpop.f32.mrb[0].mxu0
      %v666 = vadd.f32 0.0, %v665
      %v667 = vpop.f32.mrb[0].mxu0
      %668 = vmatprep.mubr.bf16.mxu0 0
      %669 = vmatmul.mubr.bf16.gmra.mrb[0].mxu0 %v507
      %v670 = vpop.f32.mrb[0].mxu0
      %v671 = vadd.f32 0.0, %v670
      %v672 = vpop.f32.mrb[0].mxu0
      %v673 = vpop.f32.mrb[0].mxu0
      %v674 = vadd.f32 0.0, %v673
      %v675 = vpop.f32.mrb[0].mxu0
      %676 = vmatprep.mubr.bf16.mxu0 0
      %677 = vmatmul.mubr.bf16.gmra.mrb[0].mxu0 %v508
      %v678 = vpop.f32.mrb[0].mxu0
      %v679 = vadd.f32 0.0, %v678
      %v680 = vpop.f32.mrb[0].mxu0
      %v681 = vpop.f32.mrb[0].mxu0
      %v682 = vadd.f32 0.0, %v681
      %v683 = vpop.f32.mrb[0].mxu0
      %684 = vmatprep.mubr.bf16.mxu0 0
      %685 = vmatmul.mubr.bf16.gmra.mrb[0].mxu0 %v509
      %v686 = vpop.f32.mrb[0].mxu0
      %v687 = vadd.f32 0.0, %v686
      %v688 = vpop.f32.mrb[0].mxu0
      %v689 = vpop.f32.mrb[0].mxu0
      %v690 = vadd.f32 0.0, %v689
      %v691 = vpop.f32.mrb[0].mxu0
      %692 = vmatprep.mubr.bf16.mxu0 0
      %693 = vmatmul.mubr.bf16.gmra.mrb[0].mxu0 %v510
      %v694 = vpop.f32.mrb[0].mxu0
      %v695 = vadd.f32 0.0, %v694
      %v696 = vpop.f32.mrb[0].mxu0
      %v697 = vpop.f32.mrb[0].mxu0
      %v698 = vadd.f32 0.0, %v697
      %v699 = vpop.f32.mrb[0].mxu0
      %700 = vmatprep.mubr.bf16.mxu0 0
      %701 = vmatmul.mubr.bf16.gmra.mrb[0].mxu0 %v511
      %v702 = vpop.f32.mrb[0].mxu0
      %v703 = vadd.f32 0.0, %v702
      %v704 = vpop.f32.mrb[0].mxu0
      %v705 = vpop.f32.mrb[0].mxu0
      %v706 = vadd.f32 0.0, %v705
      %v707 = vpop.f32.mrb[0].mxu0
      %708 = vmatprep.mubr.bf16.mxu0 0
      %709 = vmatmul.mubr.bf16.gmra.mrb[0].mxu0 %v512
      %v710 = vpop.f32.mrb[0].mxu0
      %v711 = vadd.f32 0.0, %v710
      %v712 = vpop.f32.mrb[0].mxu0
      %v713 = vpop.f32.mrb[0].mxu0
      %v714 = vadd.f32 0.0, %v713
      %v715 = vpop.f32.mrb[0].mxu0
      %716 = vmatprep.mubr.bf16.mxu0 0
      %717 = vmatmul.mubr.bf16.gmra.mrb[0].mxu0 %v513
      %v718 = vpop.f32.mrb[0].mxu0
      %v719 = vadd.f32 0.0, %v718
      %v720 = vpop.f32.mrb[0].mxu0
      %v721 = vpop.f32.mrb[0].mxu0
      %v722 = vadd.f32 0.0, %v721
      %v723 = vpop.f32.mrb[0].mxu0
      %724 = vmatprep.mubr.bf16.mxu0 0
      %725 = vmatmul.mubr.bf16.gmra.mrb[0].mxu0 %v514
      %v726 = vpop.f32.mrb[0].mxu0
      %v727 = vadd.f32 0.0, %v726
      %v728 = vpop.f32.mrb[0].mxu0
      %v729 = vpop.f32.mrb[0].mxu0
      %v730 = vadd.f32 0.0, %v729
      %v731 = vpop.f32.mrb[0].mxu0
      %732 = vmatprep.mubr.bf16.mxu0 0
      %733 = vmatmul.mubr.bf16.gmra.mrb[0].mxu0 %v515
      %v734 = vpop.f32.mrb[0].mxu0
      %v735 = vadd.f32 0.0, %v734
      %v736 = vpop.f32.mrb[0].mxu0
      %v737 = vpop.f32.mrb[0].mxu0
      %v738 = vadd.f32 0.0, %v737
      %v739 = vpop.f32.mrb[0].mxu0
      %740 = vdwg.mxu0
      %v741 = vadd.f32 %v356, %v615
      %v742 = vadd.f32 %v357, %v618
      %v743 = vadd.f32 %v358, %v623
      %v744 = vadd.f32 %v359, %v626
      %v745 = vadd.f32 %v360, %v631
      %v746 = vadd.f32 %v361, %v634
      %v747 = vadd.f32 %v362, %v639
      %v748 = vadd.f32 %v363, %v642
      %v749 = vadd.f32 %v364, %v647
      %v750 = vadd.f32 %v365, %v650
      %v751 = vadd.f32 %v366, %v655
      %v752 = vadd.f32 %v367, %v658
      %v753 = vadd.f32 %v368, %v663
      %v754 = vadd.f32 %v369, %v666
      %v755 = vadd.f32 %v370, %v671
      %v756 = vadd.f32 %v371, %v674
      %v757 = vadd.f32 %v372, %v679
      %v758 = vadd.f32 %v373, %v682
      %v759 = vadd.f32 %v374, %v687
      %v760 = vadd.f32 %v375, %v690
      %v761 = vadd.f32 %v376, %v695
      %v762 = vadd.f32 %v377, %v698
      %v763 = vadd.f32 %v378, %v703
      %v764 = vadd.f32 %v379, %v706
      %v765 = vadd.f32 %v380, %v711
      %v766 = vadd.f32 %v381, %v714
      %v767 = vadd.f32 %v382, %v719
      %v768 = vadd.f32 %v383, %v722
      %v769 = vadd.f32 %v384, %v727
      %v770 = vadd.f32 %v385, %v730
      %v771 = vadd.f32 %v386, %v735
      %v772 = vadd.f32 %v387, %v738
      %773 = vst [vmem:[#allocation2] sm:$0xff] %v741
      %774 = vst [vmem:[#allocation2 + $0x8] sm:$0xff] %v742
      %775 = vst [vmem:[#allocation2 + $0x10] sm:$0xff] %v743
      %776 = vst [vmem:[#allocation2 + $0x18] sm:$0xff] %v744
      %777 = vst [vmem:[#allocation2 + $0x20] sm:$0xff] %v745
      %778 = vst [vmem:[#allocation2 + $0x28] sm:$0xff] %v746
      %779 = vst [vmem:[#allocation2 + $0x30] sm:$0xff] %v747
      %780 = vst [vmem:[#allocation2 + $0x38] sm:$0xff] %v748
      %781 = vst [vmem:[#allocation2 + $0x40] sm:$0xff] %v749
      %782 = vst [vmem:[#allocation2 + $0x48] sm:$0xff] %v750
      %783 = vst [vmem:[#allocation2 + $0x50] sm:$0xff] %v751
      %784 = vst [vmem:[#allocation2 + $0x58] sm:$0xff] %v752
      %785 = vst [vmem:[#allocation2 + $0x60] sm:$0xff] %v753
      %786 = vst [vmem:[#allocation2 + $0x68] sm:$0xff] %v754
      %787 = vst [vmem:[#allocation2 + $0x70] sm:$0xff] %v755
      %788 = vst [vmem:[#allocation2 + $0x78] sm:$0xff] %v756
      %789 = vst [vmem:[#allocation2 + $0x80] sm:$0xff] %v757
      %790 = vst [vmem:[#allocation2 + $0x88] sm:$0xff] %v758
      %791 = vst [vmem:[#allocation2 + $0x90] sm:$0xff] %v759
      %792 = vst [vmem:[#allocation2 + $0x98] sm:$0xff] %v760
      %793 = vst [vmem:[#allocation2 + $0xa0] sm:$0xff] %v761
      %794 = vst [vmem:[#allocation2 + $0xa8] sm:$0xff] %v762
      %795 = vst [vmem:[#allocation2 + $0xb0] sm:$0xff] %v763
      %796 = vst [vmem:[#allocation2 + $0xb8] sm:$0xff] %v764
      %797 = vst [vmem:[#allocation2 + $0xc0] sm:$0xff] %v765
      %798 = vst [vmem:[#allocation2 + $0xc8] sm:$0xff] %v766
      %799 = vst [vmem:[#allocation2 + $0xd0] sm:$0xff] %v767
      %800 = vst [vmem:[#allocation2 + $0xd8] sm:$0xff] %v768
      %801 = vst [vmem:[#allocation2 + $0xe0] sm:$0xff] %v769
      %802 = vst [vmem:[#allocation2 + $0xe8] sm:$0xff] %v770
      %803 = vst [vmem:[#allocation2 + $0xf0] sm:$0xff] %v771
      %804 = vst [vmem:[#allocation2 + $0xf8] sm:$0xff] %v772
      // Predicated region
      $region41: #{orangenet18_forward.25} parent=35 // pred_check
        %p805 = pneg %p320
      $region42: #{orangenet18_forward.25} parent=35 // pred_check_branch
        %807 = sbr.rel (%p805) target = $region44
      $region43: #{orangenet18_forward.25} parent=35 // pred_region
        %v808 = vld [vmem:[#allocation2] sm:$0xff]
        %v809 = vld [vmem:[#allocation2 + $0x8] sm:$0xff]
        %v810 = vld [vmem:[#allocation2 + $0x10] sm:$0xff]
        %v811 = vld [vmem:[#allocation2 + $0x18] sm:$0xff]
        %v812 = vld [vmem:[#allocation2 + $0x20] sm:$0xff]
        %v813 = vld [vmem:[#allocation2 + $0x28] sm:$0xff]
        %v814 = vld [vmem:[#allocation2 + $0x30] sm:$0xff]
        %v815 = vld [vmem:[#allocation2 + $0x38] sm:$0xff]
        %v816 = vld [vmem:[#allocation2 + $0x40] sm:$0xff]
        %v817 = vld [vmem:[#allocation2 + $0x48] sm:$0xff]
        %v818 = vld [vmem:[#allocation2 + $0x50] sm:$0xff]
        %v819 = vld [vmem:[#allocation2 + $0x58] sm:$0xff]
        %v820 = vld [vmem:[#allocation2 + $0x60] sm:$0xff]
        %v821 = vld [vmem:[#allocation2 + $0x68] sm:$0xff]
        %v822 = vld [vmem:[#allocation2 + $0x70] sm:$0xff]
        %v823 = vld [vmem:[#allocation2 + $0x78] sm:$0xff]
        %v824 = vld [vmem:[#allocation2 + $0x80] sm:$0xff]
        %v825 = vld [vmem:[#allocation2 + $0x88] sm:$0xff]
        %v826 = vld [vmem:[#allocation2 + $0x90] sm:$0xff]
        %v827 = vld [vmem:[#allocation2 + $0x98] sm:$0xff]
        %v828 = vld [vmem:[#allocation2 + $0xa0] sm:$0xff]
        %v829 = vld [vmem:[#allocation2 + $0xa8] sm:$0xff]
        %v830 = vld [vmem:[#allocation2 + $0xb0] sm:$0xff]
        %v831 = vld [vmem:[#allocation2 + $0xb8] sm:$0xff]
        %v832 = vld [vmem:[#allocation2 + $0xc0] sm:$0xff]
        %v833 = vld [vmem:[#allocation2 + $0xc8] sm:$0xff]
        %v834 = vld [vmem:[#allocation2 + $0xd0] sm:$0xff]
        %v835 = vld [vmem:[#allocation2 + $0xd8] sm:$0xff]
        %v836 = vld [vmem:[#allocation2 + $0xe0] sm:$0xff]
        %v837 = vld [vmem:[#allocation2 + $0xe8] sm:$0xff]
        %v838 = vld [vmem:[#allocation2 + $0xf0] sm:$0xff]
        %v839 = vld [vmem:[#allocation2 + $0xf8] sm:$0xff]
        %v840 = vld [vmem:[%s300] sm:$0x1]
        %v842 = vlaneseq
        %v843 = vshrl.u32 %v842, 7
        %v844 = vsub.s32 0, %v843
        %v845 = vrot.slane %v840, %v844
        %v847 = vadd.f32 %v808, %v845
        %v848 = vadd.f32 %v809, %v845
        %v849 = vadd.f32 %v810, %v845
        %v850 = vadd.f32 %v811, %v845
        %v851 = vadd.f32 %v812, %v845
        %v852 = vadd.f32 %v813, %v845
        %v853 = vadd.f32 %v814, %v845
        %v854 = vadd.f32 %v815, %v845
        %v855 = vadd.f32 %v816, %v845
        %v856 = vadd.f32 %v817, %v845
        %v857 = vadd.f32 %v818, %v845
        %v858 = vadd.f32 %v819, %v845
        %v859 = vadd.f32 %v820, %v845
        %v860 = vadd.f32 %v821, %v845
        %v861 = vadd.f32 %v822, %v845
        %v862 = vadd.f32 %v823, %v845
        %v863 = vadd.f32 %v824, %v845
        %v864 = vadd.f32 %v825, %v845
        %v865 = vadd.f32 %v826, %v845
        %v866 = vadd.f32 %v827, %v845
        %v867 = vadd.f32 %v828, %v845
        %v868 = vadd.f32 %v829, %v845
        %v869 = vadd.f32 %v830, %v845
        %v870 = vadd.f32 %v831, %v845
        %v871 = vadd.f32 %v832, %v845
        %v872 = vadd.f32 %v833, %v845
        %v873 = vadd.f32 %v834, %v845
        %v874 = vadd.f32 %v835, %v845
        %v875 = vadd.f32 %v836, %v845
        %v876 = vadd.f32 %v837, %v845
        %v877 = vadd.f32 %v838, %v845
        %v878 = vadd.f32 %v839, %v845
        %v879 = vld [vmem:[%s308] sm:$0xf]
        %v880 = vld [vmem:[%s308 + $0x4] sm:$0xf]
        %v881 = vld [vmem:[%s308 + $0x8] sm:$0xf]
        %v882 = vld [vmem:[%s308 + $0xc] sm:$0xf]
        %v883 = vld [vmem:[%s308 + $0x10] sm:$0xf]
        %v884 = vld [vmem:[%s308 + $0x14] sm:$0xf]
        %v885 = vld [vmem:[%s308 + $0x18] sm:$0xf]
        %v886 = vld [vmem:[%s308 + $0x1c] sm:$0xf]
        %v887 = vld [vmem:[%s308 + $0x20] sm:$0xf]
        %v888 = vld [vmem:[%s308 + $0x24] sm:$0xf]
        %v889 = vld [vmem:[%s308 + $0x28] sm:$0xf]
        %v890 = vld [vmem:[%s308 + $0x2c] sm:$0xf]
        %v891 = vld [vmem:[%s308 + $0x30] sm:$0xf]
        %v892 = vld [vmem:[%s308 + $0x34] sm:$0xf]
        %v893 = vld [vmem:[%s308 + $0x38] sm:$0xf]
        %v894 = vld [vmem:[%s308 + $0x3c] sm:$0xf]
        %v895 = vld [vmem:[%s308 + $0x40] sm:$0xf]
        %v896 = vld [vmem:[%s308 + $0x44] sm:$0xf]
        %v897 = vld [vmem:[%s308 + $0x48] sm:$0xf]
        %v898 = vld [vmem:[%s308 + $0x4c] sm:$0xf]
        %v899 = vld [vmem:[%s308 + $0x50] sm:$0xf]
        %v900 = vld [vmem:[%s308 + $0x54] sm:$0xf]
        %v901 = vld [vmem:[%s308 + $0x58] sm:$0xf]
        %v902 = vld [vmem:[%s308 + $0x5c] sm:$0xf]
        %v903 = vld [vmem:[%s308 + $0x60] sm:$0xf]
        %v904 = vld [vmem:[%s308 + $0x64] sm:$0xf]
        %v905 = vld [vmem:[%s308 + $0x68] sm:$0xf]
        %v906 = vld [vmem:[%s308 + $0x6c] sm:$0xf]
        %v907 = vld [vmem:[%s308 + $0x70] sm:$0xf]
        %v908 = vld [vmem:[%s308 + $0x74] sm:$0xf]
        %v909 = vld [vmem:[%s308 + $0x78] sm:$0xf]
        %v910 = vld [vmem:[%s308 + $0x7c] sm:$0xf]
        %v911 = vunpack.c.l.bf16 %v879
        %v912 = vunpack.c.l.bf16 %v880
        %v913 = vunpack.c.l.bf16 %v881
        %v914 = vunpack.c.l.bf16 %v882
        %v915 = vunpack.c.l.bf16 %v883
        %v916 = vunpack.c.l.bf16 %v884
        %v917 = vunpack.c.l.bf16 %v885
        %v918 = vunpack.c.l.bf16 %v886
        %v919 = vunpack.c.l.bf16 %v887
        %v920 = vunpack.c.l.bf16 %v888
        %v921 = vunpack.c.l.bf16 %v889
        %v922 = vunpack.c.l.bf16 %v890
        %v923 = vunpack.c.l.bf16 %v891
        %v924 = vunpack.c.l.bf16 %v892
        %v925 = vunpack.c.l.bf16 %v893
        %v926 = vunpack.c.l.bf16 %v894
        %v927 = vunpack.c.l.bf16 %v895
        %v928 = vunpack.c.l.bf16 %v896
        %v929 = vunpack.c.l.bf16 %v897
        %v930 = vunpack.c.l.bf16 %v898
        %v931 = vunpack.c.l.bf16 %v899
        %v932 = vunpack.c.l.bf16 %v900
        %v933 = vunpack.c.l.bf16 %v901
        %v934 = vunpack.c.l.bf16 %v902
        %v935 = vunpack.c.l.bf16 %v903
        %v936 = vunpack.c.l.bf16 %v904
        %v937 = vunpack.c.l.bf16 %v905
        %v938 = vunpack.c.l.bf16 %v906
        %v939 = vunpack.c.l.bf16 %v907
        %v940 = vunpack.c.l.bf16 %v908
        %v941 = vunpack.c.l.bf16 %v909
        %v942 = vunpack.c.l.bf16 %v910
        %v943 = vadd.f32 %v847, %v911
        %v944 = vadd.f32 %v848, %v912
        %v945 = vadd.f32 %v849, %v913
        %v946 = vadd.f32 %v850, %v914
        %v947 = vadd.f32 %v851, %v915
        %v948 = vadd.f32 %v852, %v916
        %v949 = vadd.f32 %v853, %v917
        %v950 = vadd.f32 %v854, %v918
        %v951 = vadd.f32 %v855, %v919
        %v952 = vadd.f32 %v856, %v920
        %v953 = vadd.f32 %v857, %v921
        %v954 = vadd.f32 %v858, %v922
        %v955 = vadd.f32 %v859, %v923
        %v956 = vadd.f32 %v860, %v924
        %v957 = vadd.f32 %v861, %v925
        %v958 = vadd.f32 %v862, %v926
        %v959 = vadd.f32 %v863, %v927
        %v960 = vadd.f32 %v864, %v928
        %v961 = vadd.f32 %v865, %v929
        %v962 = vadd.f32 %v866, %v930
        %v963 = vadd.f32 %v867, %v931
        %v964 = vadd.f32 %v868, %v932
        %v965 = vadd.f32 %v869, %v933
        %v966 = vadd.f32 %v870, %v934
        %v967 = vadd.f32 %v871, %v935
        %v968 = vadd.f32 %v872, %v936
        %v969 = vadd.f32 %v873, %v937
        %v970 = vadd.f32 %v874, %v938
        %v971 = vadd.f32 %v875, %v939
        %v972 = vadd.f32 %v876, %v940
        %v973 = vadd.f32 %v877, %v941
        %v974 = vadd.f32 %v878, %v942
        %v975 = vmax.f32 %v943, 0.0
        %v976 = vmax.f32 %v944, 0.0
        %v977 = vmax.f32 %v945, 0.0
        %v978 = vmax.f32 %v946, 0.0
        %v979 = vmax.f32 %v947, 0.0
        %v980 = vmax.f32 %v948, 0.0
        %v981 = vmax.f32 %v949, 0.0
        %v982 = vmax.f32 %v950, 0.0
        %v983 = vmax.f32 %v951, 0.0
        %v984 = vmax.f32 %v952, 0.0
        %v985 = vmax.f32 %v953, 0.0
        %v986 = vmax.f32 %v954, 0.0
        %v987 = vmax.f32 %v955, 0.0
        %v988 = vmax.f32 %v956, 0.0
        %v989 = vmax.f32 %v957, 0.0
        %v990 = vmax.f32 %v958, 0.0
        %v991 = vmax.f32 %v959, 0.0
        %v992 = vmax.f32 %v960, 0.0
        %v993 = vmax.f32 %v961, 0.0
        %v994 = vmax.f32 %v962, 0.0
        %v995 = vmax.f32 %v963, 0.0
        %v996 = vmax.f32 %v964, 0.0
        %v997 = vmax.f32 %v965, 0.0
        %v998 = vmax.f32 %v966, 0.0
        %v999 = vmax.f32 %v967, 0.0
        %v1000 = vmax.f32 %v968, 0.0
        %v1001 = vmax.f32 %v969, 0.0
        %v1002 = vmax.f32 %v970, 0.0
        %v1003 = vmax.f32 %v971, 0.0
        %v1004 = vmax.f32 %v972, 0.0
        %v1005 = vmax.f32 %v973, 0.0
        %v1006 = vmax.f32 %v974, 0.0
        %v1007 = vpack.c.bf16 %v976, %v975
        %v1008 = vpack.c.bf16 %v978, %v977
        %v1009 = vpack.c.bf16 %v980, %v979
        %v1010 = vpack.c.bf16 %v982, %v981
        %v1011 = vpack.c.bf16 %v984, %v983
        %v1012 = vpack.c.bf16 %v986, %v985
        %v1013 = vpack.c.bf16 %v988, %v987
        %v1014 = vpack.c.bf16 %v990, %v989
        %v1015 = vpack.c.bf16 %v992, %v991
        %v1016 = vpack.c.bf16 %v994, %v993
        %v1017 = vpack.c.bf16 %v996, %v995
        %v1018 = vpack.c.bf16 %v998, %v997
        %v1019 = vpack.c.bf16 %v1000, %v999
        %v1020 = vpack.c.bf16 %v1002, %v1001
        %v1021 = vpack.c.bf16 %v1004, %v1003
        %v1022 = vpack.c.bf16 %v1006, %v1005
        %v1039 = vunpack.c.l.b16 %v1007
        %v1040 = vunpack.c.h.b16 %v1007
        %v1041 = vunpack.c.l.b16 %v1008
        %v1042 = vunpack.c.h.b16 %v1008
        %v1043 = vunpack.c.l.b16 %v1009
        %v1044 = vunpack.c.h.b16 %v1009
        %v1045 = vunpack.c.l.b16 %v1010
        %v1046 = vunpack.c.h.b16 %v1010
        %v1047 = vunpack.c.l.b16 %v1011
        %v1048 = vunpack.c.h.b16 %v1011
        %v1049 = vunpack.c.l.b16 %v1012
        %v1050 = vunpack.c.h.b16 %v1012
        %v1051 = vunpack.c.l.b16 %v1013
        %v1052 = vunpack.c.h.b16 %v1013
        %v1053 = vunpack.c.l.b16 %v1014
        %v1054 = vunpack.c.h.b16 %v1014
        %v1055 = vunpack.c.l.b16 %v1015
        %v1056 = vunpack.c.h.b16 %v1015
        %v1057 = vunpack.c.l.b16 %v1016
        %v1058 = vunpack.c.h.b16 %v1016
        %v1059 = vunpack.c.l.b16 %v1017
        %v1060 = vunpack.c.h.b16 %v1017
        %v1061 = vunpack.c.l.b16 %v1018
        %v1062 = vunpack.c.h.b16 %v1018
        %v1063 = vunpack.c.l.b16 %v1019
        %v1064 = vunpack.c.h.b16 %v1019
        %v1065 = vunpack.c.l.b16 %v1020
        %v1066 = vunpack.c.h.b16 %v1020
        %v1067 = vunpack.c.l.b16 %v1021
        %v1068 = vunpack.c.h.b16 %v1021
        %v1069 = vunpack.c.l.b16 %v1022
        %v1070 = vunpack.c.h.b16 %v1022
        %v1071 = vpack.c.b16 %v1039, %v1039
        %v1072 = vpack.c.b16 %v1040, %v1040
        %v1073 = vpack.c.b16 %v1041, %v1041
        %v1074 = vpack.c.b16 %v1042, %v1042
        %v1075 = vpack.c.b16 %v1043, %v1043
        %v1076 = vpack.c.b16 %v1044, %v1044
        %v1077 = vpack.c.b16 %v1045, %v1045
        %v1078 = vpack.c.b16 %v1046, %v1046
        %v1079 = vpack.c.b16 %v1047, %v1047
        %v1080 = vpack.c.b16 %v1048, %v1048
        %v1081 = vpack.c.b16 %v1049, %v1049
        %v1082 = vpack.c.b16 %v1050, %v1050
        %v1083 = vpack.c.b16 %v1051, %v1051
        %v1084 = vpack.c.b16 %v1052, %v1052
        %v1085 = vpack.c.b16 %v1053, %v1053
        %v1086 = vpack.c.b16 %v1054, %v1054
        %v1087 = vpack.c.b16 %v1055, %v1055
        %v1088 = vpack.c.b16 %v1056, %v1056
        %v1089 = vpack.c.b16 %v1057, %v1057
        %v1090 = vpack.c.b16 %v1058, %v1058
        %v1091 = vpack.c.b16 %v1059, %v1059
        %v1092 = vpack.c.b16 %v1060, %v1060
        %v1093 = vpack.c.b16 %v1061, %v1061
        %v1094 = vpack.c.b16 %v1062, %v1062
        %v1095 = vpack.c.b16 %v1063, %v1063
        %v1096 = vpack.c.b16 %v1064, %v1064
        %v1097 = vpack.c.b16 %v1065, %v1065
        %v1098 = vpack.c.b16 %v1066, %v1066
        %v1099 = vpack.c.b16 %v1067, %v1067
        %v1100 = vpack.c.b16 %v1068, %v1068
        %v1101 = vpack.c.b16 %v1069, %v1069
        %v1102 = vpack.c.b16 %v1070, %v1070
        %1135 = vst [vmem:[%s317] sm:$0xf] %v1071
        %1136 = vst [vmem:[%s317 + $0x4] sm:$0xf] %v1072
        %1137 = vst [vmem:[%s317 + $0x8] sm:$0xf] %v1073
        %1138 = vst [vmem:[%s317 + $0xc] sm:$0xf] %v1074
        %1139 = vst [vmem:[%s317 + $0x10] sm:$0xf] %v1075
        %1140 = vst [vmem:[%s317 + $0x14] sm:$0xf] %v1076
        %1141 = vst [vmem:[%s317 + $0x18] sm:$0xf] %v1077
        %1142 = vst [vmem:[%s317 + $0x1c] sm:$0xf] %v1078
        %1143 = vst [vmem:[%s317 + $0x20] sm:$0xf] %v1079
        %1144 = vst [vmem:[%s317 + $0x24] sm:$0xf] %v1080
        %1145 = vst [vmem:[%s317 + $0x28] sm:$0xf] %v1081
        %1146 = vst [vmem:[%s317 + $0x2c] sm:$0xf] %v1082
        %1147 = vst [vmem:[%s317 + $0x30] sm:$0xf] %v1083
        %1148 = vst [vmem:[%s317 + $0x34] sm:$0xf] %v1084
        %1149 = vst [vmem:[%s317 + $0x38] sm:$0xf] %v1085
        %1150 = vst [vmem:[%s317 + $0x3c] sm:$0xf] %v1086
        %1151 = vst [vmem:[%s317 + $0x40] sm:$0xf] %v1087
        %1152 = vst [vmem:[%s317 + $0x44] sm:$0xf] %v1088
        %1153 = vst [vmem:[%s317 + $0x48] sm:$0xf] %v1089
        %1154 = vst [vmem:[%s317 + $0x4c] sm:$0xf] %v1090
        %1155 = vst [vmem:[%s317 + $0x50] sm:$0xf] %v1091
        %1156 = vst [vmem:[%s317 + $0x54] sm:$0xf] %v1092
        %1157 = vst [vmem:[%s317 + $0x58] sm:$0xf] %v1093
        %1158 = vst [vmem:[%s317 + $0x5c] sm:$0xf] %v1094
        %1159 = vst [vmem:[%s317 + $0x60] sm:$0xf] %v1095
        %1160 = vst [vmem:[%s317 + $0x64] sm:$0xf] %v1096
        %1161 = vst [vmem:[%s317 + $0x68] sm:$0xf] %v1097
        %1162 = vst [vmem:[%s317 + $0x6c] sm:$0xf] %v1098
        %1163 = vst [vmem:[%s317 + $0x70] sm:$0xf] %v1099
        %1164 = vst [vmem:[%s317 + $0x74] sm:$0xf] %v1100
        %1165 = vst [vmem:[%s317 + $0x78] sm:$0xf] %v1101
        %1166 = vst [vmem:[%s317 + $0x7c] sm:$0xf] %v1102
      $region44: #{orangenet18_forward.25} parent=35 // pred_fallthru
        _
      %s1167 = smul.u32 32, %s20
      %p1168 = scmp.lt.s32.totalorder %s1167, 63
      %s1169 = scalar_select %p1168, %s1167, 63
      %p1170 = scmp.lt.s32.totalorder %s21, 0
      %s1171 = scalar_select %p1170, %s21, 0
      %s1172 = sadd.s32 %s1171, %s1169
      %s1173 = smul.addr %s1172, 4
      %s1174 = scalar_lea.vmem %s4, %s1173
      // Predicated region
      $region45: #{orangenet18_forward.25} parent=35 // pred_check
        %p1175 = pneg %p164
      $region46: #{orangenet18_forward.25} parent=35 // pred_check_branch
        %1177 = sbr.rel (%p1175) target = $region48
      $region47: #{orangenet18_forward.25} parent=35 // pred_region
        %s1178 = smul.u32 32, %s20
      $region48: #{orangenet18_forward.25} parent=35 // pred_fallthru
        _
    $region36: #{orangenet18_forward.25} parent=5 // pred_fallthru
      _
    %p1179 = scmp.le.s32.totalorder 2, %s10
    // Predicated region
    $region49: #{orangenet18_forward.25} parent=5 // pred_check
      %p1180 = pneg %p1179
    $region50: #{orangenet18_forward.25} parent=5 // pred_check_branch
      %1182 = sbr.rel (%p1180) target = $region52
    $region51: #{orangenet18_forward.25} parent=5 // pred_region
      %s1183 = ssub.s32 %s10, 2
      // Predicated region
      $region53: #{orangenet18_forward.25} parent=51 // pred_check
        %p1184 = pneg %p170
      $region54: #{orangenet18_forward.25} parent=51 // pred_check_branch
        %1186 = sbr.rel (%p1184) target = $region56
      $region55: #{orangenet18_forward.25} parent=51 // pred_region
        %s1187 = smul.u32 32, %s23
        %p1188 = scmp.lt.s32.totalorder %s1187, 63
        %s1189 = scalar_select %p1188, %s1187, 63
        %p1190 = scmp.lt.s32.totalorder %s24, 0
        %s1191 = scalar_select %p1190, %s24, 0
        %s1192 = sadd.s32 %s1191, %s1189
        %s1193 = smul.addr %s1192, 4
        %s1194 = scalar_lea.vmem %s4, %s1193
      $region56: #{orangenet18_forward.25} parent=51 // pred_fallthru
        _
    $region52: #{orangenet18_forward.25} parent=5 // pred_fallthru
      _
  $region6: #{orangenet18_forward.25} parent=0 // loop_footer
    %s14 = sadd.s32 1, %s10
  $region7: #{orangenet18_forward.25} parent=0 // loop_footer_branch
    %9 = sbr.rel target = $region3
  $region8: #{orangenet18_forward.25} parent=0 // loop_exit
    _

// kernel: orangenet18_forward.28
$region0: #{orangenet18_forward.28}
  #allocation0 [shape = 'u32[]', space=smem, size = 0x4, offset = 0x4, fixed_abs, tag = 'smem constant byte address 0x4 - core index']
  #allocation1 [shape = 'u32[144,128]{1,0:T(1,128)}', space=vmem, size = 0x12000, scoped, tag = 'internal scratch']
  #allocation2 [shape = 'f32[128,128]{1,0:T(8,128)}', space=vmem, size = 0x10000, scoped, tag = 'scratch operand']
  %s0 = inlined_call_operand.vmem [shape: bf16[128,128], index: 0, kind: input, shape index: {}]
  %s1 = inlined_call_operand.vmem [shape: bf16[128,128], index: 1, kind: input, shape index: {}]
  %s2 = inlined_call_operand.vmem [shape: f32[1,128], index: 2, kind: input, shape index: {}]
  %s3 = inlined_call_operand.vmem [shape: bf16[128,128], index: 3, kind: output, shape index: {}]
  %s4 = sld [smem:[#allocation0]]
  $region30: #{orangenet18_forward.28} parent=0
    _
  %s6 = ssub.s32 1, %s4
  %s7 = scalar_select 0, %s6, %s4
  // Predicated region
  $region2: #{orangenet18_forward.28} parent=0 // pred_check
    _
  $region3: #{orangenet18_forward.28} parent=0 // pred_check_branch
    %9 = sbr.rel (0) target = $region5
  $region4: #{orangenet18_forward.28} parent=0 // pred_region
    _
  $region5: #{orangenet18_forward.28} parent=0 // pred_fallthru
    _
  // Predicated region
  $region6: #{orangenet18_forward.28} parent=0 // pred_check
    _
  $region7: #{orangenet18_forward.28} parent=0 // pred_check_branch
    %11 = sbr.rel (0) target = $region9
  $region8: #{orangenet18_forward.28} parent=0 // pred_region
    _
  $region9: #{orangenet18_forward.28} parent=0 // pred_fallthru
    _
  // Predicated region
  $region10: #{orangenet18_forward.28} parent=0 // pred_check
    _
  $region11: #{orangenet18_forward.28} parent=0 // pred_check_branch
    %13 = sbr.rel (0) target = $region13
  $region12: #{orangenet18_forward.28} parent=0 // pred_region
    _
  $region13: #{orangenet18_forward.28} parent=0 // pred_fallthru
    _
  %p15 = scmp.eq.s32.totalorder 0, 0
  // Predicated region
  $region14: #{orangenet18_forward.28} parent=0 // pred_check
    %p16 = pneg %p15
  $region15: #{orangenet18_forward.28} parent=0 // pred_check_branch
    %18 = sbr.rel (%p16) target = $region17
  $region16: #{orangenet18_forward.28} parent=0 // pred_region
    %19 = vst [vmem:[#allocation2] sm:$0xff] 0.0
    %20 = vst [vmem:[#allocation2 + $0x8] sm:$0xff] 0.0
    %21 = vst [vmem:[#allocation2 + $0x10] sm:$0xff] 0.0
    %22 = vst [vmem:[#allocation2 + $0x18] sm:$0xff] 0.0
    %23 = vst [vmem:[#allocation2 + $0x20] sm:$0xff] 0.0
    %24 = vst [vmem:[#allocation2 + $0x28] sm:$0xff] 0.0
    %25 = vst [vmem:[#allocation2 + $0x30] sm:$0xff] 0.0
    %26 = vst [vmem:[#allocation2 + $0x38] sm:$0xff] 0.0
    %27 = vst [vmem:[#allocation2 + $0x40] sm:$0xff] 0.0
    %28 = vst [vmem:[#allocation2 + $0x48] sm:$0xff] 0.0
    %29 = vst [vmem:[#allocation2 + $0x50] sm:$0xff] 0.0
    %30 = vst [vmem:[#allocation2 + $0x58] sm:$0xff] 0.0
    %31 = vst [vmem:[#allocation2 + $0x60] sm:$0xff] 0.0
    %32 = vst [vmem:[#allocation2 + $0x68] sm:$0xff] 0.0
    %33 = vst [vmem:[#allocation2 + $0x70] sm:$0xff] 0.0
    %34 = vst [vmem:[#allocation2 + $0x78] sm:$0xff] 0.0
  $region17: #{orangenet18_forward.28} parent=0 // pred_fallthru
    _
  %v35 = vld [vmem:[#allocation2] sm:$0xff]
  %v36 = vld [vmem:[#allocation2 + $0x8] sm:$0xff]
  %v37 = vld [vmem:[#allocation2 + $0x10] sm:$0xff]
  %v38 = vld [vmem:[#allocation2 + $0x18] sm:$0xff]
  %v39 = vld [vmem:[#allocation2 + $0x20] sm:$0xff]
  %v40 = vld [vmem:[#allocation2 + $0x28] sm:$0xff]
  %v41 = vld [vmem:[#allocation2 + $0x30] sm:$0xff]
  %v42 = vld [vmem:[#allocation2 + $0x38] sm:$0xff]
  %v43 = vld [vmem:[#allocation2 + $0x40] sm:$0xff]
  %v44 = vld [vmem:[#allocation2 + $0x48] sm:$0xff]
  %v45 = vld [vmem:[#allocation2 + $0x50] sm:$0xff]
  %v46 = vld [vmem:[#allocation2 + $0x58] sm:$0xff]
  %v47 = vld [vmem:[#allocation2 + $0x60] sm:$0xff]
  %v48 = vld [vmem:[#allocation2 + $0x68] sm:$0xff]
  %v49 = vld [vmem:[#allocation2 + $0x70] sm:$0xff]
  %v50 = vld [vmem:[#allocation2 + $0x78] sm:$0xff]
  %v51 = vld [vmem:[%s0] sm:$0xf]
  %v52 = vld [vmem:[%s0 + $0x4] sm:$0xf]
  %v53 = vld [vmem:[%s0 + $0x8] sm:$0xf]
  %v54 = vld [vmem:[%s0 + $0xc] sm:$0xf]
  %v55 = vld [vmem:[%s0 + $0x10] sm:$0xf]
  %v56 = vld [vmem:[%s0 + $0x14] sm:$0xf]
  %v57 = vld [vmem:[%s0 + $0x18] sm:$0xf]
  %v58 = vld [vmem:[%s0 + $0x1c] sm:$0xf]
  %v59 = vld [vmem:[%s0 + $0x20] sm:$0xf]
  %v60 = vld [vmem:[%s0 + $0x24] sm:$0xf]
  %v61 = vld [vmem:[%s0 + $0x28] sm:$0xf]
  %v62 = vld [vmem:[%s0 + $0x2c] sm:$0xf]
  %v63 = vld [vmem:[%s0 + $0x30] sm:$0xf]
  %v64 = vld [vmem:[%s0 + $0x34] sm:$0xf]
  %v65 = vld [vmem:[%s0 + $0x38] sm:$0xf]
  %v66 = vld [vmem:[%s0 + $0x3c] sm:$0xf]
  %v67 = vld [vmem:[%s1] sm:$0xf]
  %v68 = vld [vmem:[%s1 + $0x4] sm:$0xf]
  %v69 = vld [vmem:[%s1 + $0x8] sm:$0xf]
  %v70 = vld [vmem:[%s1 + $0xc] sm:$0xf]
  %v71 = vld [vmem:[%s1 + $0x10] sm:$0xf]
  %v72 = vld [vmem:[%s1 + $0x14] sm:$0xf]
  %v73 = vld [vmem:[%s1 + $0x18] sm:$0xf]
  %v74 = vld [vmem:[%s1 + $0x1c] sm:$0xf]
  %v75 = vld [vmem:[%s1 + $0x20] sm:$0xf]
  %v76 = vld [vmem:[%s1 + $0x24] sm:$0xf]
  %v77 = vld [vmem:[%s1 + $0x28] sm:$0xf]
  %v78 = vld [vmem:[%s1 + $0x2c] sm:$0xf]
  %v79 = vld [vmem:[%s1 + $0x30] sm:$0xf]
  %v80 = vld [vmem:[%s1 + $0x34] sm:$0xf]
  %v81 = vld [vmem:[%s1 + $0x38] sm:$0xf]
  %v82 = vld [vmem:[%s1 + $0x3c] sm:$0xf]
  %v99 = vunpack.c.l.b16 %v51
  %v100 = vunpack.c.l.b16 %v52
  %v101 = vunpack.c.l.b16 %v53
  %v102 = vunpack.c.l.b16 %v54
  %v103 = vunpack.c.l.b16 %v55
  %v104 = vunpack.c.l.b16 %v56
  %v105 = vunpack.c.l.b16 %v57
  %v106 = vunpack.c.l.b16 %v58
  %v107 = vunpack.c.l.b16 %v59
  %v108 = vunpack.c.l.b16 %v60
  %v109 = vunpack.c.l.b16 %v61
  %v110 = vunpack.c.l.b16 %v62
  %v111 = vunpack.c.l.b16 %v63
  %v112 = vunpack.c.l.b16 %v64
  %v113 = vunpack.c.l.b16 %v65
  %v114 = vunpack.c.l.b16 %v66
  %v115 = vpack.c.b16 %v100, %v99
  %v116 = vpack.c.b16 %v102, %v101
  %v117 = vpack.c.b16 %v104, %v103
  %v118 = vpack.c.b16 %v106, %v105
  %v119 = vpack.c.b16 %v108, %v107
  %v120 = vpack.c.b16 %v110, %v109
  %v121 = vpack.c.b16 %v112, %v111
  %v122 = vpack.c.b16 %v114, %v113
  %v147 = vunpack.c.l.b16 %v67
  %v148 = vunpack.c.l.b16 %v68
  %v149 = vunpack.c.l.b16 %v69
  %v150 = vunpack.c.l.b16 %v70
  %v151 = vunpack.c.l.b16 %v71
  %v152 = vunpack.c.l.b16 %v72
  %v153 = vunpack.c.l.b16 %v73
  %v154 = vunpack.c.l.b16 %v74
  %v155 = vunpack.c.l.b16 %v75
  %v156 = vunpack.c.l.b16 %v76
  %v157 = vunpack.c.l.b16 %v77
  %v158 = vunpack.c.l.b16 %v78
  %v159 = vunpack.c.l.b16 %v79
  %v160 = vunpack.c.l.b16 %v80
  %v161 = vunpack.c.l.b16 %v81
  %v162 = vunpack.c.l.b16 %v82
  %v163 = vpack.c.b16 %v148, %v147
  %v164 = vpack.c.b16 %v150, %v149
  %v165 = vpack.c.b16 %v152, %v151
  %v166 = vpack.c.b16 %v154, %v153
  %v167 = vpack.c.b16 %v156, %v155
  %v168 = vpack.c.b16 %v158, %v157
  %v169 = vpack.c.b16 %v160, %v159
  %v170 = vpack.c.b16 %v162, %v161
  %179 = vmatprep.subr.bf16.mxu0 0
  %180 = vmatpush1.bf16.msra.mxu0 %v163
  %181 = vmatprep.subr.bf16.mxu0 0
  %182 = vmatpush1.bf16.msra.mxu0 %v164
  %183 = vmatprep.subr.bf16.mxu0 0
  %184 = vmatpush1.bf16.msra.mxu0 %v165
  %185 = vmatprep.subr.bf16.mxu0 0
  %186 = vmatpush1.bf16.msra.mxu0 %v166
  %187 = vmatprep.subr.bf16.mxu0 0
  %188 = vmatpush1.bf16.msra.mxu0 %v167
  %189 = vmatprep.subr.bf16.mxu0 0
  %190 = vmatpush1.bf16.msra.mxu0 %v168
  %191 = vmatprep.subr.bf16.mxu0 0
  %192 = vmatpush1.bf16.msra.mxu0 %v169
  %193 = vmatprep.subr.bf16.mxu0 0
  %194 = vmatpush1.bf16.msra.mxu0 %v170
  %195 = vmatprep.subr.bf16.mxu0 0
  %196 = vmatpush1.bf16.msra.mxu0 0
  %197 = vmatprep.subr.bf16.mxu0 0
  %198 = vmatpush1.bf16.msra.mxu0 0
  %199 = vmatprep.subr.bf16.mxu0 0
  %200 = vmatpush1.bf16.msra.mxu0 0
  %201 = vmatprep.subr.bf16.mxu0 0
  %202 = vmatpush1.bf16.msra.mxu0 0
  %203 = vmatprep.subr.bf16.mxu0 0
  %204 = vmatpush1.bf16.msra.mxu0 0
  %205 = vmatprep.subr.bf16.mxu0 0
  %206 = vmatpush1.bf16.msra.mxu0 0
  %207 = vmatprep.subr.bf16.mxu0 0
  %208 = vmatpush1.bf16.msra.mxu0 0
  %209 = vmatprep.subr.bf16.mxu0 0
  %210 = vmatpush1.bf16.msra.mxu0 0
  %211 = vmatprep.mubr.bf16.mxu0 0
  %212 = vmatmul.mubr.bf16.gmra.mrb[0].mxu0 %v115
  %v213 = vpop.f32.mrb[0].mxu0
  %v214 = vadd.f32 0.0, %v213
  %v215 = vpop.f32.mrb[0].mxu0
  %v216 = vpop.f32.mrb[0].mxu0
  %v217 = vadd.f32 0.0, %v216
  %v218 = vpop.f32.mrb[0].mxu0
  %219 = vmatprep.mubr.bf16.mxu0 0
  %220 = vmatmul.mubr.bf16.gmra.mrb[0].mxu0 %v116
  %v221 = vpop.f32.mrb[0].mxu0
  %v222 = vadd.f32 0.0, %v221
  %v223 = vpop.f32.mrb[0].mxu0
  %v224 = vpop.f32.mrb[0].mxu0
  %v225 = vadd.f32 0.0, %v224
  %v226 = vpop.f32.mrb[0].mxu0
  %227 = vmatprep.mubr.bf16.mxu0 0
  %228 = vmatmul.mubr.bf16.gmra.mrb[0].mxu0 %v117
  %v229 = vpop.f32.mrb[0].mxu0
  %v230 = vadd.f32 0.0, %v229
  %v231 = vpop.f32.mrb[0].mxu0
  %v232 = vpop.f32.mrb[0].mxu0
  %v233 = vadd.f32 0.0, %v232
  %v234 = vpop.f32.mrb[0].mxu0
  %235 = vmatprep.mubr.bf16.mxu0 0
  %236 = vmatmul.mubr.bf16.gmra.mrb[0].mxu0 %v118
  %v237 = vpop.f32.mrb[0].mxu0
  %v238 = vadd.f32 0.0, %v237
  %v239 = vpop.f32.mrb[0].mxu0
  %v240 = vpop.f32.mrb[0].mxu0
  %v241 = vadd.f32 0.0, %v240
  %v242 = vpop.f32.mrb[0].mxu0
  %243 = vmatprep.mubr.bf16.mxu0 0
  %244 = vmatmul.mubr.bf16.gmra.mrb[0].mxu0 %v119
  %v245 = vpop.f32.mrb[0].mxu0
  %v246 = vadd.f32 0.0, %v245
  %v247 = vpop.f32.mrb[0].mxu0
  %v248 = vpop.f32.mrb[0].mxu0
  %v249 = vadd.f32 0.0, %v248
  %v250 = vpop.f32.mrb[0].mxu0
  %251 = vmatprep.mubr.bf16.mxu0 0
  %252 = vmatmul.mubr.bf16.gmra.mrb[0].mxu0 %v120
  %v253 = vpop.f32.mrb[0].mxu0
  %v254 = vadd.f32 0.0, %v253
  %v255 = vpop.f32.mrb[0].mxu0
  %v256 = vpop.f32.mrb[0].mxu0
  %v257 = vadd.f32 0.0, %v256
  %v258 = vpop.f32.mrb[0].mxu0
  %259 = vmatprep.mubr.bf16.mxu0 0
  %260 = vmatmul.mubr.bf16.gmra.mrb[0].mxu0 %v121
  %v261 = vpop.f32.mrb[0].mxu0
  %v262 = vadd.f32 0.0, %v261
  %v263 = vpop.f32.mrb[0].mxu0
  %v264 = vpop.f32.mrb[0].mxu0
  %v265 = vadd.f32 0.0, %v264
  %v266 = vpop.f32.mrb[0].mxu0
  %267 = vmatprep.mubr.bf16.mxu0 0
  %268 = vmatmul.mubr.bf16.gmra.mrb[0].mxu0 %v122
  %v269 = vpop.f32.mrb[0].mxu0
  %v270 = vadd.f32 0.0, %v269
  %v271 = vpop.f32.mrb[0].mxu0
  %v272 = vpop.f32.mrb[0].mxu0
  %v273 = vadd.f32 0.0, %v272
  %v274 = vpop.f32.mrb[0].mxu0
  %275 = vdwg.mxu0
  %v276 = vadd.f32 %v35, %v214
  %v277 = vadd.f32 %v36, %v217
  %v278 = vadd.f32 %v37, %v222
  %v279 = vadd.f32 %v38, %v225
  %v280 = vadd.f32 %v39, %v230
  %v281 = vadd.f32 %v40, %v233
  %v282 = vadd.f32 %v41, %v238
  %v283 = vadd.f32 %v42, %v241
  %v284 = vadd.f32 %v43, %v246
  %v285 = vadd.f32 %v44, %v249
  %v286 = vadd.f32 %v45, %v254
  %v287 = vadd.f32 %v46, %v257
  %v288 = vadd.f32 %v47, %v262
  %v289 = vadd.f32 %v48, %v265
  %v290 = vadd.f32 %v49, %v270
  %v291 = vadd.f32 %v50, %v273
  %292 = vst [vmem:[#allocation2] sm:$0xff] %v276
  %293 = vst [vmem:[#allocation2 + $0x8] sm:$0xff] %v277
  %294 = vst [vmem:[#allocation2 + $0x10] sm:$0xff] %v278
  %295 = vst [vmem:[#allocation2 + $0x18] sm:$0xff] %v279
  %296 = vst [vmem:[#allocation2 + $0x20] sm:$0xff] %v280
  %297 = vst [vmem:[#allocation2 + $0x28] sm:$0xff] %v281
  %298 = vst [vmem:[#allocation2 + $0x30] sm:$0xff] %v282
  %299 = vst [vmem:[#allocation2 + $0x38] sm:$0xff] %v283
  %300 = vst [vmem:[#allocation2 + $0x40] sm:$0xff] %v284
  %301 = vst [vmem:[#allocation2 + $0x48] sm:$0xff] %v285
  %302 = vst [vmem:[#allocation2 + $0x50] sm:$0xff] %v286
  %303 = vst [vmem:[#allocation2 + $0x58] sm:$0xff] %v287
  %304 = vst [vmem:[#allocation2 + $0x60] sm:$0xff] %v288
  %305 = vst [vmem:[#allocation2 + $0x68] sm:$0xff] %v289
  %306 = vst [vmem:[#allocation2 + $0x70] sm:$0xff] %v290
  %307 = vst [vmem:[#allocation2 + $0x78] sm:$0xff] %v291
  // Predicated region
  $region18: #{orangenet18_forward.28} parent=0 // pred_check
    %p308 = pneg %p15
  $region19: #{orangenet18_forward.28} parent=0 // pred_check_branch
    %310 = sbr.rel (%p308) target = $region21
  $region20: #{orangenet18_forward.28} parent=0 // pred_region
    %v311 = vld [vmem:[#allocation2] sm:$0xff]
    %v312 = vld [vmem:[#allocation2 + $0x8] sm:$0xff]
    %v313 = vld [vmem:[#allocation2 + $0x10] sm:$0xff]
    %v314 = vld [vmem:[#allocation2 + $0x18] sm:$0xff]
    %v315 = vld [vmem:[#allocation2 + $0x20] sm:$0xff]
    %v316 = vld [vmem:[#allocation2 + $0x28] sm:$0xff]
    %v317 = vld [vmem:[#allocation2 + $0x30] sm:$0xff]
    %v318 = vld [vmem:[#allocation2 + $0x38] sm:$0xff]
    %v319 = vld [vmem:[#allocation2 + $0x40] sm:$0xff]
    %v320 = vld [vmem:[#allocation2 + $0x48] sm:$0xff]
    %v321 = vld [vmem:[#allocation2 + $0x50] sm:$0xff]
    %v322 = vld [vmem:[#allocation2 + $0x58] sm:$0xff]
    %v323 = vld [vmem:[#allocation2 + $0x60] sm:$0xff]
    %v324 = vld [vmem:[#allocation2 + $0x68] sm:$0xff]
    %v325 = vld [vmem:[#allocation2 + $0x70] sm:$0xff]
    %v326 = vld [vmem:[#allocation2 + $0x78] sm:$0xff]
    %v327 = vld [vmem:[%s2] sm:$0x1]
    %v329 = vlaneseq
    %v330 = vshrl.u32 %v329, 7
    %v331 = vsub.s32 0, %v330
    %v332 = vrot.slane %v327, %v331
    %v334 = vadd.f32 %v311, %v332
    %v335 = vadd.f32 %v312, %v332
    %v336 = vadd.f32 %v313, %v332
    %v337 = vadd.f32 %v314, %v332
    %v338 = vadd.f32 %v315, %v332
    %v339 = vadd.f32 %v316, %v332
    %v340 = vadd.f32 %v317, %v332
    %v341 = vadd.f32 %v318, %v332
    %v342 = vadd.f32 %v319, %v332
    %v343 = vadd.f32 %v320, %v332
    %v344 = vadd.f32 %v321, %v332
    %v345 = vadd.f32 %v322, %v332
    %v346 = vadd.f32 %v323, %v332
    %v347 = vadd.f32 %v324, %v332
    %v348 = vadd.f32 %v325, %v332
    %v349 = vadd.f32 %v326, %v332
    %v350 = vmax.f32 %v334, 0.0
    %v351 = vmax.f32 %v335, 0.0
    %v352 = vmax.f32 %v336, 0.0
    %v353 = vmax.f32 %v337, 0.0
    %v354 = vmax.f32 %v338, 0.0
    %v355 = vmax.f32 %v339, 0.0
    %v356 = vmax.f32 %v340, 0.0
    %v357 = vmax.f32 %v341, 0.0
    %v358 = vmax.f32 %v342, 0.0
    %v359 = vmax.f32 %v343, 0.0
    %v360 = vmax.f32 %v344, 0.0
    %v361 = vmax.f32 %v345, 0.0
    %v362 = vmax.f32 %v346, 0.0
    %v363 = vmax.f32 %v347, 0.0
    %v364 = vmax.f32 %v348, 0.0
    %v365 = vmax.f32 %v349, 0.0
    %v366 = vpack.c.bf16 %v351, %v350
    %v367 = vpack.c.bf16 %v353, %v352
    %v368 = vpack.c.bf16 %v355, %v354
    %v369 = vpack.c.bf16 %v357, %v356
    %v370 = vpack.c.bf16 %v359, %v358
    %v371 = vpack.c.bf16 %v361, %v360
    %v372 = vpack.c.bf16 %v363, %v362
    %v373 = vpack.c.bf16 %v365, %v364
    %v382 = vunpack.c.l.b16 %v366
    %v383 = vunpack.c.h.b16 %v366
    %v384 = vunpack.c.l.b16 %v367
    %v385 = vunpack.c.h.b16 %v367
    %v386 = vunpack.c.l.b16 %v368
    %v387 = vunpack.c.h.b16 %v368
    %v388 = vunpack.c.l.b16 %v369
    %v389 = vunpack.c.h.b16 %v369
    %v390 = vunpack.c.l.b16 %v370
    %v391 = vunpack.c.h.b16 %v370
    %v392 = vunpack.c.l.b16 %v371
    %v393 = vunpack.c.h.b16 %v371
    %v394 = vunpack.c.l.b16 %v372
    %v395 = vunpack.c.h.b16 %v372
    %v396 = vunpack.c.l.b16 %v373
    %v397 = vunpack.c.h.b16 %v373
    %v398 = vpack.c.b16 %v382, %v382
    %v399 = vpack.c.b16 %v383, %v383
    %v400 = vpack.c.b16 %v384, %v384
    %v401 = vpack.c.b16 %v385, %v385
    %v402 = vpack.c.b16 %v386, %v386
    %v403 = vpack.c.b16 %v387, %v387
    %v404 = vpack.c.b16 %v388, %v388
    %v405 = vpack.c.b16 %v389, %v389
    %v406 = vpack.c.b16 %v390, %v390
    %v407 = vpack.c.b16 %v391, %v391
    %v408 = vpack.c.b16 %v392, %v392
    %v409 = vpack.c.b16 %v393, %v393
    %v410 = vpack.c.b16 %v394, %v394
    %v411 = vpack.c.b16 %v395, %v395
    %v412 = vpack.c.b16 %v396, %v396
    %v413 = vpack.c.b16 %v397, %v397
    %430 = vst [vmem:[%s3] sm:$0xf] %v398
    %431 = vst [vmem:[%s3 + $0x4] sm:$0xf] %v399
    %432 = vst [vmem:[%s3 + $0x8] sm:$0xf] %v400
    %433 = vst [vmem:[%s3 + $0xc] sm:$0xf] %v401
    %434 = vst [vmem:[%s3 + $0x10] sm:$0xf] %v402
    %435 = vst [vmem:[%s3 + $0x14] sm:$0xf] %v403
    %436 = vst [vmem:[%s3 + $0x18] sm:$0xf] %v404
    %437 = vst [vmem:[%s3 + $0x1c] sm:$0xf] %v405
    %438 = vst [vmem:[%s3 + $0x20] sm:$0xf] %v406
    %439 = vst [vmem:[%s3 + $0x24] sm:$0xf] %v407
    %440 = vst [vmem:[%s3 + $0x28] sm:$0xf] %v408
    %441 = vst [vmem:[%s3 + $0x2c] sm:$0xf] %v409
    %442 = vst [vmem:[%s3 + $0x30] sm:$0xf] %v410
    %443 = vst [vmem:[%s3 + $0x34] sm:$0xf] %v411
    %444 = vst [vmem:[%s3 + $0x38] sm:$0xf] %v412
    %445 = vst [vmem:[%s3 + $0x3c] sm:$0xf] %v413
  $region21: #{orangenet18_forward.28} parent=0 // pred_fallthru
    _
  // Predicated region
  $region22: #{orangenet18_forward.28} parent=0 // pred_check
    _
  $region23: #{orangenet18_forward.28} parent=0 // pred_check_branch
    %447 = sbr.rel (0) target = $region25
  $region24: #{orangenet18_forward.28} parent=0 // pred_region
    _
  $region25: #{orangenet18_forward.28} parent=0 // pred_fallthru
    _
  // Predicated region
  $region26: #{orangenet18_forward.28} parent=0 // pred_check
    _
  $region27: #{orangenet18_forward.28} parent=0 // pred_check_branch
    %449 = sbr.rel (0) target = $region29
  $region28: #{orangenet18_forward.28} parent=0 // pred_region
    _
  $region29: #{orangenet18_forward.28} parent=0 // pred_fallthru
    _

// kernel: orangenet18_forward.30
$region0: #{orangenet18_forward.30}
  #allocation0 [shape = 'u32[]', space=smem, size = 0x4, offset = 0x4, fixed_abs, tag = 'smem constant byte address 0x4 - core index']
  #allocation1 [shape = 'u32[144,128]{1,0:T(1,128)}', space=vmem, size = 0x12000, scoped, tag = 'internal scratch']
  #allocation2 [shape = 'f32[128,128]{1,0:T(8,128)}', space=vmem, size = 0x10000, scoped, tag = 'scratch operand']
  %s0 = inlined_call_operand.vmem [shape: bf16[128,256], index: 0, kind: input, shape index: {}]
  %s1 = inlined_call_operand.vmem [shape: bf16[256,128], index: 1, kind: input, shape index: {}]
  %s2 = inlined_call_operand.vmem [shape: f32[1,128], index: 2, kind: input, shape index: {}]
  %s3 = inlined_call_operand.vmem [shape: bf16[128,128], index: 3, kind: input, shape index: {}]
  %s4 = inlined_call_operand.vmem [shape: bf16[128,128], index: 4, kind: output, shape index: {}]
  %s5 = sld [smem:[#allocation0]]
  $region34: #{orangenet18_forward.30} parent=0
    _
  %s7 = ssub.s32 1, %s5
  %s8 = scalar_select 0, %s7, %s5
  // Predicated region
  $region2: #{orangenet18_forward.30} parent=0 // pred_check
    _
  $region3: #{orangenet18_forward.30} parent=0 // pred_check_branch
    %10 = sbr.rel (0) target = $region5
  $region4: #{orangenet18_forward.30} parent=0 // pred_region
    _
  $region5: #{orangenet18_forward.30} parent=0 // pred_fallthru
    _
  // Predicated region
  $region6: #{orangenet18_forward.30} parent=0 // pred_check
    _
  $region7: #{orangenet18_forward.30} parent=0 // pred_check_branch
    %12 = sbr.rel (0) target = $region9
  $region8: #{orangenet18_forward.30} parent=0 // pred_region
    _
  $region9: #{orangenet18_forward.30} parent=0 // pred_fallthru
    _
  // Predicated region
  $region10: #{orangenet18_forward.30} parent=0 // pred_check
    _
  $region11: #{orangenet18_forward.30} parent=0 // pred_check_branch
    %14 = sbr.rel (0) target = $region13
  $region12: #{orangenet18_forward.30} parent=0 // pred_region
    _
  $region13: #{orangenet18_forward.30} parent=0 // pred_fallthru
    _
  // Predicated region
  $region14: #{orangenet18_forward.30} parent=0 // pred_check
    _
  $region15: #{orangenet18_forward.30} parent=0 // pred_check_branch
    %16 = sbr.rel (0) target = $region17
  $region16: #{orangenet18_forward.30} parent=0 // pred_region
    _
  $region17: #{orangenet18_forward.30} parent=0 // pred_fallthru
    _
  %p18 = scmp.eq.s32.totalorder 0, 0
  // Predicated region
  $region18: #{orangenet18_forward.30} parent=0 // pred_check
    %p19 = pneg %p18
  $region19: #{orangenet18_forward.30} parent=0 // pred_check_branch
    %21 = sbr.rel (%p19) target = $region21
  $region20: #{orangenet18_forward.30} parent=0 // pred_region
    %22 = vst [vmem:[#allocation2] sm:$0xff] 0.0
    %23 = vst [vmem:[#allocation2 + $0x8] sm:$0xff] 0.0
    %24 = vst [vmem:[#allocation2 + $0x10] sm:$0xff] 0.0
    %25 = vst [vmem:[#allocation2 + $0x18] sm:$0xff] 0.0
    %26 = vst [vmem:[#allocation2 + $0x20] sm:$0xff] 0.0
    %27 = vst [vmem:[#allocation2 + $0x28] sm:$0xff] 0.0
    %28 = vst [vmem:[#allocation2 + $0x30] sm:$0xff] 0.0
    %29 = vst [vmem:[#allocation2 + $0x38] sm:$0xff] 0.0
    %30 = vst [vmem:[#allocation2 + $0x40] sm:$0xff] 0.0
    %31 = vst [vmem:[#allocation2 + $0x48] sm:$0xff] 0.0
    %32 = vst [vmem:[#allocation2 + $0x50] sm:$0xff] 0.0
    %33 = vst [vmem:[#allocation2 + $0x58] sm:$0xff] 0.0
    %34 = vst [vmem:[#allocation2 + $0x60] sm:$0xff] 0.0
    %35 = vst [vmem:[#allocation2 + $0x68] sm:$0xff] 0.0
    %36 = vst [vmem:[#allocation2 + $0x70] sm:$0xff] 0.0
    %37 = vst [vmem:[#allocation2 + $0x78] sm:$0xff] 0.0
  $region21: #{orangenet18_forward.30} parent=0 // pred_fallthru
    _
  %v38 = vld [vmem:[#allocation2] sm:$0xff]
  %v39 = vld [vmem:[#allocation2 + $0x8] sm:$0xff]
  %v40 = vld [vmem:[#allocation2 + $0x10] sm:$0xff]
  %v41 = vld [vmem:[#allocation2 + $0x18] sm:$0xff]
  %v42 = vld [vmem:[#allocation2 + $0x20] sm:$0xff]
  %v43 = vld [vmem:[#allocation2 + $0x28] sm:$0xff]
  %v44 = vld [vmem:[#allocation2 + $0x30] sm:$0xff]
  %v45 = vld [vmem:[#allocation2 + $0x38] sm:$0xff]
  %v46 = vld [vmem:[#allocation2 + $0x40] sm:$0xff]
  %v47 = vld [vmem:[#allocation2 + $0x48] sm:$0xff]
  %v48 = vld [vmem:[#allocation2 + $0x50] sm:$0xff]
  %v49 = vld [vmem:[#allocation2 + $0x58] sm:$0xff]
  %v50 = vld [vmem:[#allocation2 + $0x60] sm:$0xff]
  %v51 = vld [vmem:[#allocation2 + $0x68] sm:$0xff]
  %v52 = vld [vmem:[#allocation2 + $0x70] sm:$0xff]
  %v53 = vld [vmem:[#allocation2 + $0x78] sm:$0xff]
  %v54 = vld [vmem:[%s0] sm:$0xff]
  %v55 = vld [vmem:[%s0 + $0x8] sm:$0xff]
  %v56 = vld [vmem:[%s0 + $0x10] sm:$0xff]
  %v57 = vld [vmem:[%s0 + $0x18] sm:$0xff]
  %v58 = vld [vmem:[%s0 + $0x20] sm:$0xff]
  %v59 = vld [vmem:[%s0 + $0x28] sm:$0xff]
  %v60 = vld [vmem:[%s0 + $0x30] sm:$0xff]
  %v61 = vld [vmem:[%s0 + $0x38] sm:$0xff]
  %v62 = vld [vmem:[%s0 + $0x40] sm:$0xff]
  %v63 = vld [vmem:[%s0 + $0x48] sm:$0xff]
  %v64 = vld [vmem:[%s0 + $0x50] sm:$0xff]
  %v65 = vld [vmem:[%s0 + $0x58] sm:$0xff]
  %v66 = vld [vmem:[%s0 + $0x60] sm:$0xff]
  %v67 = vld [vmem:[%s0 + $0x68] sm:$0xff]
  %v68 = vld [vmem:[%s0 + $0x70] sm:$0xff]
  %v69 = vld [vmem:[%s0 + $0x78] sm:$0xff]
  %v70 = vld [vmem:[%s1] sm:$0xf]
  %v71 = vld [vmem:[%s1 + $0x4] sm:$0xf]
  %v72 = vld [vmem:[%s1 + $0x8] sm:$0xf]
  %v73 = vld [vmem:[%s1 + $0xc] sm:$0xf]
  %v74 = vld [vmem:[%s1 + $0x10] sm:$0xf]
  %v75 = vld [vmem:[%s1 + $0x14] sm:$0xf]
  %v76 = vld [vmem:[%s1 + $0x18] sm:$0xf]
  %v77 = vld [vmem:[%s1 + $0x1c] sm:$0xf]
  %v78 = vld [vmem:[%s1 + $0x20] sm:$0xf]
  %v79 = vld [vmem:[%s1 + $0x24] sm:$0xf]
  %v80 = vld [vmem:[%s1 + $0x28] sm:$0xf]
  %v81 = vld [vmem:[%s1 + $0x2c] sm:$0xf]
  %v82 = vld [vmem:[%s1 + $0x30] sm:$0xf]
  %v83 = vld [vmem:[%s1 + $0x34] sm:$0xf]
  %v84 = vld [vmem:[%s1 + $0x38] sm:$0xf]
  %v85 = vld [vmem:[%s1 + $0x3c] sm:$0xf]
  %v86 = vld [vmem:[%s1 + $0x40] sm:$0xf]
  %v87 = vld [vmem:[%s1 + $0x44] sm:$0xf]
  %v88 = vld [vmem:[%s1 + $0x48] sm:$0xf]
  %v89 = vld [vmem:[%s1 + $0x4c] sm:$0xf]
  %v90 = vld [vmem:[%s1 + $0x50] sm:$0xf]
  %v91 = vld [vmem:[%s1 + $0x54] sm:$0xf]
  %v92 = vld [vmem:[%s1 + $0x58] sm:$0xf]
  %v93 = vld [vmem:[%s1 + $0x5c] sm:$0xf]
  %v94 = vld [vmem:[%s1 + $0x60] sm:$0xf]
  %v95 = vld [vmem:[%s1 + $0x64] sm:$0xf]
  %v96 = vld [vmem:[%s1 + $0x68] sm:$0xf]
  %v97 = vld [vmem:[%s1 + $0x6c] sm:$0xf]
  %v98 = vld [vmem:[%s1 + $0x70] sm:$0xf]
  %v99 = vld [vmem:[%s1 + $0x74] sm:$0xf]
  %v100 = vld [vmem:[%s1 + $0x78] sm:$0xf]
  %v101 = vld [vmem:[%s1 + $0x7c] sm:$0xf]
  %v118 = vunpack.c.l.b16 %v54
  %v119 = vunpack.c.h.b16 %v54
  %v120 = vunpack.c.l.b16 %v55
  %v121 = vunpack.c.h.b16 %v55
  %v122 = vunpack.c.l.b16 %v56
  %v123 = vunpack.c.h.b16 %v56
  %v124 = vunpack.c.l.b16 %v57
  %v125 = vunpack.c.h.b16 %v57
  %v126 = vunpack.c.l.b16 %v58
  %v127 = vunpack.c.h.b16 %v58
  %v128 = vunpack.c.l.b16 %v59
  %v129 = vunpack.c.h.b16 %v59
  %v130 = vunpack.c.l.b16 %v60
  %v131 = vunpack.c.h.b16 %v60
  %v132 = vunpack.c.l.b16 %v61
  %v133 = vunpack.c.h.b16 %v61
  %v134 = vunpack.c.l.b16 %v62
  %v135 = vunpack.c.h.b16 %v62
  %v136 = vunpack.c.l.b16 %v63
  %v137 = vunpack.c.h.b16 %v63
  %v138 = vunpack.c.l.b16 %v64
  %v139 = vunpack.c.h.b16 %v64
  %v140 = vunpack.c.l.b16 %v65
  %v141 = vunpack.c.h.b16 %v65
  %v142 = vunpack.c.l.b16 %v66
  %v143 = vunpack.c.h.b16 %v66
  %v144 = vunpack.c.l.b16 %v67
  %v145 = vunpack.c.h.b16 %v67
  %v146 = vunpack.c.l.b16 %v68
  %v147 = vunpack.c.h.b16 %v68
  %v148 = vunpack.c.l.b16 %v69
  %v149 = vunpack.c.h.b16 %v69
  %v150 = vpack.c.b16 %v120, %v118
  %v151 = vpack.c.b16 %v121, %v119
  %v152 = vpack.c.b16 %v124, %v122
  %v153 = vpack.c.b16 %v125, %v123
  %v154 = vpack.c.b16 %v128, %v126
  %v155 = vpack.c.b16 %v129, %v127
  %v156 = vpack.c.b16 %v132, %v130
  %v157 = vpack.c.b16 %v133, %v131
  %v158 = vpack.c.b16 %v136, %v134
  %v159 = vpack.c.b16 %v137, %v135
  %v160 = vpack.c.b16 %v140, %v138
  %v161 = vpack.c.b16 %v141, %v139
  %v162 = vpack.c.b16 %v144, %v142
  %v163 = vpack.c.b16 %v145, %v143
  %v164 = vpack.c.b16 %v148, %v146
  %v165 = vpack.c.b16 %v149, %v147
  %v214 = vunpack.c.l.b16 %v70
  %v215 = vunpack.c.l.b16 %v71
  %v216 = vunpack.c.l.b16 %v72
  %v217 = vunpack.c.l.b16 %v73
  %v218 = vunpack.c.l.b16 %v74
  %v219 = vunpack.c.l.b16 %v75
  %v220 = vunpack.c.l.b16 %v76
  %v221 = vunpack.c.l.b16 %v77
  %v222 = vunpack.c.l.b16 %v78
  %v223 = vunpack.c.l.b16 %v79
  %v224 = vunpack.c.l.b16 %v80
  %v225 = vunpack.c.l.b16 %v81
  %v226 = vunpack.c.l.b16 %v82
  %v227 = vunpack.c.l.b16 %v83
  %v228 = vunpack.c.l.b16 %v84
  %v229 = vunpack.c.l.b16 %v85
  %v230 = vunpack.c.l.b16 %v86
  %v231 = vunpack.c.l.b16 %v87
  %v232 = vunpack.c.l.b16 %v88
  %v233 = vunpack.c.l.b16 %v89
  %v234 = vunpack.c.l.b16 %v90
  %v235 = vunpack.c.l.b16 %v91
  %v236 = vunpack.c.l.b16 %v92
  %v237 = vunpack.c.l.b16 %v93
  %v238 = vunpack.c.l.b16 %v94
  %v239 = vunpack.c.l.b16 %v95
  %v240 = vunpack.c.l.b16 %v96
  %v241 = vunpack.c.l.b16 %v97
  %v242 = vunpack.c.l.b16 %v98
  %v243 = vunpack.c.l.b16 %v99
  %v244 = vunpack.c.l.b16 %v100
  %v245 = vunpack.c.l.b16 %v101
  %v246 = vpack.c.b16 %v215, %v214
  %v247 = vpack.c.b16 %v217, %v216
  %v248 = vpack.c.b16 %v219, %v218
  %v249 = vpack.c.b16 %v221, %v220
  %v250 = vpack.c.b16 %v223, %v222
  %v251 = vpack.c.b16 %v225, %v224
  %v252 = vpack.c.b16 %v227, %v226
  %v253 = vpack.c.b16 %v229, %v228
  %v254 = vpack.c.b16 %v231, %v230
  %v255 = vpack.c.b16 %v233, %v232
  %v256 = vpack.c.b16 %v235, %v234
  %v257 = vpack.c.b16 %v237, %v236
  %v258 = vpack.c.b16 %v239, %v238
  %v259 = vpack.c.b16 %v241, %v240
  %v260 = vpack.c.b16 %v243, %v242
  %v261 = vpack.c.b16 %v245, %v244
  %278 = vmatprep.subr.bf16.mxu0 0
  %279 = vmatpush1.bf16.msra.mxu0 %v246
  %280 = vmatprep.subr.bf16.mxu0 0
  %281 = vmatpush1.bf16.msra.mxu0 %v247
  %282 = vmatprep.subr.bf16.mxu0 0
  %283 = vmatpush1.bf16.msra.mxu0 %v248
  %284 = vmatprep.subr.bf16.mxu0 0
  %285 = vmatpush1.bf16.msra.mxu0 %v249
  %286 = vmatprep.subr.bf16.mxu0 0
  %287 = vmatpush1.bf16.msra.mxu0 %v250
  %288 = vmatprep.subr.bf16.mxu0 0
  %289 = vmatpush1.bf16.msra.mxu0 %v251
  %290 = vmatprep.subr.bf16.mxu0 0
  %291 = vmatpush1.bf16.msra.mxu0 %v252
  %292 = vmatprep.subr.bf16.mxu0 0
  %293 = vmatpush1.bf16.msra.mxu0 %v253
  %294 = vmatprep.subr.bf16.mxu0 0
  %295 = vmatpush1.bf16.msra.mxu0 %v254
  %296 = vmatprep.subr.bf16.mxu0 0
  %297 = vmatpush1.bf16.msra.mxu0 %v255
  %298 = vmatprep.subr.bf16.mxu0 0
  %299 = vmatpush1.bf16.msra.mxu0 %v256
  %300 = vmatprep.subr.bf16.mxu0 0
  %301 = vmatpush1.bf16.msra.mxu0 %v257
  %302 = vmatprep.subr.bf16.mxu0 0
  %303 = vmatpush1.bf16.msra.mxu0 %v258
  %304 = vmatprep.subr.bf16.mxu0 0
  %305 = vmatpush1.bf16.msra.mxu0 %v259
  %306 = vmatprep.subr.bf16.mxu0 0
  %307 = vmatpush1.bf16.msra.mxu0 %v260
  %308 = vmatprep.subr.bf16.mxu0 0
  %309 = vmatpush1.bf16.msra.mxu0 %v261
  %310 = vmatprep.mubr.bf16.mxu0 %v151
  %311 = vmatmul.mubr.bf16.gmra.mrb[0].mxu0 %v150
  %v312 = vpop.f32.mrb[0].mxu0
  %v313 = vadd.f32 0.0, %v312
  %v314 = vpop.f32.mrb[0].mxu0
  %v315 = vpop.f32.mrb[0].mxu0
  %v316 = vadd.f32 0.0, %v315
  %v317 = vpop.f32.mrb[0].mxu0
  %318 = vmatprep.mubr.bf16.mxu0 %v153
  %319 = vmatmul.mubr.bf16.gmra.mrb[0].mxu0 %v152
  %v320 = vpop.f32.mrb[0].mxu0
  %v321 = vadd.f32 0.0, %v320
  %v322 = vpop.f32.mrb[0].mxu0
  %v323 = vpop.f32.mrb[0].mxu0
  %v324 = vadd.f32 0.0, %v323
  %v325 = vpop.f32.mrb[0].mxu0
  %326 = vmatprep.mubr.bf16.mxu0 %v155
  %327 = vmatmul.mubr.bf16.gmra.mrb[0].mxu0 %v154
  %v328 = vpop.f32.mrb[0].mxu0
  %v329 = vadd.f32 0.0, %v328
  %v330 = vpop.f32.mrb[0].mxu0
  %v331 = vpop.f32.mrb[0].mxu0
  %v332 = vadd.f32 0.0, %v331
  %v333 = vpop.f32.mrb[0].mxu0
  %334 = vmatprep.mubr.bf16.mxu0 %v157
  %335 = vmatmul.mubr.bf16.gmra.mrb[0].mxu0 %v156
  %v336 = vpop.f32.mrb[0].mxu0
  %v337 = vadd.f32 0.0, %v336
  %v338 = vpop.f32.mrb[0].mxu0
  %v339 = vpop.f32.mrb[0].mxu0
  %v340 = vadd.f32 0.0, %v339
  %v341 = vpop.f32.mrb[0].mxu0
  %342 = vmatprep.mubr.bf16.mxu0 %v159
  %343 = vmatmul.mubr.bf16.gmra.mrb[0].mxu0 %v158
  %v344 = vpop.f32.mrb[0].mxu0
  %v345 = vadd.f32 0.0, %v344
  %v346 = vpop.f32.mrb[0].mxu0
  %v347 = vpop.f32.mrb[0].mxu0
  %v348 = vadd.f32 0.0, %v347
  %v349 = vpop.f32.mrb[0].mxu0
  %350 = vmatprep.mubr.bf16.mxu0 %v161
  %351 = vmatmul.mubr.bf16.gmra.mrb[0].mxu0 %v160
  %v352 = vpop.f32.mrb[0].mxu0
  %v353 = vadd.f32 0.0, %v352
  %v354 = vpop.f32.mrb[0].mxu0
  %v355 = vpop.f32.mrb[0].mxu0
  %v356 = vadd.f32 0.0, %v355
  %v357 = vpop.f32.mrb[0].mxu0
  %358 = vmatprep.mubr.bf16.mxu0 %v163
  %359 = vmatmul.mubr.bf16.gmra.mrb[0].mxu0 %v162
  %v360 = vpop.f32.mrb[0].mxu0
  %v361 = vadd.f32 0.0, %v360
  %v362 = vpop.f32.mrb[0].mxu0
  %v363 = vpop.f32.mrb[0].mxu0
  %v364 = vadd.f32 0.0, %v363
  %v365 = vpop.f32.mrb[0].mxu0
  %366 = vmatprep.mubr.bf16.mxu0 %v165
  %367 = vmatmul.mubr.bf16.gmra.mrb[0].mxu0 %v164
  %v368 = vpop.f32.mrb[0].mxu0
  %v369 = vadd.f32 0.0, %v368
  %v370 = vpop.f32.mrb[0].mxu0
  %v371 = vpop.f32.mrb[0].mxu0
  %v372 = vadd.f32 0.0, %v371
  %v373 = vpop.f32.mrb[0].mxu0
  %374 = vdwg.mxu0
  %v375 = vadd.f32 %v38, %v313
  %v376 = vadd.f32 %v39, %v316
  %v377 = vadd.f32 %v40, %v321
  %v378 = vadd.f32 %v41, %v324
  %v379 = vadd.f32 %v42, %v329
  %v380 = vadd.f32 %v43, %v332
  %v381 = vadd.f32 %v44, %v337
  %v382 = vadd.f32 %v45, %v340
  %v383 = vadd.f32 %v46, %v345
  %v384 = vadd.f32 %v47, %v348
  %v385 = vadd.f32 %v48, %v353
  %v386 = vadd.f32 %v49, %v356
  %v387 = vadd.f32 %v50, %v361
  %v388 = vadd.f32 %v51, %v364
  %v389 = vadd.f32 %v52, %v369
  %v390 = vadd.f32 %v53, %v372
  %391 = vst [vmem:[#allocation2] sm:$0xff] %v375
  %392 = vst [vmem:[#allocation2 + $0x8] sm:$0xff] %v376
  %393 = vst [vmem:[#allocation2 + $0x10] sm:$0xff] %v377
  %394 = vst [vmem:[#allocation2 + $0x18] sm:$0xff] %v378
  %395 = vst [vmem:[#allocation2 + $0x20] sm:$0xff] %v379
  %396 = vst [vmem:[#allocation2 + $0x28] sm:$0xff] %v380
  %397 = vst [vmem:[#allocation2 + $0x30] sm:$0xff] %v381
  %398 = vst [vmem:[#allocation2 + $0x38] sm:$0xff] %v382
  %399 = vst [vmem:[#allocation2 + $0x40] sm:$0xff] %v383
  %400 = vst [vmem:[#allocation2 + $0x48] sm:$0xff] %v384
  %401 = vst [vmem:[#allocation2 + $0x50] sm:$0xff] %v385
  %402 = vst [vmem:[#allocation2 + $0x58] sm:$0xff] %v386
  %403 = vst [vmem:[#allocation2 + $0x60] sm:$0xff] %v387
  %404 = vst [vmem:[#allocation2 + $0x68] sm:$0xff] %v388
  %405 = vst [vmem:[#allocation2 + $0x70] sm:$0xff] %v389
  %406 = vst [vmem:[#allocation2 + $0x78] sm:$0xff] %v390
  // Predicated region
  $region22: #{orangenet18_forward.30} parent=0 // pred_check
    %p407 = pneg %p18
  $region23: #{orangenet18_forward.30} parent=0 // pred_check_branch
    %409 = sbr.rel (%p407) target = $region25
  $region24: #{orangenet18_forward.30} parent=0 // pred_region
    %v410 = vld [vmem:[#allocation2] sm:$0xff]
    %v411 = vld [vmem:[#allocation2 + $0x8] sm:$0xff]
    %v412 = vld [vmem:[#allocation2 + $0x10] sm:$0xff]
    %v413 = vld [vmem:[#allocation2 + $0x18] sm:$0xff]
    %v414 = vld [vmem:[#allocation2 + $0x20] sm:$0xff]
    %v415 = vld [vmem:[#allocation2 + $0x28] sm:$0xff]
    %v416 = vld [vmem:[#allocation2 + $0x30] sm:$0xff]
    %v417 = vld [vmem:[#allocation2 + $0x38] sm:$0xff]
    %v418 = vld [vmem:[#allocation2 + $0x40] sm:$0xff]
    %v419 = vld [vmem:[#allocation2 + $0x48] sm:$0xff]
    %v420 = vld [vmem:[#allocation2 + $0x50] sm:$0xff]
    %v421 = vld [vmem:[#allocation2 + $0x58] sm:$0xff]
    %v422 = vld [vmem:[#allocation2 + $0x60] sm:$0xff]
    %v423 = vld [vmem:[#allocation2 + $0x68] sm:$0xff]
    %v424 = vld [vmem:[#allocation2 + $0x70] sm:$0xff]
    %v425 = vld [vmem:[#allocation2 + $0x78] sm:$0xff]
    %v426 = vld [vmem:[%s2] sm:$0x1]
    %v428 = vlaneseq
    %v429 = vshrl.u32 %v428, 7
    %v430 = vsub.s32 0, %v429
    %v431 = vrot.slane %v426, %v430
    %v433 = vadd.f32 %v410, %v431
    %v434 = vadd.f32 %v411, %v431
    %v435 = vadd.f32 %v412, %v431
    %v436 = vadd.f32 %v413, %v431
    %v437 = vadd.f32 %v414, %v431
    %v438 = vadd.f32 %v415, %v431
    %v439 = vadd.f32 %v416, %v431
    %v440 = vadd.f32 %v417, %v431
    %v441 = vadd.f32 %v418, %v431
    %v442 = vadd.f32 %v419, %v431
    %v443 = vadd.f32 %v420, %v431
    %v444 = vadd.f32 %v421, %v431
    %v445 = vadd.f32 %v422, %v431
    %v446 = vadd.f32 %v423, %v431
    %v447 = vadd.f32 %v424, %v431
    %v448 = vadd.f32 %v425, %v431
    %v449 = vld [vmem:[%s3] sm:$0xf]
    %v450 = vld [vmem:[%s3 + $0x4] sm:$0xf]
    %v451 = vld [vmem:[%s3 + $0x8] sm:$0xf]
    %v452 = vld [vmem:[%s3 + $0xc] sm:$0xf]
    %v453 = vld [vmem:[%s3 + $0x10] sm:$0xf]
    %v454 = vld [vmem:[%s3 + $0x14] sm:$0xf]
    %v455 = vld [vmem:[%s3 + $0x18] sm:$0xf]
    %v456 = vld [vmem:[%s3 + $0x1c] sm:$0xf]
    %v457 = vld [vmem:[%s3 + $0x20] sm:$0xf]
    %v458 = vld [vmem:[%s3 + $0x24] sm:$0xf]
    %v459 = vld [vmem:[%s3 + $0x28] sm:$0xf]
    %v460 = vld [vmem:[%s3 + $0x2c] sm:$0xf]
    %v461 = vld [vmem:[%s3 + $0x30] sm:$0xf]
    %v462 = vld [vmem:[%s3 + $0x34] sm:$0xf]
    %v463 = vld [vmem:[%s3 + $0x38] sm:$0xf]
    %v464 = vld [vmem:[%s3 + $0x3c] sm:$0xf]
    %v465 = vunpack.c.l.bf16 %v449
    %v466 = vunpack.c.l.bf16 %v450
    %v467 = vunpack.c.l.bf16 %v451
    %v468 = vunpack.c.l.bf16 %v452
    %v469 = vunpack.c.l.bf16 %v453
    %v470 = vunpack.c.l.bf16 %v454
    %v471 = vunpack.c.l.bf16 %v455
    %v472 = vunpack.c.l.bf16 %v456
    %v473 = vunpack.c.l.bf16 %v457
    %v474 = vunpack.c.l.bf16 %v458
    %v475 = vunpack.c.l.bf16 %v459
    %v476 = vunpack.c.l.bf16 %v460
    %v477 = vunpack.c.l.bf16 %v461
    %v478 = vunpack.c.l.bf16 %v462
    %v479 = vunpack.c.l.bf16 %v463
    %v480 = vunpack.c.l.bf16 %v464
    %v481 = vadd.f32 %v433, %v465
    %v482 = vadd.f32 %v434, %v466
    %v483 = vadd.f32 %v435, %v467
    %v484 = vadd.f32 %v436, %v468
    %v485 = vadd.f32 %v437, %v469
    %v486 = vadd.f32 %v438, %v470
    %v487 = vadd.f32 %v439, %v471
    %v488 = vadd.f32 %v440, %v472
    %v489 = vadd.f32 %v441, %v473
    %v490 = vadd.f32 %v442, %v474
    %v491 = vadd.f32 %v443, %v475
    %v492 = vadd.f32 %v444, %v476
    %v493 = vadd.f32 %v445, %v477
    %v494 = vadd.f32 %v446, %v478
    %v495 = vadd.f32 %v447, %v479
    %v496 = vadd.f32 %v448, %v480
    %v497 = vmax.f32 %v481, 0.0
    %v498 = vmax.f32 %v482, 0.0
    %v499 = vmax.f32 %v483, 0.0
    %v500 = vmax.f32 %v484, 0.0
    %v501 = vmax.f32 %v485, 0.0
    %v502 = vmax.f32 %v486, 0.0
    %v503 = vmax.f32 %v487, 0.0
    %v504 = vmax.f32 %v488, 0.0
    %v505 = vmax.f32 %v489, 0.0
    %v506 = vmax.f32 %v490, 0.0
    %v507 = vmax.f32 %v491, 0.0
    %v508 = vmax.f32 %v492, 0.0
    %v509 = vmax.f32 %v493, 0.0
    %v510 = vmax.f32 %v494, 0.0
    %v511 = vmax.f32 %v495, 0.0
    %v512 = vmax.f32 %v496, 0.0
    %v513 = vpack.c.bf16 %v498, %v497
    %v514 = vpack.c.bf16 %v500, %v499
    %v515 = vpack.c.bf16 %v502, %v501
    %v516 = vpack.c.bf16 %v504, %v503
    %v517 = vpack.c.bf16 %v506, %v505
    %v518 = vpack.c.bf16 %v508, %v507
    %v519 = vpack.c.bf16 %v510, %v509
    %v520 = vpack.c.bf16 %v512, %v511
    %v529 = vunpack.c.l.b16 %v513
    %v530 = vunpack.c.h.b16 %v513
    %v531 = vunpack.c.l.b16 %v514
    %v532 = vunpack.c.h.b16 %v514
    %v533 = vunpack.c.l.b16 %v515
    %v534 = vunpack.c.h.b16 %v515
    %v535 = vunpack.c.l.b16 %v516
    %v536 = vunpack.c.h.b16 %v516
    %v537 = vunpack.c.l.b16 %v517
    %v538 = vunpack.c.h.b16 %v517
    %v539 = vunpack.c.l.b16 %v518
    %v540 = vunpack.c.h.b16 %v518
    %v541 = vunpack.c.l.b16 %v519
    %v542 = vunpack.c.h.b16 %v519
    %v543 = vunpack.c.l.b16 %v520
    %v544 = vunpack.c.h.b16 %v520
    %v545 = vpack.c.b16 %v529, %v529
    %v546 = vpack.c.b16 %v530, %v530
    %v547 = vpack.c.b16 %v531, %v531
    %v548 = vpack.c.b16 %v532, %v532
    %v549 = vpack.c.b16 %v533, %v533
    %v550 = vpack.c.b16 %v534, %v534
    %v551 = vpack.c.b16 %v535, %v535
    %v552 = vpack.c.b16 %v536, %v536
    %v553 = vpack.c.b16 %v537, %v537
    %v554 = vpack.c.b16 %v538, %v538
    %v555 = vpack.c.b16 %v539, %v539
    %v556 = vpack.c.b16 %v540, %v540
    %v557 = vpack.c.b16 %v541, %v541
    %v558 = vpack.c.b16 %v542, %v542
    %v559 = vpack.c.b16 %v543, %v543
    %v560 = vpack.c.b16 %v544, %v544
    %577 = vst [vmem:[%s4] sm:$0xf] %v545
    %578 = vst [vmem:[%s4 + $0x4] sm:$0xf] %v546
    %579 = vst [vmem:[%s4 + $0x8] sm:$0xf] %v547
    %580 = vst [vmem:[%s4 + $0xc] sm:$0xf] %v548
    %581 = vst [vmem:[%s4 + $0x10] sm:$0xf] %v549
    %582 = vst [vmem:[%s4 + $0x14] sm:$0xf] %v550
    %583 = vst [vmem:[%s4 + $0x18] sm:$0xf] %v551
    %584 = vst [vmem:[%s4 + $0x1c] sm:$0xf] %v552
    %585 = vst [vmem:[%s4 + $0x20] sm:$0xf] %v553
    %586 = vst [vmem:[%s4 + $0x24] sm:$0xf] %v554
    %587 = vst [vmem:[%s4 + $0x28] sm:$0xf] %v555
    %588 = vst [vmem:[%s4 + $0x2c] sm:$0xf] %v556
    %589 = vst [vmem:[%s4 + $0x30] sm:$0xf] %v557
    %590 = vst [vmem:[%s4 + $0x34] sm:$0xf] %v558
    %591 = vst [vmem:[%s4 + $0x38] sm:$0xf] %v559
    %592 = vst [vmem:[%s4 + $0x3c] sm:$0xf] %v560
  $region25: #{orangenet18_forward.30} parent=0 // pred_fallthru
    _
  // Predicated region
  $region26: #{orangenet18_forward.30} parent=0 // pred_check
    _
  $region27: #{orangenet18_forward.30} parent=0 // pred_check_branch
    %594 = sbr.rel (0) target = $region29
  $region28: #{orangenet18_forward.30} parent=0 // pred_region
    _
  $region29: #{orangenet18_forward.30} parent=0 // pred_fallthru
    _
  // Predicated region
  $region30: #{orangenet18_forward.30} parent=0 // pred_check
    _
  $region31: #{orangenet18_forward.30} parent=0 // pred_check_branch
    %596 = sbr.rel (0) target = $region33
  $region32: #{orangenet18_forward.30} parent=0 // pred_region
    _
  $region33: #{orangenet18_forward.30} parent=0 // pred_fallthru
    _

// kernel: orangenet18_forward.29
$region0: #{orangenet18_forward.29}
  #allocation0 [shape = 'u32[]', space=smem, size = 0x4, offset = 0x4, fixed_abs, tag = 'smem constant byte address 0x4 - core index']
  #allocation1 [shape = 'u32[144,128]{1,0:T(1,128)}', space=vmem, size = 0x12000, scoped, tag = 'internal scratch']
  #allocation2 [shape = 'f32[128,128]{1,0:T(8,128)}', space=vmem, size = 0x10000, scoped, tag = 'scratch operand']
  %s0 = inlined_call_operand.vmem [shape: bf16[128,128], index: 0, kind: input, shape index: {}]
  %s1 = inlined_call_operand.vmem [shape: bf16[128,128], index: 1, kind: input, shape index: {}]
  %s2 = inlined_call_operand.vmem [shape: f32[1,128], index: 2, kind: input, shape index: {}]
  %s3 = inlined_call_operand.vmem [shape: bf16[128,128], index: 3, kind: output, shape index: {}]
  %s4 = sld [smem:[#allocation0]]
  $region30: #{orangenet18_forward.29} parent=0
    _
  %s6 = ssub.s32 1, %s4
  %s7 = scalar_select 0, %s6, %s4
  // Predicated region
  $region2: #{orangenet18_forward.29} parent=0 // pred_check
    _
  $region3: #{orangenet18_forward.29} parent=0 // pred_check_branch
    %9 = sbr.rel (0) target = $region5
  $region4: #{orangenet18_forward.29} parent=0 // pred_region
    _
  $region5: #{orangenet18_forward.29} parent=0 // pred_fallthru
    _
  // Predicated region
  $region6: #{orangenet18_forward.29} parent=0 // pred_check
    _
  $region7: #{orangenet18_forward.29} parent=0 // pred_check_branch
    %11 = sbr.rel (0) target = $region9
  $region8: #{orangenet18_forward.29} parent=0 // pred_region
    _
  $region9: #{orangenet18_forward.29} parent=0 // pred_fallthru
    _
  // Predicated region
  $region10: #{orangenet18_forward.29} parent=0 // pred_check
    _
  $region11: #{orangenet18_forward.29} parent=0 // pred_check_branch
    %13 = sbr.rel (0) target = $region13
  $region12: #{orangenet18_forward.29} parent=0 // pred_region
    _
  $region13: #{orangenet18_forward.29} parent=0 // pred_fallthru
    _
  %p15 = scmp.eq.s32.totalorder 0, 0
  // Predicated region
  $region14: #{orangenet18_forward.29} parent=0 // pred_check
    %p16 = pneg %p15
  $region15: #{orangenet18_forward.29} parent=0 // pred_check_branch
    %18 = sbr.rel (%p16) target = $region17
  $region16: #{orangenet18_forward.29} parent=0 // pred_region
    %19 = vst [vmem:[#allocation2] sm:$0xff] 0.0
    %20 = vst [vmem:[#allocation2 + $0x8] sm:$0xff] 0.0
    %21 = vst [vmem:[#allocation2 + $0x10] sm:$0xff] 0.0
    %22 = vst [vmem:[#allocation2 + $0x18] sm:$0xff] 0.0
    %23 = vst [vmem:[#allocation2 + $0x20] sm:$0xff] 0.0
    %24 = vst [vmem:[#allocation2 + $0x28] sm:$0xff] 0.0
    %25 = vst [vmem:[#allocation2 + $0x30] sm:$0xff] 0.0
    %26 = vst [vmem:[#allocation2 + $0x38] sm:$0xff] 0.0
    %27 = vst [vmem:[#allocation2 + $0x40] sm:$0xff] 0.0
    %28 = vst [vmem:[#allocation2 + $0x48] sm:$0xff] 0.0
    %29 = vst [vmem:[#allocation2 + $0x50] sm:$0xff] 0.0
    %30 = vst [vmem:[#allocation2 + $0x58] sm:$0xff] 0.0
    %31 = vst [vmem:[#allocation2 + $0x60] sm:$0xff] 0.0
    %32 = vst [vmem:[#allocation2 + $0x68] sm:$0xff] 0.0
    %33 = vst [vmem:[#allocation2 + $0x70] sm:$0xff] 0.0
    %34 = vst [vmem:[#allocation2 + $0x78] sm:$0xff] 0.0
  $region17: #{orangenet18_forward.29} parent=0 // pred_fallthru
    _
  %v35 = vld [vmem:[#allocation2] sm:$0xff]
  %v36 = vld [vmem:[#allocation2 + $0x8] sm:$0xff]
  %v37 = vld [vmem:[#allocation2 + $0x10] sm:$0xff]
  %v38 = vld [vmem:[#allocation2 + $0x18] sm:$0xff]
  %v39 = vld [vmem:[#allocation2 + $0x20] sm:$0xff]
  %v40 = vld [vmem:[#allocation2 + $0x28] sm:$0xff]
  %v41 = vld [vmem:[#allocation2 + $0x30] sm:$0xff]
  %v42 = vld [vmem:[#allocation2 + $0x38] sm:$0xff]
  %v43 = vld [vmem:[#allocation2 + $0x40] sm:$0xff]
  %v44 = vld [vmem:[#allocation2 + $0x48] sm:$0xff]
  %v45 = vld [vmem:[#allocation2 + $0x50] sm:$0xff]
  %v46 = vld [vmem:[#allocation2 + $0x58] sm:$0xff]
  %v47 = vld [vmem:[#allocation2 + $0x60] sm:$0xff]
  %v48 = vld [vmem:[#allocation2 + $0x68] sm:$0xff]
  %v49 = vld [vmem:[#allocation2 + $0x70] sm:$0xff]
  %v50 = vld [vmem:[#allocation2 + $0x78] sm:$0xff]
  %v51 = vld [vmem:[%s0] sm:$0xf]
  %v52 = vld [vmem:[%s0 + $0x4] sm:$0xf]
  %v53 = vld [vmem:[%s0 + $0x8] sm:$0xf]
  %v54 = vld [vmem:[%s0 + $0xc] sm:$0xf]
  %v55 = vld [vmem:[%s0 + $0x10] sm:$0xf]
  %v56 = vld [vmem:[%s0 + $0x14] sm:$0xf]
  %v57 = vld [vmem:[%s0 + $0x18] sm:$0xf]
  %v58 = vld [vmem:[%s0 + $0x1c] sm:$0xf]
  %v59 = vld [vmem:[%s0 + $0x20] sm:$0xf]
  %v60 = vld [vmem:[%s0 + $0x24] sm:$0xf]
  %v61 = vld [vmem:[%s0 + $0x28] sm:$0xf]
  %v62 = vld [vmem:[%s0 + $0x2c] sm:$0xf]
  %v63 = vld [vmem:[%s0 + $0x30] sm:$0xf]
  %v64 = vld [vmem:[%s0 + $0x34] sm:$0xf]
  %v65 = vld [vmem:[%s0 + $0x38] sm:$0xf]
  %v66 = vld [vmem:[%s0 + $0x3c] sm:$0xf]
  %v67 = vld [vmem:[%s1] sm:$0xf]
  %v68 = vld [vmem:[%s1 + $0x4] sm:$0xf]
  %v69 = vld [vmem:[%s1 + $0x8] sm:$0xf]
  %v70 = vld [vmem:[%s1 + $0xc] sm:$0xf]
  %v71 = vld [vmem:[%s1 + $0x10] sm:$0xf]
  %v72 = vld [vmem:[%s1 + $0x14] sm:$0xf]
  %v73 = vld [vmem:[%s1 + $0x18] sm:$0xf]
  %v74 = vld [vmem:[%s1 + $0x1c] sm:$0xf]
  %v75 = vld [vmem:[%s1 + $0x20] sm:$0xf]
  %v76 = vld [vmem:[%s1 + $0x24] sm:$0xf]
  %v77 = vld [vmem:[%s1 + $0x28] sm:$0xf]
  %v78 = vld [vmem:[%s1 + $0x2c] sm:$0xf]
  %v79 = vld [vmem:[%s1 + $0x30] sm:$0xf]
  %v80 = vld [vmem:[%s1 + $0x34] sm:$0xf]
  %v81 = vld [vmem:[%s1 + $0x38] sm:$0xf]
  %v82 = vld [vmem:[%s1 + $0x3c] sm:$0xf]
  %v99 = vunpack.c.l.b16 %v51
  %v100 = vunpack.c.l.b16 %v52
  %v101 = vunpack.c.l.b16 %v53
  %v102 = vunpack.c.l.b16 %v54
  %v103 = vunpack.c.l.b16 %v55
  %v104 = vunpack.c.l.b16 %v56
  %v105 = vunpack.c.l.b16 %v57
  %v106 = vunpack.c.l.b16 %v58
  %v107 = vunpack.c.l.b16 %v59
  %v108 = vunpack.c.l.b16 %v60
  %v109 = vunpack.c.l.b16 %v61
  %v110 = vunpack.c.l.b16 %v62
  %v111 = vunpack.c.l.b16 %v63
  %v112 = vunpack.c.l.b16 %v64
  %v113 = vunpack.c.l.b16 %v65
  %v114 = vunpack.c.l.b16 %v66
  %v115 = vpack.c.b16 %v100, %v99
  %v116 = vpack.c.b16 %v102, %v101
  %v117 = vpack.c.b16 %v104, %v103
  %v118 = vpack.c.b16 %v106, %v105
  %v119 = vpack.c.b16 %v108, %v107
  %v120 = vpack.c.b16 %v110, %v109
  %v121 = vpack.c.b16 %v112, %v111
  %v122 = vpack.c.b16 %v114, %v113
  %v147 = vunpack.c.l.b16 %v67
  %v148 = vunpack.c.l.b16 %v68
  %v149 = vunpack.c.l.b16 %v69
  %v150 = vunpack.c.l.b16 %v70
  %v151 = vunpack.c.l.b16 %v71
  %v152 = vunpack.c.l.b16 %v72
  %v153 = vunpack.c.l.b16 %v73
  %v154 = vunpack.c.l.b16 %v74
  %v155 = vunpack.c.l.b16 %v75
  %v156 = vunpack.c.l.b16 %v76
  %v157 = vunpack.c.l.b16 %v77
  %v158 = vunpack.c.l.b16 %v78
  %v159 = vunpack.c.l.b16 %v79
  %v160 = vunpack.c.l.b16 %v80
  %v161 = vunpack.c.l.b16 %v81
  %v162 = vunpack.c.l.b16 %v82
  %v163 = vpack.c.b16 %v148, %v147
  %v164 = vpack.c.b16 %v150, %v149
  %v165 = vpack.c.b16 %v152, %v151
  %v166 = vpack.c.b16 %v154, %v153
  %v167 = vpack.c.b16 %v156, %v155
  %v168 = vpack.c.b16 %v158, %v157
  %v169 = vpack.c.b16 %v160, %v159
  %v170 = vpack.c.b16 %v162, %v161
  %179 = vmatprep.subr.bf16.mxu0 0
  %180 = vmatpush1.bf16.msra.mxu0 %v163
  %181 = vmatprep.subr.bf16.mxu0 0
  %182 = vmatpush1.bf16.msra.mxu0 %v164
  %183 = vmatprep.subr.bf16.mxu0 0
  %184 = vmatpush1.bf16.msra.mxu0 %v165
  %185 = vmatprep.subr.bf16.mxu0 0
  %186 = vmatpush1.bf16.msra.mxu0 %v166
  %187 = vmatprep.subr.bf16.mxu0 0
  %188 = vmatpush1.bf16.msra.mxu0 %v167
  %189 = vmatprep.subr.bf16.mxu0 0
  %190 = vmatpush1.bf16.msra.mxu0 %v168
  %191 = vmatprep.subr.bf16.mxu0 0
  %192 = vmatpush1.bf16.msra.mxu0 %v169
  %193 = vmatprep.subr.bf16.mxu0 0
  %194 = vmatpush1.bf16.msra.mxu0 %v170
  %195 = vmatprep.subr.bf16.mxu0 0
  %196 = vmatpush1.bf16.msra.mxu0 0
  %197 = vmatprep.subr.bf16.mxu0 0
  %198 = vmatpush1.bf16.msra.mxu0 0
  %199 = vmatprep.subr.bf16.mxu0 0
  %200 = vmatpush1.bf16.msra.mxu0 0
  %201 = vmatprep.subr.bf16.mxu0 0
  %202 = vmatpush1.bf16.msra.mxu0 0
  %203 = vmatprep.subr.bf16.mxu0 0
  %204 = vmatpush1.bf16.msra.mxu0 0
  %205 = vmatprep.subr.bf16.mxu0 0
  %206 = vmatpush1.bf16.msra.mxu0 0
  %207 = vmatprep.subr.bf16.mxu0 0
  %208 = vmatpush1.bf16.msra.mxu0 0
  %209 = vmatprep.subr.bf16.mxu0 0
  %210 = vmatpush1.bf16.msra.mxu0 0
  %211 = vmatprep.mubr.bf16.mxu0 0
  %212 = vmatmul.mubr.bf16.gmra.mrb[0].mxu0 %v115
  %v213 = vpop.f32.mrb[0].mxu0
  %v214 = vadd.f32 0.0, %v213
  %v215 = vpop.f32.mrb[0].mxu0
  %v216 = vpop.f32.mrb[0].mxu0
  %v217 = vadd.f32 0.0, %v216
  %v218 = vpop.f32.mrb[0].mxu0
  %219 = vmatprep.mubr.bf16.mxu0 0
  %220 = vmatmul.mubr.bf16.gmra.mrb[0].mxu0 %v116
  %v221 = vpop.f32.mrb[0].mxu0
  %v222 = vadd.f32 0.0, %v221
  %v223 = vpop.f32.mrb[0].mxu0
  %v224 = vpop.f32.mrb[0].mxu0
  %v225 = vadd.f32 0.0, %v224
  %v226 = vpop.f32.mrb[0].mxu0
  %227 = vmatprep.mubr.bf16.mxu0 0
  %228 = vmatmul.mubr.bf16.gmra.mrb[0].mxu0 %v117
  %v229 = vpop.f32.mrb[0].mxu0
  %v230 = vadd.f32 0.0, %v229
  %v231 = vpop.f32.mrb[0].mxu0
  %v232 = vpop.f32.mrb[0].mxu0
  %v233 = vadd.f32 0.0, %v232
  %v234 = vpop.f32.mrb[0].mxu0
  %235 = vmatprep.mubr.bf16.mxu0 0
  %236 = vmatmul.mubr.bf16.gmra.mrb[0].mxu0 %v118
  %v237 = vpop.f32.mrb[0].mxu0
  %v238 = vadd.f32 0.0, %v237
  %v239 = vpop.f32.mrb[0].mxu0
  %v240 = vpop.f32.mrb[0].mxu0
  %v241 = vadd.f32 0.0, %v240
  %v242 = vpop.f32.mrb[0].mxu0
  %243 = vmatprep.mubr.bf16.mxu0 0
  %244 = vmatmul.mubr.bf16.gmra.mrb[0].mxu0 %v119
  %v245 = vpop.f32.mrb[0].mxu0
  %v246 = vadd.f32 0.0, %v245
  %v247 = vpop.f32.mrb[0].mxu0
  %v248 = vpop.f32.mrb[0].mxu0
  %v249 = vadd.f32 0.0, %v248
  %v250 = vpop.f32.mrb[0].mxu0
  %251 = vmatprep.mubr.bf16.mxu0 0
  %252 = vmatmul.mubr.bf16.gmra.mrb[0].mxu0 %v120
  %v253 = vpop.f32.mrb[0].mxu0
  %v254 = vadd.f32 0.0, %v253
  %v255 = vpop.f32.mrb[0].mxu0
  %v256 = vpop.f32.mrb[0].mxu0
  %v257 = vadd.f32 0.0, %v256
  %v258 = vpop.f32.mrb[0].mxu0
  %259 = vmatprep.mubr.bf16.mxu0 0
  %260 = vmatmul.mubr.bf16.gmra.mrb[0].mxu0 %v121
  %v261 = vpop.f32.mrb[0].mxu0
  %v262 = vadd.f32 0.0, %v261
  %v263 = vpop.f32.mrb[0].mxu0
  %v264 = vpop.f32.mrb[0].mxu0
  %v265 = vadd.f32 0.0, %v264
  %v266 = vpop.f32.mrb[0].mxu0
  %267 = vmatprep.mubr.bf16.mxu0 0
  %268 = vmatmul.mubr.bf16.gmra.mrb[0].mxu0 %v122
  %v269 = vpop.f32.mrb[0].mxu0
  %v270 = vadd.f32 0.0, %v269
  %v271 = vpop.f32.mrb[0].mxu0
  %v272 = vpop.f32.mrb[0].mxu0
  %v273 = vadd.f32 0.0, %v272
  %v274 = vpop.f32.mrb[0].mxu0
  %275 = vdwg.mxu0
  %v276 = vadd.f32 %v35, %v214
  %v277 = vadd.f32 %v36, %v217
  %v278 = vadd.f32 %v37, %v222
  %v279 = vadd.f32 %v38, %v225
  %v280 = vadd.f32 %v39, %v230
  %v281 = vadd.f32 %v40, %v233
  %v282 = vadd.f32 %v41, %v238
  %v283 = vadd.f32 %v42, %v241
  %v284 = vadd.f32 %v43, %v246
  %v285 = vadd.f32 %v44, %v249
  %v286 = vadd.f32 %v45, %v254
  %v287 = vadd.f32 %v46, %v257
  %v288 = vadd.f32 %v47, %v262
  %v289 = vadd.f32 %v48, %v265
  %v290 = vadd.f32 %v49, %v270
  %v291 = vadd.f32 %v50, %v273
  %292 = vst [vmem:[#allocation2] sm:$0xff] %v276
  %293 = vst [vmem:[#allocation2 + $0x8] sm:$0xff] %v277
  %294 = vst [vmem:[#allocation2 + $0x10] sm:$0xff] %v278
  %295 = vst [vmem:[#allocation2 + $0x18] sm:$0xff] %v279
  %296 = vst [vmem:[#allocation2 + $0x20] sm:$0xff] %v280
  %297 = vst [vmem:[#allocation2 + $0x28] sm:$0xff] %v281
  %298 = vst [vmem:[#allocation2 + $0x30] sm:$0xff] %v282
  %299 = vst [vmem:[#allocation2 + $0x38] sm:$0xff] %v283
  %300 = vst [vmem:[#allocation2 + $0x40] sm:$0xff] %v284
  %301 = vst [vmem:[#allocation2 + $0x48] sm:$0xff] %v285
  %302 = vst [vmem:[#allocation2 + $0x50] sm:$0xff] %v286
  %303 = vst [vmem:[#allocation2 + $0x58] sm:$0xff] %v287
  %304 = vst [vmem:[#allocation2 + $0x60] sm:$0xff] %v288
  %305 = vst [vmem:[#allocation2 + $0x68] sm:$0xff] %v289
  %306 = vst [vmem:[#allocation2 + $0x70] sm:$0xff] %v290
  %307 = vst [vmem:[#allocation2 + $0x78] sm:$0xff] %v291
  // Predicated region
  $region18: #{orangenet18_forward.29} parent=0 // pred_check
    %p308 = pneg %p15
  $region19: #{orangenet18_forward.29} parent=0 // pred_check_branch
    %310 = sbr.rel (%p308) target = $region21
  $region20: #{orangenet18_forward.29} parent=0 // pred_region
    %v311 = vld [vmem:[#allocation2] sm:$0xff]
    %v312 = vld [vmem:[#allocation2 + $0x8] sm:$0xff]
    %v313 = vld [vmem:[#allocation2 + $0x10] sm:$0xff]
    %v314 = vld [vmem:[#allocation2 + $0x18] sm:$0xff]
    %v315 = vld [vmem:[#allocation2 + $0x20] sm:$0xff]
    %v316 = vld [vmem:[#allocation2 + $0x28] sm:$0xff]
    %v317 = vld [vmem:[#allocation2 + $0x30] sm:$0xff]
    %v318 = vld [vmem:[#allocation2 + $0x38] sm:$0xff]
    %v319 = vld [vmem:[#allocation2 + $0x40] sm:$0xff]
    %v320 = vld [vmem:[#allocation2 + $0x48] sm:$0xff]
    %v321 = vld [vmem:[#allocation2 + $0x50] sm:$0xff]
    %v322 = vld [vmem:[#allocation2 + $0x58] sm:$0xff]
    %v323 = vld [vmem:[#allocation2 + $0x60] sm:$0xff]
    %v324 = vld [vmem:[#allocation2 + $0x68] sm:$0xff]
    %v325 = vld [vmem:[#allocation2 + $0x70] sm:$0xff]
    %v326 = vld [vmem:[#allocation2 + $0x78] sm:$0xff]
    %v327 = vld [vmem:[%s2] sm:$0x1]
    %v329 = vlaneseq
    %v330 = vshrl.u32 %v329, 7
    %v331 = vsub.s32 0, %v330
    %v332 = vrot.slane %v327, %v331
    %v334 = vadd.f32 %v311, %v332
    %v335 = vadd.f32 %v312, %v332
    %v336 = vadd.f32 %v313, %v332
    %v337 = vadd.f32 %v314, %v332
    %v338 = vadd.f32 %v315, %v332
    %v339 = vadd.f32 %v316, %v332
    %v340 = vadd.f32 %v317, %v332
    %v341 = vadd.f32 %v318, %v332
    %v342 = vadd.f32 %v319, %v332
    %v343 = vadd.f32 %v320, %v332
    %v344 = vadd.f32 %v321, %v332
    %v345 = vadd.f32 %v322, %v332
    %v346 = vadd.f32 %v323, %v332
    %v347 = vadd.f32 %v324, %v332
    %v348 = vadd.f32 %v325, %v332
    %v349 = vadd.f32 %v326, %v332
    %v350 = vpack.c.bf16 %v335, %v334
    %v351 = vpack.c.bf16 %v337, %v336
    %v352 = vpack.c.bf16 %v339, %v338
    %v353 = vpack.c.bf16 %v341, %v340
    %v354 = vpack.c.bf16 %v343, %v342
    %v355 = vpack.c.bf16 %v345, %v344
    %v356 = vpack.c.bf16 %v347, %v346
    %v357 = vpack.c.bf16 %v349, %v348
    %v366 = vunpack.c.l.b16 %v350
    %v367 = vunpack.c.h.b16 %v350
    %v368 = vunpack.c.l.b16 %v351
    %v369 = vunpack.c.h.b16 %v351
    %v370 = vunpack.c.l.b16 %v352
    %v371 = vunpack.c.h.b16 %v352
    %v372 = vunpack.c.l.b16 %v353
    %v373 = vunpack.c.h.b16 %v353
    %v374 = vunpack.c.l.b16 %v354
    %v375 = vunpack.c.h.b16 %v354
    %v376 = vunpack.c.l.b16 %v355
    %v377 = vunpack.c.h.b16 %v355
    %v378 = vunpack.c.l.b16 %v356
    %v379 = vunpack.c.h.b16 %v356
    %v380 = vunpack.c.l.b16 %v357
    %v381 = vunpack.c.h.b16 %v357
    %v382 = vpack.c.b16 %v366, %v366
    %v383 = vpack.c.b16 %v367, %v367
    %v384 = vpack.c.b16 %v368, %v368
    %v385 = vpack.c.b16 %v369, %v369
    %v386 = vpack.c.b16 %v370, %v370
    %v387 = vpack.c.b16 %v371, %v371
    %v388 = vpack.c.b16 %v372, %v372
    %v389 = vpack.c.b16 %v373, %v373
    %v390 = vpack.c.b16 %v374, %v374
    %v391 = vpack.c.b16 %v375, %v375
    %v392 = vpack.c.b16 %v376, %v376
    %v393 = vpack.c.b16 %v377, %v377
    %v394 = vpack.c.b16 %v378, %v378
    %v395 = vpack.c.b16 %v379, %v379
    %v396 = vpack.c.b16 %v380, %v380
    %v397 = vpack.c.b16 %v381, %v381
    %414 = vst [vmem:[%s3] sm:$0xf] %v382
    %415 = vst [vmem:[%s3 + $0x4] sm:$0xf] %v383
    %416 = vst [vmem:[%s3 + $0x8] sm:$0xf] %v384
    %417 = vst [vmem:[%s3 + $0xc] sm:$0xf] %v385
    %418 = vst [vmem:[%s3 + $0x10] sm:$0xf] %v386
    %419 = vst [vmem:[%s3 + $0x14] sm:$0xf] %v387
    %420 = vst [vmem:[%s3 + $0x18] sm:$0xf] %v388
    %421 = vst [vmem:[%s3 + $0x1c] sm:$0xf] %v389
    %422 = vst [vmem:[%s3 + $0x20] sm:$0xf] %v390
    %423 = vst [vmem:[%s3 + $0x24] sm:$0xf] %v391
    %424 = vst [vmem:[%s3 + $0x28] sm:$0xf] %v392
    %425 = vst [vmem:[%s3 + $0x2c] sm:$0xf] %v393
    %426 = vst [vmem:[%s3 + $0x30] sm:$0xf] %v394
    %427 = vst [vmem:[%s3 + $0x34] sm:$0xf] %v395
    %428 = vst [vmem:[%s3 + $0x38] sm:$0xf] %v396
    %429 = vst [vmem:[%s3 + $0x3c] sm:$0xf] %v397
  $region21: #{orangenet18_forward.29} parent=0 // pred_fallthru
    _
  // Predicated region
  $region22: #{orangenet18_forward.29} parent=0 // pred_check
    _
  $region23: #{orangenet18_forward.29} parent=0 // pred_check_branch
    %431 = sbr.rel (0) target = $region25
  $region24: #{orangenet18_forward.29} parent=0 // pred_region
    _
  $region25: #{orangenet18_forward.29} parent=0 // pred_fallthru
    _
  // Predicated region
  $region26: #{orangenet18_forward.29} parent=0 // pred_check
    _
  $region27: #{orangenet18_forward.29} parent=0 // pred_check_branch
    %433 = sbr.rel (0) target = $region29
  $region28: #{orangenet18_forward.29} parent=0 // pred_region
    _
  $region29: #{orangenet18_forward.29} parent=0 // pred_fallthru
    _

// kernel: orangenet18_forward.31
$region0: #{orangenet18_forward.31}
  #allocation0 [shape = 'u32[]', space=smem, size = 0x4, offset = 0x4, fixed_abs, tag = 'smem constant byte address 0x4 - core index']
  #allocation1 [shape = 'u32[144,128]{1,0:T(1,128)}', space=vmem, size = 0x12000, scoped, tag = 'internal scratch']
  #allocation2 [shape = 'f32[128,128]{1,0:T(8,128)}', space=vmem, size = 0x10000, scoped, tag = 'scratch operand']
  %s0 = inlined_call_operand.vmem [shape: bf16[128,256], index: 0, kind: input, shape index: {}]
  %s1 = inlined_call_operand.vmem [shape: bf16[256,128], index: 1, kind: input, shape index: {}]
  %s2 = inlined_call_operand.vmem [shape: f32[1,128], index: 2, kind: input, shape index: {}]
  %s3 = inlined_call_operand.vmem [shape: bf16[128,128], index: 3, kind: output, shape index: {}]
  %s4 = sld [smem:[#allocation0]]
  $region30: #{orangenet18_forward.31} parent=0
    _
  %s6 = ssub.s32 1, %s4
  %s7 = scalar_select 0, %s6, %s4
  // Predicated region
  $region2: #{orangenet18_forward.31} parent=0 // pred_check
    _
  $region3: #{orangenet18_forward.31} parent=0 // pred_check_branch
    %9 = sbr.rel (0) target = $region5
  $region4: #{orangenet18_forward.31} parent=0 // pred_region
    _
  $region5: #{orangenet18_forward.31} parent=0 // pred_fallthru
    _
  // Predicated region
  $region6: #{orangenet18_forward.31} parent=0 // pred_check
    _
  $region7: #{orangenet18_forward.31} parent=0 // pred_check_branch
    %11 = sbr.rel (0) target = $region9
  $region8: #{orangenet18_forward.31} parent=0 // pred_region
    _
  $region9: #{orangenet18_forward.31} parent=0 // pred_fallthru
    _
  // Predicated region
  $region10: #{orangenet18_forward.31} parent=0 // pred_check
    _
  $region11: #{orangenet18_forward.31} parent=0 // pred_check_branch
    %13 = sbr.rel (0) target = $region13
  $region12: #{orangenet18_forward.31} parent=0 // pred_region
    _
  $region13: #{orangenet18_forward.31} parent=0 // pred_fallthru
    _
  %p15 = scmp.eq.s32.totalorder 0, 0
  // Predicated region
  $region14: #{orangenet18_forward.31} parent=0 // pred_check
    %p16 = pneg %p15
  $region15: #{orangenet18_forward.31} parent=0 // pred_check_branch
    %18 = sbr.rel (%p16) target = $region17
  $region16: #{orangenet18_forward.31} parent=0 // pred_region
    %19 = vst [vmem:[#allocation2] sm:$0xff] 0.0
    %20 = vst [vmem:[#allocation2 + $0x8] sm:$0xff] 0.0
    %21 = vst [vmem:[#allocation2 + $0x10] sm:$0xff] 0.0
    %22 = vst [vmem:[#allocation2 + $0x18] sm:$0xff] 0.0
    %23 = vst [vmem:[#allocation2 + $0x20] sm:$0xff] 0.0
    %24 = vst [vmem:[#allocation2 + $0x28] sm:$0xff] 0.0
    %25 = vst [vmem:[#allocation2 + $0x30] sm:$0xff] 0.0
    %26 = vst [vmem:[#allocation2 + $0x38] sm:$0xff] 0.0
    %27 = vst [vmem:[#allocation2 + $0x40] sm:$0xff] 0.0
    %28 = vst [vmem:[#allocation2 + $0x48] sm:$0xff] 0.0
    %29 = vst [vmem:[#allocation2 + $0x50] sm:$0xff] 0.0
    %30 = vst [vmem:[#allocation2 + $0x58] sm:$0xff] 0.0
    %31 = vst [vmem:[#allocation2 + $0x60] sm:$0xff] 0.0
    %32 = vst [vmem:[#allocation2 + $0x68] sm:$0xff] 0.0
    %33 = vst [vmem:[#allocation2 + $0x70] sm:$0xff] 0.0
    %34 = vst [vmem:[#allocation2 + $0x78] sm:$0xff] 0.0
  $region17: #{orangenet18_forward.31} parent=0 // pred_fallthru
    _
  %v35 = vld [vmem:[#allocation2] sm:$0xff]
  %v36 = vld [vmem:[#allocation2 + $0x8] sm:$0xff]
  %v37 = vld [vmem:[#allocation2 + $0x10] sm:$0xff]
  %v38 = vld [vmem:[#allocation2 + $0x18] sm:$0xff]
  %v39 = vld [vmem:[#allocation2 + $0x20] sm:$0xff]
  %v40 = vld [vmem:[#allocation2 + $0x28] sm:$0xff]
  %v41 = vld [vmem:[#allocation2 + $0x30] sm:$0xff]
  %v42 = vld [vmem:[#allocation2 + $0x38] sm:$0xff]
  %v43 = vld [vmem:[#allocation2 + $0x40] sm:$0xff]
  %v44 = vld [vmem:[#allocation2 + $0x48] sm:$0xff]
  %v45 = vld [vmem:[#allocation2 + $0x50] sm:$0xff]
  %v46 = vld [vmem:[#allocation2 + $0x58] sm:$0xff]
  %v47 = vld [vmem:[#allocation2 + $0x60] sm:$0xff]
  %v48 = vld [vmem:[#allocation2 + $0x68] sm:$0xff]
  %v49 = vld [vmem:[#allocation2 + $0x70] sm:$0xff]
  %v50 = vld [vmem:[#allocation2 + $0x78] sm:$0xff]
  %v51 = vld [vmem:[%s0] sm:$0xff]
  %v52 = vld [vmem:[%s0 + $0x8] sm:$0xff]
  %v53 = vld [vmem:[%s0 + $0x10] sm:$0xff]
  %v54 = vld [vmem:[%s0 + $0x18] sm:$0xff]
  %v55 = vld [vmem:[%s0 + $0x20] sm:$0xff]
  %v56 = vld [vmem:[%s0 + $0x28] sm:$0xff]
  %v57 = vld [vmem:[%s0 + $0x30] sm:$0xff]
  %v58 = vld [vmem:[%s0 + $0x38] sm:$0xff]
  %v59 = vld [vmem:[%s0 + $0x40] sm:$0xff]
  %v60 = vld [vmem:[%s0 + $0x48] sm:$0xff]
  %v61 = vld [vmem:[%s0 + $0x50] sm:$0xff]
  %v62 = vld [vmem:[%s0 + $0x58] sm:$0xff]
  %v63 = vld [vmem:[%s0 + $0x60] sm:$0xff]
  %v64 = vld [vmem:[%s0 + $0x68] sm:$0xff]
  %v65 = vld [vmem:[%s0 + $0x70] sm:$0xff]
  %v66 = vld [vmem:[%s0 + $0x78] sm:$0xff]
  %v67 = vld [vmem:[%s1] sm:$0xf]
  %v68 = vld [vmem:[%s1 + $0x4] sm:$0xf]
  %v69 = vld [vmem:[%s1 + $0x8] sm:$0xf]
  %v70 = vld [vmem:[%s1 + $0xc] sm:$0xf]
  %v71 = vld [vmem:[%s1 + $0x10] sm:$0xf]
  %v72 = vld [vmem:[%s1 + $0x14] sm:$0xf]
  %v73 = vld [vmem:[%s1 + $0x18] sm:$0xf]
  %v74 = vld [vmem:[%s1 + $0x1c] sm:$0xf]
  %v75 = vld [vmem:[%s1 + $0x20] sm:$0xf]
  %v76 = vld [vmem:[%s1 + $0x24] sm:$0xf]
  %v77 = vld [vmem:[%s1 + $0x28] sm:$0xf]
  %v78 = vld [vmem:[%s1 + $0x2c] sm:$0xf]
  %v79 = vld [vmem:[%s1 + $0x30] sm:$0xf]
  %v80 = vld [vmem:[%s1 + $0x34] sm:$0xf]
  %v81 = vld [vmem:[%s1 + $0x38] sm:$0xf]
  %v82 = vld [vmem:[%s1 + $0x3c] sm:$0xf]
  %v83 = vld [vmem:[%s1 + $0x40] sm:$0xf]
  %v84 = vld [vmem:[%s1 + $0x44] sm:$0xf]
  %v85 = vld [vmem:[%s1 + $0x48] sm:$0xf]
  %v86 = vld [vmem:[%s1 + $0x4c] sm:$0xf]
  %v87 = vld [vmem:[%s1 + $0x50] sm:$0xf]
  %v88 = vld [vmem:[%s1 + $0x54] sm:$0xf]
  %v89 = vld [vmem:[%s1 + $0x58] sm:$0xf]
  %v90 = vld [vmem:[%s1 + $0x5c] sm:$0xf]
  %v91 = vld [vmem:[%s1 + $0x60] sm:$0xf]
  %v92 = vld [vmem:[%s1 + $0x64] sm:$0xf]
  %v93 = vld [vmem:[%s1 + $0x68] sm:$0xf]
  %v94 = vld [vmem:[%s1 + $0x6c] sm:$0xf]
  %v95 = vld [vmem:[%s1 + $0x70] sm:$0xf]
  %v96 = vld [vmem:[%s1 + $0x74] sm:$0xf]
  %v97 = vld [vmem:[%s1 + $0x78] sm:$0xf]
  %v98 = vld [vmem:[%s1 + $0x7c] sm:$0xf]
  %v115 = vunpack.c.l.b16 %v51
  %v116 = vunpack.c.h.b16 %v51
  %v117 = vunpack.c.l.b16 %v52
  %v118 = vunpack.c.h.b16 %v52
  %v119 = vunpack.c.l.b16 %v53
  %v120 = vunpack.c.h.b16 %v53
  %v121 = vunpack.c.l.b16 %v54
  %v122 = vunpack.c.h.b16 %v54
  %v123 = vunpack.c.l.b16 %v55
  %v124 = vunpack.c.h.b16 %v55
  %v125 = vunpack.c.l.b16 %v56
  %v126 = vunpack.c.h.b16 %v56
  %v127 = vunpack.c.l.b16 %v57
  %v128 = vunpack.c.h.b16 %v57
  %v129 = vunpack.c.l.b16 %v58
  %v130 = vunpack.c.h.b16 %v58
  %v131 = vunpack.c.l.b16 %v59
  %v132 = vunpack.c.h.b16 %v59
  %v133 = vunpack.c.l.b16 %v60
  %v134 = vunpack.c.h.b16 %v60
  %v135 = vunpack.c.l.b16 %v61
  %v136 = vunpack.c.h.b16 %v61
  %v137 = vunpack.c.l.b16 %v62
  %v138 = vunpack.c.h.b16 %v62
  %v139 = vunpack.c.l.b16 %v63
  %v140 = vunpack.c.h.b16 %v63
  %v141 = vunpack.c.l.b16 %v64
  %v142 = vunpack.c.h.b16 %v64
  %v143 = vunpack.c.l.b16 %v65
  %v144 = vunpack.c.h.b16 %v65
  %v145 = vunpack.c.l.b16 %v66
  %v146 = vunpack.c.h.b16 %v66
  %v147 = vpack.c.b16 %v117, %v115
  %v148 = vpack.c.b16 %v118, %v116
  %v149 = vpack.c.b16 %v121, %v119
  %v150 = vpack.c.b16 %v122, %v120
  %v151 = vpack.c.b16 %v125, %v123
  %v152 = vpack.c.b16 %v126, %v124
  %v153 = vpack.c.b16 %v129, %v127
  %v154 = vpack.c.b16 %v130, %v128
  %v155 = vpack.c.b16 %v133, %v131
  %v156 = vpack.c.b16 %v134, %v132
  %v157 = vpack.c.b16 %v137, %v135
  %v158 = vpack.c.b16 %v138, %v136
  %v159 = vpack.c.b16 %v141, %v139
  %v160 = vpack.c.b16 %v142, %v140
  %v161 = vpack.c.b16 %v145, %v143
  %v162 = vpack.c.b16 %v146, %v144
  %v211 = vunpack.c.l.b16 %v67
  %v212 = vunpack.c.l.b16 %v68
  %v213 = vunpack.c.l.b16 %v69
  %v214 = vunpack.c.l.b16 %v70
  %v215 = vunpack.c.l.b16 %v71
  %v216 = vunpack.c.l.b16 %v72
  %v217 = vunpack.c.l.b16 %v73
  %v218 = vunpack.c.l.b16 %v74
  %v219 = vunpack.c.l.b16 %v75
  %v220 = vunpack.c.l.b16 %v76
  %v221 = vunpack.c.l.b16 %v77
  %v222 = vunpack.c.l.b16 %v78
  %v223 = vunpack.c.l.b16 %v79
  %v224 = vunpack.c.l.b16 %v80
  %v225 = vunpack.c.l.b16 %v81
  %v226 = vunpack.c.l.b16 %v82
  %v227 = vunpack.c.l.b16 %v83
  %v228 = vunpack.c.l.b16 %v84
  %v229 = vunpack.c.l.b16 %v85
  %v230 = vunpack.c.l.b16 %v86
  %v231 = vunpack.c.l.b16 %v87
  %v232 = vunpack.c.l.b16 %v88
  %v233 = vunpack.c.l.b16 %v89
  %v234 = vunpack.c.l.b16 %v90
  %v235 = vunpack.c.l.b16 %v91
  %v236 = vunpack.c.l.b16 %v92
  %v237 = vunpack.c.l.b16 %v93
  %v238 = vunpack.c.l.b16 %v94
  %v239 = vunpack.c.l.b16 %v95
  %v240 = vunpack.c.l.b16 %v96
  %v241 = vunpack.c.l.b16 %v97
  %v242 = vunpack.c.l.b16 %v98
  %v243 = vpack.c.b16 %v212, %v211
  %v244 = vpack.c.b16 %v214, %v213
  %v245 = vpack.c.b16 %v216, %v215
  %v246 = vpack.c.b16 %v218, %v217
  %v247 = vpack.c.b16 %v220, %v219
  %v248 = vpack.c.b16 %v222, %v221
  %v249 = vpack.c.b16 %v224, %v223
  %v250 = vpack.c.b16 %v226, %v225
  %v251 = vpack.c.b16 %v228, %v227
  %v252 = vpack.c.b16 %v230, %v229
  %v253 = vpack.c.b16 %v232, %v231
  %v254 = vpack.c.b16 %v234, %v233
  %v255 = vpack.c.b16 %v236, %v235
  %v256 = vpack.c.b16 %v238, %v237
  %v257 = vpack.c.b16 %v240, %v239
  %v258 = vpack.c.b16 %v242, %v241
  %275 = vmatprep.subr.bf16.mxu0 0
  %276 = vmatpush1.bf16.msra.mxu0 %v243
  %277 = vmatprep.subr.bf16.mxu0 0
  %278 = vmatpush1.bf16.msra.mxu0 %v244
  %279 = vmatprep.subr.bf16.mxu0 0
  %280 = vmatpush1.bf16.msra.mxu0 %v245
  %281 = vmatprep.subr.bf16.mxu0 0
  %282 = vmatpush1.bf16.msra.mxu0 %v246
  %283 = vmatprep.subr.bf16.mxu0 0
  %284 = vmatpush1.bf16.msra.mxu0 %v247
  %285 = vmatprep.subr.bf16.mxu0 0
  %286 = vmatpush1.bf16.msra.mxu0 %v248
  %287 = vmatprep.subr.bf16.mxu0 0
  %288 = vmatpush1.bf16.msra.mxu0 %v249
  %289 = vmatprep.subr.bf16.mxu0 0
  %290 = vmatpush1.bf16.msra.mxu0 %v250
  %291 = vmatprep.subr.bf16.mxu0 0
  %292 = vmatpush1.bf16.msra.mxu0 %v251
  %293 = vmatprep.subr.bf16.mxu0 0
  %294 = vmatpush1.bf16.msra.mxu0 %v252
  %295 = vmatprep.subr.bf16.mxu0 0
  %296 = vmatpush1.bf16.msra.mxu0 %v253
  %297 = vmatprep.subr.bf16.mxu0 0
  %298 = vmatpush1.bf16.msra.mxu0 %v254
  %299 = vmatprep.subr.bf16.mxu0 0
  %300 = vmatpush1.bf16.msra.mxu0 %v255
  %301 = vmatprep.subr.bf16.mxu0 0
  %302 = vmatpush1.bf16.msra.mxu0 %v256
  %303 = vmatprep.subr.bf16.mxu0 0
  %304 = vmatpush1.bf16.msra.mxu0 %v257
  %305 = vmatprep.subr.bf16.mxu0 0
  %306 = vmatpush1.bf16.msra.mxu0 %v258
  %307 = vmatprep.mubr.bf16.mxu0 %v148
  %308 = vmatmul.mubr.bf16.gmra.mrb[0].mxu0 %v147
  %v309 = vpop.f32.mrb[0].mxu0
  %v310 = vadd.f32 0.0, %v309
  %v311 = vpop.f32.mrb[0].mxu0
  %v312 = vpop.f32.mrb[0].mxu0
  %v313 = vadd.f32 0.0, %v312
  %v314 = vpop.f32.mrb[0].mxu0
  %315 = vmatprep.mubr.bf16.mxu0 %v150
  %316 = vmatmul.mubr.bf16.gmra.mrb[0].mxu0 %v149
  %v317 = vpop.f32.mrb[0].mxu0
  %v318 = vadd.f32 0.0, %v317
  %v319 = vpop.f32.mrb[0].mxu0
  %v320 = vpop.f32.mrb[0].mxu0
  %v321 = vadd.f32 0.0, %v320
  %v322 = vpop.f32.mrb[0].mxu0
  %323 = vmatprep.mubr.bf16.mxu0 %v152
  %324 = vmatmul.mubr.bf16.gmra.mrb[0].mxu0 %v151
  %v325 = vpop.f32.mrb[0].mxu0
  %v326 = vadd.f32 0.0, %v325
  %v327 = vpop.f32.mrb[0].mxu0
  %v328 = vpop.f32.mrb[0].mxu0
  %v329 = vadd.f32 0.0, %v328
  %v330 = vpop.f32.mrb[0].mxu0
  %331 = vmatprep.mubr.bf16.mxu0 %v154
  %332 = vmatmul.mubr.bf16.gmra.mrb[0].mxu0 %v153
  %v333 = vpop.f32.mrb[0].mxu0
  %v334 = vadd.f32 0.0, %v333
  %v335 = vpop.f32.mrb[0].mxu0
  %v336 = vpop.f32.mrb[0].mxu0
  %v337 = vadd.f32 0.0, %v336
  %v338 = vpop.f32.mrb[0].mxu0
  %339 = vmatprep.mubr.bf16.mxu0 %v156
  %340 = vmatmul.mubr.bf16.gmra.mrb[0].mxu0 %v155
  %v341 = vpop.f32.mrb[0].mxu0
  %v342 = vadd.f32 0.0, %v341
  %v343 = vpop.f32.mrb[0].mxu0
  %v344 = vpop.f32.mrb[0].mxu0
  %v345 = vadd.f32 0.0, %v344
  %v346 = vpop.f32.mrb[0].mxu0
  %347 = vmatprep.mubr.bf16.mxu0 %v158
  %348 = vmatmul.mubr.bf16.gmra.mrb[0].mxu0 %v157
  %v349 = vpop.f32.mrb[0].mxu0
  %v350 = vadd.f32 0.0, %v349
  %v351 = vpop.f32.mrb[0].mxu0
  %v352 = vpop.f32.mrb[0].mxu0
  %v353 = vadd.f32 0.0, %v352
  %v354 = vpop.f32.mrb[0].mxu0
  %355 = vmatprep.mubr.bf16.mxu0 %v160
  %356 = vmatmul.mubr.bf16.gmra.mrb[0].mxu0 %v159
  %v357 = vpop.f32.mrb[0].mxu0
  %v358 = vadd.f32 0.0, %v357
  %v359 = vpop.f32.mrb[0].mxu0
  %v360 = vpop.f32.mrb[0].mxu0
  %v361 = vadd.f32 0.0, %v360
  %v362 = vpop.f32.mrb[0].mxu0
  %363 = vmatprep.mubr.bf16.mxu0 %v162
  %364 = vmatmul.mubr.bf16.gmra.mrb[0].mxu0 %v161
  %v365 = vpop.f32.mrb[0].mxu0
  %v366 = vadd.f32 0.0, %v365
  %v367 = vpop.f32.mrb[0].mxu0
  %v368 = vpop.f32.mrb[0].mxu0
  %v369 = vadd.f32 0.0, %v368
  %v370 = vpop.f32.mrb[0].mxu0
  %371 = vdwg.mxu0
  %v372 = vadd.f32 %v35, %v310
  %v373 = vadd.f32 %v36, %v313
  %v374 = vadd.f32 %v37, %v318
  %v375 = vadd.f32 %v38, %v321
  %v376 = vadd.f32 %v39, %v326
  %v377 = vadd.f32 %v40, %v329
  %v378 = vadd.f32 %v41, %v334
  %v379 = vadd.f32 %v42, %v337
  %v380 = vadd.f32 %v43, %v342
  %v381 = vadd.f32 %v44, %v345
  %v382 = vadd.f32 %v45, %v350
  %v383 = vadd.f32 %v46, %v353
  %v384 = vadd.f32 %v47, %v358
  %v385 = vadd.f32 %v48, %v361
  %v386 = vadd.f32 %v49, %v366
  %v387 = vadd.f32 %v50, %v369
  %388 = vst [vmem:[#allocation2] sm:$0xff] %v372
  %389 = vst [vmem:[#allocation2 + $0x8] sm:$0xff] %v373
  %390 = vst [vmem:[#allocation2 + $0x10] sm:$0xff] %v374
  %391 = vst [vmem:[#allocation2 + $0x18] sm:$0xff] %v375
  %392 = vst [vmem:[#allocation2 + $0x20] sm:$0xff] %v376
  %393 = vst [vmem:[#allocation2 + $0x28] sm:$0xff] %v377
  %394 = vst [vmem:[#allocation2 + $0x30] sm:$0xff] %v378
  %395 = vst [vmem:[#allocation2 + $0x38] sm:$0xff] %v379
  %396 = vst [vmem:[#allocation2 + $0x40] sm:$0xff] %v380
  %397 = vst [vmem:[#allocation2 + $0x48] sm:$0xff] %v381
  %398 = vst [vmem:[#allocation2 + $0x50] sm:$0xff] %v382
  %399 = vst [vmem:[#allocation2 + $0x58] sm:$0xff] %v383
  %400 = vst [vmem:[#allocation2 + $0x60] sm:$0xff] %v384
  %401 = vst [vmem:[#allocation2 + $0x68] sm:$0xff] %v385
  %402 = vst [vmem:[#allocation2 + $0x70] sm:$0xff] %v386
  %403 = vst [vmem:[#allocation2 + $0x78] sm:$0xff] %v387
  // Predicated region
  $region18: #{orangenet18_forward.31} parent=0 // pred_check
    %p404 = pneg %p15
  $region19: #{orangenet18_forward.31} parent=0 // pred_check_branch
    %406 = sbr.rel (%p404) target = $region21
  $region20: #{orangenet18_forward.31} parent=0 // pred_region
    %v407 = vld [vmem:[#allocation2] sm:$0xff]
    %v408 = vld [vmem:[#allocation2 + $0x8] sm:$0xff]
    %v409 = vld [vmem:[#allocation2 + $0x10] sm:$0xff]
    %v410 = vld [vmem:[#allocation2 + $0x18] sm:$0xff]
    %v411 = vld [vmem:[#allocation2 + $0x20] sm:$0xff]
    %v412 = vld [vmem:[#allocation2 + $0x28] sm:$0xff]
    %v413 = vld [vmem:[#allocation2 + $0x30] sm:$0xff]
    %v414 = vld [vmem:[#allocation2 + $0x38] sm:$0xff]
    %v415 = vld [vmem:[#allocation2 + $0x40] sm:$0xff]
    %v416 = vld [vmem:[#allocation2 + $0x48] sm:$0xff]
    %v417 = vld [vmem:[#allocation2 + $0x50] sm:$0xff]
    %v418 = vld [vmem:[#allocation2 + $0x58] sm:$0xff]
    %v419 = vld [vmem:[#allocation2 + $0x60] sm:$0xff]
    %v420 = vld [vmem:[#allocation2 + $0x68] sm:$0xff]
    %v421 = vld [vmem:[#allocation2 + $0x70] sm:$0xff]
    %v422 = vld [vmem:[#allocation2 + $0x78] sm:$0xff]
    %v423 = vld [vmem:[%s2] sm:$0x1]
    %v425 = vlaneseq
    %v426 = vshrl.u32 %v425, 7
    %v427 = vsub.s32 0, %v426
    %v428 = vrot.slane %v423, %v427
    %v430 = vadd.f32 %v407, %v428
    %v431 = vadd.f32 %v408, %v428
    %v432 = vadd.f32 %v409, %v428
    %v433 = vadd.f32 %v410, %v428
    %v434 = vadd.f32 %v411, %v428
    %v435 = vadd.f32 %v412, %v428
    %v436 = vadd.f32 %v413, %v428
    %v437 = vadd.f32 %v414, %v428
    %v438 = vadd.f32 %v415, %v428
    %v439 = vadd.f32 %v416, %v428
    %v440 = vadd.f32 %v417, %v428
    %v441 = vadd.f32 %v418, %v428
    %v442 = vadd.f32 %v419, %v428
    %v443 = vadd.f32 %v420, %v428
    %v444 = vadd.f32 %v421, %v428
    %v445 = vadd.f32 %v422, %v428
    %v446 = vmax.f32 %v430, 0.0
    %v447 = vmax.f32 %v431, 0.0
    %v448 = vmax.f32 %v432, 0.0
    %v449 = vmax.f32 %v433, 0.0
    %v450 = vmax.f32 %v434, 0.0
    %v451 = vmax.f32 %v435, 0.0
    %v452 = vmax.f32 %v436, 0.0
    %v453 = vmax.f32 %v437, 0.0
    %v454 = vmax.f32 %v438, 0.0
    %v455 = vmax.f32 %v439, 0.0
    %v456 = vmax.f32 %v440, 0.0
    %v457 = vmax.f32 %v441, 0.0
    %v458 = vmax.f32 %v442, 0.0
    %v459 = vmax.f32 %v443, 0.0
    %v460 = vmax.f32 %v444, 0.0
    %v461 = vmax.f32 %v445, 0.0
    %v462 = vpack.c.bf16 %v447, %v446
    %v463 = vpack.c.bf16 %v449, %v448
    %v464 = vpack.c.bf16 %v451, %v450
    %v465 = vpack.c.bf16 %v453, %v452
    %v466 = vpack.c.bf16 %v455, %v454
    %v467 = vpack.c.bf16 %v457, %v456
    %v468 = vpack.c.bf16 %v459, %v458
    %v469 = vpack.c.bf16 %v461, %v460
    %v478 = vunpack.c.l.b16 %v462
    %v479 = vunpack.c.h.b16 %v462
    %v480 = vunpack.c.l.b16 %v463
    %v481 = vunpack.c.h.b16 %v463
    %v482 = vunpack.c.l.b16 %v464
    %v483 = vunpack.c.h.b16 %v464
    %v484 = vunpack.c.l.b16 %v465
    %v485 = vunpack.c.h.b16 %v465
    %v486 = vunpack.c.l.b16 %v466
    %v487 = vunpack.c.h.b16 %v466
    %v488 = vunpack.c.l.b16 %v467
    %v489 = vunpack.c.h.b16 %v467
    %v490 = vunpack.c.l.b16 %v468
    %v491 = vunpack.c.h.b16 %v468
    %v492 = vunpack.c.l.b16 %v469
    %v493 = vunpack.c.h.b16 %v469
    %v494 = vpack.c.b16 %v478, %v478
    %v495 = vpack.c.b16 %v479, %v479
    %v496 = vpack.c.b16 %v480, %v480
    %v497 = vpack.c.b16 %v481, %v481
    %v498 = vpack.c.b16 %v482, %v482
    %v499 = vpack.c.b16 %v483, %v483
    %v500 = vpack.c.b16 %v484, %v484
    %v501 = vpack.c.b16 %v485, %v485
    %v502 = vpack.c.b16 %v486, %v486
    %v503 = vpack.c.b16 %v487, %v487
    %v504 = vpack.c.b16 %v488, %v488
    %v505 = vpack.c.b16 %v489, %v489
    %v506 = vpack.c.b16 %v490, %v490
    %v507 = vpack.c.b16 %v491, %v491
    %v508 = vpack.c.b16 %v492, %v492
    %v509 = vpack.c.b16 %v493, %v493
    %526 = vst [vmem:[%s3] sm:$0xf] %v494
    %527 = vst [vmem:[%s3 + $0x4] sm:$0xf] %v495
    %528 = vst [vmem:[%s3 + $0x8] sm:$0xf] %v496
    %529 = vst [vmem:[%s3 + $0xc] sm:$0xf] %v497
    %530 = vst [vmem:[%s3 + $0x10] sm:$0xf] %v498
    %531 = vst [vmem:[%s3 + $0x14] sm:$0xf] %v499
    %532 = vst [vmem:[%s3 + $0x18] sm:$0xf] %v500
    %533 = vst [vmem:[%s3 + $0x1c] sm:$0xf] %v501
    %534 = vst [vmem:[%s3 + $0x20] sm:$0xf] %v502
    %535 = vst [vmem:[%s3 + $0x24] sm:$0xf] %v503
    %536 = vst [vmem:[%s3 + $0x28] sm:$0xf] %v504
    %537 = vst [vmem:[%s3 + $0x2c] sm:$0xf] %v505
    %538 = vst [vmem:[%s3 + $0x30] sm:$0xf] %v506
    %539 = vst [vmem:[%s3 + $0x34] sm:$0xf] %v507
    %540 = vst [vmem:[%s3 + $0x38] sm:$0xf] %v508
    %541 = vst [vmem:[%s3 + $0x3c] sm:$0xf] %v509
  $region21: #{orangenet18_forward.31} parent=0 // pred_fallthru
    _
  // Predicated region
  $region22: #{orangenet18_forward.31} parent=0 // pred_check
    _
  $region23: #{orangenet18_forward.31} parent=0 // pred_check_branch
    %543 = sbr.rel (0) target = $region25
  $region24: #{orangenet18_forward.31} parent=0 // pred_region
    _
  $region25: #{orangenet18_forward.31} parent=0 // pred_fallthru
    _
  // Predicated region
  $region26: #{orangenet18_forward.31} parent=0 // pred_check
    _
  $region27: #{orangenet18_forward.31} parent=0 // pred_check_branch
    %545 = sbr.rel (0) target = $region29
  $region28: #{orangenet18_forward.31} parent=0 // pred_region
    _
  $region29: #{orangenet18_forward.31} parent=0 // pred_fallthru
    _

// kernel: orangenet18_forward.33
$region0: #{orangenet18_forward.33}
  #allocation0 [shape = 'u32[]', space=smem, size = 0x4, offset = 0x4, fixed_abs, tag = 'smem constant byte address 0x4 - core index']
  #allocation1 [shape = 'u32[144,128]{1,0:T(1,128)}', space=vmem, size = 0x12000, scoped, tag = 'internal scratch']
  #allocation2 [shape = 'f32[32,128]{1,0:T(8,128)}', space=vmem, size = 0x4000, scoped, tag = 'scratch operand']
  %s0 = inlined_call_operand.vmem [shape: bf16[32,256], index: 0, kind: input, shape index: {}]
  %s1 = inlined_call_operand.vmem [shape: bf16[256,128], index: 1, kind: input, shape index: {}]
  %s2 = inlined_call_operand.vmem [shape: f32[1,128], index: 2, kind: input, shape index: {}]
  %s3 = inlined_call_operand.vmem [shape: bf16[32,128], index: 3, kind: output, shape index: {}]
  %s4 = sld [smem:[#allocation0]]
  $region30: #{orangenet18_forward.33} parent=0
    _
  %s6 = ssub.s32 1, %s4
  %s7 = scalar_select 0, %s6, %s4
  // Predicated region
  $region2: #{orangenet18_forward.33} parent=0 // pred_check
    _
  $region3: #{orangenet18_forward.33} parent=0 // pred_check_branch
    %9 = sbr.rel (0) target = $region5
  $region4: #{orangenet18_forward.33} parent=0 // pred_region
    _
  $region5: #{orangenet18_forward.33} parent=0 // pred_fallthru
    _
  // Predicated region
  $region6: #{orangenet18_forward.33} parent=0 // pred_check
    _
  $region7: #{orangenet18_forward.33} parent=0 // pred_check_branch
    %11 = sbr.rel (0) target = $region9
  $region8: #{orangenet18_forward.33} parent=0 // pred_region
    _
  $region9: #{orangenet18_forward.33} parent=0 // pred_fallthru
    _
  // Predicated region
  $region10: #{orangenet18_forward.33} parent=0 // pred_check
    _
  $region11: #{orangenet18_forward.33} parent=0 // pred_check_branch
    %13 = sbr.rel (0) target = $region13
  $region12: #{orangenet18_forward.33} parent=0 // pred_region
    _
  $region13: #{orangenet18_forward.33} parent=0 // pred_fallthru
    _
  %p15 = scmp.eq.s32.totalorder 0, 0
  // Predicated region
  $region14: #{orangenet18_forward.33} parent=0 // pred_check
    %p16 = pneg %p15
  $region15: #{orangenet18_forward.33} parent=0 // pred_check_branch
    %18 = sbr.rel (%p16) target = $region17
  $region16: #{orangenet18_forward.33} parent=0 // pred_region
    %19 = vst [vmem:[#allocation2] sm:$0xff] 0.0
    %20 = vst [vmem:[#allocation2 + $0x8] sm:$0xff] 0.0
    %21 = vst [vmem:[#allocation2 + $0x10] sm:$0xff] 0.0
    %22 = vst [vmem:[#allocation2 + $0x18] sm:$0xff] 0.0
  $region17: #{orangenet18_forward.33} parent=0 // pred_fallthru
    _
  %v23 = vld [vmem:[#allocation2] sm:$0xff]
  %v24 = vld [vmem:[#allocation2 + $0x8] sm:$0xff]
  %v25 = vld [vmem:[#allocation2 + $0x10] sm:$0xff]
  %v26 = vld [vmem:[#allocation2 + $0x18] sm:$0xff]
  %v27 = vld [vmem:[%s0] sm:$0xff]
  %v28 = vld [vmem:[%s0 + $0x8] sm:$0xff]
  %v29 = vld [vmem:[%s0 + $0x10] sm:$0xff]
  %v30 = vld [vmem:[%s0 + $0x18] sm:$0xff]
  %v31 = vld [vmem:[%s1] sm:$0xf]
  %v32 = vld [vmem:[%s1 + $0x4] sm:$0xf]
  %v33 = vld [vmem:[%s1 + $0x8] sm:$0xf]
  %v34 = vld [vmem:[%s1 + $0xc] sm:$0xf]
  %v35 = vld [vmem:[%s1 + $0x10] sm:$0xf]
  %v36 = vld [vmem:[%s1 + $0x14] sm:$0xf]
  %v37 = vld [vmem:[%s1 + $0x18] sm:$0xf]
  %v38 = vld [vmem:[%s1 + $0x1c] sm:$0xf]
  %v39 = vld [vmem:[%s1 + $0x20] sm:$0xf]
  %v40 = vld [vmem:[%s1 + $0x24] sm:$0xf]
  %v41 = vld [vmem:[%s1 + $0x28] sm:$0xf]
  %v42 = vld [vmem:[%s1 + $0x2c] sm:$0xf]
  %v43 = vld [vmem:[%s1 + $0x30] sm:$0xf]
  %v44 = vld [vmem:[%s1 + $0x34] sm:$0xf]
  %v45 = vld [vmem:[%s1 + $0x38] sm:$0xf]
  %v46 = vld [vmem:[%s1 + $0x3c] sm:$0xf]
  %v47 = vld [vmem:[%s1 + $0x40] sm:$0xf]
  %v48 = vld [vmem:[%s1 + $0x44] sm:$0xf]
  %v49 = vld [vmem:[%s1 + $0x48] sm:$0xf]
  %v50 = vld [vmem:[%s1 + $0x4c] sm:$0xf]
  %v51 = vld [vmem:[%s1 + $0x50] sm:$0xf]
  %v52 = vld [vmem:[%s1 + $0x54] sm:$0xf]
  %v53 = vld [vmem:[%s1 + $0x58] sm:$0xf]
  %v54 = vld [vmem:[%s1 + $0x5c] sm:$0xf]
  %v55 = vld [vmem:[%s1 + $0x60] sm:$0xf]
  %v56 = vld [vmem:[%s1 + $0x64] sm:$0xf]
  %v57 = vld [vmem:[%s1 + $0x68] sm:$0xf]
  %v58 = vld [vmem:[%s1 + $0x6c] sm:$0xf]
  %v59 = vld [vmem:[%s1 + $0x70] sm:$0xf]
  %v60 = vld [vmem:[%s1 + $0x74] sm:$0xf]
  %v61 = vld [vmem:[%s1 + $0x78] sm:$0xf]
  %v62 = vld [vmem:[%s1 + $0x7c] sm:$0xf]
  %v67 = vunpack.c.l.b16 %v27
  %v68 = vunpack.c.h.b16 %v27
  %v69 = vunpack.c.l.b16 %v28
  %v70 = vunpack.c.h.b16 %v28
  %v71 = vunpack.c.l.b16 %v29
  %v72 = vunpack.c.h.b16 %v29
  %v73 = vunpack.c.l.b16 %v30
  %v74 = vunpack.c.h.b16 %v30
  %v75 = vpack.c.b16 %v69, %v67
  %v76 = vpack.c.b16 %v70, %v68
  %v77 = vpack.c.b16 %v73, %v71
  %v78 = vpack.c.b16 %v74, %v72
  %v115 = vunpack.c.l.b16 %v31
  %v116 = vunpack.c.l.b16 %v32
  %v117 = vunpack.c.l.b16 %v33
  %v118 = vunpack.c.l.b16 %v34
  %v119 = vunpack.c.l.b16 %v35
  %v120 = vunpack.c.l.b16 %v36
  %v121 = vunpack.c.l.b16 %v37
  %v122 = vunpack.c.l.b16 %v38
  %v123 = vunpack.c.l.b16 %v39
  %v124 = vunpack.c.l.b16 %v40
  %v125 = vunpack.c.l.b16 %v41
  %v126 = vunpack.c.l.b16 %v42
  %v127 = vunpack.c.l.b16 %v43
  %v128 = vunpack.c.l.b16 %v44
  %v129 = vunpack.c.l.b16 %v45
  %v130 = vunpack.c.l.b16 %v46
  %v131 = vunpack.c.l.b16 %v47
  %v132 = vunpack.c.l.b16 %v48
  %v133 = vunpack.c.l.b16 %v49
  %v134 = vunpack.c.l.b16 %v50
  %v135 = vunpack.c.l.b16 %v51
  %v136 = vunpack.c.l.b16 %v52
  %v137 = vunpack.c.l.b16 %v53
  %v138 = vunpack.c.l.b16 %v54
  %v139 = vunpack.c.l.b16 %v55
  %v140 = vunpack.c.l.b16 %v56
  %v141 = vunpack.c.l.b16 %v57
  %v142 = vunpack.c.l.b16 %v58
  %v143 = vunpack.c.l.b16 %v59
  %v144 = vunpack.c.l.b16 %v60
  %v145 = vunpack.c.l.b16 %v61
  %v146 = vunpack.c.l.b16 %v62
  %v147 = vpack.c.b16 %v116, %v115
  %v148 = vpack.c.b16 %v118, %v117
  %v149 = vpack.c.b16 %v120, %v119
  %v150 = vpack.c.b16 %v122, %v121
  %v151 = vpack.c.b16 %v124, %v123
  %v152 = vpack.c.b16 %v126, %v125
  %v153 = vpack.c.b16 %v128, %v127
  %v154 = vpack.c.b16 %v130, %v129
  %v155 = vpack.c.b16 %v132, %v131
  %v156 = vpack.c.b16 %v134, %v133
  %v157 = vpack.c.b16 %v136, %v135
  %v158 = vpack.c.b16 %v138, %v137
  %v159 = vpack.c.b16 %v140, %v139
  %v160 = vpack.c.b16 %v142, %v141
  %v161 = vpack.c.b16 %v144, %v143
  %v162 = vpack.c.b16 %v146, %v145
  %179 = vmatprep.subr.bf16.mxu0 0
  %180 = vmatpush1.bf16.msra.mxu0 %v147
  %181 = vmatprep.subr.bf16.mxu0 0
  %182 = vmatpush1.bf16.msra.mxu0 %v148
  %183 = vmatprep.subr.bf16.mxu0 0
  %184 = vmatpush1.bf16.msra.mxu0 %v149
  %185 = vmatprep.subr.bf16.mxu0 0
  %186 = vmatpush1.bf16.msra.mxu0 %v150
  %187 = vmatprep.subr.bf16.mxu0 0
  %188 = vmatpush1.bf16.msra.mxu0 %v151
  %189 = vmatprep.subr.bf16.mxu0 0
  %190 = vmatpush1.bf16.msra.mxu0 %v152
  %191 = vmatprep.subr.bf16.mxu0 0
  %192 = vmatpush1.bf16.msra.mxu0 %v153
  %193 = vmatprep.subr.bf16.mxu0 0
  %194 = vmatpush1.bf16.msra.mxu0 %v154
  %195 = vmatprep.subr.bf16.mxu0 0
  %196 = vmatpush1.bf16.msra.mxu0 %v155
  %197 = vmatprep.subr.bf16.mxu0 0
  %198 = vmatpush1.bf16.msra.mxu0 %v156
  %199 = vmatprep.subr.bf16.mxu0 0
  %200 = vmatpush1.bf16.msra.mxu0 %v157
  %201 = vmatprep.subr.bf16.mxu0 0
  %202 = vmatpush1.bf16.msra.mxu0 %v158
  %203 = vmatprep.subr.bf16.mxu0 0
  %204 = vmatpush1.bf16.msra.mxu0 %v159
  %205 = vmatprep.subr.bf16.mxu0 0
  %206 = vmatpush1.bf16.msra.mxu0 %v160
  %207 = vmatprep.subr.bf16.mxu0 0
  %208 = vmatpush1.bf16.msra.mxu0 %v161
  %209 = vmatprep.subr.bf16.mxu0 0
  %210 = vmatpush1.bf16.msra.mxu0 %v162
  %211 = vmatprep.mubr.bf16.mxu0 %v76
  %212 = vmatmul.mubr.bf16.gmra.mrb[0].mxu0 %v75
  %v213 = vpop.f32.mrb[0].mxu0
  %v214 = vadd.f32 0.0, %v213
  %v215 = vpop.f32.mrb[0].mxu0
  %v216 = vpop.f32.mrb[0].mxu0
  %v217 = vadd.f32 0.0, %v216
  %v218 = vpop.f32.mrb[0].mxu0
  %219 = vmatprep.mubr.bf16.mxu0 %v78
  %220 = vmatmul.mubr.bf16.gmra.mrb[0].mxu0 %v77
  %v221 = vpop.f32.mrb[0].mxu0
  %v222 = vadd.f32 0.0, %v221
  %v223 = vpop.f32.mrb[0].mxu0
  %v224 = vpop.f32.mrb[0].mxu0
  %v225 = vadd.f32 0.0, %v224
  %v226 = vpop.f32.mrb[0].mxu0
  %227 = vdwg.mxu0
  %v228 = vadd.f32 %v23, %v214
  %v229 = vadd.f32 %v24, %v217
  %v230 = vadd.f32 %v25, %v222
  %v231 = vadd.f32 %v26, %v225
  %232 = vst [vmem:[#allocation2] sm:$0xff] %v228
  %233 = vst [vmem:[#allocation2 + $0x8] sm:$0xff] %v229
  %234 = vst [vmem:[#allocation2 + $0x10] sm:$0xff] %v230
  %235 = vst [vmem:[#allocation2 + $0x18] sm:$0xff] %v231
  // Predicated region
  $region18: #{orangenet18_forward.33} parent=0 // pred_check
    %p236 = pneg %p15
  $region19: #{orangenet18_forward.33} parent=0 // pred_check_branch
    %238 = sbr.rel (%p236) target = $region21
  $region20: #{orangenet18_forward.33} parent=0 // pred_region
    %v239 = vld [vmem:[#allocation2] sm:$0xff]
    %v240 = vld [vmem:[#allocation2 + $0x8] sm:$0xff]
    %v241 = vld [vmem:[#allocation2 + $0x10] sm:$0xff]
    %v242 = vld [vmem:[#allocation2 + $0x18] sm:$0xff]
    %v243 = vld [vmem:[%s2] sm:$0x1]
    %v245 = vlaneseq
    %v246 = vshrl.u32 %v245, 7
    %v247 = vsub.s32 0, %v246
    %v248 = vrot.slane %v243, %v247
    %v250 = vadd.f32 %v239, %v248
    %v251 = vadd.f32 %v240, %v248
    %v252 = vadd.f32 %v241, %v248
    %v253 = vadd.f32 %v242, %v248
    %v254 = vmax.f32 %v250, 0.0
    %v255 = vmax.f32 %v251, 0.0
    %v256 = vmax.f32 %v252, 0.0
    %v257 = vmax.f32 %v253, 0.0
    %v258 = vpack.c.bf16 %v255, %v254
    %v259 = vpack.c.bf16 %v257, %v256
    %v262 = vunpack.c.l.b16 %v258
    %v263 = vunpack.c.h.b16 %v258
    %v264 = vunpack.c.l.b16 %v259
    %v265 = vunpack.c.h.b16 %v259
    %v266 = vpack.c.b16 %v262, %v262
    %v267 = vpack.c.b16 %v263, %v263
    %v268 = vpack.c.b16 %v264, %v264
    %v269 = vpack.c.b16 %v265, %v265
    %274 = vst [vmem:[%s3] sm:$0xf] %v266
    %275 = vst [vmem:[%s3 + $0x4] sm:$0xf] %v267
    %276 = vst [vmem:[%s3 + $0x8] sm:$0xf] %v268
    %277 = vst [vmem:[%s3 + $0xc] sm:$0xf] %v269
  $region21: #{orangenet18_forward.33} parent=0 // pred_fallthru
    _
  // Predicated region
  $region22: #{orangenet18_forward.33} parent=0 // pred_check
    _
  $region23: #{orangenet18_forward.33} parent=0 // pred_check_branch
    %279 = sbr.rel (0) target = $region25
  $region24: #{orangenet18_forward.33} parent=0 // pred_region
    _
  $region25: #{orangenet18_forward.33} parent=0 // pred_fallthru
    _
  // Predicated region
  $region26: #{orangenet18_forward.33} parent=0 // pred_check
    _
  $region27: #{orangenet18_forward.33} parent=0 // pred_check_branch
    %281 = sbr.rel (0) target = $region29
  $region28: #{orangenet18_forward.33} parent=0 // pred_region
    _
  $region29: #{orangenet18_forward.33} parent=0 // pred_fallthru
    _

// kernel: orangenet18_forward.34
$region0: #{orangenet18_forward.34}
  #allocation0 [shape = 'u32[]', space=smem, size = 0x4, offset = 0x4, fixed_abs, tag = 'smem constant byte address 0x4 - core index']
  #allocation1 [shape = 'u32[144,128]{1,0:T(1,128)}', space=vmem, size = 0x12000, scoped, tag = 'internal scratch']
  #allocation2 [shape = 'f32[32,128]{1,0:T(8,128)}', space=vmem, size = 0x4000, scoped, tag = 'scratch operand']
  %s0 = inlined_call_operand.vmem [shape: bf16[32,128], index: 0, kind: input, shape index: {}]
  %s1 = inlined_call_operand.vmem [shape: bf16[128,128], index: 1, kind: input, shape index: {}]
  %s2 = inlined_call_operand.vmem [shape: f32[1,128], index: 2, kind: input, shape index: {}]
  %s3 = inlined_call_operand.vmem [shape: bf16[32,128], index: 3, kind: output, shape index: {}]
  %s4 = sld [smem:[#allocation0]]
  $region30: #{orangenet18_forward.34} parent=0
    _
  %s6 = ssub.s32 1, %s4
  %s7 = scalar_select 0, %s6, %s4
  // Predicated region
  $region2: #{orangenet18_forward.34} parent=0 // pred_check
    _
  $region3: #{orangenet18_forward.34} parent=0 // pred_check_branch
    %9 = sbr.rel (0) target = $region5
  $region4: #{orangenet18_forward.34} parent=0 // pred_region
    _
  $region5: #{orangenet18_forward.34} parent=0 // pred_fallthru
    _
  // Predicated region
  $region6: #{orangenet18_forward.34} parent=0 // pred_check
    _
  $region7: #{orangenet18_forward.34} parent=0 // pred_check_branch
    %11 = sbr.rel (0) target = $region9
  $region8: #{orangenet18_forward.34} parent=0 // pred_region
    _
  $region9: #{orangenet18_forward.34} parent=0 // pred_fallthru
    _
  // Predicated region
  $region10: #{orangenet18_forward.34} parent=0 // pred_check
    _
  $region11: #{orangenet18_forward.34} parent=0 // pred_check_branch
    %13 = sbr.rel (0) target = $region13
  $region12: #{orangenet18_forward.34} parent=0 // pred_region
    _
  $region13: #{orangenet18_forward.34} parent=0 // pred_fallthru
    _
  %p15 = scmp.eq.s32.totalorder 0, 0
  // Predicated region
  $region14: #{orangenet18_forward.34} parent=0 // pred_check
    %p16 = pneg %p15
  $region15: #{orangenet18_forward.34} parent=0 // pred_check_branch
    %18 = sbr.rel (%p16) target = $region17
  $region16: #{orangenet18_forward.34} parent=0 // pred_region
    %19 = vst [vmem:[#allocation2] sm:$0xff] 0.0
    %20 = vst [vmem:[#allocation2 + $0x8] sm:$0xff] 0.0
    %21 = vst [vmem:[#allocation2 + $0x10] sm:$0xff] 0.0
    %22 = vst [vmem:[#allocation2 + $0x18] sm:$0xff] 0.0
  $region17: #{orangenet18_forward.34} parent=0 // pred_fallthru
    _
  %v23 = vld [vmem:[#allocation2] sm:$0xff]
  %v24 = vld [vmem:[#allocation2 + $0x8] sm:$0xff]
  %v25 = vld [vmem:[#allocation2 + $0x10] sm:$0xff]
  %v26 = vld [vmem:[#allocation2 + $0x18] sm:$0xff]
  %v27 = vld [vmem:[%s0] sm:$0xf]
  %v28 = vld [vmem:[%s0 + $0x4] sm:$0xf]
  %v29 = vld [vmem:[%s0 + $0x8] sm:$0xf]
  %v30 = vld [vmem:[%s0 + $0xc] sm:$0xf]
  %v31 = vld [vmem:[%s1] sm:$0xf]
  %v32 = vld [vmem:[%s1 + $0x4] sm:$0xf]
  %v33 = vld [vmem:[%s1 + $0x8] sm:$0xf]
  %v34 = vld [vmem:[%s1 + $0xc] sm:$0xf]
  %v35 = vld [vmem:[%s1 + $0x10] sm:$0xf]
  %v36 = vld [vmem:[%s1 + $0x14] sm:$0xf]
  %v37 = vld [vmem:[%s1 + $0x18] sm:$0xf]
  %v38 = vld [vmem:[%s1 + $0x1c] sm:$0xf]
  %v39 = vld [vmem:[%s1 + $0x20] sm:$0xf]
  %v40 = vld [vmem:[%s1 + $0x24] sm:$0xf]
  %v41 = vld [vmem:[%s1 + $0x28] sm:$0xf]
  %v42 = vld [vmem:[%s1 + $0x2c] sm:$0xf]
  %v43 = vld [vmem:[%s1 + $0x30] sm:$0xf]
  %v44 = vld [vmem:[%s1 + $0x34] sm:$0xf]
  %v45 = vld [vmem:[%s1 + $0x38] sm:$0xf]
  %v46 = vld [vmem:[%s1 + $0x3c] sm:$0xf]
  %v51 = vunpack.c.l.b16 %v27
  %v52 = vunpack.c.l.b16 %v28
  %v53 = vunpack.c.l.b16 %v29
  %v54 = vunpack.c.l.b16 %v30
  %v55 = vpack.c.b16 %v52, %v51
  %v56 = vpack.c.b16 %v54, %v53
  %v75 = vunpack.c.l.b16 %v31
  %v76 = vunpack.c.l.b16 %v32
  %v77 = vunpack.c.l.b16 %v33
  %v78 = vunpack.c.l.b16 %v34
  %v79 = vunpack.c.l.b16 %v35
  %v80 = vunpack.c.l.b16 %v36
  %v81 = vunpack.c.l.b16 %v37
  %v82 = vunpack.c.l.b16 %v38
  %v83 = vunpack.c.l.b16 %v39
  %v84 = vunpack.c.l.b16 %v40
  %v85 = vunpack.c.l.b16 %v41
  %v86 = vunpack.c.l.b16 %v42
  %v87 = vunpack.c.l.b16 %v43
  %v88 = vunpack.c.l.b16 %v44
  %v89 = vunpack.c.l.b16 %v45
  %v90 = vunpack.c.l.b16 %v46
  %v91 = vpack.c.b16 %v76, %v75
  %v92 = vpack.c.b16 %v78, %v77
  %v93 = vpack.c.b16 %v80, %v79
  %v94 = vpack.c.b16 %v82, %v81
  %v95 = vpack.c.b16 %v84, %v83
  %v96 = vpack.c.b16 %v86, %v85
  %v97 = vpack.c.b16 %v88, %v87
  %v98 = vpack.c.b16 %v90, %v89
  %107 = vmatprep.subr.bf16.mxu0 0
  %108 = vmatpush1.bf16.msra.mxu0 %v91
  %109 = vmatprep.subr.bf16.mxu0 0
  %110 = vmatpush1.bf16.msra.mxu0 %v92
  %111 = vmatprep.subr.bf16.mxu0 0
  %112 = vmatpush1.bf16.msra.mxu0 %v93
  %113 = vmatprep.subr.bf16.mxu0 0
  %114 = vmatpush1.bf16.msra.mxu0 %v94
  %115 = vmatprep.subr.bf16.mxu0 0
  %116 = vmatpush1.bf16.msra.mxu0 %v95
  %117 = vmatprep.subr.bf16.mxu0 0
  %118 = vmatpush1.bf16.msra.mxu0 %v96
  %119 = vmatprep.subr.bf16.mxu0 0
  %120 = vmatpush1.bf16.msra.mxu0 %v97
  %121 = vmatprep.subr.bf16.mxu0 0
  %122 = vmatpush1.bf16.msra.mxu0 %v98
  %123 = vmatprep.subr.bf16.mxu0 0
  %124 = vmatpush1.bf16.msra.mxu0 0
  %125 = vmatprep.subr.bf16.mxu0 0
  %126 = vmatpush1.bf16.msra.mxu0 0
  %127 = vmatprep.subr.bf16.mxu0 0
  %128 = vmatpush1.bf16.msra.mxu0 0
  %129 = vmatprep.subr.bf16.mxu0 0
  %130 = vmatpush1.bf16.msra.mxu0 0
  %131 = vmatprep.subr.bf16.mxu0 0
  %132 = vmatpush1.bf16.msra.mxu0 0
  %133 = vmatprep.subr.bf16.mxu0 0
  %134 = vmatpush1.bf16.msra.mxu0 0
  %135 = vmatprep.subr.bf16.mxu0 0
  %136 = vmatpush1.bf16.msra.mxu0 0
  %137 = vmatprep.subr.bf16.mxu0 0
  %138 = vmatpush1.bf16.msra.mxu0 0
  %139 = vmatprep.mubr.bf16.mxu0 0
  %140 = vmatmul.mubr.bf16.gmra.mrb[0].mxu0 %v55
  %v141 = vpop.f32.mrb[0].mxu0
  %v142 = vadd.f32 0.0, %v141
  %v143 = vpop.f32.mrb[0].mxu0
  %v144 = vpop.f32.mrb[0].mxu0
  %v145 = vadd.f32 0.0, %v144
  %v146 = vpop.f32.mrb[0].mxu0
  %147 = vmatprep.mubr.bf16.mxu0 0
  %148 = vmatmul.mubr.bf16.gmra.mrb[0].mxu0 %v56
  %v149 = vpop.f32.mrb[0].mxu0
  %v150 = vadd.f32 0.0, %v149
  %v151 = vpop.f32.mrb[0].mxu0
  %v152 = vpop.f32.mrb[0].mxu0
  %v153 = vadd.f32 0.0, %v152
  %v154 = vpop.f32.mrb[0].mxu0
  %155 = vdwg.mxu0
  %v156 = vadd.f32 %v23, %v142
  %v157 = vadd.f32 %v24, %v145
  %v158 = vadd.f32 %v25, %v150
  %v159 = vadd.f32 %v26, %v153
  %160 = vst [vmem:[#allocation2] sm:$0xff] %v156
  %161 = vst [vmem:[#allocation2 + $0x8] sm:$0xff] %v157
  %162 = vst [vmem:[#allocation2 + $0x10] sm:$0xff] %v158
  %163 = vst [vmem:[#allocation2 + $0x18] sm:$0xff] %v159
  // Predicated region
  $region18: #{orangenet18_forward.34} parent=0 // pred_check
    %p164 = pneg %p15
  $region19: #{orangenet18_forward.34} parent=0 // pred_check_branch
    %166 = sbr.rel (%p164) target = $region21
  $region20: #{orangenet18_forward.34} parent=0 // pred_region
    %v167 = vld [vmem:[#allocation2] sm:$0xff]
    %v168 = vld [vmem:[#allocation2 + $0x8] sm:$0xff]
    %v169 = vld [vmem:[#allocation2 + $0x10] sm:$0xff]
    %v170 = vld [vmem:[#allocation2 + $0x18] sm:$0xff]
    %v171 = vld [vmem:[%s2] sm:$0x1]
    %v173 = vlaneseq
    %v174 = vshrl.u32 %v173, 7
    %v175 = vsub.s32 0, %v174
    %v176 = vrot.slane %v171, %v175
    %v178 = vadd.f32 %v167, %v176
    %v179 = vadd.f32 %v168, %v176
    %v180 = vadd.f32 %v169, %v176
    %v181 = vadd.f32 %v170, %v176
    %v182 = vpack.c.bf16 %v179, %v178
    %v183 = vpack.c.bf16 %v181, %v180
    %v186 = vunpack.c.l.b16 %v182
    %v187 = vunpack.c.h.b16 %v182
    %v188 = vunpack.c.l.b16 %v183
    %v189 = vunpack.c.h.b16 %v183
    %v190 = vpack.c.b16 %v186, %v186
    %v191 = vpack.c.b16 %v187, %v187
    %v192 = vpack.c.b16 %v188, %v188
    %v193 = vpack.c.b16 %v189, %v189
    %198 = vst [vmem:[%s3] sm:$0xf] %v190
    %199 = vst [vmem:[%s3 + $0x4] sm:$0xf] %v191
    %200 = vst [vmem:[%s3 + $0x8] sm:$0xf] %v192
    %201 = vst [vmem:[%s3 + $0xc] sm:$0xf] %v193
  $region21: #{orangenet18_forward.34} parent=0 // pred_fallthru
    _
  // Predicated region
  $region22: #{orangenet18_forward.34} parent=0 // pred_check
    _
  $region23: #{orangenet18_forward.34} parent=0 // pred_check_branch
    %203 = sbr.rel (0) target = $region25
  $region24: #{orangenet18_forward.34} parent=0 // pred_region
    _
  $region25: #{orangenet18_forward.34} parent=0 // pred_fallthru
    _
  // Predicated region
  $region26: #{orangenet18_forward.34} parent=0 // pred_check
    _
  $region27: #{orangenet18_forward.34} parent=0 // pred_check_branch
    %205 = sbr.rel (0) target = $region29
  $region28: #{orangenet18_forward.34} parent=0 // pred_region
    _
  $region29: #{orangenet18_forward.34} parent=0 // pred_fallthru
    _

// kernel: orangenet18_forward.35
$region0: #{orangenet18_forward.35}
  #allocation0 [shape = 'u32[]', space=smem, size = 0x4, offset = 0x4, fixed_abs, tag = 'smem constant byte address 0x4 - core index']
  #allocation1 [shape = 'u32[144,128]{1,0:T(1,128)}', space=vmem, size = 0x12000, scoped, tag = 'internal scratch']
  #allocation2 [shape = 'f32[32,128]{1,0:T(8,128)}', space=vmem, size = 0x4000, scoped, tag = 'scratch operand']
  %s0 = inlined_call_operand.vmem [shape: bf16[32,384], index: 0, kind: input, shape index: {}]
  %s1 = inlined_call_operand.vmem [shape: bf16[384,128], index: 1, kind: input, shape index: {}]
  %s2 = inlined_call_operand.vmem [shape: f32[1,128], index: 2, kind: input, shape index: {}]
  %s3 = inlined_call_operand.vmem [shape: bf16[32,128], index: 3, kind: input, shape index: {}]
  %s4 = inlined_call_operand.vmem [shape: bf16[32,128], index: 4, kind: output, shape index: {}]
  %s5 = sld [smem:[#allocation0]]
  $region34: #{orangenet18_forward.35} parent=0
    _
  %s7 = ssub.s32 1, %s5
  %s8 = scalar_select 0, %s7, %s5
  // Predicated region
  $region2: #{orangenet18_forward.35} parent=0 // pred_check
    _
  $region3: #{orangenet18_forward.35} parent=0 // pred_check_branch
    %10 = sbr.rel (0) target = $region5
  $region4: #{orangenet18_forward.35} parent=0 // pred_region
    _
  $region5: #{orangenet18_forward.35} parent=0 // pred_fallthru
    _
  // Predicated region
  $region6: #{orangenet18_forward.35} parent=0 // pred_check
    _
  $region7: #{orangenet18_forward.35} parent=0 // pred_check_branch
    %12 = sbr.rel (0) target = $region9
  $region8: #{orangenet18_forward.35} parent=0 // pred_region
    _
  $region9: #{orangenet18_forward.35} parent=0 // pred_fallthru
    _
  // Predicated region
  $region10: #{orangenet18_forward.35} parent=0 // pred_check
    _
  $region11: #{orangenet18_forward.35} parent=0 // pred_check_branch
    %14 = sbr.rel (0) target = $region13
  $region12: #{orangenet18_forward.35} parent=0 // pred_region
    _
  $region13: #{orangenet18_forward.35} parent=0 // pred_fallthru
    _
  // Predicated region
  $region14: #{orangenet18_forward.35} parent=0 // pred_check
    _
  $region15: #{orangenet18_forward.35} parent=0 // pred_check_branch
    %16 = sbr.rel (0) target = $region17
  $region16: #{orangenet18_forward.35} parent=0 // pred_region
    _
  $region17: #{orangenet18_forward.35} parent=0 // pred_fallthru
    _
  %p18 = scmp.eq.s32.totalorder 0, 0
  // Predicated region
  $region18: #{orangenet18_forward.35} parent=0 // pred_check
    %p19 = pneg %p18
  $region19: #{orangenet18_forward.35} parent=0 // pred_check_branch
    %21 = sbr.rel (%p19) target = $region21
  $region20: #{orangenet18_forward.35} parent=0 // pred_region
    %22 = vst [vmem:[#allocation2] sm:$0xff] 0.0
    %23 = vst [vmem:[#allocation2 + $0x8] sm:$0xff] 0.0
    %24 = vst [vmem:[#allocation2 + $0x10] sm:$0xff] 0.0
    %25 = vst [vmem:[#allocation2 + $0x18] sm:$0xff] 0.0
  $region21: #{orangenet18_forward.35} parent=0 // pred_fallthru
    _
  %v26 = vld [vmem:[#allocation2] sm:$0xff]
  %v27 = vld [vmem:[#allocation2 + $0x8] sm:$0xff]
  %v28 = vld [vmem:[#allocation2 + $0x10] sm:$0xff]
  %v29 = vld [vmem:[#allocation2 + $0x18] sm:$0xff]
  %v30 = vld [vmem:[%s0] sm:$0xff]
  %v31 = vld [vmem:[%s0 + $0x8] sm:$0xf]
  %v32 = vld [vmem:[%s0 + $0xc] sm:$0xff]
  %v33 = vld [vmem:[%s0 + $0x14] sm:$0xf]
  %v34 = vld [vmem:[%s0 + $0x18] sm:$0xff]
  %v35 = vld [vmem:[%s0 + $0x20] sm:$0xf]
  %v36 = vld [vmem:[%s0 + $0x24] sm:$0xff]
  %v37 = vld [vmem:[%s0 + $0x2c] sm:$0xf]
  %v38 = vld [vmem:[%s1] sm:$0xf]
  %v39 = vld [vmem:[%s1 + $0x4] sm:$0xf]
  %v40 = vld [vmem:[%s1 + $0x8] sm:$0xf]
  %v41 = vld [vmem:[%s1 + $0xc] sm:$0xf]
  %v42 = vld [vmem:[%s1 + $0x10] sm:$0xf]
  %v43 = vld [vmem:[%s1 + $0x14] sm:$0xf]
  %v44 = vld [vmem:[%s1 + $0x18] sm:$0xf]
  %v45 = vld [vmem:[%s1 + $0x1c] sm:$0xf]
  %v46 = vld [vmem:[%s1 + $0x20] sm:$0xf]
  %v47 = vld [vmem:[%s1 + $0x24] sm:$0xf]
  %v48 = vld [vmem:[%s1 + $0x28] sm:$0xf]
  %v49 = vld [vmem:[%s1 + $0x2c] sm:$0xf]
  %v50 = vld [vmem:[%s1 + $0x30] sm:$0xf]
  %v51 = vld [vmem:[%s1 + $0x34] sm:$0xf]
  %v52 = vld [vmem:[%s1 + $0x38] sm:$0xf]
  %v53 = vld [vmem:[%s1 + $0x3c] sm:$0xf]
  %v54 = vld [vmem:[%s1 + $0x40] sm:$0xf]
  %v55 = vld [vmem:[%s1 + $0x44] sm:$0xf]
  %v56 = vld [vmem:[%s1 + $0x48] sm:$0xf]
  %v57 = vld [vmem:[%s1 + $0x4c] sm:$0xf]
  %v58 = vld [vmem:[%s1 + $0x50] sm:$0xf]
  %v59 = vld [vmem:[%s1 + $0x54] sm:$0xf]
  %v60 = vld [vmem:[%s1 + $0x58] sm:$0xf]
  %v61 = vld [vmem:[%s1 + $0x5c] sm:$0xf]
  %v62 = vld [vmem:[%s1 + $0x60] sm:$0xf]
  %v63 = vld [vmem:[%s1 + $0x64] sm:$0xf]
  %v64 = vld [vmem:[%s1 + $0x68] sm:$0xf]
  %v65 = vld [vmem:[%s1 + $0x6c] sm:$0xf]
  %v66 = vld [vmem:[%s1 + $0x70] sm:$0xf]
  %v67 = vld [vmem:[%s1 + $0x74] sm:$0xf]
  %v68 = vld [vmem:[%s1 + $0x78] sm:$0xf]
  %v69 = vld [vmem:[%s1 + $0x7c] sm:$0xf]
  %v70 = vld [vmem:[%s1 + $0x80] sm:$0xf]
  %v71 = vld [vmem:[%s1 + $0x84] sm:$0xf]
  %v72 = vld [vmem:[%s1 + $0x88] sm:$0xf]
  %v73 = vld [vmem:[%s1 + $0x8c] sm:$0xf]
  %v74 = vld [vmem:[%s1 + $0x90] sm:$0xf]
  %v75 = vld [vmem:[%s1 + $0x94] sm:$0xf]
  %v76 = vld [vmem:[%s1 + $0x98] sm:$0xf]
  %v77 = vld [vmem:[%s1 + $0x9c] sm:$0xf]
  %v78 = vld [vmem:[%s1 + $0xa0] sm:$0xf]
  %v79 = vld [vmem:[%s1 + $0xa4] sm:$0xf]
  %v80 = vld [vmem:[%s1 + $0xa8] sm:$0xf]
  %v81 = vld [vmem:[%s1 + $0xac] sm:$0xf]
  %v82 = vld [vmem:[%s1 + $0xb0] sm:$0xf]
  %v83 = vld [vmem:[%s1 + $0xb4] sm:$0xf]
  %v84 = vld [vmem:[%s1 + $0xb8] sm:$0xf]
  %v85 = vld [vmem:[%s1 + $0xbc] sm:$0xf]
  %v94 = vunpack.c.l.b16 %v30
  %v95 = vunpack.c.h.b16 %v30
  %v96 = vunpack.c.l.b16 %v31
  %v97 = vunpack.c.l.b16 %v32
  %v98 = vunpack.c.h.b16 %v32
  %v99 = vunpack.c.l.b16 %v33
  %v100 = vunpack.c.l.b16 %v34
  %v101 = vunpack.c.h.b16 %v34
  %v102 = vunpack.c.l.b16 %v35
  %v103 = vunpack.c.l.b16 %v36
  %v104 = vunpack.c.h.b16 %v36
  %v105 = vunpack.c.l.b16 %v37
  %v106 = vpack.c.b16 %v97, %v94
  %v107 = vpack.c.b16 %v98, %v95
  %v108 = vpack.c.b16 %v99, %v96
  %v109 = vpack.c.b16 %v103, %v100
  %v110 = vpack.c.b16 %v104, %v101
  %v111 = vpack.c.b16 %v105, %v102
  %v166 = vunpack.c.l.b16 %v38
  %v167 = vunpack.c.l.b16 %v39
  %v168 = vunpack.c.l.b16 %v40
  %v169 = vunpack.c.l.b16 %v41
  %v170 = vunpack.c.l.b16 %v42
  %v171 = vunpack.c.l.b16 %v43
  %v172 = vunpack.c.l.b16 %v44
  %v173 = vunpack.c.l.b16 %v45
  %v174 = vunpack.c.l.b16 %v46
  %v175 = vunpack.c.l.b16 %v47
  %v176 = vunpack.c.l.b16 %v48
  %v177 = vunpack.c.l.b16 %v49
  %v178 = vunpack.c.l.b16 %v50
  %v179 = vunpack.c.l.b16 %v51
  %v180 = vunpack.c.l.b16 %v52
  %v181 = vunpack.c.l.b16 %v53
  %v182 = vunpack.c.l.b16 %v54
  %v183 = vunpack.c.l.b16 %v55
  %v184 = vunpack.c.l.b16 %v56
  %v185 = vunpack.c.l.b16 %v57
  %v186 = vunpack.c.l.b16 %v58
  %v187 = vunpack.c.l.b16 %v59
  %v188 = vunpack.c.l.b16 %v60
  %v189 = vunpack.c.l.b16 %v61
  %v190 = vunpack.c.l.b16 %v62
  %v191 = vunpack.c.l.b16 %v63
  %v192 = vunpack.c.l.b16 %v64
  %v193 = vunpack.c.l.b16 %v65
  %v194 = vunpack.c.l.b16 %v66
  %v195 = vunpack.c.l.b16 %v67
  %v196 = vunpack.c.l.b16 %v68
  %v197 = vunpack.c.l.b16 %v69
  %v198 = vunpack.c.l.b16 %v70
  %v199 = vunpack.c.l.b16 %v71
  %v200 = vunpack.c.l.b16 %v72
  %v201 = vunpack.c.l.b16 %v73
  %v202 = vunpack.c.l.b16 %v74
  %v203 = vunpack.c.l.b16 %v75
  %v204 = vunpack.c.l.b16 %v76
  %v205 = vunpack.c.l.b16 %v77
  %v206 = vunpack.c.l.b16 %v78
  %v207 = vunpack.c.l.b16 %v79
  %v208 = vunpack.c.l.b16 %v80
  %v209 = vunpack.c.l.b16 %v81
  %v210 = vunpack.c.l.b16 %v82
  %v211 = vunpack.c.l.b16 %v83
  %v212 = vunpack.c.l.b16 %v84
  %v213 = vunpack.c.l.b16 %v85
  %v214 = vpack.c.b16 %v167, %v166
  %v215 = vpack.c.b16 %v169, %v168
  %v216 = vpack.c.b16 %v171, %v170
  %v217 = vpack.c.b16 %v173, %v172
  %v218 = vpack.c.b16 %v175, %v174
  %v219 = vpack.c.b16 %v177, %v176
  %v220 = vpack.c.b16 %v179, %v178
  %v221 = vpack.c.b16 %v181, %v180
  %v222 = vpack.c.b16 %v183, %v182
  %v223 = vpack.c.b16 %v185, %v184
  %v224 = vpack.c.b16 %v187, %v186
  %v225 = vpack.c.b16 %v189, %v188
  %v226 = vpack.c.b16 %v191, %v190
  %v227 = vpack.c.b16 %v193, %v192
  %v228 = vpack.c.b16 %v195, %v194
  %v229 = vpack.c.b16 %v197, %v196
  %v230 = vpack.c.b16 %v199, %v198
  %v231 = vpack.c.b16 %v201, %v200
  %v232 = vpack.c.b16 %v203, %v202
  %v233 = vpack.c.b16 %v205, %v204
  %v234 = vpack.c.b16 %v207, %v206
  %v235 = vpack.c.b16 %v209, %v208
  %v236 = vpack.c.b16 %v211, %v210
  %v237 = vpack.c.b16 %v213, %v212
  %262 = vmatprep.subr.bf16.mxu0 0
  %263 = vmatpush1.bf16.msra.mxu0 %v214
  %264 = vmatprep.subr.bf16.mxu0 0
  %265 = vmatpush1.bf16.msra.mxu0 %v215
  %266 = vmatprep.subr.bf16.mxu0 0
  %267 = vmatpush1.bf16.msra.mxu0 %v216
  %268 = vmatprep.subr.bf16.mxu0 0
  %269 = vmatpush1.bf16.msra.mxu0 %v217
  %270 = vmatprep.subr.bf16.mxu0 0
  %271 = vmatpush1.bf16.msra.mxu0 %v218
  %272 = vmatprep.subr.bf16.mxu0 0
  %273 = vmatpush1.bf16.msra.mxu0 %v219
  %274 = vmatprep.subr.bf16.mxu0 0
  %275 = vmatpush1.bf16.msra.mxu0 %v220
  %276 = vmatprep.subr.bf16.mxu0 0
  %277 = vmatpush1.bf16.msra.mxu0 %v221
  %278 = vmatprep.subr.bf16.mxu0 0
  %279 = vmatpush1.bf16.msra.mxu0 %v222
  %280 = vmatprep.subr.bf16.mxu0 0
  %281 = vmatpush1.bf16.msra.mxu0 %v223
  %282 = vmatprep.subr.bf16.mxu0 0
  %283 = vmatpush1.bf16.msra.mxu0 %v224
  %284 = vmatprep.subr.bf16.mxu0 0
  %285 = vmatpush1.bf16.msra.mxu0 %v225
  %286 = vmatprep.subr.bf16.mxu0 0
  %287 = vmatpush1.bf16.msra.mxu0 %v226
  %288 = vmatprep.subr.bf16.mxu0 0
  %289 = vmatpush1.bf16.msra.mxu0 %v227
  %290 = vmatprep.subr.bf16.mxu0 0
  %291 = vmatpush1.bf16.msra.mxu0 %v228
  %292 = vmatprep.subr.bf16.mxu0 0
  %293 = vmatpush1.bf16.msra.mxu0 %v229
  %294 = vmatprep.mubr.bf16.mxu0 %v107
  %295 = vmatmul.mubr.bf16.gmra.mrb[0].mxu0 %v106
  %v296 = vpop.f32.mrb[0].mxu0
  %v297 = vadd.f32 0.0, %v296
  %v298 = vpop.f32.mrb[0].mxu0
  %v299 = vpop.f32.mrb[0].mxu0
  %v300 = vadd.f32 0.0, %v299
  %v301 = vpop.f32.mrb[0].mxu0
  %302 = vmatprep.mubr.bf16.mxu0 %v110
  %303 = vmatmul.mubr.bf16.gmra.mrb[0].mxu0 %v109
  %v304 = vpop.f32.mrb[0].mxu0
  %v305 = vadd.f32 0.0, %v304
  %v306 = vpop.f32.mrb[0].mxu0
  %v307 = vpop.f32.mrb[0].mxu0
  %v308 = vadd.f32 0.0, %v307
  %v309 = vpop.f32.mrb[0].mxu0
  %310 = vdwg.mxu0
  %311 = vmatprep.subr.bf16.mxu0 0
  %312 = vmatpush1.bf16.msra.mxu0 %v230
  %313 = vmatprep.subr.bf16.mxu0 0
  %314 = vmatpush1.bf16.msra.mxu0 %v231
  %315 = vmatprep.subr.bf16.mxu0 0
  %316 = vmatpush1.bf16.msra.mxu0 %v232
  %317 = vmatprep.subr.bf16.mxu0 0
  %318 = vmatpush1.bf16.msra.mxu0 %v233
  %319 = vmatprep.subr.bf16.mxu0 0
  %320 = vmatpush1.bf16.msra.mxu0 %v234
  %321 = vmatprep.subr.bf16.mxu0 0
  %322 = vmatpush1.bf16.msra.mxu0 %v235
  %323 = vmatprep.subr.bf16.mxu0 0
  %324 = vmatpush1.bf16.msra.mxu0 %v236
  %325 = vmatprep.subr.bf16.mxu0 0
  %326 = vmatpush1.bf16.msra.mxu0 %v237
  %327 = vmatprep.subr.bf16.mxu0 0
  %328 = vmatpush1.bf16.msra.mxu0 0
  %329 = vmatprep.subr.bf16.mxu0 0
  %330 = vmatpush1.bf16.msra.mxu0 0
  %331 = vmatprep.subr.bf16.mxu0 0
  %332 = vmatpush1.bf16.msra.mxu0 0
  %333 = vmatprep.subr.bf16.mxu0 0
  %334 = vmatpush1.bf16.msra.mxu0 0
  %335 = vmatprep.subr.bf16.mxu0 0
  %336 = vmatpush1.bf16.msra.mxu0 0
  %337 = vmatprep.subr.bf16.mxu0 0
  %338 = vmatpush1.bf16.msra.mxu0 0
  %339 = vmatprep.subr.bf16.mxu0 0
  %340 = vmatpush1.bf16.msra.mxu0 0
  %341 = vmatprep.subr.bf16.mxu0 0
  %342 = vmatpush1.bf16.msra.mxu0 0
  %343 = vmatprep.mubr.bf16.mxu0 0
  %344 = vmatmul.mubr.bf16.gmra.mrb[0].mxu0 %v108
  %v345 = vpop.f32.mrb[0].mxu0
  %v346 = vadd.f32 %v297, %v345
  %v347 = vpop.f32.mrb[0].mxu0
  %v348 = vpop.f32.mrb[0].mxu0
  %v349 = vadd.f32 %v300, %v348
  %v350 = vpop.f32.mrb[0].mxu0
  %351 = vmatprep.mubr.bf16.mxu0 0
  %352 = vmatmul.mubr.bf16.gmra.mrb[0].mxu0 %v111
  %v353 = vpop.f32.mrb[0].mxu0
  %v354 = vadd.f32 %v305, %v353
  %v355 = vpop.f32.mrb[0].mxu0
  %v356 = vpop.f32.mrb[0].mxu0
  %v357 = vadd.f32 %v308, %v356
  %v358 = vpop.f32.mrb[0].mxu0
  %359 = vdwg.mxu0
  %v360 = vadd.f32 %v26, %v346
  %v361 = vadd.f32 %v27, %v349
  %v362 = vadd.f32 %v28, %v354
  %v363 = vadd.f32 %v29, %v357
  %364 = vst [vmem:[#allocation2] sm:$0xff] %v360
  %365 = vst [vmem:[#allocation2 + $0x8] sm:$0xff] %v361
  %366 = vst [vmem:[#allocation2 + $0x10] sm:$0xff] %v362
  %367 = vst [vmem:[#allocation2 + $0x18] sm:$0xff] %v363
  // Predicated region
  $region22: #{orangenet18_forward.35} parent=0 // pred_check
    %p368 = pneg %p18
  $region23: #{orangenet18_forward.35} parent=0 // pred_check_branch
    %370 = sbr.rel (%p368) target = $region25
  $region24: #{orangenet18_forward.35} parent=0 // pred_region
    %v371 = vld [vmem:[#allocation2] sm:$0xff]
    %v372 = vld [vmem:[#allocation2 + $0x8] sm:$0xff]
    %v373 = vld [vmem:[#allocation2 + $0x10] sm:$0xff]
    %v374 = vld [vmem:[#allocation2 + $0x18] sm:$0xff]
    %v375 = vld [vmem:[%s2] sm:$0x1]
    %v377 = vlaneseq
    %v378 = vshrl.u32 %v377, 7
    %v379 = vsub.s32 0, %v378
    %v380 = vrot.slane %v375, %v379
    %v382 = vadd.f32 %v371, %v380
    %v383 = vadd.f32 %v372, %v380
    %v384 = vadd.f32 %v373, %v380
    %v385 = vadd.f32 %v374, %v380
    %v386 = vld [vmem:[%s3] sm:$0xf]
    %v387 = vld [vmem:[%s3 + $0x4] sm:$0xf]
    %v388 = vld [vmem:[%s3 + $0x8] sm:$0xf]
    %v389 = vld [vmem:[%s3 + $0xc] sm:$0xf]
    %v390 = vunpack.c.l.bf16 %v386
    %v391 = vunpack.c.l.bf16 %v387
    %v392 = vunpack.c.l.bf16 %v388
    %v393 = vunpack.c.l.bf16 %v389
    %v394 = vadd.f32 %v382, %v390
    %v395 = vadd.f32 %v383, %v391
    %v396 = vadd.f32 %v384, %v392
    %v397 = vadd.f32 %v385, %v393
    %v398 = vmax.f32 %v394, 0.0
    %v399 = vmax.f32 %v395, 0.0
    %v400 = vmax.f32 %v396, 0.0
    %v401 = vmax.f32 %v397, 0.0
    %v402 = vpack.c.bf16 %v399, %v398
    %v403 = vpack.c.bf16 %v401, %v400
    %v406 = vunpack.c.l.b16 %v402
    %v407 = vunpack.c.h.b16 %v402
    %v408 = vunpack.c.l.b16 %v403
    %v409 = vunpack.c.h.b16 %v403
    %v410 = vpack.c.b16 %v406, %v406
    %v411 = vpack.c.b16 %v407, %v407
    %v412 = vpack.c.b16 %v408, %v408
    %v413 = vpack.c.b16 %v409, %v409
    %418 = vst [vmem:[%s4] sm:$0xf] %v410
    %419 = vst [vmem:[%s4 + $0x4] sm:$0xf] %v411
    %420 = vst [vmem:[%s4 + $0x8] sm:$0xf] %v412
    %421 = vst [vmem:[%s4 + $0xc] sm:$0xf] %v413
  $region25: #{orangenet18_forward.35} parent=0 // pred_fallthru
    _
  // Predicated region
  $region26: #{orangenet18_forward.35} parent=0 // pred_check
    _
  $region27: #{orangenet18_forward.35} parent=0 // pred_check_branch
    %423 = sbr.rel (0) target = $region29
  $region28: #{orangenet18_forward.35} parent=0 // pred_region
    _
  $region29: #{orangenet18_forward.35} parent=0 // pred_fallthru
    _
  // Predicated region
  $region30: #{orangenet18_forward.35} parent=0 // pred_check
    _
  $region31: #{orangenet18_forward.35} parent=0 // pred_check_branch
    %425 = sbr.rel (0) target = $region33
  $region32: #{orangenet18_forward.35} parent=0 // pred_region
    _
  $region33: #{orangenet18_forward.35} parent=0 // pred_fallthru
    _

// kernel: orangenet18_forward.36
$region0: #{orangenet18_forward.36}
  #allocation0 [shape = 'u32[]', space=smem, size = 0x4, offset = 0x4, fixed_abs, tag = 'smem constant byte address 0x4 - core index']
  #allocation1 [shape = 'u32[144,128]{1,0:T(1,128)}', space=vmem, size = 0x12000, scoped, tag = 'internal scratch']
  #allocation2 [shape = 'f32[32,128]{1,0:T(8,128)}', space=vmem, size = 0x4000, scoped, tag = 'scratch operand']
  %s0 = inlined_call_operand.vmem [shape: bf16[32,384], index: 0, kind: input, shape index: {}]
  %s1 = inlined_call_operand.vmem [shape: bf16[384,128], index: 1, kind: input, shape index: {}]
  %s2 = inlined_call_operand.vmem [shape: f32[1,128], index: 2, kind: input, shape index: {}]
  %s3 = inlined_call_operand.vmem [shape: bf16[32,128], index: 3, kind: output, shape index: {}]
  %s4 = sld [smem:[#allocation0]]
  $region30: #{orangenet18_forward.36} parent=0
    _
  %s6 = ssub.s32 1, %s4
  %s7 = scalar_select 0, %s6, %s4
  // Predicated region
  $region2: #{orangenet18_forward.36} parent=0 // pred_check
    _
  $region3: #{orangenet18_forward.36} parent=0 // pred_check_branch
    %9 = sbr.rel (0) target = $region5
  $region4: #{orangenet18_forward.36} parent=0 // pred_region
    _
  $region5: #{orangenet18_forward.36} parent=0 // pred_fallthru
    _
  // Predicated region
  $region6: #{orangenet18_forward.36} parent=0 // pred_check
    _
  $region7: #{orangenet18_forward.36} parent=0 // pred_check_branch
    %11 = sbr.rel (0) target = $region9
  $region8: #{orangenet18_forward.36} parent=0 // pred_region
    _
  $region9: #{orangenet18_forward.36} parent=0 // pred_fallthru
    _
  // Predicated region
  $region10: #{orangenet18_forward.36} parent=0 // pred_check
    _
  $region11: #{orangenet18_forward.36} parent=0 // pred_check_branch
    %13 = sbr.rel (0) target = $region13
  $region12: #{orangenet18_forward.36} parent=0 // pred_region
    _
  $region13: #{orangenet18_forward.36} parent=0 // pred_fallthru
    _
  %p15 = scmp.eq.s32.totalorder 0, 0
  // Predicated region
  $region14: #{orangenet18_forward.36} parent=0 // pred_check
    %p16 = pneg %p15
  $region15: #{orangenet18_forward.36} parent=0 // pred_check_branch
    %18 = sbr.rel (%p16) target = $region17
  $region16: #{orangenet18_forward.36} parent=0 // pred_region
    %19 = vst [vmem:[#allocation2] sm:$0xff] 0.0
    %20 = vst [vmem:[#allocation2 + $0x8] sm:$0xff] 0.0
    %21 = vst [vmem:[#allocation2 + $0x10] sm:$0xff] 0.0
    %22 = vst [vmem:[#allocation2 + $0x18] sm:$0xff] 0.0
  $region17: #{orangenet18_forward.36} parent=0 // pred_fallthru
    _
  %v23 = vld [vmem:[#allocation2] sm:$0xff]
  %v24 = vld [vmem:[#allocation2 + $0x8] sm:$0xff]
  %v25 = vld [vmem:[#allocation2 + $0x10] sm:$0xff]
  %v26 = vld [vmem:[#allocation2 + $0x18] sm:$0xff]
  %v27 = vld [vmem:[%s0] sm:$0xff]
  %v28 = vld [vmem:[%s0 + $0x8] sm:$0xf]
  %v29 = vld [vmem:[%s0 + $0xc] sm:$0xff]
  %v30 = vld [vmem:[%s0 + $0x14] sm:$0xf]
  %v31 = vld [vmem:[%s0 + $0x18] sm:$0xff]
  %v32 = vld [vmem:[%s0 + $0x20] sm:$0xf]
  %v33 = vld [vmem:[%s0 + $0x24] sm:$0xff]
  %v34 = vld [vmem:[%s0 + $0x2c] sm:$0xf]
  %v35 = vld [vmem:[%s1] sm:$0xf]
  %v36 = vld [vmem:[%s1 + $0x4] sm:$0xf]
  %v37 = vld [vmem:[%s1 + $0x8] sm:$0xf]
  %v38 = vld [vmem:[%s1 + $0xc] sm:$0xf]
  %v39 = vld [vmem:[%s1 + $0x10] sm:$0xf]
  %v40 = vld [vmem:[%s1 + $0x14] sm:$0xf]
  %v41 = vld [vmem:[%s1 + $0x18] sm:$0xf]
  %v42 = vld [vmem:[%s1 + $0x1c] sm:$0xf]
  %v43 = vld [vmem:[%s1 + $0x20] sm:$0xf]
  %v44 = vld [vmem:[%s1 + $0x24] sm:$0xf]
  %v45 = vld [vmem:[%s1 + $0x28] sm:$0xf]
  %v46 = vld [vmem:[%s1 + $0x2c] sm:$0xf]
  %v47 = vld [vmem:[%s1 + $0x30] sm:$0xf]
  %v48 = vld [vmem:[%s1 + $0x34] sm:$0xf]
  %v49 = vld [vmem:[%s1 + $0x38] sm:$0xf]
  %v50 = vld [vmem:[%s1 + $0x3c] sm:$0xf]
  %v51 = vld [vmem:[%s1 + $0x40] sm:$0xf]
  %v52 = vld [vmem:[%s1 + $0x44] sm:$0xf]
  %v53 = vld [vmem:[%s1 + $0x48] sm:$0xf]
  %v54 = vld [vmem:[%s1 + $0x4c] sm:$0xf]
  %v55 = vld [vmem:[%s1 + $0x50] sm:$0xf]
  %v56 = vld [vmem:[%s1 + $0x54] sm:$0xf]
  %v57 = vld [vmem:[%s1 + $0x58] sm:$0xf]
  %v58 = vld [vmem:[%s1 + $0x5c] sm:$0xf]
  %v59 = vld [vmem:[%s1 + $0x60] sm:$0xf]
  %v60 = vld [vmem:[%s1 + $0x64] sm:$0xf]
  %v61 = vld [vmem:[%s1 + $0x68] sm:$0xf]
  %v62 = vld [vmem:[%s1 + $0x6c] sm:$0xf]
  %v63 = vld [vmem:[%s1 + $0x70] sm:$0xf]
  %v64 = vld [vmem:[%s1 + $0x74] sm:$0xf]
  %v65 = vld [vmem:[%s1 + $0x78] sm:$0xf]
  %v66 = vld [vmem:[%s1 + $0x7c] sm:$0xf]
  %v67 = vld [vmem:[%s1 + $0x80] sm:$0xf]
  %v68 = vld [vmem:[%s1 + $0x84] sm:$0xf]
  %v69 = vld [vmem:[%s1 + $0x88] sm:$0xf]
  %v70 = vld [vmem:[%s1 + $0x8c] sm:$0xf]
  %v71 = vld [vmem:[%s1 + $0x90] sm:$0xf]
  %v72 = vld [vmem:[%s1 + $0x94] sm:$0xf]
  %v73 = vld [vmem:[%s1 + $0x98] sm:$0xf]
  %v74 = vld [vmem:[%s1 + $0x9c] sm:$0xf]
  %v75 = vld [vmem:[%s1 + $0xa0] sm:$0xf]
  %v76 = vld [vmem:[%s1 + $0xa4] sm:$0xf]
  %v77 = vld [vmem:[%s1 + $0xa8] sm:$0xf]
  %v78 = vld [vmem:[%s1 + $0xac] sm:$0xf]
  %v79 = vld [vmem:[%s1 + $0xb0] sm:$0xf]
  %v80 = vld [vmem:[%s1 + $0xb4] sm:$0xf]
  %v81 = vld [vmem:[%s1 + $0xb8] sm:$0xf]
  %v82 = vld [vmem:[%s1 + $0xbc] sm:$0xf]
  %v91 = vunpack.c.l.b16 %v27
  %v92 = vunpack.c.h.b16 %v27
  %v93 = vunpack.c.l.b16 %v28
  %v94 = vunpack.c.l.b16 %v29
  %v95 = vunpack.c.h.b16 %v29
  %v96 = vunpack.c.l.b16 %v30
  %v97 = vunpack.c.l.b16 %v31
  %v98 = vunpack.c.h.b16 %v31
  %v99 = vunpack.c.l.b16 %v32
  %v100 = vunpack.c.l.b16 %v33
  %v101 = vunpack.c.h.b16 %v33
  %v102 = vunpack.c.l.b16 %v34
  %v103 = vpack.c.b16 %v94, %v91
  %v104 = vpack.c.b16 %v95, %v92
  %v105 = vpack.c.b16 %v96, %v93
  %v106 = vpack.c.b16 %v100, %v97
  %v107 = vpack.c.b16 %v101, %v98
  %v108 = vpack.c.b16 %v102, %v99
  %v163 = vunpack.c.l.b16 %v35
  %v164 = vunpack.c.l.b16 %v36
  %v165 = vunpack.c.l.b16 %v37
  %v166 = vunpack.c.l.b16 %v38
  %v167 = vunpack.c.l.b16 %v39
  %v168 = vunpack.c.l.b16 %v40
  %v169 = vunpack.c.l.b16 %v41
  %v170 = vunpack.c.l.b16 %v42
  %v171 = vunpack.c.l.b16 %v43
  %v172 = vunpack.c.l.b16 %v44
  %v173 = vunpack.c.l.b16 %v45
  %v174 = vunpack.c.l.b16 %v46
  %v175 = vunpack.c.l.b16 %v47
  %v176 = vunpack.c.l.b16 %v48
  %v177 = vunpack.c.l.b16 %v49
  %v178 = vunpack.c.l.b16 %v50
  %v179 = vunpack.c.l.b16 %v51
  %v180 = vunpack.c.l.b16 %v52
  %v181 = vunpack.c.l.b16 %v53
  %v182 = vunpack.c.l.b16 %v54
  %v183 = vunpack.c.l.b16 %v55
  %v184 = vunpack.c.l.b16 %v56
  %v185 = vunpack.c.l.b16 %v57
  %v186 = vunpack.c.l.b16 %v58
  %v187 = vunpack.c.l.b16 %v59
  %v188 = vunpack.c.l.b16 %v60
  %v189 = vunpack.c.l.b16 %v61
  %v190 = vunpack.c.l.b16 %v62
  %v191 = vunpack.c.l.b16 %v63
  %v192 = vunpack.c.l.b16 %v64
  %v193 = vunpack.c.l.b16 %v65
  %v194 = vunpack.c.l.b16 %v66
  %v195 = vunpack.c.l.b16 %v67
  %v196 = vunpack.c.l.b16 %v68
  %v197 = vunpack.c.l.b16 %v69
  %v198 = vunpack.c.l.b16 %v70
  %v199 = vunpack.c.l.b16 %v71
  %v200 = vunpack.c.l.b16 %v72
  %v201 = vunpack.c.l.b16 %v73
  %v202 = vunpack.c.l.b16 %v74
  %v203 = vunpack.c.l.b16 %v75
  %v204 = vunpack.c.l.b16 %v76
  %v205 = vunpack.c.l.b16 %v77
  %v206 = vunpack.c.l.b16 %v78
  %v207 = vunpack.c.l.b16 %v79
  %v208 = vunpack.c.l.b16 %v80
  %v209 = vunpack.c.l.b16 %v81
  %v210 = vunpack.c.l.b16 %v82
  %v211 = vpack.c.b16 %v164, %v163
  %v212 = vpack.c.b16 %v166, %v165
  %v213 = vpack.c.b16 %v168, %v167
  %v214 = vpack.c.b16 %v170, %v169
  %v215 = vpack.c.b16 %v172, %v171
  %v216 = vpack.c.b16 %v174, %v173
  %v217 = vpack.c.b16 %v176, %v175
  %v218 = vpack.c.b16 %v178, %v177
  %v219 = vpack.c.b16 %v180, %v179
  %v220 = vpack.c.b16 %v182, %v181
  %v221 = vpack.c.b16 %v184, %v183
  %v222 = vpack.c.b16 %v186, %v185
  %v223 = vpack.c.b16 %v188, %v187
  %v224 = vpack.c.b16 %v190, %v189
  %v225 = vpack.c.b16 %v192, %v191
  %v226 = vpack.c.b16 %v194, %v193
  %v227 = vpack.c.b16 %v196, %v195
  %v228 = vpack.c.b16 %v198, %v197
  %v229 = vpack.c.b16 %v200, %v199
  %v230 = vpack.c.b16 %v202, %v201
  %v231 = vpack.c.b16 %v204, %v203
  %v232 = vpack.c.b16 %v206, %v205
  %v233 = vpack.c.b16 %v208, %v207
  %v234 = vpack.c.b16 %v210, %v209
  %259 = vmatprep.subr.bf16.mxu0 0
  %260 = vmatpush1.bf16.msra.mxu0 %v211
  %261 = vmatprep.subr.bf16.mxu0 0
  %262 = vmatpush1.bf16.msra.mxu0 %v212
  %263 = vmatprep.subr.bf16.mxu0 0
  %264 = vmatpush1.bf16.msra.mxu0 %v213
  %265 = vmatprep.subr.bf16.mxu0 0
  %266 = vmatpush1.bf16.msra.mxu0 %v214
  %267 = vmatprep.subr.bf16.mxu0 0
  %268 = vmatpush1.bf16.msra.mxu0 %v215
  %269 = vmatprep.subr.bf16.mxu0 0
  %270 = vmatpush1.bf16.msra.mxu0 %v216
  %271 = vmatprep.subr.bf16.mxu0 0
  %272 = vmatpush1.bf16.msra.mxu0 %v217
  %273 = vmatprep.subr.bf16.mxu0 0
  %274 = vmatpush1.bf16.msra.mxu0 %v218
  %275 = vmatprep.subr.bf16.mxu0 0
  %276 = vmatpush1.bf16.msra.mxu0 %v219
  %277 = vmatprep.subr.bf16.mxu0 0
  %278 = vmatpush1.bf16.msra.mxu0 %v220
  %279 = vmatprep.subr.bf16.mxu0 0
  %280 = vmatpush1.bf16.msra.mxu0 %v221
  %281 = vmatprep.subr.bf16.mxu0 0
  %282 = vmatpush1.bf16.msra.mxu0 %v222
  %283 = vmatprep.subr.bf16.mxu0 0
  %284 = vmatpush1.bf16.msra.mxu0 %v223
  %285 = vmatprep.subr.bf16.mxu0 0
  %286 = vmatpush1.bf16.msra.mxu0 %v224
  %287 = vmatprep.subr.bf16.mxu0 0
  %288 = vmatpush1.bf16.msra.mxu0 %v225
  %289 = vmatprep.subr.bf16.mxu0 0
  %290 = vmatpush1.bf16.msra.mxu0 %v226
  %291 = vmatprep.mubr.bf16.mxu0 %v104
  %292 = vmatmul.mubr.bf16.gmra.mrb[0].mxu0 %v103
  %v293 = vpop.f32.mrb[0].mxu0
  %v294 = vadd.f32 0.0, %v293
  %v295 = vpop.f32.mrb[0].mxu0
  %v296 = vpop.f32.mrb[0].mxu0
  %v297 = vadd.f32 0.0, %v296
  %v298 = vpop.f32.mrb[0].mxu0
  %299 = vmatprep.mubr.bf16.mxu0 %v107
  %300 = vmatmul.mubr.bf16.gmra.mrb[0].mxu0 %v106
  %v301 = vpop.f32.mrb[0].mxu0
  %v302 = vadd.f32 0.0, %v301
  %v303 = vpop.f32.mrb[0].mxu0
  %v304 = vpop.f32.mrb[0].mxu0
  %v305 = vadd.f32 0.0, %v304
  %v306 = vpop.f32.mrb[0].mxu0
  %307 = vdwg.mxu0
  %308 = vmatprep.subr.bf16.mxu0 0
  %309 = vmatpush1.bf16.msra.mxu0 %v227
  %310 = vmatprep.subr.bf16.mxu0 0
  %311 = vmatpush1.bf16.msra.mxu0 %v228
  %312 = vmatprep.subr.bf16.mxu0 0
  %313 = vmatpush1.bf16.msra.mxu0 %v229
  %314 = vmatprep.subr.bf16.mxu0 0
  %315 = vmatpush1.bf16.msra.mxu0 %v230
  %316 = vmatprep.subr.bf16.mxu0 0
  %317 = vmatpush1.bf16.msra.mxu0 %v231
  %318 = vmatprep.subr.bf16.mxu0 0
  %319 = vmatpush1.bf16.msra.mxu0 %v232
  %320 = vmatprep.subr.bf16.mxu0 0
  %321 = vmatpush1.bf16.msra.mxu0 %v233
  %322 = vmatprep.subr.bf16.mxu0 0
  %323 = vmatpush1.bf16.msra.mxu0 %v234
  %324 = vmatprep.subr.bf16.mxu0 0
  %325 = vmatpush1.bf16.msra.mxu0 0
  %326 = vmatprep.subr.bf16.mxu0 0
  %327 = vmatpush1.bf16.msra.mxu0 0
  %328 = vmatprep.subr.bf16.mxu0 0
  %329 = vmatpush1.bf16.msra.mxu0 0
  %330 = vmatprep.subr.bf16.mxu0 0
  %331 = vmatpush1.bf16.msra.mxu0 0
  %332 = vmatprep.subr.bf16.mxu0 0
  %333 = vmatpush1.bf16.msra.mxu0 0
  %334 = vmatprep.subr.bf16.mxu0 0
  %335 = vmatpush1.bf16.msra.mxu0 0
  %336 = vmatprep.subr.bf16.mxu0 0
  %337 = vmatpush1.bf16.msra.mxu0 0
  %338 = vmatprep.subr.bf16.mxu0 0
  %339 = vmatpush1.bf16.msra.mxu0 0
  %340 = vmatprep.mubr.bf16.mxu0 0
  %341 = vmatmul.mubr.bf16.gmra.mrb[0].mxu0 %v105
  %v342 = vpop.f32.mrb[0].mxu0
  %v343 = vadd.f32 %v294, %v342
  %v344 = vpop.f32.mrb[0].mxu0
  %v345 = vpop.f32.mrb[0].mxu0
  %v346 = vadd.f32 %v297, %v345
  %v347 = vpop.f32.mrb[0].mxu0
  %348 = vmatprep.mubr.bf16.mxu0 0
  %349 = vmatmul.mubr.bf16.gmra.mrb[0].mxu0 %v108
  %v350 = vpop.f32.mrb[0].mxu0
  %v351 = vadd.f32 %v302, %v350
  %v352 = vpop.f32.mrb[0].mxu0
  %v353 = vpop.f32.mrb[0].mxu0
  %v354 = vadd.f32 %v305, %v353
  %v355 = vpop.f32.mrb[0].mxu0
  %356 = vdwg.mxu0
  %v357 = vadd.f32 %v23, %v343
  %v358 = vadd.f32 %v24, %v346
  %v359 = vadd.f32 %v25, %v351
  %v360 = vadd.f32 %v26, %v354
  %361 = vst [vmem:[#allocation2] sm:$0xff] %v357
  %362 = vst [vmem:[#allocation2 + $0x8] sm:$0xff] %v358
  %363 = vst [vmem:[#allocation2 + $0x10] sm:$0xff] %v359
  %364 = vst [vmem:[#allocation2 + $0x18] sm:$0xff] %v360
  // Predicated region
  $region18: #{orangenet18_forward.36} parent=0 // pred_check
    %p365 = pneg %p15
  $region19: #{orangenet18_forward.36} parent=0 // pred_check_branch
    %367 = sbr.rel (%p365) target = $region21
  $region20: #{orangenet18_forward.36} parent=0 // pred_region
    %v368 = vld [vmem:[#allocation2] sm:$0xff]
    %v369 = vld [vmem:[#allocation2 + $0x8] sm:$0xff]
    %v370 = vld [vmem:[#allocation2 + $0x10] sm:$0xff]
    %v371 = vld [vmem:[#allocation2 + $0x18] sm:$0xff]
    %v372 = vld [vmem:[%s2] sm:$0x1]
    %v374 = vlaneseq
    %v375 = vshrl.u32 %v374, 7
    %v376 = vsub.s32 0, %v375
    %v377 = vrot.slane %v372, %v376
    %v379 = vadd.f32 %v368, %v377
    %v380 = vadd.f32 %v369, %v377
    %v381 = vadd.f32 %v370, %v377
    %v382 = vadd.f32 %v371, %v377
    %v383 = vmax.f32 %v379, 0.0
    %v384 = vmax.f32 %v380, 0.0
    %v385 = vmax.f32 %v381, 0.0
    %v386 = vmax.f32 %v382, 0.0
    %v387 = vpack.c.bf16 %v384, %v383
    %v388 = vpack.c.bf16 %v386, %v385
    %v391 = vunpack.c.l.b16 %v387
    %v392 = vunpack.c.h.b16 %v387
    %v393 = vunpack.c.l.b16 %v388
    %v394 = vunpack.c.h.b16 %v388
    %v395 = vpack.c.b16 %v391, %v391
    %v396 = vpack.c.b16 %v392, %v392
    %v397 = vpack.c.b16 %v393, %v393
    %v398 = vpack.c.b16 %v394, %v394
    %403 = vst [vmem:[%s3] sm:$0xf] %v395
    %404 = vst [vmem:[%s3 + $0x4] sm:$0xf] %v396
    %405 = vst [vmem:[%s3 + $0x8] sm:$0xf] %v397
    %406 = vst [vmem:[%s3 + $0xc] sm:$0xf] %v398
  $region21: #{orangenet18_forward.36} parent=0 // pred_fallthru
    _
  // Predicated region
  $region22: #{orangenet18_forward.36} parent=0 // pred_check
    _
  $region23: #{orangenet18_forward.36} parent=0 // pred_check_branch
    %408 = sbr.rel (0) target = $region25
  $region24: #{orangenet18_forward.36} parent=0 // pred_region
    _
  $region25: #{orangenet18_forward.36} parent=0 // pred_fallthru
    _
  // Predicated region
  $region26: #{orangenet18_forward.36} parent=0 // pred_check
    _
  $region27: #{orangenet18_forward.36} parent=0 // pred_check_branch
    %410 = sbr.rel (0) target = $region29
  $region28: #{orangenet18_forward.36} parent=0 // pred_region
    _
  $region29: #{orangenet18_forward.36} parent=0 // pred_fallthru
    _

// kernel: orangenet18_forward.38
$region0: #{orangenet18_forward.38}
  #allocation0 [shape = 'u32[]', space=smem, size = 0x4, offset = 0x4, fixed_abs, tag = 'smem constant byte address 0x4 - core index']
  #allocation1 [shape = 'u32[144,128]{1,0:T(1,128)}', space=vmem, size = 0x12000, scoped, tag = 'internal scratch']
  #allocation2 [shape = 'f32[8,128]{1,0:T(8,128)}', space=vmem, size = 0x1000, scoped, tag = 'scratch operand']
  %s0 = inlined_call_operand.vmem [shape: bf16[8,384], index: 0, kind: input, shape index: {}]
  %s1 = inlined_call_operand.vmem [shape: bf16[384,128], index: 1, kind: input, shape index: {}]
  %s2 = inlined_call_operand.vmem [shape: f32[1,128], index: 2, kind: input, shape index: {}]
  %s3 = inlined_call_operand.vmem [shape: bf16[8,128], index: 3, kind: output, shape index: {}]
  %s4 = sld [smem:[#allocation0]]
  $region30: #{orangenet18_forward.38} parent=0
    _
  %s6 = ssub.s32 1, %s4
  %s7 = scalar_select 0, %s6, %s4
  // Predicated region
  $region2: #{orangenet18_forward.38} parent=0 // pred_check
    _
  $region3: #{orangenet18_forward.38} parent=0 // pred_check_branch
    %9 = sbr.rel (0) target = $region5
  $region4: #{orangenet18_forward.38} parent=0 // pred_region
    _
  $region5: #{orangenet18_forward.38} parent=0 // pred_fallthru
    _
  // Predicated region
  $region6: #{orangenet18_forward.38} parent=0 // pred_check
    _
  $region7: #{orangenet18_forward.38} parent=0 // pred_check_branch
    %11 = sbr.rel (0) target = $region9
  $region8: #{orangenet18_forward.38} parent=0 // pred_region
    _
  $region9: #{orangenet18_forward.38} parent=0 // pred_fallthru
    _
  // Predicated region
  $region10: #{orangenet18_forward.38} parent=0 // pred_check
    _
  $region11: #{orangenet18_forward.38} parent=0 // pred_check_branch
    %13 = sbr.rel (0) target = $region13
  $region12: #{orangenet18_forward.38} parent=0 // pred_region
    _
  $region13: #{orangenet18_forward.38} parent=0 // pred_fallthru
    _
  %p15 = scmp.eq.s32.totalorder 0, 0
  // Predicated region
  $region14: #{orangenet18_forward.38} parent=0 // pred_check
    %p16 = pneg %p15
  $region15: #{orangenet18_forward.38} parent=0 // pred_check_branch
    %18 = sbr.rel (%p16) target = $region17
  $region16: #{orangenet18_forward.38} parent=0 // pred_region
    %19 = vst [vmem:[#allocation2] sm:$0xff] 0.0
  $region17: #{orangenet18_forward.38} parent=0 // pred_fallthru
    _
  %v20 = vld [vmem:[#allocation2] sm:$0xff]
  %v21 = vld [vmem:[%s0] sm:$0xff]
  %v22 = vld [vmem:[%s0 + $0x8] sm:$0xf]
  %v23 = vld [vmem:[%s1] sm:$0xf]
  %v24 = vld [vmem:[%s1 + $0x4] sm:$0xf]
  %v25 = vld [vmem:[%s1 + $0x8] sm:$0xf]
  %v26 = vld [vmem:[%s1 + $0xc] sm:$0xf]
  %v27 = vld [vmem:[%s1 + $0x10] sm:$0xf]
  %v28 = vld [vmem:[%s1 + $0x14] sm:$0xf]
  %v29 = vld [vmem:[%s1 + $0x18] sm:$0xf]
  %v30 = vld [vmem:[%s1 + $0x1c] sm:$0xf]
  %v31 = vld [vmem:[%s1 + $0x20] sm:$0xf]
  %v32 = vld [vmem:[%s1 + $0x24] sm:$0xf]
  %v33 = vld [vmem:[%s1 + $0x28] sm:$0xf]
  %v34 = vld [vmem:[%s1 + $0x2c] sm:$0xf]
  %v35 = vld [vmem:[%s1 + $0x30] sm:$0xf]
  %v36 = vld [vmem:[%s1 + $0x34] sm:$0xf]
  %v37 = vld [vmem:[%s1 + $0x38] sm:$0xf]
  %v38 = vld [vmem:[%s1 + $0x3c] sm:$0xf]
  %v39 = vld [vmem:[%s1 + $0x40] sm:$0xf]
  %v40 = vld [vmem:[%s1 + $0x44] sm:$0xf]
  %v41 = vld [vmem:[%s1 + $0x48] sm:$0xf]
  %v42 = vld [vmem:[%s1 + $0x4c] sm:$0xf]
  %v43 = vld [vmem:[%s1 + $0x50] sm:$0xf]
  %v44 = vld [vmem:[%s1 + $0x54] sm:$0xf]
  %v45 = vld [vmem:[%s1 + $0x58] sm:$0xf]
  %v46 = vld [vmem:[%s1 + $0x5c] sm:$0xf]
  %v47 = vld [vmem:[%s1 + $0x60] sm:$0xf]
  %v48 = vld [vmem:[%s1 + $0x64] sm:$0xf]
  %v49 = vld [vmem:[%s1 + $0x68] sm:$0xf]
  %v50 = vld [vmem:[%s1 + $0x6c] sm:$0xf]
  %v51 = vld [vmem:[%s1 + $0x70] sm:$0xf]
  %v52 = vld [vmem:[%s1 + $0x74] sm:$0xf]
  %v53 = vld [vmem:[%s1 + $0x78] sm:$0xf]
  %v54 = vld [vmem:[%s1 + $0x7c] sm:$0xf]
  %v55 = vld [vmem:[%s1 + $0x80] sm:$0xf]
  %v56 = vld [vmem:[%s1 + $0x84] sm:$0xf]
  %v57 = vld [vmem:[%s1 + $0x88] sm:$0xf]
  %v58 = vld [vmem:[%s1 + $0x8c] sm:$0xf]
  %v59 = vld [vmem:[%s1 + $0x90] sm:$0xf]
  %v60 = vld [vmem:[%s1 + $0x94] sm:$0xf]
  %v61 = vld [vmem:[%s1 + $0x98] sm:$0xf]
  %v62 = vld [vmem:[%s1 + $0x9c] sm:$0xf]
  %v63 = vld [vmem:[%s1 + $0xa0] sm:$0xf]
  %v64 = vld [vmem:[%s1 + $0xa4] sm:$0xf]
  %v65 = vld [vmem:[%s1 + $0xa8] sm:$0xf]
  %v66 = vld [vmem:[%s1 + $0xac] sm:$0xf]
  %v67 = vld [vmem:[%s1 + $0xb0] sm:$0xf]
  %v68 = vld [vmem:[%s1 + $0xb4] sm:$0xf]
  %v69 = vld [vmem:[%s1 + $0xb8] sm:$0xf]
  %v70 = vld [vmem:[%s1 + $0xbc] sm:$0xf]
  %v73 = vunpack.c.l.b16 %v21
  %v74 = vunpack.c.h.b16 %v21
  %v75 = vunpack.c.l.b16 %v22
  %v76 = vpack.c.b16 %v73, %v73
  %v77 = vpack.c.b16 %v74, %v74
  %v78 = vpack.c.b16 %v75, %v75
  %v130 = vunpack.c.l.b16 %v23
  %v131 = vunpack.c.l.b16 %v24
  %v132 = vunpack.c.l.b16 %v25
  %v133 = vunpack.c.l.b16 %v26
  %v134 = vunpack.c.l.b16 %v27
  %v135 = vunpack.c.l.b16 %v28
  %v136 = vunpack.c.l.b16 %v29
  %v137 = vunpack.c.l.b16 %v30
  %v138 = vunpack.c.l.b16 %v31
  %v139 = vunpack.c.l.b16 %v32
  %v140 = vunpack.c.l.b16 %v33
  %v141 = vunpack.c.l.b16 %v34
  %v142 = vunpack.c.l.b16 %v35
  %v143 = vunpack.c.l.b16 %v36
  %v144 = vunpack.c.l.b16 %v37
  %v145 = vunpack.c.l.b16 %v38
  %v146 = vunpack.c.l.b16 %v39
  %v147 = vunpack.c.l.b16 %v40
  %v148 = vunpack.c.l.b16 %v41
  %v149 = vunpack.c.l.b16 %v42
  %v150 = vunpack.c.l.b16 %v43
  %v151 = vunpack.c.l.b16 %v44
  %v152 = vunpack.c.l.b16 %v45
  %v153 = vunpack.c.l.b16 %v46
  %v154 = vunpack.c.l.b16 %v47
  %v155 = vunpack.c.l.b16 %v48
  %v156 = vunpack.c.l.b16 %v49
  %v157 = vunpack.c.l.b16 %v50
  %v158 = vunpack.c.l.b16 %v51
  %v159 = vunpack.c.l.b16 %v52
  %v160 = vunpack.c.l.b16 %v53
  %v161 = vunpack.c.l.b16 %v54
  %v162 = vunpack.c.l.b16 %v55
  %v163 = vunpack.c.l.b16 %v56
  %v164 = vunpack.c.l.b16 %v57
  %v165 = vunpack.c.l.b16 %v58
  %v166 = vunpack.c.l.b16 %v59
  %v167 = vunpack.c.l.b16 %v60
  %v168 = vunpack.c.l.b16 %v61
  %v169 = vunpack.c.l.b16 %v62
  %v170 = vunpack.c.l.b16 %v63
  %v171 = vunpack.c.l.b16 %v64
  %v172 = vunpack.c.l.b16 %v65
  %v173 = vunpack.c.l.b16 %v66
  %v174 = vunpack.c.l.b16 %v67
  %v175 = vunpack.c.l.b16 %v68
  %v176 = vunpack.c.l.b16 %v69
  %v177 = vunpack.c.l.b16 %v70
  %v178 = vpack.c.b16 %v131, %v130
  %v179 = vpack.c.b16 %v133, %v132
  %v180 = vpack.c.b16 %v135, %v134
  %v181 = vpack.c.b16 %v137, %v136
  %v182 = vpack.c.b16 %v139, %v138
  %v183 = vpack.c.b16 %v141, %v140
  %v184 = vpack.c.b16 %v143, %v142
  %v185 = vpack.c.b16 %v145, %v144
  %v186 = vpack.c.b16 %v147, %v146
  %v187 = vpack.c.b16 %v149, %v148
  %v188 = vpack.c.b16 %v151, %v150
  %v189 = vpack.c.b16 %v153, %v152
  %v190 = vpack.c.b16 %v155, %v154
  %v191 = vpack.c.b16 %v157, %v156
  %v192 = vpack.c.b16 %v159, %v158
  %v193 = vpack.c.b16 %v161, %v160
  %v194 = vpack.c.b16 %v163, %v162
  %v195 = vpack.c.b16 %v165, %v164
  %v196 = vpack.c.b16 %v167, %v166
  %v197 = vpack.c.b16 %v169, %v168
  %v198 = vpack.c.b16 %v171, %v170
  %v199 = vpack.c.b16 %v173, %v172
  %v200 = vpack.c.b16 %v175, %v174
  %v201 = vpack.c.b16 %v177, %v176
  %226 = vmatprep.subr.bf16.mxu0 0
  %227 = vmatpush1.bf16.msra.mxu0 %v178
  %228 = vmatprep.subr.bf16.mxu0 0
  %229 = vmatpush1.bf16.msra.mxu0 %v179
  %230 = vmatprep.subr.bf16.mxu0 0
  %231 = vmatpush1.bf16.msra.mxu0 %v180
  %232 = vmatprep.subr.bf16.mxu0 0
  %233 = vmatpush1.bf16.msra.mxu0 %v181
  %234 = vmatprep.subr.bf16.mxu0 0
  %235 = vmatpush1.bf16.msra.mxu0 %v182
  %236 = vmatprep.subr.bf16.mxu0 0
  %237 = vmatpush1.bf16.msra.mxu0 %v183
  %238 = vmatprep.subr.bf16.mxu0 0
  %239 = vmatpush1.bf16.msra.mxu0 %v184
  %240 = vmatprep.subr.bf16.mxu0 0
  %241 = vmatpush1.bf16.msra.mxu0 %v185
  %242 = vmatprep.subr.bf16.mxu0 0
  %243 = vmatpush1.bf16.msra.mxu0 %v186
  %244 = vmatprep.subr.bf16.mxu0 0
  %245 = vmatpush1.bf16.msra.mxu0 %v187
  %246 = vmatprep.subr.bf16.mxu0 0
  %247 = vmatpush1.bf16.msra.mxu0 %v188
  %248 = vmatprep.subr.bf16.mxu0 0
  %249 = vmatpush1.bf16.msra.mxu0 %v189
  %250 = vmatprep.subr.bf16.mxu0 0
  %251 = vmatpush1.bf16.msra.mxu0 %v190
  %252 = vmatprep.subr.bf16.mxu0 0
  %253 = vmatpush1.bf16.msra.mxu0 %v191
  %254 = vmatprep.subr.bf16.mxu0 0
  %255 = vmatpush1.bf16.msra.mxu0 %v192
  %256 = vmatprep.subr.bf16.mxu0 0
  %257 = vmatpush1.bf16.msra.mxu0 %v193
  %258 = vmatprep.mubr.bf16.mxu0 %v77
  %259 = vmatmul.mubr.bf16.gmra.mrb[0].mxu0 %v76
  %v260 = vpop.f32.mrb[0].mxu0
  %v261 = vadd.f32 0.0, %v260
  %v262 = vpop.f32.mrb[0].mxu0
  %v263 = vpop.f32.mrb[0].mxu0
  %v264 = vpop.f32.mrb[0].mxu0
  %265 = vdwg.mxu0
  %266 = vmatprep.subr.bf16.mxu0 0
  %267 = vmatpush1.bf16.msra.mxu0 %v194
  %268 = vmatprep.subr.bf16.mxu0 0
  %269 = vmatpush1.bf16.msra.mxu0 %v195
  %270 = vmatprep.subr.bf16.mxu0 0
  %271 = vmatpush1.bf16.msra.mxu0 %v196
  %272 = vmatprep.subr.bf16.mxu0 0
  %273 = vmatpush1.bf16.msra.mxu0 %v197
  %274 = vmatprep.subr.bf16.mxu0 0
  %275 = vmatpush1.bf16.msra.mxu0 %v198
  %276 = vmatprep.subr.bf16.mxu0 0
  %277 = vmatpush1.bf16.msra.mxu0 %v199
  %278 = vmatprep.subr.bf16.mxu0 0
  %279 = vmatpush1.bf16.msra.mxu0 %v200
  %280 = vmatprep.subr.bf16.mxu0 0
  %281 = vmatpush1.bf16.msra.mxu0 %v201
  %282 = vmatprep.subr.bf16.mxu0 0
  %283 = vmatpush1.bf16.msra.mxu0 0
  %284 = vmatprep.subr.bf16.mxu0 0
  %285 = vmatpush1.bf16.msra.mxu0 0
  %286 = vmatprep.subr.bf16.mxu0 0
  %287 = vmatpush1.bf16.msra.mxu0 0
  %288 = vmatprep.subr.bf16.mxu0 0
  %289 = vmatpush1.bf16.msra.mxu0 0
  %290 = vmatprep.subr.bf16.mxu0 0
  %291 = vmatpush1.bf16.msra.mxu0 0
  %292 = vmatprep.subr.bf16.mxu0 0
  %293 = vmatpush1.bf16.msra.mxu0 0
  %294 = vmatprep.subr.bf16.mxu0 0
  %295 = vmatpush1.bf16.msra.mxu0 0
  %296 = vmatprep.subr.bf16.mxu0 0
  %297 = vmatpush1.bf16.msra.mxu0 0
  %298 = vmatprep.mubr.bf16.mxu0 0
  %299 = vmatmul.mubr.bf16.gmra.mrb[0].mxu0 %v78
  %v300 = vpop.f32.mrb[0].mxu0
  %v301 = vadd.f32 %v261, %v300
  %v302 = vpop.f32.mrb[0].mxu0
  %v303 = vpop.f32.mrb[0].mxu0
  %v304 = vpop.f32.mrb[0].mxu0
  %305 = vdwg.mxu0
  %v306 = vadd.f32 %v20, %v301
  %307 = vst [vmem:[#allocation2] sm:$0xff] %v306
  // Predicated region
  $region18: #{orangenet18_forward.38} parent=0 // pred_check
    %p308 = pneg %p15
  $region19: #{orangenet18_forward.38} parent=0 // pred_check_branch
    %310 = sbr.rel (%p308) target = $region21
  $region20: #{orangenet18_forward.38} parent=0 // pred_region
    %v311 = vld [vmem:[#allocation2] sm:$0xff]
    %v312 = vld [vmem:[%s2] sm:$0x1]
    %v314 = vlaneseq
    %v315 = vshrl.u32 %v314, 7
    %v316 = vsub.s32 0, %v315
    %v317 = vrot.slane %v312, %v316
    %v319 = vadd.f32 %v311, %v317
    %v320 = vmax.f32 %v319, 0.0
    %v321 = vpack.c.bf16 %v320, %v320
    %322 = vst [vmem:[%s3] sm:$0xf] %v321
  $region21: #{orangenet18_forward.38} parent=0 // pred_fallthru
    _
  // Predicated region
  $region22: #{orangenet18_forward.38} parent=0 // pred_check
    _
  $region23: #{orangenet18_forward.38} parent=0 // pred_check_branch
    %324 = sbr.rel (0) target = $region25
  $region24: #{orangenet18_forward.38} parent=0 // pred_region
    _
  $region25: #{orangenet18_forward.38} parent=0 // pred_fallthru
    _
  // Predicated region
  $region26: #{orangenet18_forward.38} parent=0 // pred_check
    _
  $region27: #{orangenet18_forward.38} parent=0 // pred_check_branch
    %326 = sbr.rel (0) target = $region29
  $region28: #{orangenet18_forward.38} parent=0 // pred_region
    _
  $region29: #{orangenet18_forward.38} parent=0 // pred_fallthru
    _

// kernel: orangenet18_forward.39
$region0: #{orangenet18_forward.39}
  #allocation0 [shape = 'u32[]', space=smem, size = 0x4, offset = 0x4, fixed_abs, tag = 'smem constant byte address 0x4 - core index']
  #allocation1 [shape = 'u32[144,128]{1,0:T(1,128)}', space=vmem, size = 0x12000, scoped, tag = 'internal scratch']
  #allocation2 [shape = 'f32[8,128]{1,0:T(8,128)}', space=vmem, size = 0x1000, scoped, tag = 'scratch operand']
  %s0 = inlined_call_operand.vmem [shape: bf16[8,128], index: 0, kind: input, shape index: {}]
  %s1 = inlined_call_operand.vmem [shape: bf16[128,128], index: 1, kind: input, shape index: {}]
  %s2 = inlined_call_operand.vmem [shape: f32[1,128], index: 2, kind: input, shape index: {}]
  %s3 = inlined_call_operand.vmem [shape: bf16[8,128], index: 3, kind: output, shape index: {}]
  %s4 = sld [smem:[#allocation0]]
  $region30: #{orangenet18_forward.39} parent=0
    _
  %s6 = ssub.s32 1, %s4
  %s7 = scalar_select 0, %s6, %s4
  // Predicated region
  $region2: #{orangenet18_forward.39} parent=0 // pred_check
    _
  $region3: #{orangenet18_forward.39} parent=0 // pred_check_branch
    %9 = sbr.rel (0) target = $region5
  $region4: #{orangenet18_forward.39} parent=0 // pred_region
    _
  $region5: #{orangenet18_forward.39} parent=0 // pred_fallthru
    _
  // Predicated region
  $region6: #{orangenet18_forward.39} parent=0 // pred_check
    _
  $region7: #{orangenet18_forward.39} parent=0 // pred_check_branch
    %11 = sbr.rel (0) target = $region9
  $region8: #{orangenet18_forward.39} parent=0 // pred_region
    _
  $region9: #{orangenet18_forward.39} parent=0 // pred_fallthru
    _
  // Predicated region
  $region10: #{orangenet18_forward.39} parent=0 // pred_check
    _
  $region11: #{orangenet18_forward.39} parent=0 // pred_check_branch
    %13 = sbr.rel (0) target = $region13
  $region12: #{orangenet18_forward.39} parent=0 // pred_region
    _
  $region13: #{orangenet18_forward.39} parent=0 // pred_fallthru
    _
  %p15 = scmp.eq.s32.totalorder 0, 0
  // Predicated region
  $region14: #{orangenet18_forward.39} parent=0 // pred_check
    %p16 = pneg %p15
  $region15: #{orangenet18_forward.39} parent=0 // pred_check_branch
    %18 = sbr.rel (%p16) target = $region17
  $region16: #{orangenet18_forward.39} parent=0 // pred_region
    %19 = vst [vmem:[#allocation2] sm:$0xff] 0.0
  $region17: #{orangenet18_forward.39} parent=0 // pred_fallthru
    _
  %v20 = vld [vmem:[#allocation2] sm:$0xff]
  %v21 = vld [vmem:[%s0] sm:$0xf]
  %v22 = vld [vmem:[%s1] sm:$0xf]
  %v23 = vld [vmem:[%s1 + $0x4] sm:$0xf]
  %v24 = vld [vmem:[%s1 + $0x8] sm:$0xf]
  %v25 = vld [vmem:[%s1 + $0xc] sm:$0xf]
  %v26 = vld [vmem:[%s1 + $0x10] sm:$0xf]
  %v27 = vld [vmem:[%s1 + $0x14] sm:$0xf]
  %v28 = vld [vmem:[%s1 + $0x18] sm:$0xf]
  %v29 = vld [vmem:[%s1 + $0x1c] sm:$0xf]
  %v30 = vld [vmem:[%s1 + $0x20] sm:$0xf]
  %v31 = vld [vmem:[%s1 + $0x24] sm:$0xf]
  %v32 = vld [vmem:[%s1 + $0x28] sm:$0xf]
  %v33 = vld [vmem:[%s1 + $0x2c] sm:$0xf]
  %v34 = vld [vmem:[%s1 + $0x30] sm:$0xf]
  %v35 = vld [vmem:[%s1 + $0x34] sm:$0xf]
  %v36 = vld [vmem:[%s1 + $0x38] sm:$0xf]
  %v37 = vld [vmem:[%s1 + $0x3c] sm:$0xf]
  %v54 = vunpack.c.l.b16 %v22
  %v55 = vunpack.c.l.b16 %v23
  %v56 = vunpack.c.l.b16 %v24
  %v57 = vunpack.c.l.b16 %v25
  %v58 = vunpack.c.l.b16 %v26
  %v59 = vunpack.c.l.b16 %v27
  %v60 = vunpack.c.l.b16 %v28
  %v61 = vunpack.c.l.b16 %v29
  %v62 = vunpack.c.l.b16 %v30
  %v63 = vunpack.c.l.b16 %v31
  %v64 = vunpack.c.l.b16 %v32
  %v65 = vunpack.c.l.b16 %v33
  %v66 = vunpack.c.l.b16 %v34
  %v67 = vunpack.c.l.b16 %v35
  %v68 = vunpack.c.l.b16 %v36
  %v69 = vunpack.c.l.b16 %v37
  %v70 = vpack.c.b16 %v55, %v54
  %v71 = vpack.c.b16 %v57, %v56
  %v72 = vpack.c.b16 %v59, %v58
  %v73 = vpack.c.b16 %v61, %v60
  %v74 = vpack.c.b16 %v63, %v62
  %v75 = vpack.c.b16 %v65, %v64
  %v76 = vpack.c.b16 %v67, %v66
  %v77 = vpack.c.b16 %v69, %v68
  %86 = vmatprep.subr.bf16.mxu0 0
  %87 = vmatpush1.bf16.msra.mxu0 %v70
  %88 = vmatprep.subr.bf16.mxu0 0
  %89 = vmatpush1.bf16.msra.mxu0 %v71
  %90 = vmatprep.subr.bf16.mxu0 0
  %91 = vmatpush1.bf16.msra.mxu0 %v72
  %92 = vmatprep.subr.bf16.mxu0 0
  %93 = vmatpush1.bf16.msra.mxu0 %v73
  %94 = vmatprep.subr.bf16.mxu0 0
  %95 = vmatpush1.bf16.msra.mxu0 %v74
  %96 = vmatprep.subr.bf16.mxu0 0
  %97 = vmatpush1.bf16.msra.mxu0 %v75
  %98 = vmatprep.subr.bf16.mxu0 0
  %99 = vmatpush1.bf16.msra.mxu0 %v76
  %100 = vmatprep.subr.bf16.mxu0 0
  %101 = vmatpush1.bf16.msra.mxu0 %v77
  %102 = vmatprep.subr.bf16.mxu0 0
  %103 = vmatpush1.bf16.msra.mxu0 0
  %104 = vmatprep.subr.bf16.mxu0 0
  %105 = vmatpush1.bf16.msra.mxu0 0
  %106 = vmatprep.subr.bf16.mxu0 0
  %107 = vmatpush1.bf16.msra.mxu0 0
  %108 = vmatprep.subr.bf16.mxu0 0
  %109 = vmatpush1.bf16.msra.mxu0 0
  %110 = vmatprep.subr.bf16.mxu0 0
  %111 = vmatpush1.bf16.msra.mxu0 0
  %112 = vmatprep.subr.bf16.mxu0 0
  %113 = vmatpush1.bf16.msra.mxu0 0
  %114 = vmatprep.subr.bf16.mxu0 0
  %115 = vmatpush1.bf16.msra.mxu0 0
  %116 = vmatprep.subr.bf16.mxu0 0
  %117 = vmatpush1.bf16.msra.mxu0 0
  %118 = vmatprep.mubr.bf16.mxu0 0
  %119 = vmatmul.mubr.bf16.gmra.mrb[0].mxu0 %v21
  %v120 = vpop.f32.mrb[0].mxu0
  %v121 = vadd.f32 0.0, %v120
  %v122 = vpop.f32.mrb[0].mxu0
  %v123 = vpop.f32.mrb[0].mxu0
  %v124 = vpop.f32.mrb[0].mxu0
  %125 = vdwg.mxu0
  %v126 = vadd.f32 %v20, %v121
  %127 = vst [vmem:[#allocation2] sm:$0xff] %v126
  // Predicated region
  $region18: #{orangenet18_forward.39} parent=0 // pred_check
    %p128 = pneg %p15
  $region19: #{orangenet18_forward.39} parent=0 // pred_check_branch
    %130 = sbr.rel (%p128) target = $region21
  $region20: #{orangenet18_forward.39} parent=0 // pred_region
    %v131 = vld [vmem:[#allocation2] sm:$0xff]
    %v132 = vld [vmem:[%s2] sm:$0x1]
    %v134 = vlaneseq
    %v135 = vshrl.u32 %v134, 7
    %v136 = vsub.s32 0, %v135
    %v137 = vrot.slane %v132, %v136
    %v139 = vadd.f32 %v131, %v137
    %v140 = vpack.c.bf16 %v139, %v139
    %141 = vst [vmem:[%s3] sm:$0xf] %v140
  $region21: #{orangenet18_forward.39} parent=0 // pred_fallthru
    _
  // Predicated region
  $region22: #{orangenet18_forward.39} parent=0 // pred_check
    _
  $region23: #{orangenet18_forward.39} parent=0 // pred_check_branch
    %143 = sbr.rel (0) target = $region25
  $region24: #{orangenet18_forward.39} parent=0 // pred_region
    _
  $region25: #{orangenet18_forward.39} parent=0 // pred_fallthru
    _
  // Predicated region
  $region26: #{orangenet18_forward.39} parent=0 // pred_check
    _
  $region27: #{orangenet18_forward.39} parent=0 // pred_check_branch
    %145 = sbr.rel (0) target = $region29
  $region28: #{orangenet18_forward.39} parent=0 // pred_region
    _
  $region29: #{orangenet18_forward.39} parent=0 // pred_fallthru
    _

// kernel: orangenet18_forward.40
$region0: #{orangenet18_forward.40}
  #allocation0 [shape = 'u32[]', space=smem, size = 0x4, offset = 0x4, fixed_abs, tag = 'smem constant byte address 0x4 - core index']
  #allocation1 [shape = 'u32[144,128]{1,0:T(1,128)}', space=vmem, size = 0x12000, scoped, tag = 'internal scratch']
  #allocation2 [shape = 'f32[8,128]{1,0:T(8,128)}', space=vmem, size = 0x1000, scoped, tag = 'scratch operand']
  %s0 = inlined_call_operand.vmem [shape: bf16[8,640], index: 0, kind: input, shape index: {}]
  %s1 = inlined_call_operand.vmem [shape: bf16[640,128], index: 1, kind: input, shape index: {}]
  %s2 = inlined_call_operand.vmem [shape: f32[1,128], index: 2, kind: input, shape index: {}]
  %s3 = inlined_call_operand.vmem [shape: bf16[8,128], index: 3, kind: input, shape index: {}]
  %s4 = inlined_call_operand.vmem [shape: bf16[8,128], index: 4, kind: output, shape index: {}]
  %s5 = sld [smem:[#allocation0]]
  $region34: #{orangenet18_forward.40} parent=0
    _
  %s7 = ssub.s32 1, %s5
  %s8 = scalar_select 0, %s7, %s5
  // Predicated region
  $region2: #{orangenet18_forward.40} parent=0 // pred_check
    _
  $region3: #{orangenet18_forward.40} parent=0 // pred_check_branch
    %10 = sbr.rel (0) target = $region5
  $region4: #{orangenet18_forward.40} parent=0 // pred_region
    _
  $region5: #{orangenet18_forward.40} parent=0 // pred_fallthru
    _
  // Predicated region
  $region6: #{orangenet18_forward.40} parent=0 // pred_check
    _
  $region7: #{orangenet18_forward.40} parent=0 // pred_check_branch
    %12 = sbr.rel (0) target = $region9
  $region8: #{orangenet18_forward.40} parent=0 // pred_region
    _
  $region9: #{orangenet18_forward.40} parent=0 // pred_fallthru
    _
  // Predicated region
  $region10: #{orangenet18_forward.40} parent=0 // pred_check
    _
  $region11: #{orangenet18_forward.40} parent=0 // pred_check_branch
    %14 = sbr.rel (0) target = $region13
  $region12: #{orangenet18_forward.40} parent=0 // pred_region
    _
  $region13: #{orangenet18_forward.40} parent=0 // pred_fallthru
    _
  // Predicated region
  $region14: #{orangenet18_forward.40} parent=0 // pred_check
    _
  $region15: #{orangenet18_forward.40} parent=0 // pred_check_branch
    %16 = sbr.rel (0) target = $region17
  $region16: #{orangenet18_forward.40} parent=0 // pred_region
    _
  $region17: #{orangenet18_forward.40} parent=0 // pred_fallthru
    _
  %p18 = scmp.eq.s32.totalorder 0, 0
  // Predicated region
  $region18: #{orangenet18_forward.40} parent=0 // pred_check
    %p19 = pneg %p18
  $region19: #{orangenet18_forward.40} parent=0 // pred_check_branch
    %21 = sbr.rel (%p19) target = $region21
  $region20: #{orangenet18_forward.40} parent=0 // pred_region
    %22 = vst [vmem:[#allocation2] sm:$0xff] 0.0
  $region21: #{orangenet18_forward.40} parent=0 // pred_fallthru
    _
  %v23 = vld [vmem:[#allocation2] sm:$0xff]
  %v24 = vld [vmem:[%s0] sm:$0xff]
  %v25 = vld [vmem:[%s0 + $0x8] sm:$0xff]
  %v26 = vld [vmem:[%s0 + $0x10] sm:$0xf]
  %v27 = vld [vmem:[%s1] sm:$0xf]
  %v28 = vld [vmem:[%s1 + $0x4] sm:$0xf]
  %v29 = vld [vmem:[%s1 + $0x8] sm:$0xf]
  %v30 = vld [vmem:[%s1 + $0xc] sm:$0xf]
  %v31 = vld [vmem:[%s1 + $0x10] sm:$0xf]
  %v32 = vld [vmem:[%s1 + $0x14] sm:$0xf]
  %v33 = vld [vmem:[%s1 + $0x18] sm:$0xf]
  %v34 = vld [vmem:[%s1 + $0x1c] sm:$0xf]
  %v35 = vld [vmem:[%s1 + $0x20] sm:$0xf]
  %v36 = vld [vmem:[%s1 + $0x24] sm:$0xf]
  %v37 = vld [vmem:[%s1 + $0x28] sm:$0xf]
  %v38 = vld [vmem:[%s1 + $0x2c] sm:$0xf]
  %v39 = vld [vmem:[%s1 + $0x30] sm:$0xf]
  %v40 = vld [vmem:[%s1 + $0x34] sm:$0xf]
  %v41 = vld [vmem:[%s1 + $0x38] sm:$0xf]
  %v42 = vld [vmem:[%s1 + $0x3c] sm:$0xf]
  %v43 = vld [vmem:[%s1 + $0x40] sm:$0xf]
  %v44 = vld [vmem:[%s1 + $0x44] sm:$0xf]
  %v45 = vld [vmem:[%s1 + $0x48] sm:$0xf]
  %v46 = vld [vmem:[%s1 + $0x4c] sm:$0xf]
  %v47 = vld [vmem:[%s1 + $0x50] sm:$0xf]
  %v48 = vld [vmem:[%s1 + $0x54] sm:$0xf]
  %v49 = vld [vmem:[%s1 + $0x58] sm:$0xf]
  %v50 = vld [vmem:[%s1 + $0x5c] sm:$0xf]
  %v51 = vld [vmem:[%s1 + $0x60] sm:$0xf]
  %v52 = vld [vmem:[%s1 + $0x64] sm:$0xf]
  %v53 = vld [vmem:[%s1 + $0x68] sm:$0xf]
  %v54 = vld [vmem:[%s1 + $0x6c] sm:$0xf]
  %v55 = vld [vmem:[%s1 + $0x70] sm:$0xf]
  %v56 = vld [vmem:[%s1 + $0x74] sm:$0xf]
  %v57 = vld [vmem:[%s1 + $0x78] sm:$0xf]
  %v58 = vld [vmem:[%s1 + $0x7c] sm:$0xf]
  %v59 = vld [vmem:[%s1 + $0x80] sm:$0xf]
  %v60 = vld [vmem:[%s1 + $0x84] sm:$0xf]
  %v61 = vld [vmem:[%s1 + $0x88] sm:$0xf]
  %v62 = vld [vmem:[%s1 + $0x8c] sm:$0xf]
  %v63 = vld [vmem:[%s1 + $0x90] sm:$0xf]
  %v64 = vld [vmem:[%s1 + $0x94] sm:$0xf]
  %v65 = vld [vmem:[%s1 + $0x98] sm:$0xf]
  %v66 = vld [vmem:[%s1 + $0x9c] sm:$0xf]
  %v67 = vld [vmem:[%s1 + $0xa0] sm:$0xf]
  %v68 = vld [vmem:[%s1 + $0xa4] sm:$0xf]
  %v69 = vld [vmem:[%s1 + $0xa8] sm:$0xf]
  %v70 = vld [vmem:[%s1 + $0xac] sm:$0xf]
  %v71 = vld [vmem:[%s1 + $0xb0] sm:$0xf]
  %v72 = vld [vmem:[%s1 + $0xb4] sm:$0xf]
  %v73 = vld [vmem:[%s1 + $0xb8] sm:$0xf]
  %v74 = vld [vmem:[%s1 + $0xbc] sm:$0xf]
  %v75 = vld [vmem:[%s1 + $0xc0] sm:$0xf]
  %v76 = vld [vmem:[%s1 + $0xc4] sm:$0xf]
  %v77 = vld [vmem:[%s1 + $0xc8] sm:$0xf]
  %v78 = vld [vmem:[%s1 + $0xcc] sm:$0xf]
  %v79 = vld [vmem:[%s1 + $0xd0] sm:$0xf]
  %v80 = vld [vmem:[%s1 + $0xd4] sm:$0xf]
  %v81 = vld [vmem:[%s1 + $0xd8] sm:$0xf]
  %v82 = vld [vmem:[%s1 + $0xdc] sm:$0xf]
  %v83 = vld [vmem:[%s1 + $0xe0] sm:$0xf]
  %v84 = vld [vmem:[%s1 + $0xe4] sm:$0xf]
  %v85 = vld [vmem:[%s1 + $0xe8] sm:$0xf]
  %v86 = vld [vmem:[%s1 + $0xec] sm:$0xf]
  %v87 = vld [vmem:[%s1 + $0xf0] sm:$0xf]
  %v88 = vld [vmem:[%s1 + $0xf4] sm:$0xf]
  %v89 = vld [vmem:[%s1 + $0xf8] sm:$0xf]
  %v90 = vld [vmem:[%s1 + $0xfc] sm:$0xf]
  %v91 = vld [vmem:[%s1 + $0x100] sm:$0xf]
  %v92 = vld [vmem:[%s1 + $0x104] sm:$0xf]
  %v93 = vld [vmem:[%s1 + $0x108] sm:$0xf]
  %v94 = vld [vmem:[%s1 + $0x10c] sm:$0xf]
  %v95 = vld [vmem:[%s1 + $0x110] sm:$0xf]
  %v96 = vld [vmem:[%s1 + $0x114] sm:$0xf]
  %v97 = vld [vmem:[%s1 + $0x118] sm:$0xf]
  %v98 = vld [vmem:[%s1 + $0x11c] sm:$0xf]
  %v99 = vld [vmem:[%s1 + $0x120] sm:$0xf]
  %v100 = vld [vmem:[%s1 + $0x124] sm:$0xf]
  %v101 = vld [vmem:[%s1 + $0x128] sm:$0xf]
  %v102 = vld [vmem:[%s1 + $0x12c] sm:$0xf]
  %v103 = vld [vmem:[%s1 + $0x130] sm:$0xf]
  %v104 = vld [vmem:[%s1 + $0x134] sm:$0xf]
  %v105 = vld [vmem:[%s1 + $0x138] sm:$0xf]
  %v106 = vld [vmem:[%s1 + $0x13c] sm:$0xf]
  %v110 = vunpack.c.l.b16 %v24
  %v111 = vunpack.c.h.b16 %v24
  %v112 = vunpack.c.l.b16 %v25
  %v113 = vunpack.c.h.b16 %v25
  %v114 = vunpack.c.l.b16 %v26
  %v115 = vpack.c.b16 %v110, %v110
  %v116 = vpack.c.b16 %v111, %v111
  %v117 = vpack.c.b16 %v112, %v112
  %v118 = vpack.c.b16 %v113, %v113
  %v119 = vpack.c.b16 %v114, %v114
  %v205 = vunpack.c.l.b16 %v27
  %v206 = vunpack.c.l.b16 %v28
  %v207 = vunpack.c.l.b16 %v29
  %v208 = vunpack.c.l.b16 %v30
  %v209 = vunpack.c.l.b16 %v31
  %v210 = vunpack.c.l.b16 %v32
  %v211 = vunpack.c.l.b16 %v33
  %v212 = vunpack.c.l.b16 %v34
  %v213 = vunpack.c.l.b16 %v35
  %v214 = vunpack.c.l.b16 %v36
  %v215 = vunpack.c.l.b16 %v37
  %v216 = vunpack.c.l.b16 %v38
  %v217 = vunpack.c.l.b16 %v39
  %v218 = vunpack.c.l.b16 %v40
  %v219 = vunpack.c.l.b16 %v41
  %v220 = vunpack.c.l.b16 %v42
  %v221 = vunpack.c.l.b16 %v43
  %v222 = vunpack.c.l.b16 %v44
  %v223 = vunpack.c.l.b16 %v45
  %v224 = vunpack.c.l.b16 %v46
  %v225 = vunpack.c.l.b16 %v47
  %v226 = vunpack.c.l.b16 %v48
  %v227 = vunpack.c.l.b16 %v49
  %v228 = vunpack.c.l.b16 %v50
  %v229 = vunpack.c.l.b16 %v51
  %v230 = vunpack.c.l.b16 %v52
  %v231 = vunpack.c.l.b16 %v53
  %v232 = vunpack.c.l.b16 %v54
  %v233 = vunpack.c.l.b16 %v55
  %v234 = vunpack.c.l.b16 %v56
  %v235 = vunpack.c.l.b16 %v57
  %v236 = vunpack.c.l.b16 %v58
  %v237 = vunpack.c.l.b16 %v59
  %v238 = vunpack.c.l.b16 %v60
  %v239 = vunpack.c.l.b16 %v61
  %v240 = vunpack.c.l.b16 %v62
  %v241 = vunpack.c.l.b16 %v63
  %v242 = vunpack.c.l.b16 %v64
  %v243 = vunpack.c.l.b16 %v65
  %v244 = vunpack.c.l.b16 %v66
  %v245 = vunpack.c.l.b16 %v67
  %v246 = vunpack.c.l.b16 %v68
  %v247 = vunpack.c.l.b16 %v69
  %v248 = vunpack.c.l.b16 %v70
  %v249 = vunpack.c.l.b16 %v71
  %v250 = vunpack.c.l.b16 %v72
  %v251 = vunpack.c.l.b16 %v73
  %v252 = vunpack.c.l.b16 %v74
  %v253 = vunpack.c.l.b16 %v75
  %v254 = vunpack.c.l.b16 %v76
  %v255 = vunpack.c.l.b16 %v77
  %v256 = vunpack.c.l.b16 %v78
  %v257 = vunpack.c.l.b16 %v79
  %v258 = vunpack.c.l.b16 %v80
  %v259 = vunpack.c.l.b16 %v81
  %v260 = vunpack.c.l.b16 %v82
  %v261 = vunpack.c.l.b16 %v83
  %v262 = vunpack.c.l.b16 %v84
  %v263 = vunpack.c.l.b16 %v85
  %v264 = vunpack.c.l.b16 %v86
  %v265 = vunpack.c.l.b16 %v87
  %v266 = vunpack.c.l.b16 %v88
  %v267 = vunpack.c.l.b16 %v89
  %v268 = vunpack.c.l.b16 %v90
  %v269 = vunpack.c.l.b16 %v91
  %v270 = vunpack.c.l.b16 %v92
  %v271 = vunpack.c.l.b16 %v93
  %v272 = vunpack.c.l.b16 %v94
  %v273 = vunpack.c.l.b16 %v95
  %v274 = vunpack.c.l.b16 %v96
  %v275 = vunpack.c.l.b16 %v97
  %v276 = vunpack.c.l.b16 %v98
  %v277 = vunpack.c.l.b16 %v99
  %v278 = vunpack.c.l.b16 %v100
  %v279 = vunpack.c.l.b16 %v101
  %v280 = vunpack.c.l.b16 %v102
  %v281 = vunpack.c.l.b16 %v103
  %v282 = vunpack.c.l.b16 %v104
  %v283 = vunpack.c.l.b16 %v105
  %v284 = vunpack.c.l.b16 %v106
  %v285 = vpack.c.b16 %v206, %v205
  %v286 = vpack.c.b16 %v208, %v207
  %v287 = vpack.c.b16 %v210, %v209
  %v288 = vpack.c.b16 %v212, %v211
  %v289 = vpack.c.b16 %v214, %v213
  %v290 = vpack.c.b16 %v216, %v215
  %v291 = vpack.c.b16 %v218, %v217
  %v292 = vpack.c.b16 %v220, %v219
  %v293 = vpack.c.b16 %v222, %v221
  %v294 = vpack.c.b16 %v224, %v223
  %v295 = vpack.c.b16 %v226, %v225
  %v296 = vpack.c.b16 %v228, %v227
  %v297 = vpack.c.b16 %v230, %v229
  %v298 = vpack.c.b16 %v232, %v231
  %v299 = vpack.c.b16 %v234, %v233
  %v300 = vpack.c.b16 %v236, %v235
  %v301 = vpack.c.b16 %v238, %v237
  %v302 = vpack.c.b16 %v240, %v239
  %v303 = vpack.c.b16 %v242, %v241
  %v304 = vpack.c.b16 %v244, %v243
  %v305 = vpack.c.b16 %v246, %v245
  %v306 = vpack.c.b16 %v248, %v247
  %v307 = vpack.c.b16 %v250, %v249
  %v308 = vpack.c.b16 %v252, %v251
  %v309 = vpack.c.b16 %v254, %v253
  %v310 = vpack.c.b16 %v256, %v255
  %v311 = vpack.c.b16 %v258, %v257
  %v312 = vpack.c.b16 %v260, %v259
  %v313 = vpack.c.b16 %v262, %v261
  %v314 = vpack.c.b16 %v264, %v263
  %v315 = vpack.c.b16 %v266, %v265
  %v316 = vpack.c.b16 %v268, %v267
  %v317 = vpack.c.b16 %v270, %v269
  %v318 = vpack.c.b16 %v272, %v271
  %v319 = vpack.c.b16 %v274, %v273
  %v320 = vpack.c.b16 %v276, %v275
  %v321 = vpack.c.b16 %v278, %v277
  %v322 = vpack.c.b16 %v280, %v279
  %v323 = vpack.c.b16 %v282, %v281
  %v324 = vpack.c.b16 %v284, %v283
  %365 = vmatprep.subr.bf16.mxu0 0
  %366 = vmatpush1.bf16.msra.mxu0 %v285
  %367 = vmatprep.subr.bf16.mxu0 0
  %368 = vmatpush1.bf16.msra.mxu0 %v286
  %369 = vmatprep.subr.bf16.mxu0 0
  %370 = vmatpush1.bf16.msra.mxu0 %v287
  %371 = vmatprep.subr.bf16.mxu0 0
  %372 = vmatpush1.bf16.msra.mxu0 %v288
  %373 = vmatprep.subr.bf16.mxu0 0
  %374 = vmatpush1.bf16.msra.mxu0 %v289
  %375 = vmatprep.subr.bf16.mxu0 0
  %376 = vmatpush1.bf16.msra.mxu0 %v290
  %377 = vmatprep.subr.bf16.mxu0 0
  %378 = vmatpush1.bf16.msra.mxu0 %v291
  %379 = vmatprep.subr.bf16.mxu0 0
  %380 = vmatpush1.bf16.msra.mxu0 %v292
  %381 = vmatprep.subr.bf16.mxu0 0
  %382 = vmatpush1.bf16.msra.mxu0 %v293
  %383 = vmatprep.subr.bf16.mxu0 0
  %384 = vmatpush1.bf16.msra.mxu0 %v294
  %385 = vmatprep.subr.bf16.mxu0 0
  %386 = vmatpush1.bf16.msra.mxu0 %v295
  %387 = vmatprep.subr.bf16.mxu0 0
  %388 = vmatpush1.bf16.msra.mxu0 %v296
  %389 = vmatprep.subr.bf16.mxu0 0
  %390 = vmatpush1.bf16.msra.mxu0 %v297
  %391 = vmatprep.subr.bf16.mxu0 0
  %392 = vmatpush1.bf16.msra.mxu0 %v298
  %393 = vmatprep.subr.bf16.mxu0 0
  %394 = vmatpush1.bf16.msra.mxu0 %v299
  %395 = vmatprep.subr.bf16.mxu0 0
  %396 = vmatpush1.bf16.msra.mxu0 %v300
  %397 = vmatprep.mubr.bf16.mxu0 %v116
  %398 = vmatmul.mubr.bf16.gmra.mrb[0].mxu0 %v115
  %v399 = vpop.f32.mrb[0].mxu0
  %v400 = vadd.f32 0.0, %v399
  %v401 = vpop.f32.mrb[0].mxu0
  %v402 = vpop.f32.mrb[0].mxu0
  %v403 = vpop.f32.mrb[0].mxu0
  %404 = vdwg.mxu0
  %405 = vmatprep.subr.bf16.mxu0 0
  %406 = vmatpush1.bf16.msra.mxu0 %v301
  %407 = vmatprep.subr.bf16.mxu0 0
  %408 = vmatpush1.bf16.msra.mxu0 %v302
  %409 = vmatprep.subr.bf16.mxu0 0
  %410 = vmatpush1.bf16.msra.mxu0 %v303
  %411 = vmatprep.subr.bf16.mxu0 0
  %412 = vmatpush1.bf16.msra.mxu0 %v304
  %413 = vmatprep.subr.bf16.mxu0 0
  %414 = vmatpush1.bf16.msra.mxu0 %v305
  %415 = vmatprep.subr.bf16.mxu0 0
  %416 = vmatpush1.bf16.msra.mxu0 %v306
  %417 = vmatprep.subr.bf16.mxu0 0
  %418 = vmatpush1.bf16.msra.mxu0 %v307
  %419 = vmatprep.subr.bf16.mxu0 0
  %420 = vmatpush1.bf16.msra.mxu0 %v308
  %421 = vmatprep.subr.bf16.mxu0 0
  %422 = vmatpush1.bf16.msra.mxu0 %v309
  %423 = vmatprep.subr.bf16.mxu0 0
  %424 = vmatpush1.bf16.msra.mxu0 %v310
  %425 = vmatprep.subr.bf16.mxu0 0
  %426 = vmatpush1.bf16.msra.mxu0 %v311
  %427 = vmatprep.subr.bf16.mxu0 0
  %428 = vmatpush1.bf16.msra.mxu0 %v312
  %429 = vmatprep.subr.bf16.mxu0 0
  %430 = vmatpush1.bf16.msra.mxu0 %v313
  %431 = vmatprep.subr.bf16.mxu0 0
  %432 = vmatpush1.bf16.msra.mxu0 %v314
  %433 = vmatprep.subr.bf16.mxu0 0
  %434 = vmatpush1.bf16.msra.mxu0 %v315
  %435 = vmatprep.subr.bf16.mxu0 0
  %436 = vmatpush1.bf16.msra.mxu0 %v316
  %437 = vmatprep.mubr.bf16.mxu0 %v118
  %438 = vmatmul.mubr.bf16.gmra.mrb[0].mxu0 %v117
  %v439 = vpop.f32.mrb[0].mxu0
  %v440 = vadd.f32 %v400, %v439
  %v441 = vpop.f32.mrb[0].mxu0
  %v442 = vpop.f32.mrb[0].mxu0
  %v443 = vpop.f32.mrb[0].mxu0
  %444 = vdwg.mxu0
  %445 = vmatprep.subr.bf16.mxu0 0
  %446 = vmatpush1.bf16.msra.mxu0 %v317
  %447 = vmatprep.subr.bf16.mxu0 0
  %448 = vmatpush1.bf16.msra.mxu0 %v318
  %449 = vmatprep.subr.bf16.mxu0 0
  %450 = vmatpush1.bf16.msra.mxu0 %v319
  %451 = vmatprep.subr.bf16.mxu0 0
  %452 = vmatpush1.bf16.msra.mxu0 %v320
  %453 = vmatprep.subr.bf16.mxu0 0
  %454 = vmatpush1.bf16.msra.mxu0 %v321
  %455 = vmatprep.subr.bf16.mxu0 0
  %456 = vmatpush1.bf16.msra.mxu0 %v322
  %457 = vmatprep.subr.bf16.mxu0 0
  %458 = vmatpush1.bf16.msra.mxu0 %v323
  %459 = vmatprep.subr.bf16.mxu0 0
  %460 = vmatpush1.bf16.msra.mxu0 %v324
  %461 = vmatprep.subr.bf16.mxu0 0
  %462 = vmatpush1.bf16.msra.mxu0 0
  %463 = vmatprep.subr.bf16.mxu0 0
  %464 = vmatpush1.bf16.msra.mxu0 0
  %465 = vmatprep.subr.bf16.mxu0 0
  %466 = vmatpush1.bf16.msra.mxu0 0
  %467 = vmatprep.subr.bf16.mxu0 0
  %468 = vmatpush1.bf16.msra.mxu0 0
  %469 = vmatprep.subr.bf16.mxu0 0
  %470 = vmatpush1.bf16.msra.mxu0 0
  %471 = vmatprep.subr.bf16.mxu0 0
  %472 = vmatpush1.bf16.msra.mxu0 0
  %473 = vmatprep.subr.bf16.mxu0 0
  %474 = vmatpush1.bf16.msra.mxu0 0
  %475 = vmatprep.subr.bf16.mxu0 0
  %476 = vmatpush1.bf16.msra.mxu0 0
  %477 = vmatprep.mubr.bf16.mxu0 0
  %478 = vmatmul.mubr.bf16.gmra.mrb[0].mxu0 %v119
  %v479 = vpop.f32.mrb[0].mxu0
  %v480 = vadd.f32 %v440, %v479
  %v481 = vpop.f32.mrb[0].mxu0
  %v482 = vpop.f32.mrb[0].mxu0
  %v483 = vpop.f32.mrb[0].mxu0
  %484 = vdwg.mxu0
  %v485 = vadd.f32 %v23, %v480
  %486 = vst [vmem:[#allocation2] sm:$0xff] %v485
  // Predicated region
  $region22: #{orangenet18_forward.40} parent=0 // pred_check
    %p487 = pneg %p18
  $region23: #{orangenet18_forward.40} parent=0 // pred_check_branch
    %489 = sbr.rel (%p487) target = $region25
  $region24: #{orangenet18_forward.40} parent=0 // pred_region
    %v490 = vld [vmem:[#allocation2] sm:$0xff]
    %v491 = vld [vmem:[%s2] sm:$0x1]
    %v493 = vlaneseq
    %v494 = vshrl.u32 %v493, 7
    %v495 = vsub.s32 0, %v494
    %v496 = vrot.slane %v491, %v495
    %v498 = vadd.f32 %v490, %v496
    %v499 = vld [vmem:[%s3] sm:$0xf]
    %v500 = vunpack.c.l.bf16 %v499
    %v501 = vadd.f32 %v498, %v500
    %v502 = vmax.f32 %v501, 0.0
    %v503 = vpack.c.bf16 %v502, %v502
    %504 = vst [vmem:[%s4] sm:$0xf] %v503
  $region25: #{orangenet18_forward.40} parent=0 // pred_fallthru
    _
  // Predicated region
  $region26: #{orangenet18_forward.40} parent=0 // pred_check
    _
  $region27: #{orangenet18_forward.40} parent=0 // pred_check_branch
    %506 = sbr.rel (0) target = $region29
  $region28: #{orangenet18_forward.40} parent=0 // pred_region
    _
  $region29: #{orangenet18_forward.40} parent=0 // pred_fallthru
    _
  // Predicated region
  $region30: #{orangenet18_forward.40} parent=0 // pred_check
    _
  $region31: #{orangenet18_forward.40} parent=0 // pred_check_branch
    %508 = sbr.rel (0) target = $region33
  $region32: #{orangenet18_forward.40} parent=0 // pred_region
    _
  $region33: #{orangenet18_forward.40} parent=0 // pred_fallthru
    _

// kernel: orangenet18_forward.41
$region0: #{orangenet18_forward.41}
  #allocation0 [shape = 'u32[]', space=smem, size = 0x4, offset = 0x4, fixed_abs, tag = 'smem constant byte address 0x4 - core index']
  #allocation1 [shape = 'u32[144,128]{1,0:T(1,128)}', space=vmem, size = 0x12000, scoped, tag = 'internal scratch']
  #allocation2 [shape = 'f32[8,128]{1,0:T(8,128)}', space=vmem, size = 0x1000, scoped, tag = 'scratch operand']
  %s0 = inlined_call_operand.vmem [shape: bf16[8,640], index: 0, kind: input, shape index: {}]
  %s1 = inlined_call_operand.vmem [shape: bf16[640,128], index: 1, kind: input, shape index: {}]
  %s2 = inlined_call_operand.vmem [shape: f32[1,128], index: 2, kind: input, shape index: {}]
  %s3 = inlined_call_operand.vmem [shape: bf16[8,128], index: 3, kind: output, shape index: {}]
  %s4 = sld [smem:[#allocation0]]
  $region30: #{orangenet18_forward.41} parent=0
    _
  %s6 = ssub.s32 1, %s4
  %s7 = scalar_select 0, %s6, %s4
  // Predicated region
  $region2: #{orangenet18_forward.41} parent=0 // pred_check
    _
  $region3: #{orangenet18_forward.41} parent=0 // pred_check_branch
    %9 = sbr.rel (0) target = $region5
  $region4: #{orangenet18_forward.41} parent=0 // pred_region
    _
  $region5: #{orangenet18_forward.41} parent=0 // pred_fallthru
    _
  // Predicated region
  $region6: #{orangenet18_forward.41} parent=0 // pred_check
    _
  $region7: #{orangenet18_forward.41} parent=0 // pred_check_branch
    %11 = sbr.rel (0) target = $region9
  $region8: #{orangenet18_forward.41} parent=0 // pred_region
    _
  $region9: #{orangenet18_forward.41} parent=0 // pred_fallthru
    _
  // Predicated region
  $region10: #{orangenet18_forward.41} parent=0 // pred_check
    _
  $region11: #{orangenet18_forward.41} parent=0 // pred_check_branch
    %13 = sbr.rel (0) target = $region13
  $region12: #{orangenet18_forward.41} parent=0 // pred_region
    _
  $region13: #{orangenet18_forward.41} parent=0 // pred_fallthru
    _
  %p15 = scmp.eq.s32.totalorder 0, 0
  // Predicated region
  $region14: #{orangenet18_forward.41} parent=0 // pred_check
    %p16 = pneg %p15
  $region15: #{orangenet18_forward.41} parent=0 // pred_check_branch
    %18 = sbr.rel (%p16) target = $region17
  $region16: #{orangenet18_forward.41} parent=0 // pred_region
    %19 = vst [vmem:[#allocation2] sm:$0xff] 0.0
  $region17: #{orangenet18_forward.41} parent=0 // pred_fallthru
    _
  %v20 = vld [vmem:[#allocation2] sm:$0xff]
  %v21 = vld [vmem:[%s0] sm:$0xff]
  %v22 = vld [vmem:[%s0 + $0x8] sm:$0xff]
  %v23 = vld [vmem:[%s0 + $0x10] sm:$0xf]
  %v24 = vld [vmem:[%s1] sm:$0xf]
  %v25 = vld [vmem:[%s1 + $0x4] sm:$0xf]
  %v26 = vld [vmem:[%s1 + $0x8] sm:$0xf]
  %v27 = vld [vmem:[%s1 + $0xc] sm:$0xf]
  %v28 = vld [vmem:[%s1 + $0x10] sm:$0xf]
  %v29 = vld [vmem:[%s1 + $0x14] sm:$0xf]
  %v30 = vld [vmem:[%s1 + $0x18] sm:$0xf]
  %v31 = vld [vmem:[%s1 + $0x1c] sm:$0xf]
  %v32 = vld [vmem:[%s1 + $0x20] sm:$0xf]
  %v33 = vld [vmem:[%s1 + $0x24] sm:$0xf]
  %v34 = vld [vmem:[%s1 + $0x28] sm:$0xf]
  %v35 = vld [vmem:[%s1 + $0x2c] sm:$0xf]
  %v36 = vld [vmem:[%s1 + $0x30] sm:$0xf]
  %v37 = vld [vmem:[%s1 + $0x34] sm:$0xf]
  %v38 = vld [vmem:[%s1 + $0x38] sm:$0xf]
  %v39 = vld [vmem:[%s1 + $0x3c] sm:$0xf]
  %v40 = vld [vmem:[%s1 + $0x40] sm:$0xf]
  %v41 = vld [vmem:[%s1 + $0x44] sm:$0xf]
  %v42 = vld [vmem:[%s1 + $0x48] sm:$0xf]
  %v43 = vld [vmem:[%s1 + $0x4c] sm:$0xf]
  %v44 = vld [vmem:[%s1 + $0x50] sm:$0xf]
  %v45 = vld [vmem:[%s1 + $0x54] sm:$0xf]
  %v46 = vld [vmem:[%s1 + $0x58] sm:$0xf]
  %v47 = vld [vmem:[%s1 + $0x5c] sm:$0xf]
  %v48 = vld [vmem:[%s1 + $0x60] sm:$0xf]
  %v49 = vld [vmem:[%s1 + $0x64] sm:$0xf]
  %v50 = vld [vmem:[%s1 + $0x68] sm:$0xf]
  %v51 = vld [vmem:[%s1 + $0x6c] sm:$0xf]
  %v52 = vld [vmem:[%s1 + $0x70] sm:$0xf]
  %v53 = vld [vmem:[%s1 + $0x74] sm:$0xf]
  %v54 = vld [vmem:[%s1 + $0x78] sm:$0xf]
  %v55 = vld [vmem:[%s1 + $0x7c] sm:$0xf]
  %v56 = vld [vmem:[%s1 + $0x80] sm:$0xf]
  %v57 = vld [vmem:[%s1 + $0x84] sm:$0xf]
  %v58 = vld [vmem:[%s1 + $0x88] sm:$0xf]
  %v59 = vld [vmem:[%s1 + $0x8c] sm:$0xf]
  %v60 = vld [vmem:[%s1 + $0x90] sm:$0xf]
  %v61 = vld [vmem:[%s1 + $0x94] sm:$0xf]
  %v62 = vld [vmem:[%s1 + $0x98] sm:$0xf]
  %v63 = vld [vmem:[%s1 + $0x9c] sm:$0xf]
  %v64 = vld [vmem:[%s1 + $0xa0] sm:$0xf]
  %v65 = vld [vmem:[%s1 + $0xa4] sm:$0xf]
  %v66 = vld [vmem:[%s1 + $0xa8] sm:$0xf]
  %v67 = vld [vmem:[%s1 + $0xac] sm:$0xf]
  %v68 = vld [vmem:[%s1 + $0xb0] sm:$0xf]
  %v69 = vld [vmem:[%s1 + $0xb4] sm:$0xf]
  %v70 = vld [vmem:[%s1 + $0xb8] sm:$0xf]
  %v71 = vld [vmem:[%s1 + $0xbc] sm:$0xf]
  %v72 = vld [vmem:[%s1 + $0xc0] sm:$0xf]
  %v73 = vld [vmem:[%s1 + $0xc4] sm:$0xf]
  %v74 = vld [vmem:[%s1 + $0xc8] sm:$0xf]
  %v75 = vld [vmem:[%s1 + $0xcc] sm:$0xf]
  %v76 = vld [vmem:[%s1 + $0xd0] sm:$0xf]
  %v77 = vld [vmem:[%s1 + $0xd4] sm:$0xf]
  %v78 = vld [vmem:[%s1 + $0xd8] sm:$0xf]
  %v79 = vld [vmem:[%s1 + $0xdc] sm:$0xf]
  %v80 = vld [vmem:[%s1 + $0xe0] sm:$0xf]
  %v81 = vld [vmem:[%s1 + $0xe4] sm:$0xf]
  %v82 = vld [vmem:[%s1 + $0xe8] sm:$0xf]
  %v83 = vld [vmem:[%s1 + $0xec] sm:$0xf]
  %v84 = vld [vmem:[%s1 + $0xf0] sm:$0xf]
  %v85 = vld [vmem:[%s1 + $0xf4] sm:$0xf]
  %v86 = vld [vmem:[%s1 + $0xf8] sm:$0xf]
  %v87 = vld [vmem:[%s1 + $0xfc] sm:$0xf]
  %v88 = vld [vmem:[%s1 + $0x100] sm:$0xf]
  %v89 = vld [vmem:[%s1 + $0x104] sm:$0xf]
  %v90 = vld [vmem:[%s1 + $0x108] sm:$0xf]
  %v91 = vld [vmem:[%s1 + $0x10c] sm:$0xf]
  %v92 = vld [vmem:[%s1 + $0x110] sm:$0xf]
  %v93 = vld [vmem:[%s1 + $0x114] sm:$0xf]
  %v94 = vld [vmem:[%s1 + $0x118] sm:$0xf]
  %v95 = vld [vmem:[%s1 + $0x11c] sm:$0xf]
  %v96 = vld [vmem:[%s1 + $0x120] sm:$0xf]
  %v97 = vld [vmem:[%s1 + $0x124] sm:$0xf]
  %v98 = vld [vmem:[%s1 + $0x128] sm:$0xf]
  %v99 = vld [vmem:[%s1 + $0x12c] sm:$0xf]
  %v100 = vld [vmem:[%s1 + $0x130] sm:$0xf]
  %v101 = vld [vmem:[%s1 + $0x134] sm:$0xf]
  %v102 = vld [vmem:[%s1 + $0x138] sm:$0xf]
  %v103 = vld [vmem:[%s1 + $0x13c] sm:$0xf]
  %v107 = vunpack.c.l.b16 %v21
  %v108 = vunpack.c.h.b16 %v21
  %v109 = vunpack.c.l.b16 %v22
  %v110 = vunpack.c.h.b16 %v22
  %v111 = vunpack.c.l.b16 %v23
  %v112 = vpack.c.b16 %v107, %v107
  %v113 = vpack.c.b16 %v108, %v108
  %v114 = vpack.c.b16 %v109, %v109
  %v115 = vpack.c.b16 %v110, %v110
  %v116 = vpack.c.b16 %v111, %v111
  %v202 = vunpack.c.l.b16 %v24
  %v203 = vunpack.c.l.b16 %v25
  %v204 = vunpack.c.l.b16 %v26
  %v205 = vunpack.c.l.b16 %v27
  %v206 = vunpack.c.l.b16 %v28
  %v207 = vunpack.c.l.b16 %v29
  %v208 = vunpack.c.l.b16 %v30
  %v209 = vunpack.c.l.b16 %v31
  %v210 = vunpack.c.l.b16 %v32
  %v211 = vunpack.c.l.b16 %v33
  %v212 = vunpack.c.l.b16 %v34
  %v213 = vunpack.c.l.b16 %v35
  %v214 = vunpack.c.l.b16 %v36
  %v215 = vunpack.c.l.b16 %v37
  %v216 = vunpack.c.l.b16 %v38
  %v217 = vunpack.c.l.b16 %v39
  %v218 = vunpack.c.l.b16 %v40
  %v219 = vunpack.c.l.b16 %v41
  %v220 = vunpack.c.l.b16 %v42
  %v221 = vunpack.c.l.b16 %v43
  %v222 = vunpack.c.l.b16 %v44
  %v223 = vunpack.c.l.b16 %v45
  %v224 = vunpack.c.l.b16 %v46
  %v225 = vunpack.c.l.b16 %v47
  %v226 = vunpack.c.l.b16 %v48
  %v227 = vunpack.c.l.b16 %v49
  %v228 = vunpack.c.l.b16 %v50
  %v229 = vunpack.c.l.b16 %v51
  %v230 = vunpack.c.l.b16 %v52
  %v231 = vunpack.c.l.b16 %v53
  %v232 = vunpack.c.l.b16 %v54
  %v233 = vunpack.c.l.b16 %v55
  %v234 = vunpack.c.l.b16 %v56
  %v235 = vunpack.c.l.b16 %v57
  %v236 = vunpack.c.l.b16 %v58
  %v237 = vunpack.c.l.b16 %v59
  %v238 = vunpack.c.l.b16 %v60
  %v239 = vunpack.c.l.b16 %v61
  %v240 = vunpack.c.l.b16 %v62
  %v241 = vunpack.c.l.b16 %v63
  %v242 = vunpack.c.l.b16 %v64
  %v243 = vunpack.c.l.b16 %v65
  %v244 = vunpack.c.l.b16 %v66
  %v245 = vunpack.c.l.b16 %v67
  %v246 = vunpack.c.l.b16 %v68
  %v247 = vunpack.c.l.b16 %v69
  %v248 = vunpack.c.l.b16 %v70
  %v249 = vunpack.c.l.b16 %v71
  %v250 = vunpack.c.l.b16 %v72
  %v251 = vunpack.c.l.b16 %v73
  %v252 = vunpack.c.l.b16 %v74
  %v253 = vunpack.c.l.b16 %v75
  %v254 = vunpack.c.l.b16 %v76
  %v255 = vunpack.c.l.b16 %v77
  %v256 = vunpack.c.l.b16 %v78
  %v257 = vunpack.c.l.b16 %v79
  %v258 = vunpack.c.l.b16 %v80
  %v259 = vunpack.c.l.b16 %v81
  %v260 = vunpack.c.l.b16 %v82
  %v261 = vunpack.c.l.b16 %v83
  %v262 = vunpack.c.l.b16 %v84
  %v263 = vunpack.c.l.b16 %v85
  %v264 = vunpack.c.l.b16 %v86
  %v265 = vunpack.c.l.b16 %v87
  %v266 = vunpack.c.l.b16 %v88
  %v267 = vunpack.c.l.b16 %v89
  %v268 = vunpack.c.l.b16 %v90
  %v269 = vunpack.c.l.b16 %v91
  %v270 = vunpack.c.l.b16 %v92
  %v271 = vunpack.c.l.b16 %v93
  %v272 = vunpack.c.l.b16 %v94
  %v273 = vunpack.c.l.b16 %v95
  %v274 = vunpack.c.l.b16 %v96
  %v275 = vunpack.c.l.b16 %v97
  %v276 = vunpack.c.l.b16 %v98
  %v277 = vunpack.c.l.b16 %v99
  %v278 = vunpack.c.l.b16 %v100
  %v279 = vunpack.c.l.b16 %v101
  %v280 = vunpack.c.l.b16 %v102
  %v281 = vunpack.c.l.b16 %v103
  %v282 = vpack.c.b16 %v203, %v202
  %v283 = vpack.c.b16 %v205, %v204
  %v284 = vpack.c.b16 %v207, %v206
  %v285 = vpack.c.b16 %v209, %v208
  %v286 = vpack.c.b16 %v211, %v210
  %v287 = vpack.c.b16 %v213, %v212
  %v288 = vpack.c.b16 %v215, %v214
  %v289 = vpack.c.b16 %v217, %v216
  %v290 = vpack.c.b16 %v219, %v218
  %v291 = vpack.c.b16 %v221, %v220
  %v292 = vpack.c.b16 %v223, %v222
  %v293 = vpack.c.b16 %v225, %v224
  %v294 = vpack.c.b16 %v227, %v226
  %v295 = vpack.c.b16 %v229, %v228
  %v296 = vpack.c.b16 %v231, %v230
  %v297 = vpack.c.b16 %v233, %v232
  %v298 = vpack.c.b16 %v235, %v234
  %v299 = vpack.c.b16 %v237, %v236
  %v300 = vpack.c.b16 %v239, %v238
  %v301 = vpack.c.b16 %v241, %v240
  %v302 = vpack.c.b16 %v243, %v242
  %v303 = vpack.c.b16 %v245, %v244
  %v304 = vpack.c.b16 %v247, %v246
  %v305 = vpack.c.b16 %v249, %v248
  %v306 = vpack.c.b16 %v251, %v250
  %v307 = vpack.c.b16 %v253, %v252
  %v308 = vpack.c.b16 %v255, %v254
  %v309 = vpack.c.b16 %v257, %v256
  %v310 = vpack.c.b16 %v259, %v258
  %v311 = vpack.c.b16 %v261, %v260
  %v312 = vpack.c.b16 %v263, %v262
  %v313 = vpack.c.b16 %v265, %v264
  %v314 = vpack.c.b16 %v267, %v266
  %v315 = vpack.c.b16 %v269, %v268
  %v316 = vpack.c.b16 %v271, %v270
  %v317 = vpack.c.b16 %v273, %v272
  %v318 = vpack.c.b16 %v275, %v274
  %v319 = vpack.c.b16 %v277, %v276
  %v320 = vpack.c.b16 %v279, %v278
  %v321 = vpack.c.b16 %v281, %v280
  %362 = vmatprep.subr.bf16.mxu0 0
  %363 = vmatpush1.bf16.msra.mxu0 %v282
  %364 = vmatprep.subr.bf16.mxu0 0
  %365 = vmatpush1.bf16.msra.mxu0 %v283
  %366 = vmatprep.subr.bf16.mxu0 0
  %367 = vmatpush1.bf16.msra.mxu0 %v284
  %368 = vmatprep.subr.bf16.mxu0 0
  %369 = vmatpush1.bf16.msra.mxu0 %v285
  %370 = vmatprep.subr.bf16.mxu0 0
  %371 = vmatpush1.bf16.msra.mxu0 %v286
  %372 = vmatprep.subr.bf16.mxu0 0
  %373 = vmatpush1.bf16.msra.mxu0 %v287
  %374 = vmatprep.subr.bf16.mxu0 0
  %375 = vmatpush1.bf16.msra.mxu0 %v288
  %376 = vmatprep.subr.bf16.mxu0 0
  %377 = vmatpush1.bf16.msra.mxu0 %v289
  %378 = vmatprep.subr.bf16.mxu0 0
  %379 = vmatpush1.bf16.msra.mxu0 %v290
  %380 = vmatprep.subr.bf16.mxu0 0
  %381 = vmatpush1.bf16.msra.mxu0 %v291
  %382 = vmatprep.subr.bf16.mxu0 0
  %383 = vmatpush1.bf16.msra.mxu0 %v292
  %384 = vmatprep.subr.bf16.mxu0 0
  %385 = vmatpush1.bf16.msra.mxu0 %v293
  %386 = vmatprep.subr.bf16.mxu0 0
  %387 = vmatpush1.bf16.msra.mxu0 %v294
  %388 = vmatprep.subr.bf16.mxu0 0
  %389 = vmatpush1.bf16.msra.mxu0 %v295
  %390 = vmatprep.subr.bf16.mxu0 0
  %391 = vmatpush1.bf16.msra.mxu0 %v296
  %392 = vmatprep.subr.bf16.mxu0 0
  %393 = vmatpush1.bf16.msra.mxu0 %v297
  %394 = vmatprep.mubr.bf16.mxu0 %v113
  %395 = vmatmul.mubr.bf16.gmra.mrb[0].mxu0 %v112
  %v396 = vpop.f32.mrb[0].mxu0
  %v397 = vadd.f32 0.0, %v396
  %v398 = vpop.f32.mrb[0].mxu0
  %v399 = vpop.f32.mrb[0].mxu0
  %v400 = vpop.f32.mrb[0].mxu0
  %401 = vdwg.mxu0
  %402 = vmatprep.subr.bf16.mxu0 0
  %403 = vmatpush1.bf16.msra.mxu0 %v298
  %404 = vmatprep.subr.bf16.mxu0 0
  %405 = vmatpush1.bf16.msra.mxu0 %v299
  %406 = vmatprep.subr.bf16.mxu0 0
  %407 = vmatpush1.bf16.msra.mxu0 %v300
  %408 = vmatprep.subr.bf16.mxu0 0
  %409 = vmatpush1.bf16.msra.mxu0 %v301
  %410 = vmatprep.subr.bf16.mxu0 0
  %411 = vmatpush1.bf16.msra.mxu0 %v302
  %412 = vmatprep.subr.bf16.mxu0 0
  %413 = vmatpush1.bf16.msra.mxu0 %v303
  %414 = vmatprep.subr.bf16.mxu0 0
  %415 = vmatpush1.bf16.msra.mxu0 %v304
  %416 = vmatprep.subr.bf16.mxu0 0
  %417 = vmatpush1.bf16.msra.mxu0 %v305
  %418 = vmatprep.subr.bf16.mxu0 0
  %419 = vmatpush1.bf16.msra.mxu0 %v306
  %420 = vmatprep.subr.bf16.mxu0 0
  %421 = vmatpush1.bf16.msra.mxu0 %v307
  %422 = vmatprep.subr.bf16.mxu0 0
  %423 = vmatpush1.bf16.msra.mxu0 %v308
  %424 = vmatprep.subr.bf16.mxu0 0
  %425 = vmatpush1.bf16.msra.mxu0 %v309
  %426 = vmatprep.subr.bf16.mxu0 0
  %427 = vmatpush1.bf16.msra.mxu0 %v310
  %428 = vmatprep.subr.bf16.mxu0 0
  %429 = vmatpush1.bf16.msra.mxu0 %v311
  %430 = vmatprep.subr.bf16.mxu0 0
  %431 = vmatpush1.bf16.msra.mxu0 %v312
  %432 = vmatprep.subr.bf16.mxu0 0
  %433 = vmatpush1.bf16.msra.mxu0 %v313
  %434 = vmatprep.mubr.bf16.mxu0 %v115
  %435 = vmatmul.mubr.bf16.gmra.mrb[0].mxu0 %v114
  %v436 = vpop.f32.mrb[0].mxu0
  %v437 = vadd.f32 %v397, %v436
  %v438 = vpop.f32.mrb[0].mxu0
  %v439 = vpop.f32.mrb[0].mxu0
  %v440 = vpop.f32.mrb[0].mxu0
  %441 = vdwg.mxu0
  %442 = vmatprep.subr.bf16.mxu0 0
  %443 = vmatpush1.bf16.msra.mxu0 %v314
  %444 = vmatprep.subr.bf16.mxu0 0
  %445 = vmatpush1.bf16.msra.mxu0 %v315
  %446 = vmatprep.subr.bf16.mxu0 0
  %447 = vmatpush1.bf16.msra.mxu0 %v316
  %448 = vmatprep.subr.bf16.mxu0 0
  %449 = vmatpush1.bf16.msra.mxu0 %v317
  %450 = vmatprep.subr.bf16.mxu0 0
  %451 = vmatpush1.bf16.msra.mxu0 %v318
  %452 = vmatprep.subr.bf16.mxu0 0
  %453 = vmatpush1.bf16.msra.mxu0 %v319
  %454 = vmatprep.subr.bf16.mxu0 0
  %455 = vmatpush1.bf16.msra.mxu0 %v320
  %456 = vmatprep.subr.bf16.mxu0 0
  %457 = vmatpush1.bf16.msra.mxu0 %v321
  %458 = vmatprep.subr.bf16.mxu0 0
  %459 = vmatpush1.bf16.msra.mxu0 0
  %460 = vmatprep.subr.bf16.mxu0 0
  %461 = vmatpush1.bf16.msra.mxu0 0
  %462 = vmatprep.subr.bf16.mxu0 0
  %463 = vmatpush1.bf16.msra.mxu0 0
  %464 = vmatprep.subr.bf16.mxu0 0
  %465 = vmatpush1.bf16.msra.mxu0 0
  %466 = vmatprep.subr.bf16.mxu0 0
  %467 = vmatpush1.bf16.msra.mxu0 0
  %468 = vmatprep.subr.bf16.mxu0 0
  %469 = vmatpush1.bf16.msra.mxu0 0
  %470 = vmatprep.subr.bf16.mxu0 0
  %471 = vmatpush1.bf16.msra.mxu0 0
  %472 = vmatprep.subr.bf16.mxu0 0
  %473 = vmatpush1.bf16.msra.mxu0 0
  %474 = vmatprep.mubr.bf16.mxu0 0
  %475 = vmatmul.mubr.bf16.gmra.mrb[0].mxu0 %v116
  %v476 = vpop.f32.mrb[0].mxu0
  %v477 = vadd.f32 %v437, %v476
  %v478 = vpop.f32.mrb[0].mxu0
  %v479 = vpop.f32.mrb[0].mxu0
  %v480 = vpop.f32.mrb[0].mxu0
  %481 = vdwg.mxu0
  %v482 = vadd.f32 %v20, %v477
  %483 = vst [vmem:[#allocation2] sm:$0xff] %v482
  // Predicated region
  $region18: #{orangenet18_forward.41} parent=0 // pred_check
    %p484 = pneg %p15
  $region19: #{orangenet18_forward.41} parent=0 // pred_check_branch
    %486 = sbr.rel (%p484) target = $region21
  $region20: #{orangenet18_forward.41} parent=0 // pred_region
    %v487 = vld [vmem:[#allocation2] sm:$0xff]
    %v488 = vld [vmem:[%s2] sm:$0x1]
    %v490 = vlaneseq
    %v491 = vshrl.u32 %v490, 7
    %v492 = vsub.s32 0, %v491
    %v493 = vrot.slane %v488, %v492
    %v495 = vadd.f32 %v487, %v493
    %v496 = vmax.f32 %v495, 0.0
    %v497 = vpack.c.bf16 %v496, %v496
    %498 = vst [vmem:[%s3] sm:$0xf] %v497
  $region21: #{orangenet18_forward.41} parent=0 // pred_fallthru
    _
  // Predicated region
  $region22: #{orangenet18_forward.41} parent=0 // pred_check
    _
  $region23: #{orangenet18_forward.41} parent=0 // pred_check_branch
    %500 = sbr.rel (0) target = $region25
  $region24: #{orangenet18_forward.41} parent=0 // pred_region
    _
  $region25: #{orangenet18_forward.41} parent=0 // pred_fallthru
    _
  // Predicated region
  $region26: #{orangenet18_forward.41} parent=0 // pred_check
    _
  $region27: #{orangenet18_forward.41} parent=0 // pred_check_branch
    %502 = sbr.rel (0) target = $region29
  $region28: #{orangenet18_forward.41} parent=0 // pred_region
    _
  $region29: #{orangenet18_forward.41} parent=0 // pred_fallthru
    _

// kernel: orangenet18_forward.43
$region0: #{orangenet18_forward.43}
  #allocation0 [shape = 'u32[]', space=smem, size = 0x4, offset = 0x4, fixed_abs, tag = 'smem constant byte address 0x4 - core index']
  #allocation1 [shape = 'u32[144,128]{1,0:T(1,128)}', space=vmem, size = 0x12000, scoped, tag = 'internal scratch']
  %s0 = inlined_call_operand.vmem [shape: bf16[8,256], index: 0, kind: input, shape index: {}]
  %s1 = inlined_call_operand.vmem [shape: bf16[256,512], index: 1, kind: input, shape index: {}]
  %s2 = inlined_call_operand.vmem [shape: f32[1,512], index: 2, kind: input, shape index: {}]
  %s3 = inlined_call_operand.vmem [shape: bf16[512,256], index: 3, kind: input, shape index: {}]
  %s4 = inlined_call_operand.vmem [shape: f32[1,256], index: 4, kind: input, shape index: {}]
  %s5 = inlined_call_operand.vmem [shape: bf16[256,128], index: 5, kind: input, shape index: {}]
  %s6 = inlined_call_operand.vmem [shape: f32[1,128], index: 6, kind: input, shape index: {}]
  %s7 = inlined_call_operand.vmem [shape: bf16[128,384], index: 7, kind: input, shape index: {}]
  %s8 = inlined_call_operand.vmem [shape: f32[1,384], index: 8, kind: input, shape index: {}]
  %s9 = inlined_call_operand.vmem [shape: f32[8,384], index: 9, kind: output, shape index: {}]
  %s10 = sld [smem:[#allocation0]]
  $region46: #{orangenet18_forward.43} parent=0
    _
  %s12 = ssub.s32 1, %s10
  %s13 = scalar_select 0, %s12, %s10
  // Predicated region
  $region2: #{orangenet18_forward.43} parent=0 // pred_check
    _
  $region3: #{orangenet18_forward.43} parent=0 // pred_check_branch
    %15 = sbr.rel (0) target = $region5
  $region4: #{orangenet18_forward.43} parent=0 // pred_region
    _
  $region5: #{orangenet18_forward.43} parent=0 // pred_fallthru
    _
  // Predicated region
  $region6: #{orangenet18_forward.43} parent=0 // pred_check
    _
  $region7: #{orangenet18_forward.43} parent=0 // pred_check_branch
    %17 = sbr.rel (0) target = $region9
  $region8: #{orangenet18_forward.43} parent=0 // pred_region
    _
  $region9: #{orangenet18_forward.43} parent=0 // pred_fallthru
    _
  // Predicated region
  $region10: #{orangenet18_forward.43} parent=0 // pred_check
    _
  $region11: #{orangenet18_forward.43} parent=0 // pred_check_branch
    %19 = sbr.rel (0) target = $region13
  $region12: #{orangenet18_forward.43} parent=0 // pred_region
    _
  $region13: #{orangenet18_forward.43} parent=0 // pred_fallthru
    _
  // Predicated region
  $region14: #{orangenet18_forward.43} parent=0 // pred_check
    _
  $region15: #{orangenet18_forward.43} parent=0 // pred_check_branch
    %21 = sbr.rel (0) target = $region17
  $region16: #{orangenet18_forward.43} parent=0 // pred_region
    _
  $region17: #{orangenet18_forward.43} parent=0 // pred_fallthru
    _
  // Predicated region
  $region18: #{orangenet18_forward.43} parent=0 // pred_check
    _
  $region19: #{orangenet18_forward.43} parent=0 // pred_check_branch
    %23 = sbr.rel (0) target = $region21
  $region20: #{orangenet18_forward.43} parent=0 // pred_region
    _
  $region21: #{orangenet18_forward.43} parent=0 // pred_fallthru
    _
  // Predicated region
  $region22: #{orangenet18_forward.43} parent=0 // pred_check
    _
  $region23: #{orangenet18_forward.43} parent=0 // pred_check_branch
    %25 = sbr.rel (0) target = $region25
  $region24: #{orangenet18_forward.43} parent=0 // pred_region
    _
  $region25: #{orangenet18_forward.43} parent=0 // pred_fallthru
    _
  // Predicated region
  $region26: #{orangenet18_forward.43} parent=0 // pred_check
    _
  $region27: #{orangenet18_forward.43} parent=0 // pred_check_branch
    %27 = sbr.rel (0) target = $region29
  $region28: #{orangenet18_forward.43} parent=0 // pred_region
    _
  $region29: #{orangenet18_forward.43} parent=0 // pred_fallthru
    _
  // Predicated region
  $region30: #{orangenet18_forward.43} parent=0 // pred_check
    _
  $region31: #{orangenet18_forward.43} parent=0 // pred_check_branch
    %29 = sbr.rel (0) target = $region33
  $region32: #{orangenet18_forward.43} parent=0 // pred_region
    _
  $region33: #{orangenet18_forward.43} parent=0 // pred_fallthru
    _
  // Predicated region
  $region34: #{orangenet18_forward.43} parent=0 // pred_check
    _
  $region35: #{orangenet18_forward.43} parent=0 // pred_check_branch
    %31 = sbr.rel (0) target = $region37
  $region36: #{orangenet18_forward.43} parent=0 // pred_region
    _
  $region37: #{orangenet18_forward.43} parent=0 // pred_fallthru
    _
  %v33 = vld [vmem:[%s0] sm:$0xff]
  %v34 = vunpack.c.l.bf16 %v33
  %v35 = vunpack.c.h.bf16 %v33
  %v36 = vmax.f32 %v34, 0.0
  %v37 = vmax.f32 %v35, 0.0
  %v38 = vpack.c.bf16 %v36, %v36
  %v39 = vpack.c.bf16 %v37, %v37
  %v40 = vld [vmem:[%s1] sm:$0xff]
  %v41 = vld [vmem:[%s1 + $0x8] sm:$0xff]
  %v42 = vld [vmem:[%s1 + $0x10] sm:$0xff]
  %v43 = vld [vmem:[%s1 + $0x18] sm:$0xff]
  %v44 = vld [vmem:[%s1 + $0x20] sm:$0xff]
  %v45 = vld [vmem:[%s1 + $0x28] sm:$0xff]
  %v46 = vld [vmem:[%s1 + $0x30] sm:$0xff]
  %v47 = vld [vmem:[%s1 + $0x38] sm:$0xff]
  %v48 = vld [vmem:[%s1 + $0x40] sm:$0xff]
  %v49 = vld [vmem:[%s1 + $0x48] sm:$0xff]
  %v50 = vld [vmem:[%s1 + $0x50] sm:$0xff]
  %v51 = vld [vmem:[%s1 + $0x58] sm:$0xff]
  %v52 = vld [vmem:[%s1 + $0x60] sm:$0xff]
  %v53 = vld [vmem:[%s1 + $0x68] sm:$0xff]
  %v54 = vld [vmem:[%s1 + $0x70] sm:$0xff]
  %v55 = vld [vmem:[%s1 + $0x78] sm:$0xff]
  %v56 = vld [vmem:[%s1 + $0x80] sm:$0xff]
  %v57 = vld [vmem:[%s1 + $0x88] sm:$0xff]
  %v58 = vld [vmem:[%s1 + $0x90] sm:$0xff]
  %v59 = vld [vmem:[%s1 + $0x98] sm:$0xff]
  %v60 = vld [vmem:[%s1 + $0xa0] sm:$0xff]
  %v61 = vld [vmem:[%s1 + $0xa8] sm:$0xff]
  %v62 = vld [vmem:[%s1 + $0xb0] sm:$0xff]
  %v63 = vld [vmem:[%s1 + $0xb8] sm:$0xff]
  %v64 = vld [vmem:[%s1 + $0xc0] sm:$0xff]
  %v65 = vld [vmem:[%s1 + $0xc8] sm:$0xff]
  %v66 = vld [vmem:[%s1 + $0xd0] sm:$0xff]
  %v67 = vld [vmem:[%s1 + $0xd8] sm:$0xff]
  %v68 = vld [vmem:[%s1 + $0xe0] sm:$0xff]
  %v69 = vld [vmem:[%s1 + $0xe8] sm:$0xff]
  %v70 = vld [vmem:[%s1 + $0xf0] sm:$0xff]
  %v71 = vld [vmem:[%s1 + $0xf8] sm:$0xff]
  %v72 = vld [vmem:[%s1 + $0x100] sm:$0xff]
  %v73 = vld [vmem:[%s1 + $0x108] sm:$0xff]
  %v74 = vld [vmem:[%s1 + $0x110] sm:$0xff]
  %v75 = vld [vmem:[%s1 + $0x118] sm:$0xff]
  %v76 = vld [vmem:[%s1 + $0x120] sm:$0xff]
  %v77 = vld [vmem:[%s1 + $0x128] sm:$0xff]
  %v78 = vld [vmem:[%s1 + $0x130] sm:$0xff]
  %v79 = vld [vmem:[%s1 + $0x138] sm:$0xff]
  %v80 = vld [vmem:[%s1 + $0x140] sm:$0xff]
  %v81 = vld [vmem:[%s1 + $0x148] sm:$0xff]
  %v82 = vld [vmem:[%s1 + $0x150] sm:$0xff]
  %v83 = vld [vmem:[%s1 + $0x158] sm:$0xff]
  %v84 = vld [vmem:[%s1 + $0x160] sm:$0xff]
  %v85 = vld [vmem:[%s1 + $0x168] sm:$0xff]
  %v86 = vld [vmem:[%s1 + $0x170] sm:$0xff]
  %v87 = vld [vmem:[%s1 + $0x178] sm:$0xff]
  %v88 = vld [vmem:[%s1 + $0x180] sm:$0xff]
  %v89 = vld [vmem:[%s1 + $0x188] sm:$0xff]
  %v90 = vld [vmem:[%s1 + $0x190] sm:$0xff]
  %v91 = vld [vmem:[%s1 + $0x198] sm:$0xff]
  %v92 = vld [vmem:[%s1 + $0x1a0] sm:$0xff]
  %v93 = vld [vmem:[%s1 + $0x1a8] sm:$0xff]
  %v94 = vld [vmem:[%s1 + $0x1b0] sm:$0xff]
  %v95 = vld [vmem:[%s1 + $0x1b8] sm:$0xff]
  %v96 = vld [vmem:[%s1 + $0x1c0] sm:$0xff]
  %v97 = vld [vmem:[%s1 + $0x1c8] sm:$0xff]
  %v98 = vld [vmem:[%s1 + $0x1d0] sm:$0xff]
  %v99 = vld [vmem:[%s1 + $0x1d8] sm:$0xff]
  %v100 = vld [vmem:[%s1 + $0x1e0] sm:$0xff]
  %v101 = vld [vmem:[%s1 + $0x1e8] sm:$0xff]
  %v102 = vld [vmem:[%s1 + $0x1f0] sm:$0xff]
  %v103 = vld [vmem:[%s1 + $0x1f8] sm:$0xff]
  %v104 = vld [vmem:[%s2] sm:$0xf]
  %v106 = vlaneseq
  %v107 = vshrl.u32 %v106, 7
  %v108 = vsub.s32 0, %v107
  %v109 = vrot.slane %v104, %v108
  %v110 = vlaneseq
  %v111 = vshrl.u32 %v110, 7
  %v112 = vsub.s32 1, %v111
  %v113 = vrot.slane %v104, %v112
  %v114 = vlaneseq
  %v115 = vshrl.u32 %v114, 7
  %v116 = vsub.s32 2, %v115
  %v117 = vrot.slane %v104, %v116
  %v118 = vlaneseq
  %v119 = vshrl.u32 %v118, 7
  %v120 = vsub.s32 3, %v119
  %v121 = vrot.slane %v104, %v120
  %v190 = vunpack.c.l.b16 %v40
  %v191 = vunpack.c.h.b16 %v40
  %v192 = vunpack.c.l.b16 %v41
  %v193 = vunpack.c.h.b16 %v41
  %v194 = vunpack.c.l.b16 %v42
  %v195 = vunpack.c.h.b16 %v42
  %v196 = vunpack.c.l.b16 %v43
  %v197 = vunpack.c.h.b16 %v43
  %v198 = vunpack.c.l.b16 %v44
  %v199 = vunpack.c.h.b16 %v44
  %v200 = vunpack.c.l.b16 %v45
  %v201 = vunpack.c.h.b16 %v45
  %v202 = vunpack.c.l.b16 %v46
  %v203 = vunpack.c.h.b16 %v46
  %v204 = vunpack.c.l.b16 %v47
  %v205 = vunpack.c.h.b16 %v47
  %v206 = vunpack.c.l.b16 %v48
  %v207 = vunpack.c.h.b16 %v48
  %v208 = vunpack.c.l.b16 %v49
  %v209 = vunpack.c.h.b16 %v49
  %v210 = vunpack.c.l.b16 %v50
  %v211 = vunpack.c.h.b16 %v50
  %v212 = vunpack.c.l.b16 %v51
  %v213 = vunpack.c.h.b16 %v51
  %v214 = vunpack.c.l.b16 %v52
  %v215 = vunpack.c.h.b16 %v52
  %v216 = vunpack.c.l.b16 %v53
  %v217 = vunpack.c.h.b16 %v53
  %v218 = vunpack.c.l.b16 %v54
  %v219 = vunpack.c.h.b16 %v54
  %v220 = vunpack.c.l.b16 %v55
  %v221 = vunpack.c.h.b16 %v55
  %v222 = vunpack.c.l.b16 %v56
  %v223 = vunpack.c.h.b16 %v56
  %v224 = vunpack.c.l.b16 %v57
  %v225 = vunpack.c.h.b16 %v57
  %v226 = vunpack.c.l.b16 %v58
  %v227 = vunpack.c.h.b16 %v58
  %v228 = vunpack.c.l.b16 %v59
  %v229 = vunpack.c.h.b16 %v59
  %v230 = vunpack.c.l.b16 %v60
  %v231 = vunpack.c.h.b16 %v60
  %v232 = vunpack.c.l.b16 %v61
  %v233 = vunpack.c.h.b16 %v61
  %v234 = vunpack.c.l.b16 %v62
  %v235 = vunpack.c.h.b16 %v62
  %v236 = vunpack.c.l.b16 %v63
  %v237 = vunpack.c.h.b16 %v63
  %v238 = vunpack.c.l.b16 %v64
  %v239 = vunpack.c.h.b16 %v64
  %v240 = vunpack.c.l.b16 %v65
  %v241 = vunpack.c.h.b16 %v65
  %v242 = vunpack.c.l.b16 %v66
  %v243 = vunpack.c.h.b16 %v66
  %v244 = vunpack.c.l.b16 %v67
  %v245 = vunpack.c.h.b16 %v67
  %v246 = vunpack.c.l.b16 %v68
  %v247 = vunpack.c.h.b16 %v68
  %v248 = vunpack.c.l.b16 %v69
  %v249 = vunpack.c.h.b16 %v69
  %v250 = vunpack.c.l.b16 %v70
  %v251 = vunpack.c.h.b16 %v70
  %v252 = vunpack.c.l.b16 %v71
  %v253 = vunpack.c.h.b16 %v71
  %v254 = vunpack.c.l.b16 %v72
  %v255 = vunpack.c.h.b16 %v72
  %v256 = vunpack.c.l.b16 %v73
  %v257 = vunpack.c.h.b16 %v73
  %v258 = vunpack.c.l.b16 %v74
  %v259 = vunpack.c.h.b16 %v74
  %v260 = vunpack.c.l.b16 %v75
  %v261 = vunpack.c.h.b16 %v75
  %v262 = vunpack.c.l.b16 %v76
  %v263 = vunpack.c.h.b16 %v76
  %v264 = vunpack.c.l.b16 %v77
  %v265 = vunpack.c.h.b16 %v77
  %v266 = vunpack.c.l.b16 %v78
  %v267 = vunpack.c.h.b16 %v78
  %v268 = vunpack.c.l.b16 %v79
  %v269 = vunpack.c.h.b16 %v79
  %v270 = vunpack.c.l.b16 %v80
  %v271 = vunpack.c.h.b16 %v80
  %v272 = vunpack.c.l.b16 %v81
  %v273 = vunpack.c.h.b16 %v81
  %v274 = vunpack.c.l.b16 %v82
  %v275 = vunpack.c.h.b16 %v82
  %v276 = vunpack.c.l.b16 %v83
  %v277 = vunpack.c.h.b16 %v83
  %v278 = vunpack.c.l.b16 %v84
  %v279 = vunpack.c.h.b16 %v84
  %v280 = vunpack.c.l.b16 %v85
  %v281 = vunpack.c.h.b16 %v85
  %v282 = vunpack.c.l.b16 %v86
  %v283 = vunpack.c.h.b16 %v86
  %v284 = vunpack.c.l.b16 %v87
  %v285 = vunpack.c.h.b16 %v87
  %v286 = vunpack.c.l.b16 %v88
  %v287 = vunpack.c.h.b16 %v88
  %v288 = vunpack.c.l.b16 %v89
  %v289 = vunpack.c.h.b16 %v89
  %v290 = vunpack.c.l.b16 %v90
  %v291 = vunpack.c.h.b16 %v90
  %v292 = vunpack.c.l.b16 %v91
  %v293 = vunpack.c.h.b16 %v91
  %v294 = vunpack.c.l.b16 %v92
  %v295 = vunpack.c.h.b16 %v92
  %v296 = vunpack.c.l.b16 %v93
  %v297 = vunpack.c.h.b16 %v93
  %v298 = vunpack.c.l.b16 %v94
  %v299 = vunpack.c.h.b16 %v94
  %v300 = vunpack.c.l.b16 %v95
  %v301 = vunpack.c.h.b16 %v95
  %v302 = vunpack.c.l.b16 %v96
  %v303 = vunpack.c.h.b16 %v96
  %v304 = vunpack.c.l.b16 %v97
  %v305 = vunpack.c.h.b16 %v97
  %v306 = vunpack.c.l.b16 %v98
  %v307 = vunpack.c.h.b16 %v98
  %v308 = vunpack.c.l.b16 %v99
  %v309 = vunpack.c.h.b16 %v99
  %v310 = vunpack.c.l.b16 %v100
  %v311 = vunpack.c.h.b16 %v100
  %v312 = vunpack.c.l.b16 %v101
  %v313 = vunpack.c.h.b16 %v101
  %v314 = vunpack.c.l.b16 %v102
  %v315 = vunpack.c.h.b16 %v102
  %v316 = vunpack.c.l.b16 %v103
  %v317 = vunpack.c.h.b16 %v103
  %v318 = vpack.c.b16 %v194, %v190
  %v319 = vpack.c.b16 %v195, %v191
  %v320 = vpack.c.b16 %v196, %v192
  %v321 = vpack.c.b16 %v197, %v193
  %v322 = vpack.c.b16 %v202, %v198
  %v323 = vpack.c.b16 %v203, %v199
  %v324 = vpack.c.b16 %v204, %v200
  %v325 = vpack.c.b16 %v205, %v201
  %v326 = vpack.c.b16 %v210, %v206
  %v327 = vpack.c.b16 %v211, %v207
  %v328 = vpack.c.b16 %v212, %v208
  %v329 = vpack.c.b16 %v213, %v209
  %v330 = vpack.c.b16 %v218, %v214
  %v331 = vpack.c.b16 %v219, %v215
  %v332 = vpack.c.b16 %v220, %v216
  %v333 = vpack.c.b16 %v221, %v217
  %v334 = vpack.c.b16 %v226, %v222
  %v335 = vpack.c.b16 %v227, %v223
  %v336 = vpack.c.b16 %v228, %v224
  %v337 = vpack.c.b16 %v229, %v225
  %v338 = vpack.c.b16 %v234, %v230
  %v339 = vpack.c.b16 %v235, %v231
  %v340 = vpack.c.b16 %v236, %v232
  %v341 = vpack.c.b16 %v237, %v233
  %v342 = vpack.c.b16 %v242, %v238
  %v343 = vpack.c.b16 %v243, %v239
  %v344 = vpack.c.b16 %v244, %v240
  %v345 = vpack.c.b16 %v245, %v241
  %v346 = vpack.c.b16 %v250, %v246
  %v347 = vpack.c.b16 %v251, %v247
  %v348 = vpack.c.b16 %v252, %v248
  %v349 = vpack.c.b16 %v253, %v249
  %v350 = vpack.c.b16 %v258, %v254
  %v351 = vpack.c.b16 %v259, %v255
  %v352 = vpack.c.b16 %v260, %v256
  %v353 = vpack.c.b16 %v261, %v257
  %v354 = vpack.c.b16 %v266, %v262
  %v355 = vpack.c.b16 %v267, %v263
  %v356 = vpack.c.b16 %v268, %v264
  %v357 = vpack.c.b16 %v269, %v265
  %v358 = vpack.c.b16 %v274, %v270
  %v359 = vpack.c.b16 %v275, %v271
  %v360 = vpack.c.b16 %v276, %v272
  %v361 = vpack.c.b16 %v277, %v273
  %v362 = vpack.c.b16 %v282, %v278
  %v363 = vpack.c.b16 %v283, %v279
  %v364 = vpack.c.b16 %v284, %v280
  %v365 = vpack.c.b16 %v285, %v281
  %v366 = vpack.c.b16 %v290, %v286
  %v367 = vpack.c.b16 %v291, %v287
  %v368 = vpack.c.b16 %v292, %v288
  %v369 = vpack.c.b16 %v293, %v289
  %v370 = vpack.c.b16 %v298, %v294
  %v371 = vpack.c.b16 %v299, %v295
  %v372 = vpack.c.b16 %v300, %v296
  %v373 = vpack.c.b16 %v301, %v297
  %v374 = vpack.c.b16 %v306, %v302
  %v375 = vpack.c.b16 %v307, %v303
  %v376 = vpack.c.b16 %v308, %v304
  %v377 = vpack.c.b16 %v309, %v305
  %v378 = vpack.c.b16 %v314, %v310
  %v379 = vpack.c.b16 %v315, %v311
  %v380 = vpack.c.b16 %v316, %v312
  %v381 = vpack.c.b16 %v317, %v313
  %446 = vmatprep.subr.bf16.mxu0 %v319
  %447 = vmatpush1.bf16.msra.mxu0 %v318
  %448 = vmatprep.subr.bf16.mxu0 %v323
  %449 = vmatpush1.bf16.msra.mxu0 %v322
  %450 = vmatprep.subr.bf16.mxu0 %v327
  %451 = vmatpush1.bf16.msra.mxu0 %v326
  %452 = vmatprep.subr.bf16.mxu0 %v331
  %453 = vmatpush1.bf16.msra.mxu0 %v330
  %454 = vmatprep.subr.bf16.mxu0 %v335
  %455 = vmatpush1.bf16.msra.mxu0 %v334
  %456 = vmatprep.subr.bf16.mxu0 %v339
  %457 = vmatpush1.bf16.msra.mxu0 %v338
  %458 = vmatprep.subr.bf16.mxu0 %v343
  %459 = vmatpush1.bf16.msra.mxu0 %v342
  %460 = vmatprep.subr.bf16.mxu0 %v347
  %461 = vmatpush1.bf16.msra.mxu0 %v346
  %462 = vmatprep.subr.bf16.mxu0 %v351
  %463 = vmatpush1.bf16.msra.mxu0 %v350
  %464 = vmatprep.subr.bf16.mxu0 %v355
  %465 = vmatpush1.bf16.msra.mxu0 %v354
  %466 = vmatprep.subr.bf16.mxu0 %v359
  %467 = vmatpush1.bf16.msra.mxu0 %v358
  %468 = vmatprep.subr.bf16.mxu0 %v363
  %469 = vmatpush1.bf16.msra.mxu0 %v362
  %470 = vmatprep.subr.bf16.mxu0 %v367
  %471 = vmatpush1.bf16.msra.mxu0 %v366
  %472 = vmatprep.subr.bf16.mxu0 %v371
  %473 = vmatpush1.bf16.msra.mxu0 %v370
  %474 = vmatprep.subr.bf16.mxu0 %v375
  %475 = vmatpush1.bf16.msra.mxu0 %v374
  %476 = vmatprep.subr.bf16.mxu0 %v379
  %477 = vmatpush1.bf16.msra.mxu0 %v378
  %478 = vmatprep.mubr.bf16.mxu0 %v39
  %479 = vmatmul.mubr.bf16.gmra.mrb[0].mxu0 %v38
  %v480 = vpop.f32.mrb[0].mxu0
  %v481 = vadd.f32 %v109, %v480
  %v482 = vpop.f32.mrb[0].mxu0
  %v483 = vadd.f32 %v113, %v482
  %v484 = vpop.f32.mrb[0].mxu0
  %v485 = vpop.f32.mrb[0].mxu0
  %486 = vdwg.mxu0
  %487 = vmatprep.subr.bf16.mxu0 %v321
  %488 = vmatpush1.bf16.msra.mxu0 %v320
  %489 = vmatprep.subr.bf16.mxu0 %v325
  %490 = vmatpush1.bf16.msra.mxu0 %v324
  %491 = vmatprep.subr.bf16.mxu0 %v329
  %492 = vmatpush1.bf16.msra.mxu0 %v328
  %493 = vmatprep.subr.bf16.mxu0 %v333
  %494 = vmatpush1.bf16.msra.mxu0 %v332
  %495 = vmatprep.subr.bf16.mxu0 %v337
  %496 = vmatpush1.bf16.msra.mxu0 %v336
  %497 = vmatprep.subr.bf16.mxu0 %v341
  %498 = vmatpush1.bf16.msra.mxu0 %v340
  %499 = vmatprep.subr.bf16.mxu0 %v345
  %500 = vmatpush1.bf16.msra.mxu0 %v344
  %501 = vmatprep.subr.bf16.mxu0 %v349
  %502 = vmatpush1.bf16.msra.mxu0 %v348
  %503 = vmatprep.subr.bf16.mxu0 %v353
  %504 = vmatpush1.bf16.msra.mxu0 %v352
  %505 = vmatprep.subr.bf16.mxu0 %v357
  %506 = vmatpush1.bf16.msra.mxu0 %v356
  %507 = vmatprep.subr.bf16.mxu0 %v361
  %508 = vmatpush1.bf16.msra.mxu0 %v360
  %509 = vmatprep.subr.bf16.mxu0 %v365
  %510 = vmatpush1.bf16.msra.mxu0 %v364
  %511 = vmatprep.subr.bf16.mxu0 %v369
  %512 = vmatpush1.bf16.msra.mxu0 %v368
  %513 = vmatprep.subr.bf16.mxu0 %v373
  %514 = vmatpush1.bf16.msra.mxu0 %v372
  %515 = vmatprep.subr.bf16.mxu0 %v377
  %516 = vmatpush1.bf16.msra.mxu0 %v376
  %517 = vmatprep.subr.bf16.mxu0 %v381
  %518 = vmatpush1.bf16.msra.mxu0 %v380
  %519 = vmatprep.mubr.bf16.mxu0 %v39
  %520 = vmatmul.mubr.bf16.gmra.mrb[0].mxu0 %v38
  %v521 = vpop.f32.mrb[0].mxu0
  %v522 = vadd.f32 %v117, %v521
  %v523 = vpop.f32.mrb[0].mxu0
  %v524 = vadd.f32 %v121, %v523
  %v525 = vpop.f32.mrb[0].mxu0
  %v526 = vpop.f32.mrb[0].mxu0
  %527 = vdwg.mxu0
  %v528 = vmax.f32 %v481, 0.0
  %v529 = vmax.f32 %v483, 0.0
  %v530 = vmax.f32 %v522, 0.0
  %v531 = vmax.f32 %v524, 0.0
  %v532 = vpack.c.bf16 %v528, %v528
  %v533 = vpack.c.bf16 %v529, %v529
  %v534 = vpack.c.bf16 %v530, %v530
  %v535 = vpack.c.bf16 %v531, %v531
  %v536 = vld [vmem:[%s3] sm:$0xff]
  %v537 = vld [vmem:[%s3 + $0x8] sm:$0xff]
  %v538 = vld [vmem:[%s3 + $0x10] sm:$0xff]
  %v539 = vld [vmem:[%s3 + $0x18] sm:$0xff]
  %v540 = vld [vmem:[%s3 + $0x20] sm:$0xff]
  %v541 = vld [vmem:[%s3 + $0x28] sm:$0xff]
  %v542 = vld [vmem:[%s3 + $0x30] sm:$0xff]
  %v543 = vld [vmem:[%s3 + $0x38] sm:$0xff]
  %v544 = vld [vmem:[%s3 + $0x40] sm:$0xff]
  %v545 = vld [vmem:[%s3 + $0x48] sm:$0xff]
  %v546 = vld [vmem:[%s3 + $0x50] sm:$0xff]
  %v547 = vld [vmem:[%s3 + $0x58] sm:$0xff]
  %v548 = vld [vmem:[%s3 + $0x60] sm:$0xff]
  %v549 = vld [vmem:[%s3 + $0x68] sm:$0xff]
  %v550 = vld [vmem:[%s3 + $0x70] sm:$0xff]
  %v551 = vld [vmem:[%s3 + $0x78] sm:$0xff]
  %v552 = vld [vmem:[%s3 + $0x80] sm:$0xff]
  %v553 = vld [vmem:[%s3 + $0x88] sm:$0xff]
  %v554 = vld [vmem:[%s3 + $0x90] sm:$0xff]
  %v555 = vld [vmem:[%s3 + $0x98] sm:$0xff]
  %v556 = vld [vmem:[%s3 + $0xa0] sm:$0xff]
  %v557 = vld [vmem:[%s3 + $0xa8] sm:$0xff]
  %v558 = vld [vmem:[%s3 + $0xb0] sm:$0xff]
  %v559 = vld [vmem:[%s3 + $0xb8] sm:$0xff]
  %v560 = vld [vmem:[%s3 + $0xc0] sm:$0xff]
  %v561 = vld [vmem:[%s3 + $0xc8] sm:$0xff]
  %v562 = vld [vmem:[%s3 + $0xd0] sm:$0xff]
  %v563 = vld [vmem:[%s3 + $0xd8] sm:$0xff]
  %v564 = vld [vmem:[%s3 + $0xe0] sm:$0xff]
  %v565 = vld [vmem:[%s3 + $0xe8] sm:$0xff]
  %v566 = vld [vmem:[%s3 + $0xf0] sm:$0xff]
  %v567 = vld [vmem:[%s3 + $0xf8] sm:$0xff]
  %v568 = vld [vmem:[%s3 + $0x100] sm:$0xff]
  %v569 = vld [vmem:[%s3 + $0x108] sm:$0xff]
  %v570 = vld [vmem:[%s3 + $0x110] sm:$0xff]
  %v571 = vld [vmem:[%s3 + $0x118] sm:$0xff]
  %v572 = vld [vmem:[%s3 + $0x120] sm:$0xff]
  %v573 = vld [vmem:[%s3 + $0x128] sm:$0xff]
  %v574 = vld [vmem:[%s3 + $0x130] sm:$0xff]
  %v575 = vld [vmem:[%s3 + $0x138] sm:$0xff]
  %v576 = vld [vmem:[%s3 + $0x140] sm:$0xff]
  %v577 = vld [vmem:[%s3 + $0x148] sm:$0xff]
  %v578 = vld [vmem:[%s3 + $0x150] sm:$0xff]
  %v579 = vld [vmem:[%s3 + $0x158] sm:$0xff]
  %v580 = vld [vmem:[%s3 + $0x160] sm:$0xff]
  %v581 = vld [vmem:[%s3 + $0x168] sm:$0xff]
  %v582 = vld [vmem:[%s3 + $0x170] sm:$0xff]
  %v583 = vld [vmem:[%s3 + $0x178] sm:$0xff]
  %v584 = vld [vmem:[%s3 + $0x180] sm:$0xff]
  %v585 = vld [vmem:[%s3 + $0x188] sm:$0xff]
  %v586 = vld [vmem:[%s3 + $0x190] sm:$0xff]
  %v587 = vld [vmem:[%s3 + $0x198] sm:$0xff]
  %v588 = vld [vmem:[%s3 + $0x1a0] sm:$0xff]
  %v589 = vld [vmem:[%s3 + $0x1a8] sm:$0xff]
  %v590 = vld [vmem:[%s3 + $0x1b0] sm:$0xff]
  %v591 = vld [vmem:[%s3 + $0x1b8] sm:$0xff]
  %v592 = vld [vmem:[%s3 + $0x1c0] sm:$0xff]
  %v593 = vld [vmem:[%s3 + $0x1c8] sm:$0xff]
  %v594 = vld [vmem:[%s3 + $0x1d0] sm:$0xff]
  %v595 = vld [vmem:[%s3 + $0x1d8] sm:$0xff]
  %v596 = vld [vmem:[%s3 + $0x1e0] sm:$0xff]
  %v597 = vld [vmem:[%s3 + $0x1e8] sm:$0xff]
  %v598 = vld [vmem:[%s3 + $0x1f0] sm:$0xff]
  %v599 = vld [vmem:[%s3 + $0x1f8] sm:$0xff]
  %v600 = vld [vmem:[%s4] sm:$0x3]
  %v602 = vlaneseq
  %v603 = vshrl.u32 %v602, 7
  %v604 = vsub.s32 0, %v603
  %v605 = vrot.slane %v600, %v604
  %v606 = vlaneseq
  %v607 = vshrl.u32 %v606, 7
  %v608 = vsub.s32 1, %v607
  %v609 = vrot.slane %v600, %v608
  %v676 = vunpack.c.l.b16 %v536
  %v677 = vunpack.c.h.b16 %v536
  %v678 = vunpack.c.l.b16 %v537
  %v679 = vunpack.c.h.b16 %v537
  %v680 = vunpack.c.l.b16 %v538
  %v681 = vunpack.c.h.b16 %v538
  %v682 = vunpack.c.l.b16 %v539
  %v683 = vunpack.c.h.b16 %v539
  %v684 = vunpack.c.l.b16 %v540
  %v685 = vunpack.c.h.b16 %v540
  %v686 = vunpack.c.l.b16 %v541
  %v687 = vunpack.c.h.b16 %v541
  %v688 = vunpack.c.l.b16 %v542
  %v689 = vunpack.c.h.b16 %v542
  %v690 = vunpack.c.l.b16 %v543
  %v691 = vunpack.c.h.b16 %v543
  %v692 = vunpack.c.l.b16 %v544
  %v693 = vunpack.c.h.b16 %v544
  %v694 = vunpack.c.l.b16 %v545
  %v695 = vunpack.c.h.b16 %v545
  %v696 = vunpack.c.l.b16 %v546
  %v697 = vunpack.c.h.b16 %v546
  %v698 = vunpack.c.l.b16 %v547
  %v699 = vunpack.c.h.b16 %v547
  %v700 = vunpack.c.l.b16 %v548
  %v701 = vunpack.c.h.b16 %v548
  %v702 = vunpack.c.l.b16 %v549
  %v703 = vunpack.c.h.b16 %v549
  %v704 = vunpack.c.l.b16 %v550
  %v705 = vunpack.c.h.b16 %v550
  %v706 = vunpack.c.l.b16 %v551
  %v707 = vunpack.c.h.b16 %v551
  %v708 = vunpack.c.l.b16 %v552
  %v709 = vunpack.c.h.b16 %v552
  %v710 = vunpack.c.l.b16 %v553
  %v711 = vunpack.c.h.b16 %v553
  %v712 = vunpack.c.l.b16 %v554
  %v713 = vunpack.c.h.b16 %v554
  %v714 = vunpack.c.l.b16 %v555
  %v715 = vunpack.c.h.b16 %v555
  %v716 = vunpack.c.l.b16 %v556
  %v717 = vunpack.c.h.b16 %v556
  %v718 = vunpack.c.l.b16 %v557
  %v719 = vunpack.c.h.b16 %v557
  %v720 = vunpack.c.l.b16 %v558
  %v721 = vunpack.c.h.b16 %v558
  %v722 = vunpack.c.l.b16 %v559
  %v723 = vunpack.c.h.b16 %v559
  %v724 = vunpack.c.l.b16 %v560
  %v725 = vunpack.c.h.b16 %v560
  %v726 = vunpack.c.l.b16 %v561
  %v727 = vunpack.c.h.b16 %v561
  %v728 = vunpack.c.l.b16 %v562
  %v729 = vunpack.c.h.b16 %v562
  %v730 = vunpack.c.l.b16 %v563
  %v731 = vunpack.c.h.b16 %v563
  %v732 = vunpack.c.l.b16 %v564
  %v733 = vunpack.c.h.b16 %v564
  %v734 = vunpack.c.l.b16 %v565
  %v735 = vunpack.c.h.b16 %v565
  %v736 = vunpack.c.l.b16 %v566
  %v737 = vunpack.c.h.b16 %v566
  %v738 = vunpack.c.l.b16 %v567
  %v739 = vunpack.c.h.b16 %v567
  %v740 = vunpack.c.l.b16 %v568
  %v741 = vunpack.c.h.b16 %v568
  %v742 = vunpack.c.l.b16 %v569
  %v743 = vunpack.c.h.b16 %v569
  %v744 = vunpack.c.l.b16 %v570
  %v745 = vunpack.c.h.b16 %v570
  %v746 = vunpack.c.l.b16 %v571
  %v747 = vunpack.c.h.b16 %v571
  %v748 = vunpack.c.l.b16 %v572
  %v749 = vunpack.c.h.b16 %v572
  %v750 = vunpack.c.l.b16 %v573
  %v751 = vunpack.c.h.b16 %v573
  %v752 = vunpack.c.l.b16 %v574
  %v753 = vunpack.c.h.b16 %v574
  %v754 = vunpack.c.l.b16 %v575
  %v755 = vunpack.c.h.b16 %v575
  %v756 = vunpack.c.l.b16 %v576
  %v757 = vunpack.c.h.b16 %v576
  %v758 = vunpack.c.l.b16 %v577
  %v759 = vunpack.c.h.b16 %v577
  %v760 = vunpack.c.l.b16 %v578
  %v761 = vunpack.c.h.b16 %v578
  %v762 = vunpack.c.l.b16 %v579
  %v763 = vunpack.c.h.b16 %v579
  %v764 = vunpack.c.l.b16 %v580
  %v765 = vunpack.c.h.b16 %v580
  %v766 = vunpack.c.l.b16 %v581
  %v767 = vunpack.c.h.b16 %v581
  %v768 = vunpack.c.l.b16 %v582
  %v769 = vunpack.c.h.b16 %v582
  %v770 = vunpack.c.l.b16 %v583
  %v771 = vunpack.c.h.b16 %v583
  %v772 = vunpack.c.l.b16 %v584
  %v773 = vunpack.c.h.b16 %v584
  %v774 = vunpack.c.l.b16 %v585
  %v775 = vunpack.c.h.b16 %v585
  %v776 = vunpack.c.l.b16 %v586
  %v777 = vunpack.c.h.b16 %v586
  %v778 = vunpack.c.l.b16 %v587
  %v779 = vunpack.c.h.b16 %v587
  %v780 = vunpack.c.l.b16 %v588
  %v781 = vunpack.c.h.b16 %v588
  %v782 = vunpack.c.l.b16 %v589
  %v783 = vunpack.c.h.b16 %v589
  %v784 = vunpack.c.l.b16 %v590
  %v785 = vunpack.c.h.b16 %v590
  %v786 = vunpack.c.l.b16 %v591
  %v787 = vunpack.c.h.b16 %v591
  %v788 = vunpack.c.l.b16 %v592
  %v789 = vunpack.c.h.b16 %v592
  %v790 = vunpack.c.l.b16 %v593
  %v791 = vunpack.c.h.b16 %v593
  %v792 = vunpack.c.l.b16 %v594
  %v793 = vunpack.c.h.b16 %v594
  %v794 = vunpack.c.l.b16 %v595
  %v795 = vunpack.c.h.b16 %v595
  %v796 = vunpack.c.l.b16 %v596
  %v797 = vunpack.c.h.b16 %v596
  %v798 = vunpack.c.l.b16 %v597
  %v799 = vunpack.c.h.b16 %v597
  %v800 = vunpack.c.l.b16 %v598
  %v801 = vunpack.c.h.b16 %v598
  %v802 = vunpack.c.l.b16 %v599
  %v803 = vunpack.c.h.b16 %v599
  %v804 = vpack.c.b16 %v678, %v676
  %v805 = vpack.c.b16 %v679, %v677
  %v806 = vpack.c.b16 %v682, %v680
  %v807 = vpack.c.b16 %v683, %v681
  %v808 = vpack.c.b16 %v686, %v684
  %v809 = vpack.c.b16 %v687, %v685
  %v810 = vpack.c.b16 %v690, %v688
  %v811 = vpack.c.b16 %v691, %v689
  %v812 = vpack.c.b16 %v694, %v692
  %v813 = vpack.c.b16 %v695, %v693
  %v814 = vpack.c.b16 %v698, %v696
  %v815 = vpack.c.b16 %v699, %v697
  %v816 = vpack.c.b16 %v702, %v700
  %v817 = vpack.c.b16 %v703, %v701
  %v818 = vpack.c.b16 %v706, %v704
  %v819 = vpack.c.b16 %v707, %v705
  %v820 = vpack.c.b16 %v710, %v708
  %v821 = vpack.c.b16 %v711, %v709
  %v822 = vpack.c.b16 %v714, %v712
  %v823 = vpack.c.b16 %v715, %v713
  %v824 = vpack.c.b16 %v718, %v716
  %v825 = vpack.c.b16 %v719, %v717
  %v826 = vpack.c.b16 %v722, %v720
  %v827 = vpack.c.b16 %v723, %v721
  %v828 = vpack.c.b16 %v726, %v724
  %v829 = vpack.c.b16 %v727, %v725
  %v830 = vpack.c.b16 %v730, %v728
  %v831 = vpack.c.b16 %v731, %v729
  %v832 = vpack.c.b16 %v734, %v732
  %v833 = vpack.c.b16 %v735, %v733
  %v834 = vpack.c.b16 %v738, %v736
  %v835 = vpack.c.b16 %v739, %v737
  %v836 = vpack.c.b16 %v742, %v740
  %v837 = vpack.c.b16 %v743, %v741
  %v838 = vpack.c.b16 %v746, %v744
  %v839 = vpack.c.b16 %v747, %v745
  %v840 = vpack.c.b16 %v750, %v748
  %v841 = vpack.c.b16 %v751, %v749
  %v842 = vpack.c.b16 %v754, %v752
  %v843 = vpack.c.b16 %v755, %v753
  %v844 = vpack.c.b16 %v758, %v756
  %v845 = vpack.c.b16 %v759, %v757
  %v846 = vpack.c.b16 %v762, %v760
  %v847 = vpack.c.b16 %v763, %v761
  %v848 = vpack.c.b16 %v766, %v764
  %v849 = vpack.c.b16 %v767, %v765
  %v850 = vpack.c.b16 %v770, %v768
  %v851 = vpack.c.b16 %v771, %v769
  %v852 = vpack.c.b16 %v774, %v772
  %v853 = vpack.c.b16 %v775, %v773
  %v854 = vpack.c.b16 %v778, %v776
  %v855 = vpack.c.b16 %v779, %v777
  %v856 = vpack.c.b16 %v782, %v780
  %v857 = vpack.c.b16 %v783, %v781
  %v858 = vpack.c.b16 %v786, %v784
  %v859 = vpack.c.b16 %v787, %v785
  %v860 = vpack.c.b16 %v790, %v788
  %v861 = vpack.c.b16 %v791, %v789
  %v862 = vpack.c.b16 %v794, %v792
  %v863 = vpack.c.b16 %v795, %v793
  %v864 = vpack.c.b16 %v798, %v796
  %v865 = vpack.c.b16 %v799, %v797
  %v866 = vpack.c.b16 %v802, %v800
  %v867 = vpack.c.b16 %v803, %v801
  %932 = vmatprep.subr.bf16.mxu0 %v805
  %933 = vmatpush1.bf16.msra.mxu0 %v804
  %934 = vmatprep.subr.bf16.mxu0 %v807
  %935 = vmatpush1.bf16.msra.mxu0 %v806
  %936 = vmatprep.subr.bf16.mxu0 %v809
  %937 = vmatpush1.bf16.msra.mxu0 %v808
  %938 = vmatprep.subr.bf16.mxu0 %v811
  %939 = vmatpush1.bf16.msra.mxu0 %v810
  %940 = vmatprep.subr.bf16.mxu0 %v813
  %941 = vmatpush1.bf16.msra.mxu0 %v812
  %942 = vmatprep.subr.bf16.mxu0 %v815
  %943 = vmatpush1.bf16.msra.mxu0 %v814
  %944 = vmatprep.subr.bf16.mxu0 %v817
  %945 = vmatpush1.bf16.msra.mxu0 %v816
  %946 = vmatprep.subr.bf16.mxu0 %v819
  %947 = vmatpush1.bf16.msra.mxu0 %v818
  %948 = vmatprep.subr.bf16.mxu0 %v821
  %949 = vmatpush1.bf16.msra.mxu0 %v820
  %950 = vmatprep.subr.bf16.mxu0 %v823
  %951 = vmatpush1.bf16.msra.mxu0 %v822
  %952 = vmatprep.subr.bf16.mxu0 %v825
  %953 = vmatpush1.bf16.msra.mxu0 %v824
  %954 = vmatprep.subr.bf16.mxu0 %v827
  %955 = vmatpush1.bf16.msra.mxu0 %v826
  %956 = vmatprep.subr.bf16.mxu0 %v829
  %957 = vmatpush1.bf16.msra.mxu0 %v828
  %958 = vmatprep.subr.bf16.mxu0 %v831
  %959 = vmatpush1.bf16.msra.mxu0 %v830
  %960 = vmatprep.subr.bf16.mxu0 %v833
  %961 = vmatpush1.bf16.msra.mxu0 %v832
  %962 = vmatprep.subr.bf16.mxu0 %v835
  %963 = vmatpush1.bf16.msra.mxu0 %v834
  %964 = vmatprep.mubr.bf16.mxu0 %v533
  %965 = vmatmul.mubr.bf16.gmra.mrb[0].mxu0 %v532
  %v966 = vpop.f32.mrb[0].mxu0
  %v967 = vadd.f32 %v605, %v966
  %v968 = vpop.f32.mrb[0].mxu0
  %v969 = vadd.f32 %v609, %v968
  %v970 = vpop.f32.mrb[0].mxu0
  %v971 = vpop.f32.mrb[0].mxu0
  %972 = vdwg.mxu0
  %973 = vmatprep.subr.bf16.mxu0 %v837
  %974 = vmatpush1.bf16.msra.mxu0 %v836
  %975 = vmatprep.subr.bf16.mxu0 %v839
  %976 = vmatpush1.bf16.msra.mxu0 %v838
  %977 = vmatprep.subr.bf16.mxu0 %v841
  %978 = vmatpush1.bf16.msra.mxu0 %v840
  %979 = vmatprep.subr.bf16.mxu0 %v843
  %980 = vmatpush1.bf16.msra.mxu0 %v842
  %981 = vmatprep.subr.bf16.mxu0 %v845
  %982 = vmatpush1.bf16.msra.mxu0 %v844
  %983 = vmatprep.subr.bf16.mxu0 %v847
  %984 = vmatpush1.bf16.msra.mxu0 %v846
  %985 = vmatprep.subr.bf16.mxu0 %v849
  %986 = vmatpush1.bf16.msra.mxu0 %v848
  %987 = vmatprep.subr.bf16.mxu0 %v851
  %988 = vmatpush1.bf16.msra.mxu0 %v850
  %989 = vmatprep.subr.bf16.mxu0 %v853
  %990 = vmatpush1.bf16.msra.mxu0 %v852
  %991 = vmatprep.subr.bf16.mxu0 %v855
  %992 = vmatpush1.bf16.msra.mxu0 %v854
  %993 = vmatprep.subr.bf16.mxu0 %v857
  %994 = vmatpush1.bf16.msra.mxu0 %v856
  %995 = vmatprep.subr.bf16.mxu0 %v859
  %996 = vmatpush1.bf16.msra.mxu0 %v858
  %997 = vmatprep.subr.bf16.mxu0 %v861
  %998 = vmatpush1.bf16.msra.mxu0 %v860
  %999 = vmatprep.subr.bf16.mxu0 %v863
  %1000 = vmatpush1.bf16.msra.mxu0 %v862
  %1001 = vmatprep.subr.bf16.mxu0 %v865
  %1002 = vmatpush1.bf16.msra.mxu0 %v864
  %1003 = vmatprep.subr.bf16.mxu0 %v867
  %1004 = vmatpush1.bf16.msra.mxu0 %v866
  %1005 = vmatprep.mubr.bf16.mxu0 %v535
  %1006 = vmatmul.mubr.bf16.gmra.mrb[0].mxu0 %v534
  %v1007 = vpop.f32.mrb[0].mxu0
  %v1008 = vadd.f32 %v967, %v1007
  %v1009 = vpop.f32.mrb[0].mxu0
  %v1010 = vadd.f32 %v969, %v1009
  %v1011 = vpop.f32.mrb[0].mxu0
  %v1012 = vpop.f32.mrb[0].mxu0
  %1013 = vdwg.mxu0
  %v1014 = vmax.f32 %v1008, 0.0
  %v1015 = vmax.f32 %v1010, 0.0
  %v1016 = vpack.c.bf16 %v1014, %v1014
  %v1017 = vpack.c.bf16 %v1015, %v1015
  %v1018 = vld [vmem:[%s5] sm:$0xf]
  %v1019 = vld [vmem:[%s5 + $0x4] sm:$0xf]
  %v1020 = vld [vmem:[%s5 + $0x8] sm:$0xf]
  %v1021 = vld [vmem:[%s5 + $0xc] sm:$0xf]
  %v1022 = vld [vmem:[%s5 + $0x10] sm:$0xf]
  %v1023 = vld [vmem:[%s5 + $0x14] sm:$0xf]
  %v1024 = vld [vmem:[%s5 + $0x18] sm:$0xf]
  %v1025 = vld [vmem:[%s5 + $0x1c] sm:$0xf]
  %v1026 = vld [vmem:[%s5 + $0x20] sm:$0xf]
  %v1027 = vld [vmem:[%s5 + $0x24] sm:$0xf]
  %v1028 = vld [vmem:[%s5 + $0x28] sm:$0xf]
  %v1029 = vld [vmem:[%s5 + $0x2c] sm:$0xf]
  %v1030 = vld [vmem:[%s5 + $0x30] sm:$0xf]
  %v1031 = vld [vmem:[%s5 + $0x34] sm:$0xf]
  %v1032 = vld [vmem:[%s5 + $0x38] sm:$0xf]
  %v1033 = vld [vmem:[%s5 + $0x3c] sm:$0xf]
  %v1034 = vld [vmem:[%s5 + $0x40] sm:$0xf]
  %v1035 = vld [vmem:[%s5 + $0x44] sm:$0xf]
  %v1036 = vld [vmem:[%s5 + $0x48] sm:$0xf]
  %v1037 = vld [vmem:[%s5 + $0x4c] sm:$0xf]
  %v1038 = vld [vmem:[%s5 + $0x50] sm:$0xf]
  %v1039 = vld [vmem:[%s5 + $0x54] sm:$0xf]
  %v1040 = vld [vmem:[%s5 + $0x58] sm:$0xf]
  %v1041 = vld [vmem:[%s5 + $0x5c] sm:$0xf]
  %v1042 = vld [vmem:[%s5 + $0x60] sm:$0xf]
  %v1043 = vld [vmem:[%s5 + $0x64] sm:$0xf]
  %v1044 = vld [vmem:[%s5 + $0x68] sm:$0xf]
  %v1045 = vld [vmem:[%s5 + $0x6c] sm:$0xf]
  %v1046 = vld [vmem:[%s5 + $0x70] sm:$0xf]
  %v1047 = vld [vmem:[%s5 + $0x74] sm:$0xf]
  %v1048 = vld [vmem:[%s5 + $0x78] sm:$0xf]
  %v1049 = vld [vmem:[%s5 + $0x7c] sm:$0xf]
  %v1050 = vld [vmem:[%s6] sm:$0x1]
  %v1052 = vlaneseq
  %v1053 = vshrl.u32 %v1052, 7
  %v1054 = vsub.s32 0, %v1053
  %v1055 = vrot.slane %v1050, %v1054
  %v1089 = vunpack.c.l.b16 %v1018
  %v1090 = vunpack.c.l.b16 %v1019
  %v1091 = vunpack.c.l.b16 %v1020
  %v1092 = vunpack.c.l.b16 %v1021
  %v1093 = vunpack.c.l.b16 %v1022
  %v1094 = vunpack.c.l.b16 %v1023
  %v1095 = vunpack.c.l.b16 %v1024
  %v1096 = vunpack.c.l.b16 %v1025
  %v1097 = vunpack.c.l.b16 %v1026
  %v1098 = vunpack.c.l.b16 %v1027
  %v1099 = vunpack.c.l.b16 %v1028
  %v1100 = vunpack.c.l.b16 %v1029
  %v1101 = vunpack.c.l.b16 %v1030
  %v1102 = vunpack.c.l.b16 %v1031
  %v1103 = vunpack.c.l.b16 %v1032
  %v1104 = vunpack.c.l.b16 %v1033
  %v1105 = vunpack.c.l.b16 %v1034
  %v1106 = vunpack.c.l.b16 %v1035
  %v1107 = vunpack.c.l.b16 %v1036
  %v1108 = vunpack.c.l.b16 %v1037
  %v1109 = vunpack.c.l.b16 %v1038
  %v1110 = vunpack.c.l.b16 %v1039
  %v1111 = vunpack.c.l.b16 %v1040
  %v1112 = vunpack.c.l.b16 %v1041
  %v1113 = vunpack.c.l.b16 %v1042
  %v1114 = vunpack.c.l.b16 %v1043
  %v1115 = vunpack.c.l.b16 %v1044
  %v1116 = vunpack.c.l.b16 %v1045
  %v1117 = vunpack.c.l.b16 %v1046
  %v1118 = vunpack.c.l.b16 %v1047
  %v1119 = vunpack.c.l.b16 %v1048
  %v1120 = vunpack.c.l.b16 %v1049
  %v1121 = vpack.c.b16 %v1090, %v1089
  %v1122 = vpack.c.b16 %v1092, %v1091
  %v1123 = vpack.c.b16 %v1094, %v1093
  %v1124 = vpack.c.b16 %v1096, %v1095
  %v1125 = vpack.c.b16 %v1098, %v1097
  %v1126 = vpack.c.b16 %v1100, %v1099
  %v1127 = vpack.c.b16 %v1102, %v1101
  %v1128 = vpack.c.b16 %v1104, %v1103
  %v1129 = vpack.c.b16 %v1106, %v1105
  %v1130 = vpack.c.b16 %v1108, %v1107
  %v1131 = vpack.c.b16 %v1110, %v1109
  %v1132 = vpack.c.b16 %v1112, %v1111
  %v1133 = vpack.c.b16 %v1114, %v1113
  %v1134 = vpack.c.b16 %v1116, %v1115
  %v1135 = vpack.c.b16 %v1118, %v1117
  %v1136 = vpack.c.b16 %v1120, %v1119
  %1153 = vmatprep.subr.bf16.mxu0 0
  %1154 = vmatpush1.bf16.msra.mxu0 %v1121
  %1155 = vmatprep.subr.bf16.mxu0 0
  %1156 = vmatpush1.bf16.msra.mxu0 %v1122
  %1157 = vmatprep.subr.bf16.mxu0 0
  %1158 = vmatpush1.bf16.msra.mxu0 %v1123
  %1159 = vmatprep.subr.bf16.mxu0 0
  %1160 = vmatpush1.bf16.msra.mxu0 %v1124
  %1161 = vmatprep.subr.bf16.mxu0 0
  %1162 = vmatpush1.bf16.msra.mxu0 %v1125
  %1163 = vmatprep.subr.bf16.mxu0 0
  %1164 = vmatpush1.bf16.msra.mxu0 %v1126
  %1165 = vmatprep.subr.bf16.mxu0 0
  %1166 = vmatpush1.bf16.msra.mxu0 %v1127
  %1167 = vmatprep.subr.bf16.mxu0 0
  %1168 = vmatpush1.bf16.msra.mxu0 %v1128
  %1169 = vmatprep.subr.bf16.mxu0 0
  %1170 = vmatpush1.bf16.msra.mxu0 %v1129
  %1171 = vmatprep.subr.bf16.mxu0 0
  %1172 = vmatpush1.bf16.msra.mxu0 %v1130
  %1173 = vmatprep.subr.bf16.mxu0 0
  %1174 = vmatpush1.bf16.msra.mxu0 %v1131
  %1175 = vmatprep.subr.bf16.mxu0 0
  %1176 = vmatpush1.bf16.msra.mxu0 %v1132
  %1177 = vmatprep.subr.bf16.mxu0 0
  %1178 = vmatpush1.bf16.msra.mxu0 %v1133
  %1179 = vmatprep.subr.bf16.mxu0 0
  %1180 = vmatpush1.bf16.msra.mxu0 %v1134
  %1181 = vmatprep.subr.bf16.mxu0 0
  %1182 = vmatpush1.bf16.msra.mxu0 %v1135
  %1183 = vmatprep.subr.bf16.mxu0 0
  %1184 = vmatpush1.bf16.msra.mxu0 %v1136
  %1185 = vmatprep.mubr.bf16.mxu0 %v1017
  %1186 = vmatmul.mubr.bf16.gmra.mrb[0].mxu0 %v1016
  %v1187 = vpop.f32.mrb[0].mxu0
  %v1188 = vadd.f32 %v1055, %v1187
  %v1189 = vpop.f32.mrb[0].mxu0
  %v1190 = vpop.f32.mrb[0].mxu0
  %v1191 = vpop.f32.mrb[0].mxu0
  %1192 = vdwg.mxu0
  %v1193 = vmax.f32 %v1188, 0.0
  %v1194 = vpack.c.bf16 %v1193, %v1193
  %v1195 = vld [vmem:[%s7] sm:$0xff]
  %v1196 = vld [vmem:[%s7 + $0x8] sm:$0xf]
  %v1197 = vld [vmem:[%s7 + $0xc] sm:$0xff]
  %v1198 = vld [vmem:[%s7 + $0x14] sm:$0xf]
  %v1199 = vld [vmem:[%s7 + $0x18] sm:$0xff]
  %v1200 = vld [vmem:[%s7 + $0x20] sm:$0xf]
  %v1201 = vld [vmem:[%s7 + $0x24] sm:$0xff]
  %v1202 = vld [vmem:[%s7 + $0x2c] sm:$0xf]
  %v1203 = vld [vmem:[%s7 + $0x30] sm:$0xff]
  %v1204 = vld [vmem:[%s7 + $0x38] sm:$0xf]
  %v1205 = vld [vmem:[%s7 + $0x3c] sm:$0xff]
  %v1206 = vld [vmem:[%s7 + $0x44] sm:$0xf]
  %v1207 = vld [vmem:[%s7 + $0x48] sm:$0xff]
  %v1208 = vld [vmem:[%s7 + $0x50] sm:$0xf]
  %v1209 = vld [vmem:[%s7 + $0x54] sm:$0xff]
  %v1210 = vld [vmem:[%s7 + $0x5c] sm:$0xf]
  %v1211 = vld [vmem:[%s7 + $0x60] sm:$0xff]
  %v1212 = vld [vmem:[%s7 + $0x68] sm:$0xf]
  %v1213 = vld [vmem:[%s7 + $0x6c] sm:$0xff]
  %v1214 = vld [vmem:[%s7 + $0x74] sm:$0xf]
  %v1215 = vld [vmem:[%s7 + $0x78] sm:$0xff]
  %v1216 = vld [vmem:[%s7 + $0x80] sm:$0xf]
  %v1217 = vld [vmem:[%s7 + $0x84] sm:$0xff]
  %v1218 = vld [vmem:[%s7 + $0x8c] sm:$0xf]
  %v1219 = vld [vmem:[%s7 + $0x90] sm:$0xff]
  %v1220 = vld [vmem:[%s7 + $0x98] sm:$0xf]
  %v1221 = vld [vmem:[%s7 + $0x9c] sm:$0xff]
  %v1222 = vld [vmem:[%s7 + $0xa4] sm:$0xf]
  %v1223 = vld [vmem:[%s7 + $0xa8] sm:$0xff]
  %v1224 = vld [vmem:[%s7 + $0xb0] sm:$0xf]
  %v1225 = vld [vmem:[%s7 + $0xb4] sm:$0xff]
  %v1226 = vld [vmem:[%s7 + $0xbc] sm:$0xf]
  %v1227 = vld [vmem:[%s8] sm:$0x7]
  %v1229 = vlaneseq
  %v1230 = vshrl.u32 %v1229, 7
  %v1231 = vsub.s32 0, %v1230
  %v1232 = vrot.slane %v1227, %v1231
  %v1233 = vlaneseq
  %v1234 = vshrl.u32 %v1233, 7
  %v1235 = vsub.s32 1, %v1234
  %v1236 = vrot.slane %v1227, %v1235
  %v1237 = vlaneseq
  %v1238 = vshrl.u32 %v1237, 7
  %v1239 = vsub.s32 2, %v1238
  %v1240 = vrot.slane %v1227, %v1239
  %v1276 = vunpack.c.l.b16 %v1195
  %v1277 = vunpack.c.h.b16 %v1195
  %v1278 = vunpack.c.l.b16 %v1196
  %v1279 = vunpack.c.l.b16 %v1197
  %v1280 = vunpack.c.h.b16 %v1197
  %v1281 = vunpack.c.l.b16 %v1198
  %v1282 = vunpack.c.l.b16 %v1199
  %v1283 = vunpack.c.h.b16 %v1199
  %v1284 = vunpack.c.l.b16 %v1200
  %v1285 = vunpack.c.l.b16 %v1201
  %v1286 = vunpack.c.h.b16 %v1201
  %v1287 = vunpack.c.l.b16 %v1202
  %v1288 = vunpack.c.l.b16 %v1203
  %v1289 = vunpack.c.h.b16 %v1203
  %v1290 = vunpack.c.l.b16 %v1204
  %v1291 = vunpack.c.l.b16 %v1205
  %v1292 = vunpack.c.h.b16 %v1205
  %v1293 = vunpack.c.l.b16 %v1206
  %v1294 = vunpack.c.l.b16 %v1207
  %v1295 = vunpack.c.h.b16 %v1207
  %v1296 = vunpack.c.l.b16 %v1208
  %v1297 = vunpack.c.l.b16 %v1209
  %v1298 = vunpack.c.h.b16 %v1209
  %v1299 = vunpack.c.l.b16 %v1210
  %v1300 = vunpack.c.l.b16 %v1211
  %v1301 = vunpack.c.h.b16 %v1211
  %v1302 = vunpack.c.l.b16 %v1212
  %v1303 = vunpack.c.l.b16 %v1213
  %v1304 = vunpack.c.h.b16 %v1213
  %v1305 = vunpack.c.l.b16 %v1214
  %v1306 = vunpack.c.l.b16 %v1215
  %v1307 = vunpack.c.h.b16 %v1215
  %v1308 = vunpack.c.l.b16 %v1216
  %v1309 = vunpack.c.l.b16 %v1217
  %v1310 = vunpack.c.h.b16 %v1217
  %v1311 = vunpack.c.l.b16 %v1218
  %v1312 = vunpack.c.l.b16 %v1219
  %v1313 = vunpack.c.h.b16 %v1219
  %v1314 = vunpack.c.l.b16 %v1220
  %v1315 = vunpack.c.l.b16 %v1221
  %v1316 = vunpack.c.h.b16 %v1221
  %v1317 = vunpack.c.l.b16 %v1222
  %v1318 = vunpack.c.l.b16 %v1223
  %v1319 = vunpack.c.h.b16 %v1223
  %v1320 = vunpack.c.l.b16 %v1224
  %v1321 = vunpack.c.l.b16 %v1225
  %v1322 = vunpack.c.h.b16 %v1225
  %v1323 = vunpack.c.l.b16 %v1226
  %v1324 = vpack.c.b16 %v1279, %v1276
  %v1325 = vpack.c.b16 %v1280, %v1277
  %v1326 = vpack.c.b16 %v1281, %v1278
  %v1327 = vpack.c.b16 %v1285, %v1282
  %v1328 = vpack.c.b16 %v1286, %v1283
  %v1329 = vpack.c.b16 %v1287, %v1284
  %v1330 = vpack.c.b16 %v1291, %v1288
  %v1331 = vpack.c.b16 %v1292, %v1289
  %v1332 = vpack.c.b16 %v1293, %v1290
  %v1333 = vpack.c.b16 %v1297, %v1294
  %v1334 = vpack.c.b16 %v1298, %v1295
  %v1335 = vpack.c.b16 %v1299, %v1296
  %v1336 = vpack.c.b16 %v1303, %v1300
  %v1337 = vpack.c.b16 %v1304, %v1301
  %v1338 = vpack.c.b16 %v1305, %v1302
  %v1339 = vpack.c.b16 %v1309, %v1306
  %v1340 = vpack.c.b16 %v1310, %v1307
  %v1341 = vpack.c.b16 %v1311, %v1308
  %v1342 = vpack.c.b16 %v1315, %v1312
  %v1343 = vpack.c.b16 %v1316, %v1313
  %v1344 = vpack.c.b16 %v1317, %v1314
  %v1345 = vpack.c.b16 %v1321, %v1318
  %v1346 = vpack.c.b16 %v1322, %v1319
  %v1347 = vpack.c.b16 %v1323, %v1320
  %1372 = vmatprep.subr.bf16.mxu0 %v1325
  %1373 = vmatpush1.bf16.msra.mxu0 %v1324
  %1374 = vmatprep.subr.bf16.mxu0 %v1328
  %1375 = vmatpush1.bf16.msra.mxu0 %v1327
  %1376 = vmatprep.subr.bf16.mxu0 %v1331
  %1377 = vmatpush1.bf16.msra.mxu0 %v1330
  %1378 = vmatprep.subr.bf16.mxu0 %v1334
  %1379 = vmatpush1.bf16.msra.mxu0 %v1333
  %1380 = vmatprep.subr.bf16.mxu0 %v1337
  %1381 = vmatpush1.bf16.msra.mxu0 %v1336
  %1382 = vmatprep.subr.bf16.mxu0 %v1340
  %1383 = vmatpush1.bf16.msra.mxu0 %v1339
  %1384 = vmatprep.subr.bf16.mxu0 %v1343
  %1385 = vmatpush1.bf16.msra.mxu0 %v1342
  %1386 = vmatprep.subr.bf16.mxu0 %v1346
  %1387 = vmatpush1.bf16.msra.mxu0 %v1345
  %1388 = vmatprep.subr.bf16.mxu0 0
  %1389 = vmatpush1.bf16.msra.mxu0 0
  %1390 = vmatprep.subr.bf16.mxu0 0
  %1391 = vmatpush1.bf16.msra.mxu0 0
  %1392 = vmatprep.subr.bf16.mxu0 0
  %1393 = vmatpush1.bf16.msra.mxu0 0
  %1394 = vmatprep.subr.bf16.mxu0 0
  %1395 = vmatpush1.bf16.msra.mxu0 0
  %1396 = vmatprep.subr.bf16.mxu0 0
  %1397 = vmatpush1.bf16.msra.mxu0 0
  %1398 = vmatprep.subr.bf16.mxu0 0
  %1399 = vmatpush1.bf16.msra.mxu0 0
  %1400 = vmatprep.subr.bf16.mxu0 0
  %1401 = vmatpush1.bf16.msra.mxu0 0
  %1402 = vmatprep.subr.bf16.mxu0 0
  %1403 = vmatpush1.bf16.msra.mxu0 0
  %1404 = vmatprep.mubr.bf16.mxu0 0
  %1405 = vmatmul.mubr.bf16.gmra.mrb[0].mxu0 %v1194
  %v1406 = vpop.f32.mrb[0].mxu0
  %v1407 = vadd.f32 %v1232, %v1406
  %v1408 = vpop.f32.mrb[0].mxu0
  %v1409 = vadd.f32 %v1236, %v1408
  %v1410 = vpop.f32.mrb[0].mxu0
  %v1411 = vpop.f32.mrb[0].mxu0
  %1412 = vdwg.mxu0
  %1413 = vmatprep.subr.bf16.mxu0 0
  %1414 = vmatpush1.bf16.msra.mxu0 %v1326
  %1415 = vmatprep.subr.bf16.mxu0 0
  %1416 = vmatpush1.bf16.msra.mxu0 %v1329
  %1417 = vmatprep.subr.bf16.mxu0 0
  %1418 = vmatpush1.bf16.msra.mxu0 %v1332
  %1419 = vmatprep.subr.bf16.mxu0 0
  %1420 = vmatpush1.bf16.msra.mxu0 %v1335
  %1421 = vmatprep.subr.bf16.mxu0 0
  %1422 = vmatpush1.bf16.msra.mxu0 %v1338
  %1423 = vmatprep.subr.bf16.mxu0 0
  %1424 = vmatpush1.bf16.msra.mxu0 %v1341
  %1425 = vmatprep.subr.bf16.mxu0 0
  %1426 = vmatpush1.bf16.msra.mxu0 %v1344
  %1427 = vmatprep.subr.bf16.mxu0 0
  %1428 = vmatpush1.bf16.msra.mxu0 %v1347
  %1429 = vmatprep.subr.bf16.mxu0 0
  %1430 = vmatpush1.bf16.msra.mxu0 0
  %1431 = vmatprep.subr.bf16.mxu0 0
  %1432 = vmatpush1.bf16.msra.mxu0 0
  %1433 = vmatprep.subr.bf16.mxu0 0
  %1434 = vmatpush1.bf16.msra.mxu0 0
  %1435 = vmatprep.subr.bf16.mxu0 0
  %1436 = vmatpush1.bf16.msra.mxu0 0
  %1437 = vmatprep.subr.bf16.mxu0 0
  %1438 = vmatpush1.bf16.msra.mxu0 0
  %1439 = vmatprep.subr.bf16.mxu0 0
  %1440 = vmatpush1.bf16.msra.mxu0 0
  %1441 = vmatprep.subr.bf16.mxu0 0
  %1442 = vmatpush1.bf16.msra.mxu0 0
  %1443 = vmatprep.subr.bf16.mxu0 0
  %1444 = vmatpush1.bf16.msra.mxu0 0
  %1445 = vmatprep.mubr.bf16.mxu0 0
  %1446 = vmatmul.mubr.bf16.gmra.mrb[0].mxu0 %v1194
  %v1447 = vpop.f32.mrb[0].mxu0
  %v1448 = vadd.f32 %v1240, %v1447
  %v1449 = vpop.f32.mrb[0].mxu0
  %v1450 = vpop.f32.mrb[0].mxu0
  %v1451 = vpop.f32.mrb[0].mxu0
  %1452 = vdwg.mxu0
  %1453 = vst [vmem:[%s9] sm:$0xff] %v1407
  %1454 = vst [vmem:[%s9 + $0x8] sm:$0xff] %v1409
  %1455 = vst [vmem:[%s9 + $0x10] sm:$0xff] %v1448
  // Predicated region
  $region38: #{orangenet18_forward.43} parent=0 // pred_check
    _
  $region39: #{orangenet18_forward.43} parent=0 // pred_check_branch
    %1457 = sbr.rel (0) target = $region41
  $region40: #{orangenet18_forward.43} parent=0 // pred_region
    _
  $region41: #{orangenet18_forward.43} parent=0 // pred_fallthru
    _
  // Predicated region
  $region42: #{orangenet18_forward.43} parent=0 // pred_check
    _
  $region43: #{orangenet18_forward.43} parent=0 // pred_check_branch
    %1459 = sbr.rel (0) target = $region45
  $region44: #{orangenet18_forward.43} parent=0 // pred_region
    _
  $region45: #{orangenet18_forward.43} parent=0 // pred_fallthru
    _

</llo_original>
